<compile_context>
chip_gen: v7x
topology: tpu7x:2x2x1
jax: 0.10.0
libtpu: 0.0.40
codegen_flags: <defaults>
</compile_context>

<pallas_src>
import functools

import jax
import jax.numpy as jnp
import numpy as np
from jax.experimental import pallas as pl
from jax.experimental.pallas import tpu as pltpu

PAD = 2  # 3x3 conv, dilation=2, padding=(3-1)//2+1 = 2 -> same spatial size
_DILATED_OFFSETS = (0, 2, 4)  # dilation-2 tap offsets into the padded buffer


def _drdb_kernel(num_dense, growth, c_in, H, W, bt, compute_dtype, *refs):
    """DRDB forward for one block of `bt` batch elements (NHWC).

    refs: x, (w_i, b_i) * num_dense, w1x1, b1x1, out, feat_scratch
    """
    x_ref = refs[0]
    dense_refs = refs[1:1 + 2 * num_dense]
    w1x1_ref = refs[1 + 2 * num_dense]
    b1x1_ref = refs[2 + 2 * num_dense]
    o_ref = refs[3 + 2 * num_dense]
    feat_ref = refs[4 + 2 * num_dense]

    c_total = c_in + num_dense * growth
    Hp, Wp = H + 2 * PAD, W + 2 * PAD
    M = bt * H * W

    # Zero ONLY the 2-wide conv-padding border of the feature scratch.  The
    # interior is fully overwritten every grid step and the border is never
    # written by compute, so this stays correct regardless of how the
    # "parallel" batch-block axis is sharded across TensorCores.
    zeros_row = jnp.zeros((bt, PAD, Wp, c_total), compute_dtype)
    feat_ref[:, 0:PAD, :, :] = zeros_row
    feat_ref[:, PAD + H:Hp, :, :] = zeros_row
    zeros_col = jnp.zeros((bt, H, PAD, c_total), compute_dtype)
    feat_ref[:, PAD:PAD + H, 0:PAD, :] = zeros_col
    feat_ref[:, PAD:PAD + H, PAD + W:Wp, :] = zeros_col

    x = x_ref[...]                                           # (bt, H, W, C)
    feat_ref[:, PAD:PAD + H, PAD:PAD + W, 0:c_in] = x.astype(compute_dtype)

    cin = c_in
    for i in range(num_dense):
        w = dense_refs[2 * i][...]                           # (9, cin, growth)
        bias = dense_refs[2 * i + 1][...]                    # (1, growth) f32

        # No-im2col dilated conv: 9 tap matmuls accumulated in f32.  Each
        # matmul spans all bt batch elements (M = bt*H*W), keeping the small
        # (cin, growth) weight resident and amortizing MXU push/drain.
        acc = jnp.zeros((M, growth), jnp.float32)
        tap = 0
        for ky in _DILATED_OFFSETS:
            for kx in _DILATED_OFFSETS:
                lhs = feat_ref[:, ky:ky + H, kx:kx + W, 0:cin]
                lhs = lhs.reshape(M, cin)
                acc = acc + jnp.dot(lhs, w[tap],
                                    preferred_element_type=jnp.float32)
                tap += 1
        acc = acc + bias

        # Dense concat: append the new `growth` channels in the scratch.
        feat_ref[:, PAD:PAD + H, PAD:PAD + W, cin:cin + growth] = (
            acc.reshape(bt, H, W, growth).astype(compute_dtype))
        cin += growth

    # 1x1 conv over all accumulated channels + residual add, one matmul.
    full = feat_ref[:, PAD:PAD + H, PAD:PAD + W, 0:cin].reshape(M, cin)
    out = jnp.dot(full, w1x1_ref[...],
                  preferred_element_type=jnp.float32) + b1x1_ref[...]
    out = out + x.astype(jnp.float32).reshape(M, c_in)
    o_ref[...] = out.reshape(bt, H, W, c_in).astype(o_ref.dtype)


def _ceil_to(v, m):
    return -(-int(v) // m) * m


def _padded_bytes(shape, dtype):
    """VMEM footprint of one buffer, rounded to TPU (sublane, lane) tiles."""
    itemsize = np.dtype(dtype).itemsize
    sublane = 8 * max(1, 4 // itemsize)        # f32: 8, bf16: 16, int8: 32
    s = [int(d) for d in shape] or [1]
    s[-1] = _ceil_to(s[-1], 128)
    if len(s) >= 2:
        s[-2] = _ceil_to(s[-2], sublane)
    return int(np.prod(s)) * itemsize


def drdb_forward(x_nhwc, dense_params, w1x1, b1x1, *, block_batch=None,
                 compute_dtype=jnp.float32):
    """DRDB forward in NHWC.

    x_nhwc: (B, H, W, C)
    dense_params: list of ((9, cin_i, growth) w, (1, growth) b); taps are
                  row-major (tap = 3*ky + kx), cin_i = C + i*growth.
    w1x1: (C + n*growth, C);  b1x1: (1, C)
    """
    B, H, W, C = x_nhwc.shape
    num_dense = len(dense_params)
    growth = dense_params[0][0].shape[-1] if num_dense else 0
    c_total = C + num_dense * growth
    compute_dtype = np.dtype(compute_dtype)

    # ---- VMEM budget: padded-tile accounting, capped for v7x headroom. ----
    VMEM_CAP = 48 * 1024 * 1024
    HEADROOM = 8 * 1024 * 1024

    def scratch_bytes(bt):
        return _padded_bytes((bt, H + 2 * PAD, W + 2 * PAD, c_total),
                             compute_dtype)

    def io_bytes(bt):
        # input + output blocks, double-buffered by the pipeline.
        return 2 * 2 * _padded_bytes((bt, H, W, C), x_nhwc.dtype)

    # ---- choose block_batch: keep the grid >= 2 steps (two TensorCores on
    #      v7x) while keeping the per-step working set within the budget. ----
    if block_batch is None or block_batch <= 0 or B % block_batch != 0:
        block_batch = 1
        for d in range(1, B + 1):
            if B % d:
                continue
            if B >= 2 and B // d < 2:
                continue
            if scratch_bytes(d) + io_bytes(d) > VMEM_CAP - HEADROOM:
                continue
            block_batch = d
    bt = block_batch

    # Flatten parameters; weights in the compute dtype, biases stay f32.
    inputs = [x_nhwc]
    in_specs = [pl.BlockSpec((bt, H, W, C), lambda b: (b, 0, 0, 0))]
    flat_params = []
    for (w, bias) in dense_params:
        w = w.astype(compute_dtype)
        bias = bias.astype(jnp.float32)
        flat_params += [w, bias]
        in_specs += [pl.BlockSpec(w.shape, lambda b: (0, 0, 0)),
                     pl.BlockSpec(bias.shape, lambda b: (0, 0))]
    w1x1c = w1x1.astype(compute_dtype)
    b1x1c = b1x1.astype(jnp.float32)
    flat_params += [w1x1c, b1x1c]
    in_specs += [pl.BlockSpec(w1x1c.shape, lambda b: (0, 0)),
                 pl.BlockSpec(b1x1c.shape, lambda b: (0, 0))]
    inputs += flat_params

    param_bytes = 2 * sum(_padded_bytes(a.shape, a.dtype) for a in flat_params)
    vmem_limit = min(VMEM_CAP,
                     scratch_bytes(bt) + io_bytes(bt) + param_bytes + HEADROOM)

    kernel = functools.partial(_drdb_kernel, num_dense, growth, C, H, W, bt,
                               compute_dtype)
    return pl.pallas_call(
        kernel,
        out_shape=jax.ShapeDtypeStruct((B, H, W, C), x_nhwc.dtype),
        grid_spec=pltpu.PrefetchScalarGridSpec(
            num_scalar_prefetch=0,
            grid=(B // bt,),
            in_specs=in_specs,
            out_specs=pl.BlockSpec((bt, H, W, C), lambda b: (b, 0, 0, 0)),
            scratch_shapes=[
                pltpu.VMEM((bt, H + 2 * PAD, W + 2 * PAD, c_total),
                           compute_dtype),
            ],
        ),
        compiler_params=pltpu.CompilerParams(
            dimension_semantics=("parallel",),
            vmem_limit_bytes=int(vmem_limit)),
    )(*inputs)


def drdb_reference(x_nhwc, dense_params, w1x1, b1x1):
    """Pure-JAX reference matching the PyTorch DRDB forward (NHWC)."""
    feat = x_nhwc
    for (w, bias) in dense_params:
        cin = feat.shape[-1]
        w_hwio = w.reshape(3, 3, cin, w.shape[-1])
        out = jax.lax.conv_general_dilated(
            feat, w_hwio, window_strides=(1, 1),
            padding=[(PAD, PAD), (PAD, PAD)],
            rhs_dilation=(2, 2),
            dimension_numbers=('NHWC', 'HWIO', 'NHWC'),
            precision=jax.lax.Precision.HIGHEST)
        out = out + bias[0]
        feat = jnp.concatenate([feat, out], axis=-1)
    out = jnp.einsum('bhwc,co->bhwo', feat, w1x1,
                     precision=jax.lax.Precision.HIGHEST) + b1x1[0]
    return x_nhwc + out


if __name__ == "__main__":
    B, C, H, W = 2, 4, 16, 16          # x: NCHW like the PyTorch module
    densenet_num, growth = 2, 4

    key = jax.random.PRNGKey(0)
    keys = jax.random.split(key, 2 * densenet_num + 3)

    x_nchw = jax.random.normal(keys[0], (B, C, H, W), jnp.float32)
    x_nhwc = jnp.transpose(x_nchw, (0, 2, 3, 1))

    # Deterministic synthetic parameters (shapes implied by DRDB.__init__).
    dense_params = []
    cin = C
    ki = 1
    for _ in range(densenet_num):
        w = 0.1 * jax.random.normal(keys[ki], (9, cin, growth), jnp.float32)
        ki += 1
        bias = 0.1 * jax.random.normal(keys[ki], (1, growth), jnp.float32)
        ki += 1
        dense_params.append((w, bias))
        cin += growth
    w1x1 = 0.1 * jax.random.normal(keys[ki], (cin, C), jnp.float32)
    ki += 1
    b1x1 = 0.1 * jax.random.normal(keys[ki], (1, C), jnp.float32)

    ref_nhwc = drdb_reference(x_nhwc, dense_params, w1x1, b1x1)

    # Default auto block_batch (keeps grid >= 2 for the two v7x TensorCores).
    out1 = jax.block_until_ready(
        drdb_forward(x_nhwc, dense_params, w1x1, b1x1))
    np.testing.assert_allclose(np.asarray(out1), np.asarray(ref_nhwc),
                               rtol=1e-3, atol=1e-3)

    # Several batch elements per grid step: one batched matmul per tap/layer.
    out2 = jax.block_until_ready(
        drdb_forward(x_nhwc, dense_params, w1x1, b1x1, block_batch=2))
    np.testing.assert_allclose(np.asarray(out2), np.asarray(ref_nhwc),
                               rtol=1e-3, atol=1e-3)

    # bf16 feature/weight storage (f32 accumulation) — halves store traffic.
    out3 = jax.block_until_ready(
        drdb_forward(x_nhwc, dense_params, w1x1, b1x1,
                     compute_dtype=jnp.bfloat16))
    np.testing.assert_allclose(np.asarray(out3), np.asarray(ref_nhwc),
                               rtol=5e-2, atol=5e-2)

    assert out1.shape == (B, H, W, C)
    _ = jnp.transpose(out1, (0, 3, 1, 2))  # back to PyTorch NCHW if needed
    print("KERNEL_OK")
</pallas_src>

<mosaic_0001>
module attributes {stable_mosaic.version = 11 : i64} {
  func.func @_drdb_kernel(%arg0: i32, %arg1: memref<1x16x16x4xf32, #tpu.memory_space<vmem>>, %arg2: memref<9x4x4xf32, #tpu.memory_space<vmem>>, %arg3: memref<1x4xf32, #tpu.memory_space<vmem>>, %arg4: memref<9x8x4xf32, #tpu.memory_space<vmem>>, %arg5: memref<1x4xf32, #tpu.memory_space<vmem>>, %arg6: memref<12x4xf32, #tpu.memory_space<vmem>>, %arg7: memref<1x4xf32, #tpu.memory_space<vmem>>, %arg8: memref<1x16x16x4xf32, #tpu.memory_space<vmem>>, %arg9: memref<1x20x20x12xf32, #tpu.memory_space<vmem>>) attributes {dimension_semantics = [#tpu.dimension_semantics<parallel>], iteration_bounds = array<i64: 2>, scalar_prefetch = 0 : i64, scratch_operands = 1 : i64, tpu.core_type = #tpu.core_type<tc>, window_params = [{transform_indices = @transform_0, window_bounds = array<i64: 1, 16, 16, 4>}, {pipeline_mode = #tpu.pipeline_mode<synchronous>, transform_indices = @transform_1, window_bounds = array<i64: 9, 4, 4>}, {pipeline_mode = #tpu.pipeline_mode<synchronous>, transform_indices = @transform_2, window_bounds = array<i64: 1, 4>}, {pipeline_mode = #tpu.pipeline_mode<synchronous>, transform_indices = @transform_3, window_bounds = array<i64: 9, 8, 4>}, {pipeline_mode = #tpu.pipeline_mode<synchronous>, transform_indices = @transform_4, window_bounds = array<i64: 1, 4>}, {pipeline_mode = #tpu.pipeline_mode<synchronous>, transform_indices = @transform_5, window_bounds = array<i64: 12, 4>}, {pipeline_mode = #tpu.pipeline_mode<synchronous>, transform_indices = @transform_6, window_bounds = array<i64: 1, 4>}, {transform_indices = @transform_7, window_bounds = array<i64: 1, 16, 16, 4>}]} {
    %cst = arith.constant 0.000000e+00 : f32
    %0 = vector.broadcast %cst : f32 to vector<1x2x20x12xf32>
    %c0 = arith.constant 0 : index
    %c0_0 = arith.constant 0 : index
    %c0_1 = arith.constant 0 : index
    %c0_2 = arith.constant 0 : index
    %1 = vector.load %arg9[%c0, %c0_0, %c0_1, %c0_2] : memref<1x20x20x12xf32, #tpu.memory_space<vmem>>, vector<1x2x20x12xf32>
    tpu.vector_store %arg9[%c0, %c0_0, %c0_1, %c0_2], %0 {strides = array<i32>} : memref<1x20x20x12xf32, #tpu.memory_space<vmem>>, vector<1x2x20x12xf32>,
    %c0_3 = arith.constant 0 : index
    %c18 = arith.constant 18 : index
    %c0_4 = arith.constant 0 : index
    %c0_5 = arith.constant 0 : index
    %2 = vector.load %arg9[%c0_3, %c18, %c0_4, %c0_5] : memref<1x20x20x12xf32, #tpu.memory_space<vmem>>, vector<1x2x20x12xf32>
    tpu.vector_store %arg9[%c0_3, %c18, %c0_4, %c0_5], %0 {strides = array<i32>} : memref<1x20x20x12xf32, #tpu.memory_space<vmem>>, vector<1x2x20x12xf32>,
    %cst_6 = arith.constant 0.000000e+00 : f32
    %3 = vector.broadcast %cst_6 : f32 to vector<1x16x2x12xf32>
    %c0_7 = arith.constant 0 : index
    %c2 = arith.constant 2 : index
    %c0_8 = arith.constant 0 : index
    %c0_9 = arith.constant 0 : index
    %4 = vector.load %arg9[%c0_7, %c2, %c0_8, %c0_9] : memref<1x20x20x12xf32, #tpu.memory_space<vmem>>, vector<1x16x2x12xf32>
    tpu.vector_store %arg9[%c0_7, %c2, %c0_8, %c0_9], %3 {strides = array<i32>} : memref<1x20x20x12xf32, #tpu.memory_space<vmem>>, vector<1x16x2x12xf32>,
    %c0_10 = arith.constant 0 : index
    %c2_11 = arith.constant 2 : index
    %c18_12 = arith.constant 18 : index
    %c0_13 = arith.constant 0 : index
    %5 = vector.load %arg9[%c0_10, %c2_11, %c18_12, %c0_13] : memref<1x20x20x12xf32, #tpu.memory_space<vmem>>, vector<1x16x2x12xf32>
    tpu.vector_store %arg9[%c0_10, %c2_11, %c18_12, %c0_13], %3 {strides = array<i32>} : memref<1x20x20x12xf32, #tpu.memory_space<vmem>>, vector<1x16x2x12xf32>,
    %c0_14 = arith.constant 0 : index
    %c0_15 = arith.constant 0 : index
    %c0_16 = arith.constant 0 : index
    %c0_17 = arith.constant 0 : index
    %6 = vector.load %arg1[%c0_14, %c0_15, %c0_16, %c0_17] : memref<1x16x16x4xf32, #tpu.memory_space<vmem>>, vector<1x16x16x4xf32>
    %c0_18 = arith.constant 0 : index
    %c2_19 = arith.constant 2 : index
    %c2_20 = arith.constant 2 : index
    %c0_21 = arith.constant 0 : index
    %7 = vector.load %arg9[%c0_18, %c2_19, %c2_20, %c0_21] : memref<1x20x20x12xf32, #tpu.memory_space<vmem>>, vector<1x16x16x4xf32>
    tpu.vector_store %arg9[%c0_18, %c2_19, %c2_20, %c0_21], %6 {strides = array<i32>} : memref<1x20x20x12xf32, #tpu.memory_space<vmem>>, vector<1x16x16x4xf32>,
    %c0_22 = arith.constant 0 : index
    %c0_23 = arith.constant 0 : index
    %c0_24 = arith.constant 0 : index
    %8 = vector.load %arg2[%c0_22, %c0_23, %c0_24] : memref<9x4x4xf32, #tpu.memory_space<vmem>>, vector<9x4x4xf32>
    %c0_25 = arith.constant 0 : index
    %c0_26 = arith.constant 0 : index
    %9 = vector.load %arg3[%c0_25, %c0_26] : memref<1x4xf32, #tpu.memory_space<vmem>>, vector<1x4xf32>
    %cst_27 = arith.constant 0.000000e+00 : f32
    %10 = vector.broadcast %cst_27 : f32 to vector<256x4xf32>
    %c0_28 = arith.constant 0 : index
    %c0_29 = arith.constant 0 : index
    %c0_30 = arith.constant 0 : index
    %c0_31 = arith.constant 0 : index
    %11 = vector.load %arg9[%c0_28, %c0_29, %c0_30, %c0_31] : memref<1x20x20x12xf32, #tpu.memory_space<vmem>>, vector<1x16x16x4xf32>
    %12 = vector.shape_cast %11 : vector<1x16x16x4xf32> to vector<256x4xf32>
    %13 = vector.extract_strided_slice %8 {offsets = [0, 0, 0], sizes = [1, 4, 4], strides = [1, 1, 1]} : vector<9x4x4xf32> to vector<1x4x4xf32>
    %14 = vector.shape_cast %13 : vector<1x4x4xf32> to vector<4x4xf32>
    %cst_32 = arith.constant dense<0.000000e+00> : vector<256x4xf32>
    %15 = tpu.matmul %12, %14, %cst_32 {dimension_numbers = #tpu.dot_dimension_numbers<[1], [0], [0], [1], [0, 0, 1, 1], [], []>} : vector<256x4xf32>, vector<4x4xf32>, vector<256x4xf32> -> vector<256x4xf32>
    %16 = arith.addf %10, %15 : vector<256x4xf32>
    %c0_33 = arith.constant 0 : index
    %c0_34 = arith.constant 0 : index
    %c2_35 = arith.constant 2 : index
    %c0_36 = arith.constant 0 : index
    %17 = vector.load %arg9[%c0_33, %c0_34, %c2_35, %c0_36] : memref<1x20x20x12xf32, #tpu.memory_space<vmem>>, vector<1x16x16x4xf32>
    %18 = vector.shape_cast %17 : vector<1x16x16x4xf32> to vector<256x4xf32>
    %19 = vector.extract_strided_slice %8 {offsets = [1, 0, 0], sizes = [1, 4, 4], strides = [1, 1, 1]} : vector<9x4x4xf32> to vector<1x4x4xf32>
    %20 = vector.shape_cast %19 : vector<1x4x4xf32> to vector<4x4xf32>
    %cst_37 = arith.constant dense<0.000000e+00> : vector<256x4xf32>
    %21 = tpu.matmul %18, %20, %cst_37 {dimension_numbers = #tpu.dot_dimension_numbers<[1], [0], [0], [1], [0, 0, 1, 1], [], []>} : vector<256x4xf32>, vector<4x4xf32>, vector<256x4xf32> -> vector<256x4xf32>
    %22 = arith.addf %16, %21 : vector<256x4xf32>
    %c0_38 = arith.constant 0 : index
    %c0_39 = arith.constant 0 : index
    %c4 = arith.constant 4 : index
    %c0_40 = arith.constant 0 : index
    %23 = vector.load %arg9[%c0_38, %c0_39, %c4, %c0_40] : memref<1x20x20x12xf32, #tpu.memory_space<vmem>>, vector<1x16x16x4xf32>
    %24 = vector.shape_cast %23 : vector<1x16x16x4xf32> to vector<256x4xf32>
    %25 = vector.extract_strided_slice %8 {offsets = [2, 0, 0], sizes = [1, 4, 4], strides = [1, 1, 1]} : vector<9x4x4xf32> to vector<1x4x4xf32>
    %26 = vector.shape_cast %25 : vector<1x4x4xf32> to vector<4x4xf32>
    %cst_41 = arith.constant dense<0.000000e+00> : vector<256x4xf32>
    %27 = tpu.matmul %24, %26, %cst_41 {dimension_numbers = #tpu.dot_dimension_numbers<[1], [0], [0], [1], [0, 0, 1, 1], [], []>} : vector<256x4xf32>, vector<4x4xf32>, vector<256x4xf32> -> vector<256x4xf32>
    %28 = arith.addf %22, %27 : vector<256x4xf32>
    %c0_42 = arith.constant 0 : index
    %c2_43 = arith.constant 2 : index
    %c0_44 = arith.constant 0 : index
    %c0_45 = arith.constant 0 : index
    %29 = vector.load %arg9[%c0_42, %c2_43, %c0_44, %c0_45] : memref<1x20x20x12xf32, #tpu.memory_space<vmem>>, vector<1x16x16x4xf32>
    %30 = vector.shape_cast %29 : vector<1x16x16x4xf32> to vector<256x4xf32>
    %31 = vector.extract_strided_slice %8 {offsets = [3, 0, 0], sizes = [1, 4, 4], strides = [1, 1, 1]} : vector<9x4x4xf32> to vector<1x4x4xf32>
    %32 = vector.shape_cast %31 : vector<1x4x4xf32> to vector<4x4xf32>
    %cst_46 = arith.constant dense<0.000000e+00> : vector<256x4xf32>
    %33 = tpu.matmul %30, %32, %cst_46 {dimension_numbers = #tpu.dot_dimension_numbers<[1], [0], [0], [1], [0, 0, 1, 1], [], []>} : vector<256x4xf32>, vector<4x4xf32>, vector<256x4xf32> -> vector<256x4xf32>
    %34 = arith.addf %28, %33 : vector<256x4xf32>
    %c0_47 = arith.constant 0 : index
    %c2_48 = arith.constant 2 : index
    %c2_49 = arith.constant 2 : index
    %c0_50 = arith.constant 0 : index
    %35 = vector.load %arg9[%c0_47, %c2_48, %c2_49, %c0_50] : memref<1x20x20x12xf32, #tpu.memory_space<vmem>>, vector<1x16x16x4xf32>
    %36 = vector.shape_cast %35 : vector<1x16x16x4xf32> to vector<256x4xf32>
    %37 = vector.extract_strided_slice %8 {offsets = [4, 0, 0], sizes = [1, 4, 4], strides = [1, 1, 1]} : vector<9x4x4xf32> to vector<1x4x4xf32>
    %38 = vector.shape_cast %37 : vector<1x4x4xf32> to vector<4x4xf32>
    %cst_51 = arith.constant dense<0.000000e+00> : vector<256x4xf32>
    %39 = tpu.matmul %36, %38, %cst_51 {dimension_numbers = #tpu.dot_dimension_numbers<[1], [0], [0], [1], [0, 0, 1, 1], [], []>} : vector<256x4xf32>, vector<4x4xf32>, vector<256x4xf32> -> vector<256x4xf32>
    %40 = arith.addf %34, %39 : vector<256x4xf32>
    %c0_52 = arith.constant 0 : index
    %c2_53 = arith.constant 2 : index
    %c4_54 = arith.constant 4 : index
    %c0_55 = arith.constant 0 : index
    %41 = vector.load %arg9[%c0_52, %c2_53, %c4_54, %c0_55] : memref<1x20x20x12xf32, #tpu.memory_space<vmem>>, vector<1x16x16x4xf32>
    %42 = vector.shape_cast %41 : vector<1x16x16x4xf32> to vector<256x4xf32>
    %43 = vector.extract_strided_slice %8 {offsets = [5, 0, 0], sizes = [1, 4, 4], strides = [1, 1, 1]} : vector<9x4x4xf32> to vector<1x4x4xf32>
    %44 = vector.shape_cast %43 : vector<1x4x4xf32> to vector<4x4xf32>
    %cst_56 = arith.constant dense<0.000000e+00> : vector<256x4xf32>
    %45 = tpu.matmul %42, %44, %cst_56 {dimension_numbers = #tpu.dot_dimension_numbers<[1], [0], [0], [1], [0, 0, 1, 1], [], []>} : vector<256x4xf32>, vector<4x4xf32>, vector<256x4xf32> -> vector<256x4xf32>
    %46 = arith.addf %40, %45 : vector<256x4xf32>
    %c0_57 = arith.constant 0 : index
    %c4_58 = arith.constant 4 : index
    %c0_59 = arith.constant 0 : index
    %c0_60 = arith.constant 0 : index
    %47 = vector.load %arg9[%c0_57, %c4_58, %c0_59, %c0_60] : memref<1x20x20x12xf32, #tpu.memory_space<vmem>>, vector<1x16x16x4xf32>
    %48 = vector.shape_cast %47 : vector<1x16x16x4xf32> to vector<256x4xf32>
    %49 = vector.extract_strided_slice %8 {offsets = [6, 0, 0], sizes = [1, 4, 4], strides = [1, 1, 1]} : vector<9x4x4xf32> to vector<1x4x4xf32>
    %50 = vector.shape_cast %49 : vector<1x4x4xf32> to vector<4x4xf32>
    %cst_61 = arith.constant dense<0.000000e+00> : vector<256x4xf32>
    %51 = tpu.matmul %48, %50, %cst_61 {dimension_numbers = #tpu.dot_dimension_numbers<[1], [0], [0], [1], [0, 0, 1, 1], [], []>} : vector<256x4xf32>, vector<4x4xf32>, vector<256x4xf32> -> vector<256x4xf32>
    %52 = arith.addf %46, %51 : vector<256x4xf32>
    %c0_62 = arith.constant 0 : index
    %c4_63 = arith.constant 4 : index
    %c2_64 = arith.constant 2 : index
    %c0_65 = arith.constant 0 : index
    %53 = vector.load %arg9[%c0_62, %c4_63, %c2_64, %c0_65] : memref<1x20x20x12xf32, #tpu.memory_space<vmem>>, vector<1x16x16x4xf32>
    %54 = vector.shape_cast %53 : vector<1x16x16x4xf32> to vector<256x4xf32>
    %55 = vector.extract_strided_slice %8 {offsets = [7, 0, 0], sizes = [1, 4, 4], strides = [1, 1, 1]} : vector<9x4x4xf32> to vector<1x4x4xf32>
    %56 = vector.shape_cast %55 : vector<1x4x4xf32> to vector<4x4xf32>
    %cst_66 = arith.constant dense<0.000000e+00> : vector<256x4xf32>
    %57 = tpu.matmul %54, %56, %cst_66 {dimension_numbers = #tpu.dot_dimension_numbers<[1], [0], [0], [1], [0, 0, 1, 1], [], []>} : vector<256x4xf32>, vector<4x4xf32>, vector<256x4xf32> -> vector<256x4xf32>
    %58 = arith.addf %52, %57 : vector<256x4xf32>
    %c0_67 = arith.constant 0 : index
    %c4_68 = arith.constant 4 : index
    %c4_69 = arith.constant 4 : index
    %c0_70 = arith.constant 0 : index
    %59 = vector.load %arg9[%c0_67, %c4_68, %c4_69, %c0_70] : memref<1x20x20x12xf32, #tpu.memory_space<vmem>>, vector<1x16x16x4xf32>
    %60 = vector.shape_cast %59 : vector<1x16x16x4xf32> to vector<256x4xf32>
    %61 = vector.extract_strided_slice %8 {offsets = [8, 0, 0], sizes = [1, 4, 4], strides = [1, 1, 1]} : vector<9x4x4xf32> to vector<1x4x4xf32>
    %62 = vector.shape_cast %61 : vector<1x4x4xf32> to vector<4x4xf32>
    %cst_71 = arith.constant dense<0.000000e+00> : vector<256x4xf32>
    %63 = tpu.matmul %60, %62, %cst_71 {dimension_numbers = #tpu.dot_dimension_numbers<[1], [0], [0], [1], [0, 0, 1, 1], [], []>} : vector<256x4xf32>, vector<4x4xf32>, vector<256x4xf32> -> vector<256x4xf32>
    %64 = arith.addf %58, %63 : vector<256x4xf32>
    %65 = vector.broadcast %9 : vector<1x4xf32> to vector<256x4xf32>
    %66 = arith.addf %64, %65 : vector<256x4xf32>
    %67 = vector.shape_cast %66 : vector<256x4xf32> to vector<1x16x16x4xf32>
    %c0_72 = arith.constant 0 : index
    %c2_73 = arith.constant 2 : index
    %c2_74 = arith.constant 2 : index
    %c4_75 = arith.constant 4 : index
    %68 = vector.load %arg9[%c0_72, %c2_73, %c2_74, %c4_75] : memref<1x20x20x12xf32, #tpu.memory_space<vmem>>, vector<1x16x16x4xf32>
    tpu.vector_store %arg9[%c0_72, %c2_73, %c2_74, %c4_75], %67 {strides = array<i32>} : memref<1x20x20x12xf32, #tpu.memory_space<vmem>>, vector<1x16x16x4xf32>,
    %c0_76 = arith.constant 0 : index
    %c0_77 = arith.constant 0 : index
    %c0_78 = arith.constant 0 : index
    %69 = vector.load %arg4[%c0_76, %c0_77, %c0_78] : memref<9x8x4xf32, #tpu.memory_space<vmem>>, vector<9x8x4xf32>
    %c0_79 = arith.constant 0 : index
    %c0_80 = arith.constant 0 : index
    %70 = vector.load %arg5[%c0_79, %c0_80] : memref<1x4xf32, #tpu.memory_space<vmem>>, vector<1x4xf32>
    %cst_81 = arith.constant 0.000000e+00 : f32
    %71 = vector.broadcast %cst_81 : f32 to vector<256x4xf32>
    %c0_82 = arith.constant 0 : index
    %c0_83 = arith.constant 0 : index
    %c0_84 = arith.constant 0 : index
    %c0_85 = arith.constant 0 : index
    %72 = vector.load %arg9[%c0_82, %c0_83, %c0_84, %c0_85] : memref<1x20x20x12xf32, #tpu.memory_space<vmem>>, vector<1x16x16x8xf32>
    %73 = vector.shape_cast %72 : vector<1x16x16x8xf32> to vector<256x8xf32>
    %74 = vector.extract_strided_slice %69 {offsets = [0, 0, 0], sizes = [1, 8, 4], strides = [1, 1, 1]} : vector<9x8x4xf32> to vector<1x8x4xf32>
    %75 = vector.shape_cast %74 : vector<1x8x4xf32> to vector<8x4xf32>
    %cst_86 = arith.constant dense<0.000000e+00> : vector<256x4xf32>
    %76 = tpu.matmul %73, %75, %cst_86 {dimension_numbers = #tpu.dot_dimension_numbers<[1], [0], [0], [1], [0, 0, 1, 1], [], []>} : vector<256x8xf32>, vector<8x4xf32>, vector<256x4xf32> -> vector<256x4xf32>
    %77 = arith.addf %71, %76 : vector<256x4xf32>
    %c0_87 = arith.constant 0 : index
    %c0_88 = arith.constant 0 : index
    %c2_89 = arith.constant 2 : index
    %c0_90 = arith.constant 0 : index
    %78 = vector.load %arg9[%c0_87, %c0_88, %c2_89, %c0_90] : memref<1x20x20x12xf32, #tpu.memory_space<vmem>>, vector<1x16x16x8xf32>
    %79 = vector.shape_cast %78 : vector<1x16x16x8xf32> to vector<256x8xf32>
    %80 = vector.extract_strided_slice %69 {offsets = [1, 0, 0], sizes = [1, 8, 4], strides = [1, 1, 1]} : vector<9x8x4xf32> to vector<1x8x4xf32>
    %81 = vector.shape_cast %80 : vector<1x8x4xf32> to vector<8x4xf32>
    %cst_91 = arith.constant dense<0.000000e+00> : vector<256x4xf32>
    %82 = tpu.matmul %79, %81, %cst_91 {dimension_numbers = #tpu.dot_dimension_numbers<[1], [0], [0], [1], [0, 0, 1, 1], [], []>} : vector<256x8xf32>, vector<8x4xf32>, vector<256x4xf32> -> vector<256x4xf32>
    %83 = arith.addf %77, %82 : vector<256x4xf32>
    %c0_92 = arith.constant 0 : index
    %c0_93 = arith.constant 0 : index
    %c4_94 = arith.constant 4 : index
    %c0_95 = arith.constant 0 : index
    %84 = vector.load %arg9[%c0_92, %c0_93, %c4_94, %c0_95] : memref<1x20x20x12xf32, #tpu.memory_space<vmem>>, vector<1x16x16x8xf32>
    %85 = vector.shape_cast %84 : vector<1x16x16x8xf32> to vector<256x8xf32>
    %86 = vector.extract_strided_slice %69 {offsets = [2, 0, 0], sizes = [1, 8, 4], strides = [1, 1, 1]} : vector<9x8x4xf32> to vector<1x8x4xf32>
    %87 = vector.shape_cast %86 : vector<1x8x4xf32> to vector<8x4xf32>
    %cst_96 = arith.constant dense<0.000000e+00> : vector<256x4xf32>
    %88 = tpu.matmul %85, %87, %cst_96 {dimension_numbers = #tpu.dot_dimension_numbers<[1], [0], [0], [1], [0, 0, 1, 1], [], []>} : vector<256x8xf32>, vector<8x4xf32>, vector<256x4xf32> -> vector<256x4xf32>
    %89 = arith.addf %83, %88 : vector<256x4xf32>
    %c0_97 = arith.constant 0 : index
    %c2_98 = arith.constant 2 : index
    %c0_99 = arith.constant 0 : index
    %c0_100 = arith.constant 0 : index
    %90 = vector.load %arg9[%c0_97, %c2_98, %c0_99, %c0_100] : memref<1x20x20x12xf32, #tpu.memory_space<vmem>>, vector<1x16x16x8xf32>
    %91 = vector.shape_cast %90 : vector<1x16x16x8xf32> to vector<256x8xf32>
    %92 = vector.extract_strided_slice %69 {offsets = [3, 0, 0], sizes = [1, 8, 4], strides = [1, 1, 1]} : vector<9x8x4xf32> to vector<1x8x4xf32>
    %93 = vector.shape_cast %92 : vector<1x8x4xf32> to vector<8x4xf32>
    %cst_101 = arith.constant dense<0.000000e+00> : vector<256x4xf32>
    %94 = tpu.matmul %91, %93, %cst_101 {dimension_numbers = #tpu.dot_dimension_numbers<[1], [0], [0], [1], [0, 0, 1, 1], [], []>} : vector<256x8xf32>, vector<8x4xf32>, vector<256x4xf32> -> vector<256x4xf32>
    %95 = arith.addf %89, %94 : vector<256x4xf32>
    %c0_102 = arith.constant 0 : index
    %c2_103 = arith.constant 2 : index
    %c2_104 = arith.constant 2 : index
    %c0_105 = arith.constant 0 : index
    %96 = vector.load %arg9[%c0_102, %c2_103, %c2_104, %c0_105] : memref<1x20x20x12xf32, #tpu.memory_space<vmem>>, vector<1x16x16x8xf32>
    %97 = vector.shape_cast %96 : vector<1x16x16x8xf32> to vector<256x8xf32>
    %98 = vector.extract_strided_slice %69 {offsets = [4, 0, 0], sizes = [1, 8, 4], strides = [1, 1, 1]} : vector<9x8x4xf32> to vector<1x8x4xf32>
    %99 = vector.shape_cast %98 : vector<1x8x4xf32> to vector<8x4xf32>
    %cst_106 = arith.constant dense<0.000000e+00> : vector<256x4xf32>
    %100 = tpu.matmul %97, %99, %cst_106 {dimension_numbers = #tpu.dot_dimension_numbers<[1], [0], [0], [1], [0, 0, 1, 1], [], []>} : vector<256x8xf32>, vector<8x4xf32>, vector<256x4xf32> -> vector<256x4xf32>
    %101 = arith.addf %95, %100 : vector<256x4xf32>
    %c0_107 = arith.constant 0 : index
    %c2_108 = arith.constant 2 : index
    %c4_109 = arith.constant 4 : index
    %c0_110 = arith.constant 0 : index
    %102 = vector.load %arg9[%c0_107, %c2_108, %c4_109, %c0_110] : memref<1x20x20x12xf32, #tpu.memory_space<vmem>>, vector<1x16x16x8xf32>
    %103 = vector.shape_cast %102 : vector<1x16x16x8xf32> to vector<256x8xf32>
    %104 = vector.extract_strided_slice %69 {offsets = [5, 0, 0], sizes = [1, 8, 4], strides = [1, 1, 1]} : vector<9x8x4xf32> to vector<1x8x4xf32>
    %105 = vector.shape_cast %104 : vector<1x8x4xf32> to vector<8x4xf32>
    %cst_111 = arith.constant dense<0.000000e+00> : vector<256x4xf32>
    %106 = tpu.matmul %103, %105, %cst_111 {dimension_numbers = #tpu.dot_dimension_numbers<[1], [0], [0], [1], [0, 0, 1, 1], [], []>} : vector<256x8xf32>, vector<8x4xf32>, vector<256x4xf32> -> vector<256x4xf32>
    %107 = arith.addf %101, %106 : vector<256x4xf32>
    %c0_112 = arith.constant 0 : index
    %c4_113 = arith.constant 4 : index
    %c0_114 = arith.constant 0 : index
    %c0_115 = arith.constant 0 : index
    %108 = vector.load %arg9[%c0_112, %c4_113, %c0_114, %c0_115] : memref<1x20x20x12xf32, #tpu.memory_space<vmem>>, vector<1x16x16x8xf32>
    %109 = vector.shape_cast %108 : vector<1x16x16x8xf32> to vector<256x8xf32>
    %110 = vector.extract_strided_slice %69 {offsets = [6, 0, 0], sizes = [1, 8, 4], strides = [1, 1, 1]} : vector<9x8x4xf32> to vector<1x8x4xf32>
    %111 = vector.shape_cast %110 : vector<1x8x4xf32> to vector<8x4xf32>
    %cst_116 = arith.constant dense<0.000000e+00> : vector<256x4xf32>
    %112 = tpu.matmul %109, %111, %cst_116 {dimension_numbers = #tpu.dot_dimension_numbers<[1], [0], [0], [1], [0, 0, 1, 1], [], []>} : vector<256x8xf32>, vector<8x4xf32>, vector<256x4xf32> -> vector<256x4xf32>
    %113 = arith.addf %107, %112 : vector<256x4xf32>
    %c0_117 = arith.constant 0 : index
    %c4_118 = arith.constant 4 : index
    %c2_119 = arith.constant 2 : index
    %c0_120 = arith.constant 0 : index
    %114 = vector.load %arg9[%c0_117, %c4_118, %c2_119, %c0_120] : memref<1x20x20x12xf32, #tpu.memory_space<vmem>>, vector<1x16x16x8xf32>
    %115 = vector.shape_cast %114 : vector<1x16x16x8xf32> to vector<256x8xf32>
    %116 = vector.extract_strided_slice %69 {offsets = [7, 0, 0], sizes = [1, 8, 4], strides = [1, 1, 1]} : vector<9x8x4xf32> to vector<1x8x4xf32>
    %117 = vector.shape_cast %116 : vector<1x8x4xf32> to vector<8x4xf32>
    %cst_121 = arith.constant dense<0.000000e+00> : vector<256x4xf32>
    %118 = tpu.matmul %115, %117, %cst_121 {dimension_numbers = #tpu.dot_dimension_numbers<[1], [0], [0], [1], [0, 0, 1, 1], [], []>} : vector<256x8xf32>, vector<8x4xf32>, vector<256x4xf32> -> vector<256x4xf32>
    %119 = arith.addf %113, %118 : vector<256x4xf32>
    %c0_122 = arith.constant 0 : index
    %c4_123 = arith.constant 4 : index
    %c4_124 = arith.constant 4 : index
    %c0_125 = arith.constant 0 : index
    %120 = vector.load %arg9[%c0_122, %c4_123, %c4_124, %c0_125] : memref<1x20x20x12xf32, #tpu.memory_space<vmem>>, vector<1x16x16x8xf32>
    %121 = vector.shape_cast %120 : vector<1x16x16x8xf32> to vector<256x8xf32>
    %122 = vector.extract_strided_slice %69 {offsets = [8, 0, 0], sizes = [1, 8, 4], strides = [1, 1, 1]} : vector<9x8x4xf32> to vector<1x8x4xf32>
    %123 = vector.shape_cast %122 : vector<1x8x4xf32> to vector<8x4xf32>
    %cst_126 = arith.constant dense<0.000000e+00> : vector<256x4xf32>
    %124 = tpu.matmul %121, %123, %cst_126 {dimension_numbers = #tpu.dot_dimension_numbers<[1], [0], [0], [1], [0, 0, 1, 1], [], []>} : vector<256x8xf32>, vector<8x4xf32>, vector<256x4xf32> -> vector<256x4xf32>
    %125 = arith.addf %119, %124 : vector<256x4xf32>
    %126 = vector.broadcast %70 : vector<1x4xf32> to vector<256x4xf32>
    %127 = arith.addf %125, %126 : vector<256x4xf32>
    %128 = vector.shape_cast %127 : vector<256x4xf32> to vector<1x16x16x4xf32>
    %c0_127 = arith.constant 0 : index
    %c2_128 = arith.constant 2 : index
    %c2_129 = arith.constant 2 : index
    %c8 = arith.constant 8 : index
    %129 = vector.load %arg9[%c0_127, %c2_128, %c2_129, %c8] : memref<1x20x20x12xf32, #tpu.memory_space<vmem>>, vector<1x16x16x4xf32>
    tpu.vector_store %arg9[%c0_127, %c2_128, %c2_129, %c8], %128 {strides = array<i32>} : memref<1x20x20x12xf32, #tpu.memory_space<vmem>>, vector<1x16x16x4xf32>,
    %c0_130 = arith.constant 0 : index
    %c2_131 = arith.constant 2 : index
    %c2_132 = arith.constant 2 : index
    %c0_133 = arith.constant 0 : index
    %130 = vector.load %arg9[%c0_130, %c2_131, %c2_132, %c0_133] : memref<1x20x20x12xf32, #tpu.memory_space<vmem>>, vector<1x16x16x12xf32>
    %131 = vector.shape_cast %130 : vector<1x16x16x12xf32> to vector<256x12xf32>
    %c0_134 = arith.constant 0 : index
    %c0_135 = arith.constant 0 : index
    %132 = vector.load %arg6[%c0_134, %c0_135] : memref<12x4xf32, #tpu.memory_space<vmem>>, vector<12x4xf32>
    %cst_136 = arith.constant dense<0.000000e+00> : vector<256x4xf32>
    %133 = tpu.matmul %131, %132, %cst_136 {dimension_numbers = #tpu.dot_dimension_numbers<[1], [0], [0], [1], [0, 0, 1, 1], [], []>} : vector<256x12xf32>, vector<12x4xf32>, vector<256x4xf32> -> vector<256x4xf32>
    %c0_137 = arith.constant 0 : index
    %c0_138 = arith.constant 0 : index
    %134 = vector.load %arg7[%c0_137, %c0_138] : memref<1x4xf32, #tpu.memory_space<vmem>>, vector<1x4xf32>
    %135 = vector.broadcast %134 : vector<1x4xf32> to vector<256x4xf32>
    %136 = arith.addf %133, %135 : vector<256x4xf32>
    %137 = vector.shape_cast %6 : vector<1x16x16x4xf32> to vector<256x4xf32>
    %138 = arith.addf %136, %137 : vector<256x4xf32>
    %139 = vector.shape_cast %138 : vector<256x4xf32> to vector<1x16x16x4xf32>
    %c0_139 = arith.constant 0 : index
    %c0_140 = arith.constant 0 : index
    %c0_141 = arith.constant 0 : index
    %c0_142 = arith.constant 0 : index
    %140 = vector.load %arg8[%c0_139, %c0_140, %c0_141, %c0_142] : memref<1x16x16x4xf32, #tpu.memory_space<vmem>>, vector<1x16x16x4xf32>
    tpu.vector_store %arg8[%c0_139, %c0_140, %c0_141, %c0_142], %139 {strides = array<i32>} : memref<1x16x16x4xf32, #tpu.memory_space<vmem>>, vector<1x16x16x4xf32>,
    return
  }
  func.func @transform_0(%arg0: i32) -> (i32, i32, i32, i32) {
    %c0_i32 = arith.constant 0 : i32
    %c0_i32_0 = arith.constant 0 : i32
    %c0_i32_1 = arith.constant 0 : i32
    %c0_i32_2 = arith.constant 0 : i32
    return %arg0, %c0_i32, %c0_i32_0, %c0_i32_1 : i32, i32, i32, i32
  }
  func.func @transform_1(%arg0: i32) -> (i32, i32, i32) {
    %c0_i32 = arith.constant 0 : i32
    %c0_i32_0 = arith.constant 0 : i32
    %c0_i32_1 = arith.constant 0 : i32
    %c0_i32_2 = arith.constant 0 : i32
    return %c0_i32, %c0_i32_0, %c0_i32_1 : i32, i32, i32
  }
  func.func @transform_2(%arg0: i32) -> (i32, i32) {
    %c0_i32 = arith.constant 0 : i32
    %c0_i32_0 = arith.constant 0 : i32
    %c0_i32_1 = arith.constant 0 : i32
    return %c0_i32, %c0_i32_0 : i32, i32
  }
  func.func @transform_3(%arg0: i32) -> (i32, i32, i32) {
    %c0_i32 = arith.constant 0 : i32
    %c0_i32_0 = arith.constant 0 : i32
    %c0_i32_1 = arith.constant 0 : i32
    %c0_i32_2 = arith.constant 0 : i32
    return %c0_i32, %c0_i32_0, %c0_i32_1 : i32, i32, i32
  }
  func.func @transform_4(%arg0: i32) -> (i32, i32) {
    %c0_i32 = arith.constant 0 : i32
    %c0_i32_0 = arith.constant 0 : i32
    %c0_i32_1 = arith.constant 0 : i32
    return %c0_i32, %c0_i32_0 : i32, i32
  }
  func.func @transform_5(%arg0: i32) -> (i32, i32) {
    %c0_i32 = arith.constant 0 : i32
    %c0_i32_0 = arith.constant 0 : i32
    %c0_i32_1 = arith.constant 0 : i32
    return %c0_i32, %c0_i32_0 : i32, i32
  }
  func.func @transform_6(%arg0: i32) -> (i32, i32) {
    %c0_i32 = arith.constant 0 : i32
    %c0_i32_0 = arith.constant 0 : i32
    %c0_i32_1 = arith.constant 0 : i32
    return %c0_i32, %c0_i32_0 : i32, i32
  }
  func.func @transform_7(%arg0: i32) -> (i32, i32, i32, i32) {
    %c0_i32 = arith.constant 0 : i32
    %c0_i32_0 = arith.constant 0 : i32
    %c0_i32_1 = arith.constant 0 : i32
    %c0_i32_2 = arith.constant 0 : i32
    return %arg0, %c0_i32, %c0_i32_0, %c0_i32_1 : i32, i32, i32, i32
  }
}

</mosaic_0001>

<llo_original>
// kernel: tpu_custom_call.1
$region0: #{tpu_custom_call.1}
  #allocation0 [shape = 'u32[]', space=smem, size = 0x4, offset = 0x4, fixed_abs, tag = 'smem constant byte address 0x4 - core index']
  #allocation1 [shape = 'u32[144,128]{1,0:T(1,128)}', space=vmem, size = 0x12000, scoped, tag = 'internal scratch']
  #allocation2 [shape = 'f32[1,20,20,12]{3,2,1,0:T(8,128)}', space=vmem, size = 0x3c000, scoped, tag = 'scratch operand']
  %s0 = inlined_call_operand.vmem [shape: f32[2,16,16,4], index: 0, kind: input, shape index: {}]
  %s1 = inlined_call_operand.vmem [shape: f32[9,4,4], index: 1, kind: input, shape index: {}]
  %s2 = inlined_call_operand.vmem [shape: f32[1,4], index: 2, kind: input, shape index: {}]
  %s3 = inlined_call_operand.vmem [shape: f32[9,8,4], index: 3, kind: input, shape index: {}]
  %s4 = inlined_call_operand.vmem [shape: f32[1,4], index: 4, kind: input, shape index: {}]
  %s5 = inlined_call_operand.vmem [shape: f32[12,4], index: 5, kind: input, shape index: {}]
  %s6 = inlined_call_operand.vmem [shape: f32[1,4], index: 6, kind: input, shape index: {}]
  %s7 = inlined_call_operand.vmem [shape: f32[2,16,16,4], index: 7, kind: output, shape index: {}]
  %s8 = sld [smem:[#allocation0]]
  $region61: #{tpu_custom_call.1} parent=0
    _
  %s10 = ssub.s32 1, %s8
  %s11 = scalar_select 0, %s10, %s8
  loop: start=0, step=1, limit=4
  $region2: #{tpu_custom_call.1} parent=0 // loop_pre_header
    _
  $region3: #{tpu_custom_call.1} parent=0 // loop_header
    %s13 = sphi 0, %s17
    %p14 = scmp.ge.s32.totalorder %s13, 4
    %s23 = sphi 0, %s25
    %s26 = sphi 0, %s23
    %s27 = sphi 0, %s26
    %s43 = sphi 0, %s27
    %s47 = sphi 0, %s47
    %s49 = sphi 0, %s47
    %s50 = sphi 0, %s49
    %s64 = sphi 0, %s50
    %s68 = sphi 0, %s68
    %s70 = sphi 0, %s68
    %s71 = sphi 0, %s70
    %s85 = sphi 0, %s71
    %s89 = sphi 0, %s89
    %s91 = sphi 0, %s89
    %s92 = sphi 0, %s91
    %s106 = sphi 0, %s92
    %s110 = sphi 0, %s110
    %s112 = sphi 0, %s110
    %s113 = sphi 0, %s112
    %s127 = sphi 0, %s113
    %s131 = sphi 0, %s131
    %s133 = sphi 0, %s131
    %s134 = sphi 0, %s133
    %s148 = sphi 0, %s134
    %s152 = sphi 0, %s152
    %s154 = sphi 0, %s152
    %s155 = sphi 0, %s154
    %s169 = sphi 0, %s155
    %s175 = sphi 0, %s177
    %s178 = sphi 0, %s175
    %s179 = sphi 0, %s178
    %s195 = sphi 0, %s179
  $region4: #{tpu_custom_call.1} parent=0 // loop_header_branch
    %16 = sbr.rel (%p14) target = $region8
  $region5: #{tpu_custom_call.1} parent=0 // loop_body
    %s18 = ssub.s32 %s13, 1
    %s19 = ssub.s32 %s13, 2
    %s20 = sadd.s32 %s13, 1
    %s21 = ssub.s32 %s13, %s20
    %p22 = scmp.eq.s32.totalorder %s21, 0
    %s24 = sadd.s32 %s23, 1
    %s25 = scalar_select %p22, %s23, %s24
    %p28 = pneg %p22
    %p29 = scmp.eq.s32.totalorder %s13, 1
    %p30 = por %p28, %p29
    %p31 = scmp.ne.s32.totalorder %s23, %s26
    %p32 = scmp.eq.s32.totalorder %s13, 0
    %p33 = por %p31, %p32
    %p34 = scmp.ne.s32.totalorder %s23, %s26
    %p35 = scmp.eq.s32.totalorder %s18, 1
    %p36 = por %p34, %p35
    %p37 = scmp.ne.s32.totalorder %s26, %s27
    %p38 = scmp.eq.s32.totalorder %s18, 0
    %p39 = por %p37, %p38
    %p40 = scmp.ne.s32.totalorder %s26, %s27
    %p41 = scmp.eq.s32.totalorder %s19, 1
    %p42 = por %p40, %p41
    %p44 = scmp.ne.s32.totalorder %s27, %s43
    %p45 = scmp.eq.s32.totalorder %s19, 0
    %p46 = por %p44, %p45
    %s48 = sadd.s32 %s47, 1
    %p51 = scmp.eq.s32.totalorder %s13, 1
    %p52 = scmp.ne.s32.totalorder %s47, %s49
    %p53 = scmp.eq.s32.totalorder %s13, 0
    %p54 = por %p52, %p53
    %p55 = scmp.ne.s32.totalorder %s47, %s49
    %p56 = scmp.eq.s32.totalorder %s18, 1
    %p57 = por %p55, %p56
    %p58 = scmp.ne.s32.totalorder %s49, %s50
    %p59 = scmp.eq.s32.totalorder %s18, 0
    %p60 = por %p58, %p59
    %p61 = scmp.ne.s32.totalorder %s49, %s50
    %p62 = scmp.eq.s32.totalorder %s19, 1
    %p63 = por %p61, %p62
    %p65 = scmp.ne.s32.totalorder %s50, %s64
    %p66 = scmp.eq.s32.totalorder %s19, 0
    %p67 = por %p65, %p66
    %s69 = sadd.s32 %s68, 1
    %p72 = scmp.eq.s32.totalorder %s13, 1
    %p73 = scmp.ne.s32.totalorder %s68, %s70
    %p74 = scmp.eq.s32.totalorder %s13, 0
    %p75 = por %p73, %p74
    %p76 = scmp.ne.s32.totalorder %s68, %s70
    %p77 = scmp.eq.s32.totalorder %s18, 1
    %p78 = por %p76, %p77
    %p79 = scmp.ne.s32.totalorder %s70, %s71
    %p80 = scmp.eq.s32.totalorder %s18, 0
    %p81 = por %p79, %p80
    %p82 = scmp.ne.s32.totalorder %s70, %s71
    %p83 = scmp.eq.s32.totalorder %s19, 1
    %p84 = por %p82, %p83
    %p86 = scmp.ne.s32.totalorder %s71, %s85
    %p87 = scmp.eq.s32.totalorder %s19, 0
    %p88 = por %p86, %p87
    %s90 = sadd.s32 %s89, 1
    %p93 = scmp.eq.s32.totalorder %s13, 1
    %p94 = scmp.ne.s32.totalorder %s89, %s91
    %p95 = scmp.eq.s32.totalorder %s13, 0
    %p96 = por %p94, %p95
    %p97 = scmp.ne.s32.totalorder %s89, %s91
    %p98 = scmp.eq.s32.totalorder %s18, 1
    %p99 = por %p97, %p98
    %p100 = scmp.ne.s32.totalorder %s91, %s92
    %p101 = scmp.eq.s32.totalorder %s18, 0
    %p102 = por %p100, %p101
    %p103 = scmp.ne.s32.totalorder %s91, %s92
    %p104 = scmp.eq.s32.totalorder %s19, 1
    %p105 = por %p103, %p104
    %p107 = scmp.ne.s32.totalorder %s92, %s106
    %p108 = scmp.eq.s32.totalorder %s19, 0
    %p109 = por %p107, %p108
    %s111 = sadd.s32 %s110, 1
    %p114 = scmp.eq.s32.totalorder %s13, 1
    %p115 = scmp.ne.s32.totalorder %s110, %s112
    %p116 = scmp.eq.s32.totalorder %s13, 0
    %p117 = por %p115, %p116
    %p118 = scmp.ne.s32.totalorder %s110, %s112
    %p119 = scmp.eq.s32.totalorder %s18, 1
    %p120 = por %p118, %p119
    %p121 = scmp.ne.s32.totalorder %s112, %s113
    %p122 = scmp.eq.s32.totalorder %s18, 0
    %p123 = por %p121, %p122
    %p124 = scmp.ne.s32.totalorder %s112, %s113
    %p125 = scmp.eq.s32.totalorder %s19, 1
    %p126 = por %p124, %p125
    %p128 = scmp.ne.s32.totalorder %s113, %s127
    %p129 = scmp.eq.s32.totalorder %s19, 0
    %p130 = por %p128, %p129
    %s132 = sadd.s32 %s131, 1
    %p135 = scmp.eq.s32.totalorder %s13, 1
    %p136 = scmp.ne.s32.totalorder %s131, %s133
    %p137 = scmp.eq.s32.totalorder %s13, 0
    %p138 = por %p136, %p137
    %p139 = scmp.ne.s32.totalorder %s131, %s133
    %p140 = scmp.eq.s32.totalorder %s18, 1
    %p141 = por %p139, %p140
    %p142 = scmp.ne.s32.totalorder %s133, %s134
    %p143 = scmp.eq.s32.totalorder %s18, 0
    %p144 = por %p142, %p143
    %p145 = scmp.ne.s32.totalorder %s133, %s134
    %p146 = scmp.eq.s32.totalorder %s19, 1
    %p147 = por %p145, %p146
    %p149 = scmp.ne.s32.totalorder %s134, %s148
    %p150 = scmp.eq.s32.totalorder %s19, 0
    %p151 = por %p149, %p150
    %s153 = sadd.s32 %s152, 1
    %p156 = scmp.eq.s32.totalorder %s13, 1
    %p157 = scmp.ne.s32.totalorder %s152, %s154
    %p158 = scmp.eq.s32.totalorder %s13, 0
    %p159 = por %p157, %p158
    %p160 = scmp.ne.s32.totalorder %s152, %s154
    %p161 = scmp.eq.s32.totalorder %s18, 1
    %p162 = por %p160, %p161
    %p163 = scmp.ne.s32.totalorder %s154, %s155
    %p164 = scmp.eq.s32.totalorder %s18, 0
    %p165 = por %p163, %p164
    %p166 = scmp.ne.s32.totalorder %s154, %s155
    %p167 = scmp.eq.s32.totalorder %s19, 1
    %p168 = por %p166, %p167
    %p170 = scmp.ne.s32.totalorder %s155, %s169
    %p171 = scmp.eq.s32.totalorder %s19, 0
    %p172 = por %p170, %p171
    %s173 = ssub.s32 %s13, %s20
    %p174 = scmp.eq.s32.totalorder %s173, 0
    %s176 = sadd.s32 %s175, 1
    %s177 = scalar_select %p174, %s175, %s176
    %p180 = pneg %p174
    %p181 = scmp.eq.s32.totalorder %s13, 1
    %p182 = por %p180, %p181
    %p183 = scmp.ne.s32.totalorder %s175, %s178
    %p184 = scmp.eq.s32.totalorder %s13, 0
    %p185 = por %p183, %p184
    %p186 = scmp.ne.s32.totalorder %s175, %s178
    %p187 = scmp.eq.s32.totalorder %s18, 1
    %p188 = por %p186, %p187
    %p189 = scmp.ne.s32.totalorder %s178, %s179
    %p190 = scmp.eq.s32.totalorder %s18, 0
    %p191 = por %p189, %p190
    %p192 = scmp.ne.s32.totalorder %s178, %s179
    %p193 = scmp.eq.s32.totalorder %s19, 1
    %p194 = por %p192, %p193
    %p196 = scmp.ne.s32.totalorder %s179, %s195
    %p197 = scmp.eq.s32.totalorder %s19, 0
    %p198 = por %p196, %p197
    %p199 = scmp.le.s32.totalorder 1, %s13
    %p200 = scmp.lt.s32.totalorder %s13, 3
    %p201 = pnand %p199, %p200
    %p202 = pneg %p201
    // Predicated region
    $region9: #{tpu_custom_call.1} parent=5 // pred_check
      _
    $region10: #{tpu_custom_call.1} parent=5 // pred_check_branch
      %204 = sbr.rel (%p201) target = $region12
    $region11: #{tpu_custom_call.1} parent=5 // pred_region
      %s205 = ssub.s32 %s13, 1
      // Predicated region
      $region13: #{tpu_custom_call.1} parent=11 // pred_check
        %p206 = pneg %p60
      $region14: #{tpu_custom_call.1} parent=11 // pred_check_branch
        %208 = sbr.rel (%p206) target = $region16
      $region15: #{tpu_custom_call.1} parent=11 // pred_region
        _
      $region16: #{tpu_custom_call.1} parent=11 // pred_fallthru
        _
      // Predicated region
      $region17: #{tpu_custom_call.1} parent=11 // pred_check
        %p209 = pneg %p81
      $region18: #{tpu_custom_call.1} parent=11 // pred_check_branch
        %211 = sbr.rel (%p209) target = $region20
      $region19: #{tpu_custom_call.1} parent=11 // pred_region
        _
      $region20: #{tpu_custom_call.1} parent=11 // pred_fallthru
        _
      // Predicated region
      $region21: #{tpu_custom_call.1} parent=11 // pred_check
        %p212 = pneg %p102
      $region22: #{tpu_custom_call.1} parent=11 // pred_check_branch
        %214 = sbr.rel (%p212) target = $region24
      $region23: #{tpu_custom_call.1} parent=11 // pred_region
        _
      $region24: #{tpu_custom_call.1} parent=11 // pred_fallthru
        _
      // Predicated region
      $region25: #{tpu_custom_call.1} parent=11 // pred_check
        %p215 = pneg %p123
      $region26: #{tpu_custom_call.1} parent=11 // pred_check_branch
        %217 = sbr.rel (%p215) target = $region28
      $region27: #{tpu_custom_call.1} parent=11 // pred_region
        _
      $region28: #{tpu_custom_call.1} parent=11 // pred_fallthru
        _
      // Predicated region
      $region29: #{tpu_custom_call.1} parent=11 // pred_check
        %p218 = pneg %p144
      $region30: #{tpu_custom_call.1} parent=11 // pred_check_branch
        %220 = sbr.rel (%p218) target = $region32
      $region31: #{tpu_custom_call.1} parent=11 // pred_region
        _
      $region32: #{tpu_custom_call.1} parent=11 // pred_fallthru
        _
      // Predicated region
      $region33: #{tpu_custom_call.1} parent=11 // pred_check
        %p221 = pneg %p165
      $region34: #{tpu_custom_call.1} parent=11 // pred_check_branch
        %223 = sbr.rel (%p221) target = $region36
      $region35: #{tpu_custom_call.1} parent=11 // pred_region
        _
      $region36: #{tpu_custom_call.1} parent=11 // pred_fallthru
        _
    $region12: #{tpu_custom_call.1} parent=5 // pred_fallthru
      _
    %p224 = scmp.lt.s32.totalorder %s13, 2
    // Predicated region
    $region37: #{tpu_custom_call.1} parent=5 // pred_check
      %p225 = pneg %p224
    $region38: #{tpu_custom_call.1} parent=5 // pred_check_branch
      %227 = sbr.rel (%p225) target = $region40
    $region39: #{tpu_custom_call.1} parent=5 // pred_region
      // Predicated region
      $region41: #{tpu_custom_call.1} parent=39 // pred_check
        %p228 = pneg %p33
      $region42: #{tpu_custom_call.1} parent=39 // pred_check_branch
        %230 = sbr.rel (%p228) target = $region44
      $region43: #{tpu_custom_call.1} parent=39 // pred_region
        %p231 = scmp.lt.s32.totalorder %s13, 1
        %s232 = scalar_select %p231, %s13, 1
        %s233 = smul.addr %s232, 32
        %s234 = smul.addr %s233, 8
        %s235 = scalar_lea.vmem %s0, %s234
      $region44: #{tpu_custom_call.1} parent=39 // pred_fallthru
        _
    $region40: #{tpu_custom_call.1} parent=5 // pred_fallthru
      _
    %p236 = scmp.le.s32.totalorder 1, %s13
    %p237 = scmp.lt.s32.totalorder %s13, 3
    %p238 = pnand %p236, %p237
    %p239 = pneg %p238
    // Predicated region
    $region45: #{tpu_custom_call.1} parent=5 // pred_check
      _
    $region46: #{tpu_custom_call.1} parent=5 // pred_check_branch
      %241 = sbr.rel (%p238) target = $region48
    $region47: #{tpu_custom_call.1} parent=5 // pred_region
      %s242 = ssub.s32 %s13, 1
      %p243 = scmp.lt.s32.totalorder %s18, 1
      %s244 = scalar_select %p243, %s18, 1
      %s245 = smul.addr %s244, 32
      %s246 = smul.addr %s245, 8
      %s247 = scalar_lea.vmem %s0, %s246
      %p248 = pneg %p39
      %p249 = pneg %p36
      %p250 = pneg %p60
      %p251 = pneg %p57
      %p252 = pneg %p81
      %p253 = pneg %p78
      %p254 = pneg %p102
      %p255 = pneg %p99
      %p256 = pneg %p123
      %p257 = pneg %p120
      %p258 = pneg %p144
      %p259 = pneg %p141
      %p260 = pneg %p165
      %p261 = pneg %p162
      %p262 = pneg %p191
      %p263 = pneg %p188
      %p264 = scmp.lt.s32.totalorder %s18, 1
      %s265 = scalar_select %p264, %s18, 1
      %s266 = smul.addr %s265, 32
      %s267 = smul.addr %s266, 8
      %s268 = scalar_lea.vmem %s7, %s267
      %p269 = scmp.lt.s32.totalorder %s18, 1
      %s270 = scalar_select %p269, %s18, 1
      %s271 = smul.addr %s270, 32
      %s272 = smul.addr %s271, 8
      %s273 = scalar_lea.vmem %s0, %s272
      %p274 = scmp.lt.s32.totalorder %s18, 1
      %s275 = scalar_select %p274, %s18, 1
      %s276 = smul.addr %s275, 32
      %s277 = smul.addr %s276, 8
      %s278 = scalar_lea.vmem %s7, %s277
      %vm279 = vcmask 97280
      %280 = vst.msk [vmem:[#allocation2] sm:$0xff] %vm279, 0.0
      %281 = vst.msk [vmem:[#allocation2 + $0x8] sm:$0xff] %vm279, 0.0
      %vm282 = vcmask 93184
      %283 = vst.msk [vmem:[#allocation2 + $0x10] sm:$0xf] %vm282, 0.0
      %284 = vst.msk [vmem:[#allocation2 + $0x18] sm:$0xff] %vm279, 0.0
      %285 = vst.msk [vmem:[#allocation2 + $0x20] sm:$0xff] %vm279, 0.0
      %286 = vst.msk [vmem:[#allocation2 + $0x28] sm:$0xf] %vm282, 0.0
      %s287 = scalar_lea.vmem [#allocation2], 432
      %288 = vst.msk [vmem:[%s287] sm:$0xff] %vm279, 0.0
      %289 = vst.msk [vmem:[%s287 + $0x8] sm:$0xff] %vm279, 0.0
      %290 = vst.msk [vmem:[%s287 + $0x10] sm:$0xf] %vm282, 0.0
      %291 = vst.msk [vmem:[%s287 + $0x18] sm:$0xff] %vm279, 0.0
      %292 = vst.msk [vmem:[%s287 + $0x20] sm:$0xff] %vm279, 0.0
      %293 = vst.msk [vmem:[%s287 + $0x28] sm:$0xf] %vm282, 0.0
      %s294 = scalar_lea.vmem [#allocation2], 48
      %vm295 = vcmask 91136
      %296 = vst.msk [vmem:[%s294] sm:$0x3] %vm295, 0.0
      %297 = vst.msk [vmem:[%s294 + $0x18] sm:$0x3] %vm295, 0.0
      %298 = vst.msk [vmem:[%s294 + $0x30] sm:$0x3] %vm295, 0.0
      %299 = vst.msk [vmem:[%s294 + $0x48] sm:$0x3] %vm295, 0.0
      %300 = vst.msk [vmem:[%s294 + $0x60] sm:$0x3] %vm295, 0.0
      %301 = vst.msk [vmem:[%s294 + $0x78] sm:$0x3] %vm295, 0.0
      %302 = vst.msk [vmem:[%s294 + $0x90] sm:$0x3] %vm295, 0.0
      %303 = vst.msk [vmem:[%s294 + $0xa8] sm:$0x3] %vm295, 0.0
      %304 = vst.msk [vmem:[%s294 + $0xc0] sm:$0x3] %vm295, 0.0
      %305 = vst.msk [vmem:[%s294 + $0xd8] sm:$0x3] %vm295, 0.0
      %306 = vst.msk [vmem:[%s294 + $0xf0] sm:$0x3] %vm295, 0.0
      %307 = vst.msk [vmem:[%s294 + $0x108] sm:$0x3] %vm295, 0.0
      %308 = vst.msk [vmem:[%s294 + $0x120] sm:$0x3] %vm295, 0.0
      %309 = vst.msk [vmem:[%s294 + $0x138] sm:$0x3] %vm295, 0.0
      %310 = vst.msk [vmem:[%s294 + $0x150] sm:$0x3] %vm295, 0.0
      %311 = vst.msk [vmem:[%s294 + $0x168] sm:$0x3] %vm295, 0.0
      %312 = vst.msk [vmem:[%s294 + $0x12] sm:$0x3] %vm295, 0.0
      %313 = vst.msk [vmem:[%s294 + $0x2a] sm:$0x3] %vm295, 0.0
      %314 = vst.msk [vmem:[%s294 + $0x42] sm:$0x3] %vm295, 0.0
      %315 = vst.msk [vmem:[%s294 + $0x5a] sm:$0x3] %vm295, 0.0
      %316 = vst.msk [vmem:[%s294 + $0x72] sm:$0x3] %vm295, 0.0
      %317 = vst.msk [vmem:[%s294 + $0x8a] sm:$0x3] %vm295, 0.0
      %318 = vst.msk [vmem:[%s294 + $0xa2] sm:$0x3] %vm295, 0.0
      %319 = vst.msk [vmem:[%s294 + $0xba] sm:$0x3] %vm295, 0.0
      %320 = vst.msk [vmem:[%s294 + $0xd2] sm:$0x3] %vm295, 0.0
      %321 = vst.msk [vmem:[%s294 + $0xea] sm:$0x3] %vm295, 0.0
      %322 = vst.msk [vmem:[%s294 + $0x102] sm:$0x3] %vm295, 0.0
      %323 = vst.msk [vmem:[%s294 + $0x11a] sm:$0x3] %vm295, 0.0
      %324 = vst.msk [vmem:[%s294 + $0x132] sm:$0x3] %vm295, 0.0
      %325 = vst.msk [vmem:[%s294 + $0x14a] sm:$0x3] %vm295, 0.0
      %326 = vst.msk [vmem:[%s294 + $0x162] sm:$0x3] %vm295, 0.0
      %327 = vst.msk [vmem:[%s294 + $0x17a] sm:$0x3] %vm295, 0.0
      %v328 = vld [vmem:[%s273] sm:$0xff]
      %v329 = vld [vmem:[%s273 + $0x8] sm:$0xff]
      %v330 = vld [vmem:[%s273 + $0x10] sm:$0xff]
      %v331 = vld [vmem:[%s273 + $0x18] sm:$0xff]
      %v332 = vld [vmem:[%s273 + $0x20] sm:$0xff]
      %v333 = vld [vmem:[%s273 + $0x28] sm:$0xff]
      %v334 = vld [vmem:[%s273 + $0x30] sm:$0xff]
      %v335 = vld [vmem:[%s273 + $0x38] sm:$0xff]
      %v336 = vld [vmem:[%s273 + $0x40] sm:$0xff]
      %v337 = vld [vmem:[%s273 + $0x48] sm:$0xff]
      %v338 = vld [vmem:[%s273 + $0x50] sm:$0xff]
      %v339 = vld [vmem:[%s273 + $0x58] sm:$0xff]
      %v340 = vld [vmem:[%s273 + $0x60] sm:$0xff]
      %v341 = vld [vmem:[%s273 + $0x68] sm:$0xff]
      %v342 = vld [vmem:[%s273 + $0x70] sm:$0xff]
      %v343 = vld [vmem:[%s273 + $0x78] sm:$0xff]
      %v344 = vld [vmem:[%s273 + $0x80] sm:$0xff]
      %v345 = vld [vmem:[%s273 + $0x88] sm:$0xff]
      %v346 = vld [vmem:[%s273 + $0x90] sm:$0xff]
      %v347 = vld [vmem:[%s273 + $0x98] sm:$0xff]
      %v348 = vld [vmem:[%s273 + $0xa0] sm:$0xff]
      %v349 = vld [vmem:[%s273 + $0xa8] sm:$0xff]
      %v350 = vld [vmem:[%s273 + $0xb0] sm:$0xff]
      %v351 = vld [vmem:[%s273 + $0xb8] sm:$0xff]
      %v352 = vld [vmem:[%s273 + $0xc0] sm:$0xff]
      %v353 = vld [vmem:[%s273 + $0xc8] sm:$0xff]
      %v354 = vld [vmem:[%s273 + $0xd0] sm:$0xff]
      %v355 = vld [vmem:[%s273 + $0xd8] sm:$0xff]
      %v356 = vld [vmem:[%s273 + $0xe0] sm:$0xff]
      %v357 = vld [vmem:[%s273 + $0xe8] sm:$0xff]
      %v358 = vld [vmem:[%s273 + $0xf0] sm:$0xff]
      %v359 = vld [vmem:[%s273 + $0xf8] sm:$0xff]
      %vm360 = vcmask 31744
      %361 = vst.msk [vmem:[%s294 + $0x2] sm:$0xff] %vm360, %v328
      %362 = vst.msk [vmem:[%s294 + $0xa] sm:$0xff] %vm360, %v329
      %363 = vst.msk [vmem:[%s294 + $0x1a] sm:$0xff] %vm360, %v330
      %364 = vst.msk [vmem:[%s294 + $0x22] sm:$0xff] %vm360, %v331
      %365 = vst.msk [vmem:[%s294 + $0x32] sm:$0xff] %vm360, %v332
      %366 = vst.msk [vmem:[%s294 + $0x3a] sm:$0xff] %vm360, %v333
      %367 = vst.msk [vmem:[%s294 + $0x4a] sm:$0xff] %vm360, %v334
      %368 = vst.msk [vmem:[%s294 + $0x52] sm:$0xff] %vm360, %v335
      %369 = vst.msk [vmem:[%s294 + $0x62] sm:$0xff] %vm360, %v336
      %370 = vst.msk [vmem:[%s294 + $0x6a] sm:$0xff] %vm360, %v337
      %371 = vst.msk [vmem:[%s294 + $0x7a] sm:$0xff] %vm360, %v338
      %372 = vst.msk [vmem:[%s294 + $0x82] sm:$0xff] %vm360, %v339
      %373 = vst.msk [vmem:[%s294 + $0x92] sm:$0xff] %vm360, %v340
      %374 = vst.msk [vmem:[%s294 + $0x9a] sm:$0xff] %vm360, %v341
      %375 = vst.msk [vmem:[%s294 + $0xaa] sm:$0xff] %vm360, %v342
      %376 = vst.msk [vmem:[%s294 + $0xb2] sm:$0xff] %vm360, %v343
      %377 = vst.msk [vmem:[%s294 + $0xc2] sm:$0xff] %vm360, %v344
      %378 = vst.msk [vmem:[%s294 + $0xca] sm:$0xff] %vm360, %v345
      %379 = vst.msk [vmem:[%s294 + $0xda] sm:$0xff] %vm360, %v346
      %380 = vst.msk [vmem:[%s294 + $0xe2] sm:$0xff] %vm360, %v347
      %381 = vst.msk [vmem:[%s294 + $0xf2] sm:$0xff] %vm360, %v348
      %382 = vst.msk [vmem:[%s294 + $0xfa] sm:$0xff] %vm360, %v349
      %383 = vst.msk [vmem:[%s294 + $0x10a] sm:$0xff] %vm360, %v350
      %384 = vst.msk [vmem:[%s294 + $0x112] sm:$0xff] %vm360, %v351
      %385 = vst.msk [vmem:[%s294 + $0x122] sm:$0xff] %vm360, %v352
      %386 = vst.msk [vmem:[%s294 + $0x12a] sm:$0xff] %vm360, %v353
      %387 = vst.msk [vmem:[%s294 + $0x13a] sm:$0xff] %vm360, %v354
      %388 = vst.msk [vmem:[%s294 + $0x142] sm:$0xff] %vm360, %v355
      %389 = vst.msk [vmem:[%s294 + $0x152] sm:$0xff] %vm360, %v356
      %390 = vst.msk [vmem:[%s294 + $0x15a] sm:$0xff] %vm360, %v357
      %391 = vst.msk [vmem:[%s294 + $0x16a] sm:$0xff] %vm360, %v358
      %392 = vst.msk [vmem:[%s294 + $0x172] sm:$0xff] %vm360, %v359
      %v393 = vld [vmem:[%s1] sm:$0xf]
      %v394 = vld [vmem:[%s1 + $0x4] sm:$0xf]
      %v395 = vld [vmem:[%s1 + $0x8] sm:$0xf]
      %v396 = vld [vmem:[%s1 + $0xc] sm:$0xf]
      %v397 = vld [vmem:[%s1 + $0x10] sm:$0xf]
      %v398 = vld [vmem:[%s1 + $0x14] sm:$0xf]
      %v399 = vld [vmem:[%s1 + $0x18] sm:$0xf]
      %v400 = vld [vmem:[%s1 + $0x1c] sm:$0xf]
      %v401 = vld [vmem:[%s1 + $0x20] sm:$0xf]
      %v402 = vld [vmem:[%s2] sm:$0x1]
      %v403 = vld [vmem:[#allocation2] sm:$0xff]
      %v404 = vld [vmem:[#allocation2 + $0x8] sm:$0xff]
      %v405 = vld [vmem:[#allocation2 + $0x18] sm:$0xff]
      %v406 = vld [vmem:[#allocation2 + $0x20] sm:$0xff]
      %v407 = vld [vmem:[#allocation2 + $0x30] sm:$0xff]
      %v408 = vld [vmem:[#allocation2 + $0x38] sm:$0xff]
      %v409 = vld [vmem:[#allocation2 + $0x48] sm:$0xff]
      %v410 = vld [vmem:[#allocation2 + $0x50] sm:$0xff]
      %v411 = vld [vmem:[#allocation2 + $0x60] sm:$0xff]
      %v412 = vld [vmem:[#allocation2 + $0x68] sm:$0xff]
      %v413 = vld [vmem:[#allocation2 + $0x78] sm:$0xff]
      %v414 = vld [vmem:[#allocation2 + $0x80] sm:$0xff]
      %v415 = vld [vmem:[#allocation2 + $0x90] sm:$0xff]
      %v416 = vld [vmem:[#allocation2 + $0x98] sm:$0xff]
      %v417 = vld [vmem:[#allocation2 + $0xa8] sm:$0xff]
      %v418 = vld [vmem:[#allocation2 + $0xb0] sm:$0xff]
      %v419 = vld [vmem:[#allocation2 + $0xc0] sm:$0xff]
      %v420 = vld [vmem:[#allocation2 + $0xc8] sm:$0xff]
      %v421 = vld [vmem:[#allocation2 + $0xd8] sm:$0xff]
      %v422 = vld [vmem:[#allocation2 + $0xe0] sm:$0xff]
      %v423 = vld [vmem:[#allocation2 + $0xf0] sm:$0xff]
      %v424 = vld [vmem:[#allocation2 + $0xf8] sm:$0xff]
      %v425 = vld [vmem:[#allocation2 + $0x108] sm:$0xff]
      %v426 = vld [vmem:[#allocation2 + $0x110] sm:$0xff]
      %v427 = vld [vmem:[#allocation2 + $0x120] sm:$0xff]
      %v428 = vld [vmem:[#allocation2 + $0x128] sm:$0xff]
      %v429 = vld [vmem:[#allocation2 + $0x138] sm:$0xff]
      %v430 = vld [vmem:[#allocation2 + $0x140] sm:$0xff]
      %v431 = vld [vmem:[#allocation2 + $0x150] sm:$0xff]
      %v432 = vld [vmem:[#allocation2 + $0x158] sm:$0xff]
      %v433 = vld [vmem:[#allocation2 + $0x168] sm:$0xff]
      %v434 = vld [vmem:[#allocation2 + $0x170] sm:$0xff]
      %v435 = vld [vmem:[#allocation2 + $0x2] sm:$0xff]
      %v436 = vld [vmem:[#allocation2 + $0xa] sm:$0xff]
      %v437 = vld [vmem:[#allocation2 + $0x1a] sm:$0xff]
      %v438 = vld [vmem:[#allocation2 + $0x22] sm:$0xff]
      %v439 = vld [vmem:[#allocation2 + $0x32] sm:$0xff]
      %v440 = vld [vmem:[#allocation2 + $0x3a] sm:$0xff]
      %v441 = vld [vmem:[#allocation2 + $0x4a] sm:$0xff]
      %v442 = vld [vmem:[#allocation2 + $0x52] sm:$0xff]
      %v443 = vld [vmem:[#allocation2 + $0x62] sm:$0xff]
      %v444 = vld [vmem:[#allocation2 + $0x6a] sm:$0xff]
      %v445 = vld [vmem:[#allocation2 + $0x7a] sm:$0xff]
      %v446 = vld [vmem:[#allocation2 + $0x82] sm:$0xff]
      %v447 = vld [vmem:[#allocation2 + $0x92] sm:$0xff]
      %v448 = vld [vmem:[#allocation2 + $0x9a] sm:$0xff]
      %v449 = vld [vmem:[#allocation2 + $0xaa] sm:$0xff]
      %v450 = vld [vmem:[#allocation2 + $0xb2] sm:$0xff]
      %v451 = vld [vmem:[#allocation2 + $0xc2] sm:$0xff]
      %v452 = vld [vmem:[#allocation2 + $0xca] sm:$0xff]
      %v453 = vld [vmem:[#allocation2 + $0xda] sm:$0xff]
      %v454 = vld [vmem:[#allocation2 + $0xe2] sm:$0xff]
      %v455 = vld [vmem:[#allocation2 + $0xf2] sm:$0xff]
      %v456 = vld [vmem:[#allocation2 + $0xfa] sm:$0xff]
      %v457 = vld [vmem:[#allocation2 + $0x10a] sm:$0xff]
      %v458 = vld [vmem:[#allocation2 + $0x112] sm:$0xff]
      %v459 = vld [vmem:[#allocation2 + $0x122] sm:$0xff]
      %v460 = vld [vmem:[#allocation2 + $0x12a] sm:$0xff]
      %v461 = vld [vmem:[#allocation2 + $0x13a] sm:$0xff]
      %v462 = vld [vmem:[#allocation2 + $0x142] sm:$0xff]
      %v463 = vld [vmem:[#allocation2 + $0x152] sm:$0xff]
      %v464 = vld [vmem:[#allocation2 + $0x15a] sm:$0xff]
      %v465 = vld [vmem:[#allocation2 + $0x16a] sm:$0xff]
      %v466 = vld [vmem:[#allocation2 + $0x172] sm:$0xff]
      %v468 = vsel %vm360, %v435, 0
      %v471 = vsel %vm360, %v436, 0
      %v474 = vsel %vm360, %v437, 0
      %v477 = vsel %vm360, %v438, 0
      %v480 = vsel %vm360, %v439, 0
      %v483 = vsel %vm360, %v440, 0
      %v486 = vsel %vm360, %v441, 0
      %v489 = vsel %vm360, %v442, 0
      %v492 = vsel %vm360, %v443, 0
      %v495 = vsel %vm360, %v444, 0
      %v498 = vsel %vm360, %v445, 0
      %v501 = vsel %vm360, %v446, 0
      %v504 = vsel %vm360, %v447, 0
      %v507 = vsel %vm360, %v448, 0
      %v510 = vsel %vm360, %v449, 0
      %v513 = vsel %vm360, %v450, 0
      %v516 = vsel %vm360, %v451, 0
      %v519 = vsel %vm360, %v452, 0
      %v522 = vsel %vm360, %v453, 0
      %v525 = vsel %vm360, %v454, 0
      %v528 = vsel %vm360, %v455, 0
      %v531 = vsel %vm360, %v456, 0
      %v534 = vsel %vm360, %v457, 0
      %v537 = vsel %vm360, %v458, 0
      %v540 = vsel %vm360, %v459, 0
      %v543 = vsel %vm360, %v460, 0
      %v546 = vsel %vm360, %v461, 0
      %v549 = vsel %vm360, %v462, 0
      %v552 = vsel %vm360, %v463, 0
      %v555 = vsel %vm360, %v464, 0
      %v558 = vsel %vm360, %v465, 0
      %v561 = vsel %vm360, %v466, 0
      %vm563 = vcmask 1043456
      %v565 = vsel %vm563, %v394, 0
      %567 = vmatprep.subr.mxu0 0.0
      %568 = vmatpush1.msra.mxu0 %v565
      %569 = vmatprep.subr.mxu0 0.0
      %570 = vmatpush1.msra.mxu0 0.0
      %571 = vmatprep.subr.mxu0 0.0
      %572 = vmatpush1.msra.mxu0 0.0
      %573 = vmatprep.subr.mxu0 0.0
      %574 = vmatpush1.msra.mxu0 0.0
      %575 = vmatprep.subr.mxu0 0.0
      %576 = vmatpush1.msra.mxu0 0.0
      %577 = vmatprep.subr.mxu0 0.0
      %578 = vmatpush1.msra.mxu0 0.0
      %579 = vmatprep.subr.mxu0 0.0
      %580 = vmatpush1.msra.mxu0 0.0
      %581 = vmatprep.subr.mxu0 0.0
      %582 = vmatpush1.msra.mxu0 0.0
      %583 = vmatprep.subr.mxu0 0.0
      %584 = vmatpush1.msra.mxu0 0.0
      %585 = vmatprep.subr.mxu0 0.0
      %586 = vmatpush1.msra.mxu0 0.0
      %587 = vmatprep.subr.mxu0 0.0
      %588 = vmatpush1.msra.mxu0 0.0
      %589 = vmatprep.subr.mxu0 0.0
      %590 = vmatpush1.msra.mxu0 0.0
      %591 = vmatprep.subr.mxu0 0.0
      %592 = vmatpush1.msra.mxu0 0.0
      %593 = vmatprep.subr.mxu0 0.0
      %594 = vmatpush1.msra.mxu0 0.0
      %595 = vmatprep.subr.mxu0 0.0
      %596 = vmatpush1.msra.mxu0 0.0
      %597 = vmatprep.subr.mxu0 0.0
      %598 = vmatpush1.msra.mxu0 0.0
      %599 = vmatprep.subr.mxu0 0.0
      %600 = vmatpush1.msra.mxu0 0.0
      %601 = vmatprep.subr.mxu0 0.0
      %602 = vmatpush1.msra.mxu0 0.0
      %603 = vmatprep.subr.mxu0 0.0
      %604 = vmatpush1.msra.mxu0 0.0
      %605 = vmatprep.subr.mxu0 0.0
      %606 = vmatpush1.msra.mxu0 0.0
      %607 = vmatprep.subr.mxu0 0.0
      %608 = vmatpush1.msra.mxu0 0.0
      %609 = vmatprep.subr.mxu0 0.0
      %610 = vmatpush1.msra.mxu0 0.0
      %611 = vmatprep.subr.mxu0 0.0
      %612 = vmatpush1.msra.mxu0 0.0
      %613 = vmatprep.subr.mxu0 0.0
      %614 = vmatpush1.msra.mxu0 0.0
      %615 = vmatprep.subr.mxu0 0.0
      %616 = vmatpush1.msra.mxu0 0.0
      %617 = vmatprep.subr.mxu0 0.0
      %618 = vmatpush1.msra.mxu0 0.0
      %619 = vmatprep.subr.mxu0 0.0
      %620 = vmatpush1.msra.mxu0 0.0
      %621 = vmatprep.subr.mxu0 0.0
      %622 = vmatpush1.msra.mxu0 0.0
      %623 = vmatprep.subr.mxu0 0.0
      %624 = vmatpush1.msra.mxu0 0.0
      %625 = vmatprep.subr.mxu0 0.0
      %626 = vmatpush1.msra.mxu0 0.0
      %627 = vmatprep.subr.mxu0 0.0
      %628 = vmatpush1.msra.mxu0 0.0
      %629 = vmatprep.subr.mxu0 0.0
      %630 = vmatpush1.msra.mxu0 0.0
      %631 = vmatprep.mubr.f32.mxu0 0.0
      %632 = vmatmul.mubr.f32.gmra.mrb[0].mxu0 %v468
      %v633 = vpop.f32.mrb[0].mxu0
      %v634 = vadd.f32 0.0, %v633
      %v635 = vpop.f32.mrb[0].mxu0
      %636 = vmatprep.mubr.f32.mxu0 0.0
      %637 = vmatmul.mubr.f32.gmra.mrb[0].mxu0 %v471
      %v638 = vpop.f32.mrb[0].mxu0
      %v639 = vadd.f32 0.0, %v638
      %v640 = vpop.f32.mrb[0].mxu0
      %641 = vmatprep.mubr.f32.mxu0 0.0
      %642 = vmatmul.mubr.f32.gmra.mrb[0].mxu0 %v474
      %v643 = vpop.f32.mrb[0].mxu0
      %v644 = vadd.f32 0.0, %v643
      %v645 = vpop.f32.mrb[0].mxu0
      %646 = vmatprep.mubr.f32.mxu0 0.0
      %647 = vmatmul.mubr.f32.gmra.mrb[0].mxu0 %v477
      %v648 = vpop.f32.mrb[0].mxu0
      %v649 = vadd.f32 0.0, %v648
      %v650 = vpop.f32.mrb[0].mxu0
      %651 = vmatprep.mubr.f32.mxu0 0.0
      %652 = vmatmul.mubr.f32.gmra.mrb[0].mxu0 %v480
      %v653 = vpop.f32.mrb[0].mxu0
      %v654 = vadd.f32 0.0, %v653
      %v655 = vpop.f32.mrb[0].mxu0
      %656 = vmatprep.mubr.f32.mxu0 0.0
      %657 = vmatmul.mubr.f32.gmra.mrb[0].mxu0 %v483
      %v658 = vpop.f32.mrb[0].mxu0
      %v659 = vadd.f32 0.0, %v658
      %v660 = vpop.f32.mrb[0].mxu0
      %661 = vmatprep.mubr.f32.mxu0 0.0
      %662 = vmatmul.mubr.f32.gmra.mrb[0].mxu0 %v486
      %v663 = vpop.f32.mrb[0].mxu0
      %v664 = vadd.f32 0.0, %v663
      %v665 = vpop.f32.mrb[0].mxu0
      %666 = vmatprep.mubr.f32.mxu0 0.0
      %667 = vmatmul.mubr.f32.gmra.mrb[0].mxu0 %v489
      %v668 = vpop.f32.mrb[0].mxu0
      %v669 = vadd.f32 0.0, %v668
      %v670 = vpop.f32.mrb[0].mxu0
      %671 = vmatprep.mubr.f32.mxu0 0.0
      %672 = vmatmul.mubr.f32.gmra.mrb[0].mxu0 %v492
      %v673 = vpop.f32.mrb[0].mxu0
      %v674 = vadd.f32 0.0, %v673
      %v675 = vpop.f32.mrb[0].mxu0
      %676 = vmatprep.mubr.f32.mxu0 0.0
      %677 = vmatmul.mubr.f32.gmra.mrb[0].mxu0 %v495
      %v678 = vpop.f32.mrb[0].mxu0
      %v679 = vadd.f32 0.0, %v678
      %v680 = vpop.f32.mrb[0].mxu0
      %681 = vmatprep.mubr.f32.mxu0 0.0
      %682 = vmatmul.mubr.f32.gmra.mrb[0].mxu0 %v498
      %v683 = vpop.f32.mrb[0].mxu0
      %v684 = vadd.f32 0.0, %v683
      %v685 = vpop.f32.mrb[0].mxu0
      %686 = vmatprep.mubr.f32.mxu0 0.0
      %687 = vmatmul.mubr.f32.gmra.mrb[0].mxu0 %v501
      %v688 = vpop.f32.mrb[0].mxu0
      %v689 = vadd.f32 0.0, %v688
      %v690 = vpop.f32.mrb[0].mxu0
      %691 = vmatprep.mubr.f32.mxu0 0.0
      %692 = vmatmul.mubr.f32.gmra.mrb[0].mxu0 %v504
      %v693 = vpop.f32.mrb[0].mxu0
      %v694 = vadd.f32 0.0, %v693
      %v695 = vpop.f32.mrb[0].mxu0
      %696 = vmatprep.mubr.f32.mxu0 0.0
      %697 = vmatmul.mubr.f32.gmra.mrb[0].mxu0 %v507
      %v698 = vpop.f32.mrb[0].mxu0
      %v699 = vadd.f32 0.0, %v698
      %v700 = vpop.f32.mrb[0].mxu0
      %701 = vmatprep.mubr.f32.mxu0 0.0
      %702 = vmatmul.mubr.f32.gmra.mrb[0].mxu0 %v510
      %v703 = vpop.f32.mrb[0].mxu0
      %v704 = vadd.f32 0.0, %v703
      %v705 = vpop.f32.mrb[0].mxu0
      %706 = vmatprep.mubr.f32.mxu0 0.0
      %707 = vmatmul.mubr.f32.gmra.mrb[0].mxu0 %v513
      %v708 = vpop.f32.mrb[0].mxu0
      %v709 = vadd.f32 0.0, %v708
      %v710 = vpop.f32.mrb[0].mxu0
      %711 = vmatprep.mubr.f32.mxu0 0.0
      %712 = vmatmul.mubr.f32.gmra.mrb[0].mxu0 %v516
      %v713 = vpop.f32.mrb[0].mxu0
      %v714 = vadd.f32 0.0, %v713
      %v715 = vpop.f32.mrb[0].mxu0
      %716 = vmatprep.mubr.f32.mxu0 0.0
      %717 = vmatmul.mubr.f32.gmra.mrb[0].mxu0 %v519
      %v718 = vpop.f32.mrb[0].mxu0
      %v719 = vadd.f32 0.0, %v718
      %v720 = vpop.f32.mrb[0].mxu0
      %721 = vmatprep.mubr.f32.mxu0 0.0
      %722 = vmatmul.mubr.f32.gmra.mrb[0].mxu0 %v522
      %v723 = vpop.f32.mrb[0].mxu0
      %v724 = vadd.f32 0.0, %v723
      %v725 = vpop.f32.mrb[0].mxu0
      %726 = vmatprep.mubr.f32.mxu0 0.0
      %727 = vmatmul.mubr.f32.gmra.mrb[0].mxu0 %v525
      %v728 = vpop.f32.mrb[0].mxu0
      %v729 = vadd.f32 0.0, %v728
      %v730 = vpop.f32.mrb[0].mxu0
      %731 = vmatprep.mubr.f32.mxu0 0.0
      %732 = vmatmul.mubr.f32.gmra.mrb[0].mxu0 %v528
      %v733 = vpop.f32.mrb[0].mxu0
      %v734 = vadd.f32 0.0, %v733
      %v735 = vpop.f32.mrb[0].mxu0
      %736 = vmatprep.mubr.f32.mxu0 0.0
      %737 = vmatmul.mubr.f32.gmra.mrb[0].mxu0 %v531
      %v738 = vpop.f32.mrb[0].mxu0
      %v739 = vadd.f32 0.0, %v738
      %v740 = vpop.f32.mrb[0].mxu0
      %741 = vmatprep.mubr.f32.mxu0 0.0
      %742 = vmatmul.mubr.f32.gmra.mrb[0].mxu0 %v534
      %v743 = vpop.f32.mrb[0].mxu0
      %v744 = vadd.f32 0.0, %v743
      %v745 = vpop.f32.mrb[0].mxu0
      %746 = vmatprep.mubr.f32.mxu0 0.0
      %747 = vmatmul.mubr.f32.gmra.mrb[0].mxu0 %v537
      %v748 = vpop.f32.mrb[0].mxu0
      %v749 = vadd.f32 0.0, %v748
      %v750 = vpop.f32.mrb[0].mxu0
      %751 = vmatprep.mubr.f32.mxu0 0.0
      %752 = vmatmul.mubr.f32.gmra.mrb[0].mxu0 %v540
      %v753 = vpop.f32.mrb[0].mxu0
      %v754 = vadd.f32 0.0, %v753
      %v755 = vpop.f32.mrb[0].mxu0
      %756 = vmatprep.mubr.f32.mxu0 0.0
      %757 = vmatmul.mubr.f32.gmra.mrb[0].mxu0 %v543
      %v758 = vpop.f32.mrb[0].mxu0
      %v759 = vadd.f32 0.0, %v758
      %v760 = vpop.f32.mrb[0].mxu0
      %761 = vmatprep.mubr.f32.mxu0 0.0
      %762 = vmatmul.mubr.f32.gmra.mrb[0].mxu0 %v546
      %v763 = vpop.f32.mrb[0].mxu0
      %v764 = vadd.f32 0.0, %v763
      %v765 = vpop.f32.mrb[0].mxu0
      %766 = vmatprep.mubr.f32.mxu0 0.0
      %767 = vmatmul.mubr.f32.gmra.mrb[0].mxu0 %v549
      %v768 = vpop.f32.mrb[0].mxu0
      %v769 = vadd.f32 0.0, %v768
      %v770 = vpop.f32.mrb[0].mxu0
      %771 = vmatprep.mubr.f32.mxu0 0.0
      %772 = vmatmul.mubr.f32.gmra.mrb[0].mxu0 %v552
      %v773 = vpop.f32.mrb[0].mxu0
      %v774 = vadd.f32 0.0, %v773
      %v775 = vpop.f32.mrb[0].mxu0
      %776 = vmatprep.mubr.f32.mxu0 0.0
      %777 = vmatmul.mubr.f32.gmra.mrb[0].mxu0 %v555
      %v778 = vpop.f32.mrb[0].mxu0
      %v779 = vadd.f32 0.0, %v778
      %v780 = vpop.f32.mrb[0].mxu0
      %781 = vmatprep.mubr.f32.mxu0 0.0
      %782 = vmatmul.mubr.f32.gmra.mrb[0].mxu0 %v558
      %v783 = vpop.f32.mrb[0].mxu0
      %v784 = vadd.f32 0.0, %v783
      %v785 = vpop.f32.mrb[0].mxu0
      %786 = vmatprep.mubr.f32.mxu0 0.0
      %787 = vmatmul.mubr.f32.gmra.mrb[0].mxu0 %v561
      %v788 = vpop.f32.mrb[0].mxu0
      %v789 = vadd.f32 0.0, %v788
      %v790 = vpop.f32.mrb[0].mxu0
      %791 = vdwg.mxu0
      %v793 = vsel %vm360, %v403, 0
      %v796 = vsel %vm360, %v404, 0
      %v799 = vsel %vm360, %v405, 0
      %v802 = vsel %vm360, %v406, 0
      %v805 = vsel %vm360, %v407, 0
      %v808 = vsel %vm360, %v408, 0
      %v811 = vsel %vm360, %v409, 0
      %v814 = vsel %vm360, %v410, 0
      %v817 = vsel %vm360, %v411, 0
      %v820 = vsel %vm360, %v412, 0
      %v823 = vsel %vm360, %v413, 0
      %v826 = vsel %vm360, %v414, 0
      %v829 = vsel %vm360, %v415, 0
      %v832 = vsel %vm360, %v416, 0
      %v835 = vsel %vm360, %v417, 0
      %v838 = vsel %vm360, %v418, 0
      %v841 = vsel %vm360, %v419, 0
      %v844 = vsel %vm360, %v420, 0
      %v847 = vsel %vm360, %v421, 0
      %v850 = vsel %vm360, %v422, 0
      %v853 = vsel %vm360, %v423, 0
      %v856 = vsel %vm360, %v424, 0
      %v859 = vsel %vm360, %v425, 0
      %v862 = vsel %vm360, %v426, 0
      %v865 = vsel %vm360, %v427, 0
      %v868 = vsel %vm360, %v428, 0
      %v871 = vsel %vm360, %v429, 0
      %v874 = vsel %vm360, %v430, 0
      %v877 = vsel %vm360, %v431, 0
      %v880 = vsel %vm360, %v432, 0
      %v883 = vsel %vm360, %v433, 0
      %v886 = vsel %vm360, %v434, 0
      %v889 = vsel %vm563, %v393, 0
      %891 = vmatprep.subr.mxu0 0.0
      %892 = vmatpush1.msra.mxu0 %v889
      %893 = vmatprep.subr.mxu0 0.0
      %894 = vmatpush1.msra.mxu0 0.0
      %895 = vmatprep.subr.mxu0 0.0
      %896 = vmatpush1.msra.mxu0 0.0
      %897 = vmatprep.subr.mxu0 0.0
      %898 = vmatpush1.msra.mxu0 0.0
      %899 = vmatprep.subr.mxu0 0.0
      %900 = vmatpush1.msra.mxu0 0.0
      %901 = vmatprep.subr.mxu0 0.0
      %902 = vmatpush1.msra.mxu0 0.0
      %903 = vmatprep.subr.mxu0 0.0
      %904 = vmatpush1.msra.mxu0 0.0
      %905 = vmatprep.subr.mxu0 0.0
      %906 = vmatpush1.msra.mxu0 0.0
      %907 = vmatprep.subr.mxu0 0.0
      %908 = vmatpush1.msra.mxu0 0.0
      %909 = vmatprep.subr.mxu0 0.0
      %910 = vmatpush1.msra.mxu0 0.0
      %911 = vmatprep.subr.mxu0 0.0
      %912 = vmatpush1.msra.mxu0 0.0
      %913 = vmatprep.subr.mxu0 0.0
      %914 = vmatpush1.msra.mxu0 0.0
      %915 = vmatprep.subr.mxu0 0.0
      %916 = vmatpush1.msra.mxu0 0.0
      %917 = vmatprep.subr.mxu0 0.0
      %918 = vmatpush1.msra.mxu0 0.0
      %919 = vmatprep.subr.mxu0 0.0
      %920 = vmatpush1.msra.mxu0 0.0
      %921 = vmatprep.subr.mxu0 0.0
      %922 = vmatpush1.msra.mxu0 0.0
      %923 = vmatprep.subr.mxu0 0.0
      %924 = vmatpush1.msra.mxu0 0.0
      %925 = vmatprep.subr.mxu0 0.0
      %926 = vmatpush1.msra.mxu0 0.0
      %927 = vmatprep.subr.mxu0 0.0
      %928 = vmatpush1.msra.mxu0 0.0
      %929 = vmatprep.subr.mxu0 0.0
      %930 = vmatpush1.msra.mxu0 0.0
      %931 = vmatprep.subr.mxu0 0.0
      %932 = vmatpush1.msra.mxu0 0.0
      %933 = vmatprep.subr.mxu0 0.0
      %934 = vmatpush1.msra.mxu0 0.0
      %935 = vmatprep.subr.mxu0 0.0
      %936 = vmatpush1.msra.mxu0 0.0
      %937 = vmatprep.subr.mxu0 0.0
      %938 = vmatpush1.msra.mxu0 0.0
      %939 = vmatprep.subr.mxu0 0.0
      %940 = vmatpush1.msra.mxu0 0.0
      %941 = vmatprep.subr.mxu0 0.0
      %942 = vmatpush1.msra.mxu0 0.0
      %943 = vmatprep.subr.mxu0 0.0
      %944 = vmatpush1.msra.mxu0 0.0
      %945 = vmatprep.subr.mxu0 0.0
      %946 = vmatpush1.msra.mxu0 0.0
      %947 = vmatprep.subr.mxu0 0.0
      %948 = vmatpush1.msra.mxu0 0.0
      %949 = vmatprep.subr.mxu0 0.0
      %950 = vmatpush1.msra.mxu0 0.0
      %951 = vmatprep.subr.mxu0 0.0
      %952 = vmatpush1.msra.mxu0 0.0
      %953 = vmatprep.subr.mxu0 0.0
      %954 = vmatpush1.msra.mxu0 0.0
      %955 = vmatprep.mubr.f32.mxu0 0.0
      %956 = vmatmul.mubr.f32.gmra.mrb[0].mxu0 %v793
      %v957 = vpop.f32.mrb[0].mxu0
      %v958 = vadd.f32 %v634, %v957
      %v959 = vpop.f32.mrb[0].mxu0
      %960 = vmatprep.mubr.f32.mxu0 0.0
      %961 = vmatmul.mubr.f32.gmra.mrb[0].mxu0 %v796
      %v962 = vpop.f32.mrb[0].mxu0
      %v963 = vadd.f32 %v639, %v962
      %v964 = vpop.f32.mrb[0].mxu0
      %965 = vmatprep.mubr.f32.mxu0 0.0
      %966 = vmatmul.mubr.f32.gmra.mrb[0].mxu0 %v799
      %v967 = vpop.f32.mrb[0].mxu0
      %v968 = vadd.f32 %v644, %v967
      %v969 = vpop.f32.mrb[0].mxu0
      %970 = vmatprep.mubr.f32.mxu0 0.0
      %971 = vmatmul.mubr.f32.gmra.mrb[0].mxu0 %v802
      %v972 = vpop.f32.mrb[0].mxu0
      %v973 = vadd.f32 %v649, %v972
      %v974 = vpop.f32.mrb[0].mxu0
      %975 = vmatprep.mubr.f32.mxu0 0.0
      %976 = vmatmul.mubr.f32.gmra.mrb[0].mxu0 %v805
      %v977 = vpop.f32.mrb[0].mxu0
      %v978 = vadd.f32 %v654, %v977
      %v979 = vpop.f32.mrb[0].mxu0
      %980 = vmatprep.mubr.f32.mxu0 0.0
      %981 = vmatmul.mubr.f32.gmra.mrb[0].mxu0 %v808
      %v982 = vpop.f32.mrb[0].mxu0
      %v983 = vadd.f32 %v659, %v982
      %v984 = vpop.f32.mrb[0].mxu0
      %985 = vmatprep.mubr.f32.mxu0 0.0
      %986 = vmatmul.mubr.f32.gmra.mrb[0].mxu0 %v811
      %v987 = vpop.f32.mrb[0].mxu0
      %v988 = vadd.f32 %v664, %v987
      %v989 = vpop.f32.mrb[0].mxu0
      %990 = vmatprep.mubr.f32.mxu0 0.0
      %991 = vmatmul.mubr.f32.gmra.mrb[0].mxu0 %v814
      %v992 = vpop.f32.mrb[0].mxu0
      %v993 = vadd.f32 %v669, %v992
      %v994 = vpop.f32.mrb[0].mxu0
      %995 = vmatprep.mubr.f32.mxu0 0.0
      %996 = vmatmul.mubr.f32.gmra.mrb[0].mxu0 %v817
      %v997 = vpop.f32.mrb[0].mxu0
      %v998 = vadd.f32 %v674, %v997
      %v999 = vpop.f32.mrb[0].mxu0
      %1000 = vmatprep.mubr.f32.mxu0 0.0
      %1001 = vmatmul.mubr.f32.gmra.mrb[0].mxu0 %v820
      %v1002 = vpop.f32.mrb[0].mxu0
      %v1003 = vadd.f32 %v679, %v1002
      %v1004 = vpop.f32.mrb[0].mxu0
      %1005 = vmatprep.mubr.f32.mxu0 0.0
      %1006 = vmatmul.mubr.f32.gmra.mrb[0].mxu0 %v823
      %v1007 = vpop.f32.mrb[0].mxu0
      %v1008 = vadd.f32 %v684, %v1007
      %v1009 = vpop.f32.mrb[0].mxu0
      %1010 = vmatprep.mubr.f32.mxu0 0.0
      %1011 = vmatmul.mubr.f32.gmra.mrb[0].mxu0 %v826
      %v1012 = vpop.f32.mrb[0].mxu0
      %v1013 = vadd.f32 %v689, %v1012
      %v1014 = vpop.f32.mrb[0].mxu0
      %1015 = vmatprep.mubr.f32.mxu0 0.0
      %1016 = vmatmul.mubr.f32.gmra.mrb[0].mxu0 %v829
      %v1017 = vpop.f32.mrb[0].mxu0
      %v1018 = vadd.f32 %v694, %v1017
      %v1019 = vpop.f32.mrb[0].mxu0
      %1020 = vmatprep.mubr.f32.mxu0 0.0
      %1021 = vmatmul.mubr.f32.gmra.mrb[0].mxu0 %v832
      %v1022 = vpop.f32.mrb[0].mxu0
      %v1023 = vadd.f32 %v699, %v1022
      %v1024 = vpop.f32.mrb[0].mxu0
      %1025 = vmatprep.mubr.f32.mxu0 0.0
      %1026 = vmatmul.mubr.f32.gmra.mrb[0].mxu0 %v835
      %v1027 = vpop.f32.mrb[0].mxu0
      %v1028 = vadd.f32 %v704, %v1027
      %v1029 = vpop.f32.mrb[0].mxu0
      %1030 = vmatprep.mubr.f32.mxu0 0.0
      %1031 = vmatmul.mubr.f32.gmra.mrb[0].mxu0 %v838
      %v1032 = vpop.f32.mrb[0].mxu0
      %v1033 = vadd.f32 %v709, %v1032
      %v1034 = vpop.f32.mrb[0].mxu0
      %1035 = vmatprep.mubr.f32.mxu0 0.0
      %1036 = vmatmul.mubr.f32.gmra.mrb[0].mxu0 %v841
      %v1037 = vpop.f32.mrb[0].mxu0
      %v1038 = vadd.f32 %v714, %v1037
      %v1039 = vpop.f32.mrb[0].mxu0
      %1040 = vmatprep.mubr.f32.mxu0 0.0
      %1041 = vmatmul.mubr.f32.gmra.mrb[0].mxu0 %v844
      %v1042 = vpop.f32.mrb[0].mxu0
      %v1043 = vadd.f32 %v719, %v1042
      %v1044 = vpop.f32.mrb[0].mxu0
      %1045 = vmatprep.mubr.f32.mxu0 0.0
      %1046 = vmatmul.mubr.f32.gmra.mrb[0].mxu0 %v847
      %v1047 = vpop.f32.mrb[0].mxu0
      %v1048 = vadd.f32 %v724, %v1047
      %v1049 = vpop.f32.mrb[0].mxu0
      %1050 = vmatprep.mubr.f32.mxu0 0.0
      %1051 = vmatmul.mubr.f32.gmra.mrb[0].mxu0 %v850
      %v1052 = vpop.f32.mrb[0].mxu0
      %v1053 = vadd.f32 %v729, %v1052
      %v1054 = vpop.f32.mrb[0].mxu0
      %1055 = vmatprep.mubr.f32.mxu0 0.0
      %1056 = vmatmul.mubr.f32.gmra.mrb[0].mxu0 %v853
      %v1057 = vpop.f32.mrb[0].mxu0
      %v1058 = vadd.f32 %v734, %v1057
      %v1059 = vpop.f32.mrb[0].mxu0
      %1060 = vmatprep.mubr.f32.mxu0 0.0
      %1061 = vmatmul.mubr.f32.gmra.mrb[0].mxu0 %v856
      %v1062 = vpop.f32.mrb[0].mxu0
      %v1063 = vadd.f32 %v739, %v1062
      %v1064 = vpop.f32.mrb[0].mxu0
      %1065 = vmatprep.mubr.f32.mxu0 0.0
      %1066 = vmatmul.mubr.f32.gmra.mrb[0].mxu0 %v859
      %v1067 = vpop.f32.mrb[0].mxu0
      %v1068 = vadd.f32 %v744, %v1067
      %v1069 = vpop.f32.mrb[0].mxu0
      %1070 = vmatprep.mubr.f32.mxu0 0.0
      %1071 = vmatmul.mubr.f32.gmra.mrb[0].mxu0 %v862
      %v1072 = vpop.f32.mrb[0].mxu0
      %v1073 = vadd.f32 %v749, %v1072
      %v1074 = vpop.f32.mrb[0].mxu0
      %1075 = vmatprep.mubr.f32.mxu0 0.0
      %1076 = vmatmul.mubr.f32.gmra.mrb[0].mxu0 %v865
      %v1077 = vpop.f32.mrb[0].mxu0
      %v1078 = vadd.f32 %v754, %v1077
      %v1079 = vpop.f32.mrb[0].mxu0
      %1080 = vmatprep.mubr.f32.mxu0 0.0
      %1081 = vmatmul.mubr.f32.gmra.mrb[0].mxu0 %v868
      %v1082 = vpop.f32.mrb[0].mxu0
      %v1083 = vadd.f32 %v759, %v1082
      %v1084 = vpop.f32.mrb[0].mxu0
      %1085 = vmatprep.mubr.f32.mxu0 0.0
      %1086 = vmatmul.mubr.f32.gmra.mrb[0].mxu0 %v871
      %v1087 = vpop.f32.mrb[0].mxu0
      %v1088 = vadd.f32 %v764, %v1087
      %v1089 = vpop.f32.mrb[0].mxu0
      %1090 = vmatprep.mubr.f32.mxu0 0.0
      %1091 = vmatmul.mubr.f32.gmra.mrb[0].mxu0 %v874
      %v1092 = vpop.f32.mrb[0].mxu0
      %v1093 = vadd.f32 %v769, %v1092
      %v1094 = vpop.f32.mrb[0].mxu0
      %1095 = vmatprep.mubr.f32.mxu0 0.0
      %1096 = vmatmul.mubr.f32.gmra.mrb[0].mxu0 %v877
      %v1097 = vpop.f32.mrb[0].mxu0
      %v1098 = vadd.f32 %v774, %v1097
      %v1099 = vpop.f32.mrb[0].mxu0
      %1100 = vmatprep.mubr.f32.mxu0 0.0
      %1101 = vmatmul.mubr.f32.gmra.mrb[0].mxu0 %v880
      %v1102 = vpop.f32.mrb[0].mxu0
      %v1103 = vadd.f32 %v779, %v1102
      %v1104 = vpop.f32.mrb[0].mxu0
      %1105 = vmatprep.mubr.f32.mxu0 0.0
      %1106 = vmatmul.mubr.f32.gmra.mrb[0].mxu0 %v883
      %v1107 = vpop.f32.mrb[0].mxu0
      %v1108 = vadd.f32 %v784, %v1107
      %v1109 = vpop.f32.mrb[0].mxu0
      %1110 = vmatprep.mubr.f32.mxu0 0.0
      %1111 = vmatmul.mubr.f32.gmra.mrb[0].mxu0 %v886
      %v1112 = vpop.f32.mrb[0].mxu0
      %v1113 = vadd.f32 %v789, %v1112
      %v1114 = vpop.f32.mrb[0].mxu0
      %1115 = vdwg.mxu0
      %v1116 = vld [vmem:[#allocation2 + $0x4] sm:$0xff]
      %v1117 = vld [vmem:[#allocation2 + $0xc] sm:$0xff]
      %v1118 = vld [vmem:[#allocation2 + $0x1c] sm:$0xff]
      %v1119 = vld [vmem:[#allocation2 + $0x24] sm:$0xff]
      %v1120 = vld [vmem:[#allocation2 + $0x34] sm:$0xff]
      %v1121 = vld [vmem:[#allocation2 + $0x3c] sm:$0xff]
      %v1122 = vld [vmem:[#allocation2 + $0x4c] sm:$0xff]
      %v1123 = vld [vmem:[#allocation2 + $0x54] sm:$0xff]
      %v1124 = vld [vmem:[#allocation2 + $0x64] sm:$0xff]
      %v1125 = vld [vmem:[#allocation2 + $0x6c] sm:$0xff]
      %v1126 = vld [vmem:[#allocation2 + $0x7c] sm:$0xff]
      %v1127 = vld [vmem:[#allocation2 + $0x84] sm:$0xff]
      %v1128 = vld [vmem:[#allocation2 + $0x94] sm:$0xff]
      %v1129 = vld [vmem:[#allocation2 + $0x9c] sm:$0xff]
      %v1130 = vld [vmem:[#allocation2 + $0xac] sm:$0xff]
      %v1131 = vld [vmem:[#allocation2 + $0xb4] sm:$0xff]
      %v1132 = vld [vmem:[#allocation2 + $0xc4] sm:$0xff]
      %v1133 = vld [vmem:[#allocation2 + $0xcc] sm:$0xff]
      %v1134 = vld [vmem:[#allocation2 + $0xdc] sm:$0xff]
      %v1135 = vld [vmem:[#allocation2 + $0xe4] sm:$0xff]
      %v1136 = vld [vmem:[#allocation2 + $0xf4] sm:$0xff]
      %v1137 = vld [vmem:[#allocation2 + $0xfc] sm:$0xff]
      %v1138 = vld [vmem:[#allocation2 + $0x10c] sm:$0xff]
      %v1139 = vld [vmem:[#allocation2 + $0x114] sm:$0xff]
      %v1140 = vld [vmem:[#allocation2 + $0x124] sm:$0xff]
      %v1141 = vld [vmem:[#allocation2 + $0x12c] sm:$0xff]
      %v1142 = vld [vmem:[#allocation2 + $0x13c] sm:$0xff]
      %v1143 = vld [vmem:[#allocation2 + $0x144] sm:$0xff]
      %v1144 = vld [vmem:[#allocation2 + $0x154] sm:$0xff]
      %v1145 = vld [vmem:[#allocation2 + $0x15c] sm:$0xff]
      %v1146 = vld [vmem:[#allocation2 + $0x16c] sm:$0xff]
      %v1147 = vld [vmem:[#allocation2 + $0x174] sm:$0xff]
      %v1149 = vsel %vm360, %v1116, 0
      %v1152 = vsel %vm360, %v1117, 0
      %v1155 = vsel %vm360, %v1118, 0
      %v1158 = vsel %vm360, %v1119, 0
      %v1161 = vsel %vm360, %v1120, 0
      %v1164 = vsel %vm360, %v1121, 0
      %v1167 = vsel %vm360, %v1122, 0
      %v1170 = vsel %vm360, %v1123, 0
      %v1173 = vsel %vm360, %v1124, 0
      %v1176 = vsel %vm360, %v1125, 0
      %v1179 = vsel %vm360, %v1126, 0
      %v1182 = vsel %vm360, %v1127, 0
      %v1185 = vsel %vm360, %v1128, 0
      %v1188 = vsel %vm360, %v1129, 0
      %v1191 = vsel %vm360, %v1130, 0
      %v1194 = vsel %vm360, %v1131, 0
      %v1197 = vsel %vm360, %v1132, 0
      %v1200 = vsel %vm360, %v1133, 0
      %v1203 = vsel %vm360, %v1134, 0
      %v1206 = vsel %vm360, %v1135, 0
      %v1209 = vsel %vm360, %v1136, 0
      %v1212 = vsel %vm360, %v1137, 0
      %v1215 = vsel %vm360, %v1138, 0
      %v1218 = vsel %vm360, %v1139, 0
      %v1221 = vsel %vm360, %v1140, 0
      %v1224 = vsel %vm360, %v1141, 0
      %v1227 = vsel %vm360, %v1142, 0
      %v1230 = vsel %vm360, %v1143, 0
      %v1233 = vsel %vm360, %v1144, 0
      %v1236 = vsel %vm360, %v1145, 0
      %v1239 = vsel %vm360, %v1146, 0
      %v1242 = vsel %vm360, %v1147, 0
      %v1245 = vsel %vm563, %v395, 0
      %1247 = vmatprep.subr.mxu0 0.0
      %1248 = vmatpush1.msra.mxu0 %v1245
      %1249 = vmatprep.subr.mxu0 0.0
      %1250 = vmatpush1.msra.mxu0 0.0
      %1251 = vmatprep.subr.mxu0 0.0
      %1252 = vmatpush1.msra.mxu0 0.0
      %1253 = vmatprep.subr.mxu0 0.0
      %1254 = vmatpush1.msra.mxu0 0.0
      %1255 = vmatprep.subr.mxu0 0.0
      %1256 = vmatpush1.msra.mxu0 0.0
      %1257 = vmatprep.subr.mxu0 0.0
      %1258 = vmatpush1.msra.mxu0 0.0
      %1259 = vmatprep.subr.mxu0 0.0
      %1260 = vmatpush1.msra.mxu0 0.0
      %1261 = vmatprep.subr.mxu0 0.0
      %1262 = vmatpush1.msra.mxu0 0.0
      %1263 = vmatprep.subr.mxu0 0.0
      %1264 = vmatpush1.msra.mxu0 0.0
      %1265 = vmatprep.subr.mxu0 0.0
      %1266 = vmatpush1.msra.mxu0 0.0
      %1267 = vmatprep.subr.mxu0 0.0
      %1268 = vmatpush1.msra.mxu0 0.0
      %1269 = vmatprep.subr.mxu0 0.0
      %1270 = vmatpush1.msra.mxu0 0.0
      %1271 = vmatprep.subr.mxu0 0.0
      %1272 = vmatpush1.msra.mxu0 0.0
      %1273 = vmatprep.subr.mxu0 0.0
      %1274 = vmatpush1.msra.mxu0 0.0
      %1275 = vmatprep.subr.mxu0 0.0
      %1276 = vmatpush1.msra.mxu0 0.0
      %1277 = vmatprep.subr.mxu0 0.0
      %1278 = vmatpush1.msra.mxu0 0.0
      %1279 = vmatprep.subr.mxu0 0.0
      %1280 = vmatpush1.msra.mxu0 0.0
      %1281 = vmatprep.subr.mxu0 0.0
      %1282 = vmatpush1.msra.mxu0 0.0
      %1283 = vmatprep.subr.mxu0 0.0
      %1284 = vmatpush1.msra.mxu0 0.0
      %1285 = vmatprep.subr.mxu0 0.0
      %1286 = vmatpush1.msra.mxu0 0.0
      %1287 = vmatprep.subr.mxu0 0.0
      %1288 = vmatpush1.msra.mxu0 0.0
      %1289 = vmatprep.subr.mxu0 0.0
      %1290 = vmatpush1.msra.mxu0 0.0
      %1291 = vmatprep.subr.mxu0 0.0
      %1292 = vmatpush1.msra.mxu0 0.0
      %1293 = vmatprep.subr.mxu0 0.0
      %1294 = vmatpush1.msra.mxu0 0.0
      %1295 = vmatprep.subr.mxu0 0.0
      %1296 = vmatpush1.msra.mxu0 0.0
      %1297 = vmatprep.subr.mxu0 0.0
      %1298 = vmatpush1.msra.mxu0 0.0
      %1299 = vmatprep.subr.mxu0 0.0
      %1300 = vmatpush1.msra.mxu0 0.0
      %1301 = vmatprep.subr.mxu0 0.0
      %1302 = vmatpush1.msra.mxu0 0.0
      %1303 = vmatprep.subr.mxu0 0.0
      %1304 = vmatpush1.msra.mxu0 0.0
      %1305 = vmatprep.subr.mxu0 0.0
      %1306 = vmatpush1.msra.mxu0 0.0
      %1307 = vmatprep.subr.mxu0 0.0
      %1308 = vmatpush1.msra.mxu0 0.0
      %1309 = vmatprep.subr.mxu0 0.0
      %1310 = vmatpush1.msra.mxu0 0.0
      %1311 = vmatprep.mubr.f32.mxu0 0.0
      %1312 = vmatmul.mubr.f32.gmra.mrb[0].mxu0 %v1149
      %v1313 = vpop.f32.mrb[0].mxu0
      %v1314 = vadd.f32 0.0, %v1313
      %v1315 = vpop.f32.mrb[0].mxu0
      %1316 = vmatprep.mubr.f32.mxu0 0.0
      %1317 = vmatmul.mubr.f32.gmra.mrb[0].mxu0 %v1152
      %v1318 = vpop.f32.mrb[0].mxu0
      %v1319 = vadd.f32 0.0, %v1318
      %v1320 = vpop.f32.mrb[0].mxu0
      %1321 = vmatprep.mubr.f32.mxu0 0.0
      %1322 = vmatmul.mubr.f32.gmra.mrb[0].mxu0 %v1155
      %v1323 = vpop.f32.mrb[0].mxu0
      %v1324 = vadd.f32 0.0, %v1323
      %v1325 = vpop.f32.mrb[0].mxu0
      %1326 = vmatprep.mubr.f32.mxu0 0.0
      %1327 = vmatmul.mubr.f32.gmra.mrb[0].mxu0 %v1158
      %v1328 = vpop.f32.mrb[0].mxu0
      %v1329 = vadd.f32 0.0, %v1328
      %v1330 = vpop.f32.mrb[0].mxu0
      %1331 = vmatprep.mubr.f32.mxu0 0.0
      %1332 = vmatmul.mubr.f32.gmra.mrb[0].mxu0 %v1161
      %v1333 = vpop.f32.mrb[0].mxu0
      %v1334 = vadd.f32 0.0, %v1333
      %v1335 = vpop.f32.mrb[0].mxu0
      %1336 = vmatprep.mubr.f32.mxu0 0.0
      %1337 = vmatmul.mubr.f32.gmra.mrb[0].mxu0 %v1164
      %v1338 = vpop.f32.mrb[0].mxu0
      %v1339 = vadd.f32 0.0, %v1338
      %v1340 = vpop.f32.mrb[0].mxu0
      %1341 = vmatprep.mubr.f32.mxu0 0.0
      %1342 = vmatmul.mubr.f32.gmra.mrb[0].mxu0 %v1167
      %v1343 = vpop.f32.mrb[0].mxu0
      %v1344 = vadd.f32 0.0, %v1343
      %v1345 = vpop.f32.mrb[0].mxu0
      %1346 = vmatprep.mubr.f32.mxu0 0.0
      %1347 = vmatmul.mubr.f32.gmra.mrb[0].mxu0 %v1170
      %v1348 = vpop.f32.mrb[0].mxu0
      %v1349 = vadd.f32 0.0, %v1348
      %v1350 = vpop.f32.mrb[0].mxu0
      %1351 = vmatprep.mubr.f32.mxu0 0.0
      %1352 = vmatmul.mubr.f32.gmra.mrb[0].mxu0 %v1173
      %v1353 = vpop.f32.mrb[0].mxu0
      %v1354 = vadd.f32 0.0, %v1353
      %v1355 = vpop.f32.mrb[0].mxu0
      %1356 = vmatprep.mubr.f32.mxu0 0.0
      %1357 = vmatmul.mubr.f32.gmra.mrb[0].mxu0 %v1176
      %v1358 = vpop.f32.mrb[0].mxu0
      %v1359 = vadd.f32 0.0, %v1358
      %v1360 = vpop.f32.mrb[0].mxu0
      %1361 = vmatprep.mubr.f32.mxu0 0.0
      %1362 = vmatmul.mubr.f32.gmra.mrb[0].mxu0 %v1179
      %v1363 = vpop.f32.mrb[0].mxu0
      %v1364 = vadd.f32 0.0, %v1363
      %v1365 = vpop.f32.mrb[0].mxu0
      %1366 = vmatprep.mubr.f32.mxu0 0.0
      %1367 = vmatmul.mubr.f32.gmra.mrb[0].mxu0 %v1182
      %v1368 = vpop.f32.mrb[0].mxu0
      %v1369 = vadd.f32 0.0, %v1368
      %v1370 = vpop.f32.mrb[0].mxu0
      %1371 = vmatprep.mubr.f32.mxu0 0.0
      %1372 = vmatmul.mubr.f32.gmra.mrb[0].mxu0 %v1185
      %v1373 = vpop.f32.mrb[0].mxu0
      %v1374 = vadd.f32 0.0, %v1373
      %v1375 = vpop.f32.mrb[0].mxu0
      %1376 = vmatprep.mubr.f32.mxu0 0.0
      %1377 = vmatmul.mubr.f32.gmra.mrb[0].mxu0 %v1188
      %v1378 = vpop.f32.mrb[0].mxu0
      %v1379 = vadd.f32 0.0, %v1378
      %v1380 = vpop.f32.mrb[0].mxu0
      %1381 = vmatprep.mubr.f32.mxu0 0.0
      %1382 = vmatmul.mubr.f32.gmra.mrb[0].mxu0 %v1191
      %v1383 = vpop.f32.mrb[0].mxu0
      %v1384 = vadd.f32 0.0, %v1383
      %v1385 = vpop.f32.mrb[0].mxu0
      %1386 = vmatprep.mubr.f32.mxu0 0.0
      %1387 = vmatmul.mubr.f32.gmra.mrb[0].mxu0 %v1194
      %v1388 = vpop.f32.mrb[0].mxu0
      %v1389 = vadd.f32 0.0, %v1388
      %v1390 = vpop.f32.mrb[0].mxu0
      %1391 = vmatprep.mubr.f32.mxu0 0.0
      %1392 = vmatmul.mubr.f32.gmra.mrb[0].mxu0 %v1197
      %v1393 = vpop.f32.mrb[0].mxu0
      %v1394 = vadd.f32 0.0, %v1393
      %v1395 = vpop.f32.mrb[0].mxu0
      %1396 = vmatprep.mubr.f32.mxu0 0.0
      %1397 = vmatmul.mubr.f32.gmra.mrb[0].mxu0 %v1200
      %v1398 = vpop.f32.mrb[0].mxu0
      %v1399 = vadd.f32 0.0, %v1398
      %v1400 = vpop.f32.mrb[0].mxu0
      %1401 = vmatprep.mubr.f32.mxu0 0.0
      %1402 = vmatmul.mubr.f32.gmra.mrb[0].mxu0 %v1203
      %v1403 = vpop.f32.mrb[0].mxu0
      %v1404 = vadd.f32 0.0, %v1403
      %v1405 = vpop.f32.mrb[0].mxu0
      %1406 = vmatprep.mubr.f32.mxu0 0.0
      %1407 = vmatmul.mubr.f32.gmra.mrb[0].mxu0 %v1206
      %v1408 = vpop.f32.mrb[0].mxu0
      %v1409 = vadd.f32 0.0, %v1408
      %v1410 = vpop.f32.mrb[0].mxu0
      %1411 = vmatprep.mubr.f32.mxu0 0.0
      %1412 = vmatmul.mubr.f32.gmra.mrb[0].mxu0 %v1209
      %v1413 = vpop.f32.mrb[0].mxu0
      %v1414 = vadd.f32 0.0, %v1413
      %v1415 = vpop.f32.mrb[0].mxu0
      %1416 = vmatprep.mubr.f32.mxu0 0.0
      %1417 = vmatmul.mubr.f32.gmra.mrb[0].mxu0 %v1212
      %v1418 = vpop.f32.mrb[0].mxu0
      %v1419 = vadd.f32 0.0, %v1418
      %v1420 = vpop.f32.mrb[0].mxu0
      %1421 = vmatprep.mubr.f32.mxu0 0.0
      %1422 = vmatmul.mubr.f32.gmra.mrb[0].mxu0 %v1215
      %v1423 = vpop.f32.mrb[0].mxu0
      %v1424 = vadd.f32 0.0, %v1423
      %v1425 = vpop.f32.mrb[0].mxu0
      %1426 = vmatprep.mubr.f32.mxu0 0.0
      %1427 = vmatmul.mubr.f32.gmra.mrb[0].mxu0 %v1218
      %v1428 = vpop.f32.mrb[0].mxu0
      %v1429 = vadd.f32 0.0, %v1428
      %v1430 = vpop.f32.mrb[0].mxu0
      %1431 = vmatprep.mubr.f32.mxu0 0.0
      %1432 = vmatmul.mubr.f32.gmra.mrb[0].mxu0 %v1221
      %v1433 = vpop.f32.mrb[0].mxu0
      %v1434 = vadd.f32 0.0, %v1433
      %v1435 = vpop.f32.mrb[0].mxu0
      %1436 = vmatprep.mubr.f32.mxu0 0.0
      %1437 = vmatmul.mubr.f32.gmra.mrb[0].mxu0 %v1224
      %v1438 = vpop.f32.mrb[0].mxu0
      %v1439 = vadd.f32 0.0, %v1438
      %v1440 = vpop.f32.mrb[0].mxu0
      %1441 = vmatprep.mubr.f32.mxu0 0.0
      %1442 = vmatmul.mubr.f32.gmra.mrb[0].mxu0 %v1227
      %v1443 = vpop.f32.mrb[0].mxu0
      %v1444 = vadd.f32 0.0, %v1443
      %v1445 = vpop.f32.mrb[0].mxu0
      %1446 = vmatprep.mubr.f32.mxu0 0.0
      %1447 = vmatmul.mubr.f32.gmra.mrb[0].mxu0 %v1230
      %v1448 = vpop.f32.mrb[0].mxu0
      %v1449 = vadd.f32 0.0, %v1448
      %v1450 = vpop.f32.mrb[0].mxu0
      %1451 = vmatprep.mubr.f32.mxu0 0.0
      %1452 = vmatmul.mubr.f32.gmra.mrb[0].mxu0 %v1233
      %v1453 = vpop.f32.mrb[0].mxu0
      %v1454 = vadd.f32 0.0, %v1453
      %v1455 = vpop.f32.mrb[0].mxu0
      %1456 = vmatprep.mubr.f32.mxu0 0.0
      %1457 = vmatmul.mubr.f32.gmra.mrb[0].mxu0 %v1236
      %v1458 = vpop.f32.mrb[0].mxu0
      %v1459 = vadd.f32 0.0, %v1458
      %v1460 = vpop.f32.mrb[0].mxu0
      %1461 = vmatprep.mubr.f32.mxu0 0.0
      %1462 = vmatmul.mubr.f32.gmra.mrb[0].mxu0 %v1239
      %v1463 = vpop.f32.mrb[0].mxu0
      %v1464 = vadd.f32 0.0, %v1463
      %v1465 = vpop.f32.mrb[0].mxu0
      %1466 = vmatprep.mubr.f32.mxu0 0.0
      %1467 = vmatmul.mubr.f32.gmra.mrb[0].mxu0 %v1242
      %v1468 = vpop.f32.mrb[0].mxu0
      %v1469 = vadd.f32 0.0, %v1468
      %v1470 = vpop.f32.mrb[0].mxu0
      %1471 = vdwg.mxu0
      %v1472 = vadd.f32 %v958, %v1314
      %v1473 = vadd.f32 %v963, %v1319
      %v1474 = vadd.f32 %v968, %v1324
      %v1475 = vadd.f32 %v973, %v1329
      %v1476 = vadd.f32 %v978, %v1334
      %v1477 = vadd.f32 %v983, %v1339
      %v1478 = vadd.f32 %v988, %v1344
      %v1479 = vadd.f32 %v993, %v1349
      %v1480 = vadd.f32 %v998, %v1354
      %v1481 = vadd.f32 %v1003, %v1359
      %v1482 = vadd.f32 %v1008, %v1364
      %v1483 = vadd.f32 %v1013, %v1369
      %v1484 = vadd.f32 %v1018, %v1374
      %v1485 = vadd.f32 %v1023, %v1379
      %v1486 = vadd.f32 %v1028, %v1384
      %v1487 = vadd.f32 %v1033, %v1389
      %v1488 = vadd.f32 %v1038, %v1394
      %v1489 = vadd.f32 %v1043, %v1399
      %v1490 = vadd.f32 %v1048, %v1404
      %v1491 = vadd.f32 %v1053, %v1409
      %v1492 = vadd.f32 %v1058, %v1414
      %v1493 = vadd.f32 %v1063, %v1419
      %v1494 = vadd.f32 %v1068, %v1424
      %v1495 = vadd.f32 %v1073, %v1429
      %v1496 = vadd.f32 %v1078, %v1434
      %v1497 = vadd.f32 %v1083, %v1439
      %v1498 = vadd.f32 %v1088, %v1444
      %v1499 = vadd.f32 %v1093, %v1449
      %v1500 = vadd.f32 %v1098, %v1454
      %v1501 = vadd.f32 %v1103, %v1459
      %v1502 = vadd.f32 %v1108, %v1464
      %v1503 = vadd.f32 %v1113, %v1469
      %v1504 = vld [vmem:[%s294] sm:$0xff]
      %v1505 = vld [vmem:[%s294 + $0x8] sm:$0xff]
      %v1506 = vld [vmem:[%s294 + $0x18] sm:$0xff]
      %v1507 = vld [vmem:[%s294 + $0x20] sm:$0xff]
      %v1508 = vld [vmem:[%s294 + $0x30] sm:$0xff]
      %v1509 = vld [vmem:[%s294 + $0x38] sm:$0xff]
      %v1510 = vld [vmem:[%s294 + $0x48] sm:$0xff]
      %v1511 = vld [vmem:[%s294 + $0x50] sm:$0xff]
      %v1512 = vld [vmem:[%s294 + $0x60] sm:$0xff]
      %v1513 = vld [vmem:[%s294 + $0x68] sm:$0xff]
      %v1514 = vld [vmem:[%s294 + $0x78] sm:$0xff]
      %v1515 = vld [vmem:[%s294 + $0x80] sm:$0xff]
      %v1516 = vld [vmem:[%s294 + $0x90] sm:$0xff]
      %v1517 = vld [vmem:[%s294 + $0x98] sm:$0xff]
      %v1518 = vld [vmem:[%s294 + $0xa8] sm:$0xff]
      %v1519 = vld [vmem:[%s294 + $0xb0] sm:$0xff]
      %v1520 = vld [vmem:[%s294 + $0xc0] sm:$0xff]
      %v1521 = vld [vmem:[%s294 + $0xc8] sm:$0xff]
      %v1522 = vld [vmem:[%s294 + $0xd8] sm:$0xff]
      %v1523 = vld [vmem:[%s294 + $0xe0] sm:$0xff]
      %v1524 = vld [vmem:[%s294 + $0xf0] sm:$0xff]
      %v1525 = vld [vmem:[%s294 + $0xf8] sm:$0xff]
      %v1526 = vld [vmem:[%s294 + $0x108] sm:$0xff]
      %v1527 = vld [vmem:[%s294 + $0x110] sm:$0xff]
      %v1528 = vld [vmem:[%s294 + $0x120] sm:$0xff]
      %v1529 = vld [vmem:[%s294 + $0x128] sm:$0xff]
      %v1530 = vld [vmem:[%s294 + $0x138] sm:$0xff]
      %v1531 = vld [vmem:[%s294 + $0x140] sm:$0xff]
      %v1532 = vld [vmem:[%s294 + $0x150] sm:$0xff]
      %v1533 = vld [vmem:[%s294 + $0x158] sm:$0xff]
      %v1534 = vld [vmem:[%s294 + $0x168] sm:$0xff]
      %v1535 = vld [vmem:[%s294 + $0x170] sm:$0xff]
      %v1537 = vsel %vm360, %v1504, 0
      %v1540 = vsel %vm360, %v1505, 0
      %v1543 = vsel %vm360, %v1506, 0
      %v1546 = vsel %vm360, %v1507, 0
      %v1549 = vsel %vm360, %v1508, 0
      %v1552 = vsel %vm360, %v1509, 0
      %v1555 = vsel %vm360, %v1510, 0
      %v1558 = vsel %vm360, %v1511, 0
      %v1561 = vsel %vm360, %v1512, 0
      %v1564 = vsel %vm360, %v1513, 0
      %v1567 = vsel %vm360, %v1514, 0
      %v1570 = vsel %vm360, %v1515, 0
      %v1573 = vsel %vm360, %v1516, 0
      %v1576 = vsel %vm360, %v1517, 0
      %v1579 = vsel %vm360, %v1518, 0
      %v1582 = vsel %vm360, %v1519, 0
      %v1585 = vsel %vm360, %v1520, 0
      %v1588 = vsel %vm360, %v1521, 0
      %v1591 = vsel %vm360, %v1522, 0
      %v1594 = vsel %vm360, %v1523, 0
      %v1597 = vsel %vm360, %v1524, 0
      %v1600 = vsel %vm360, %v1525, 0
      %v1603 = vsel %vm360, %v1526, 0
      %v1606 = vsel %vm360, %v1527, 0
      %v1609 = vsel %vm360, %v1528, 0
      %v1612 = vsel %vm360, %v1529, 0
      %v1615 = vsel %vm360, %v1530, 0
      %v1618 = vsel %vm360, %v1531, 0
      %v1621 = vsel %vm360, %v1532, 0
      %v1624 = vsel %vm360, %v1533, 0
      %v1627 = vsel %vm360, %v1534, 0
      %v1630 = vsel %vm360, %v1535, 0
      %v1633 = vsel %vm563, %v396, 0
      %1635 = vmatprep.subr.mxu0 0.0
      %1636 = vmatpush1.msra.mxu0 %v1633
      %1637 = vmatprep.subr.mxu0 0.0
      %1638 = vmatpush1.msra.mxu0 0.0
      %1639 = vmatprep.subr.mxu0 0.0
      %1640 = vmatpush1.msra.mxu0 0.0
      %1641 = vmatprep.subr.mxu0 0.0
      %1642 = vmatpush1.msra.mxu0 0.0
      %1643 = vmatprep.subr.mxu0 0.0
      %1644 = vmatpush1.msra.mxu0 0.0
      %1645 = vmatprep.subr.mxu0 0.0
      %1646 = vmatpush1.msra.mxu0 0.0
      %1647 = vmatprep.subr.mxu0 0.0
      %1648 = vmatpush1.msra.mxu0 0.0
      %1649 = vmatprep.subr.mxu0 0.0
      %1650 = vmatpush1.msra.mxu0 0.0
      %1651 = vmatprep.subr.mxu0 0.0
      %1652 = vmatpush1.msra.mxu0 0.0
      %1653 = vmatprep.subr.mxu0 0.0
      %1654 = vmatpush1.msra.mxu0 0.0
      %1655 = vmatprep.subr.mxu0 0.0
      %1656 = vmatpush1.msra.mxu0 0.0
      %1657 = vmatprep.subr.mxu0 0.0
      %1658 = vmatpush1.msra.mxu0 0.0
      %1659 = vmatprep.subr.mxu0 0.0
      %1660 = vmatpush1.msra.mxu0 0.0
      %1661 = vmatprep.subr.mxu0 0.0
      %1662 = vmatpush1.msra.mxu0 0.0
      %1663 = vmatprep.subr.mxu0 0.0
      %1664 = vmatpush1.msra.mxu0 0.0
      %1665 = vmatprep.subr.mxu0 0.0
      %1666 = vmatpush1.msra.mxu0 0.0
      %1667 = vmatprep.subr.mxu0 0.0
      %1668 = vmatpush1.msra.mxu0 0.0
      %1669 = vmatprep.subr.mxu0 0.0
      %1670 = vmatpush1.msra.mxu0 0.0
      %1671 = vmatprep.subr.mxu0 0.0
      %1672 = vmatpush1.msra.mxu0 0.0
      %1673 = vmatprep.subr.mxu0 0.0
      %1674 = vmatpush1.msra.mxu0 0.0
      %1675 = vmatprep.subr.mxu0 0.0
      %1676 = vmatpush1.msra.mxu0 0.0
      %1677 = vmatprep.subr.mxu0 0.0
      %1678 = vmatpush1.msra.mxu0 0.0
      %1679 = vmatprep.subr.mxu0 0.0
      %1680 = vmatpush1.msra.mxu0 0.0
      %1681 = vmatprep.subr.mxu0 0.0
      %1682 = vmatpush1.msra.mxu0 0.0
      %1683 = vmatprep.subr.mxu0 0.0
      %1684 = vmatpush1.msra.mxu0 0.0
      %1685 = vmatprep.subr.mxu0 0.0
      %1686 = vmatpush1.msra.mxu0 0.0
      %1687 = vmatprep.subr.mxu0 0.0
      %1688 = vmatpush1.msra.mxu0 0.0
      %1689 = vmatprep.subr.mxu0 0.0
      %1690 = vmatpush1.msra.mxu0 0.0
      %1691 = vmatprep.subr.mxu0 0.0
      %1692 = vmatpush1.msra.mxu0 0.0
      %1693 = vmatprep.subr.mxu0 0.0
      %1694 = vmatpush1.msra.mxu0 0.0
      %1695 = vmatprep.subr.mxu0 0.0
      %1696 = vmatpush1.msra.mxu0 0.0
      %1697 = vmatprep.subr.mxu0 0.0
      %1698 = vmatpush1.msra.mxu0 0.0
      %1699 = vmatprep.mubr.f32.mxu0 0.0
      %1700 = vmatmul.mubr.f32.gmra.mrb[0].mxu0 %v1537
      %v1701 = vpop.f32.mrb[0].mxu0
      %v1702 = vadd.f32 0.0, %v1701
      %v1703 = vpop.f32.mrb[0].mxu0
      %1704 = vmatprep.mubr.f32.mxu0 0.0
      %1705 = vmatmul.mubr.f32.gmra.mrb[0].mxu0 %v1540
      %v1706 = vpop.f32.mrb[0].mxu0
      %v1707 = vadd.f32 0.0, %v1706
      %v1708 = vpop.f32.mrb[0].mxu0
      %1709 = vmatprep.mubr.f32.mxu0 0.0
      %1710 = vmatmul.mubr.f32.gmra.mrb[0].mxu0 %v1543
      %v1711 = vpop.f32.mrb[0].mxu0
      %v1712 = vadd.f32 0.0, %v1711
      %v1713 = vpop.f32.mrb[0].mxu0
      %1714 = vmatprep.mubr.f32.mxu0 0.0
      %1715 = vmatmul.mubr.f32.gmra.mrb[0].mxu0 %v1546
      %v1716 = vpop.f32.mrb[0].mxu0
      %v1717 = vadd.f32 0.0, %v1716
      %v1718 = vpop.f32.mrb[0].mxu0
      %1719 = vmatprep.mubr.f32.mxu0 0.0
      %1720 = vmatmul.mubr.f32.gmra.mrb[0].mxu0 %v1549
      %v1721 = vpop.f32.mrb[0].mxu0
      %v1722 = vadd.f32 0.0, %v1721
      %v1723 = vpop.f32.mrb[0].mxu0
      %1724 = vmatprep.mubr.f32.mxu0 0.0
      %1725 = vmatmul.mubr.f32.gmra.mrb[0].mxu0 %v1552
      %v1726 = vpop.f32.mrb[0].mxu0
      %v1727 = vadd.f32 0.0, %v1726
      %v1728 = vpop.f32.mrb[0].mxu0
      %1729 = vmatprep.mubr.f32.mxu0 0.0
      %1730 = vmatmul.mubr.f32.gmra.mrb[0].mxu0 %v1555
      %v1731 = vpop.f32.mrb[0].mxu0
      %v1732 = vadd.f32 0.0, %v1731
      %v1733 = vpop.f32.mrb[0].mxu0
      %1734 = vmatprep.mubr.f32.mxu0 0.0
      %1735 = vmatmul.mubr.f32.gmra.mrb[0].mxu0 %v1558
      %v1736 = vpop.f32.mrb[0].mxu0
      %v1737 = vadd.f32 0.0, %v1736
      %v1738 = vpop.f32.mrb[0].mxu0
      %1739 = vmatprep.mubr.f32.mxu0 0.0
      %1740 = vmatmul.mubr.f32.gmra.mrb[0].mxu0 %v1561
      %v1741 = vpop.f32.mrb[0].mxu0
      %v1742 = vadd.f32 0.0, %v1741
      %v1743 = vpop.f32.mrb[0].mxu0
      %1744 = vmatprep.mubr.f32.mxu0 0.0
      %1745 = vmatmul.mubr.f32.gmra.mrb[0].mxu0 %v1564
      %v1746 = vpop.f32.mrb[0].mxu0
      %v1747 = vadd.f32 0.0, %v1746
      %v1748 = vpop.f32.mrb[0].mxu0
      %1749 = vmatprep.mubr.f32.mxu0 0.0
      %1750 = vmatmul.mubr.f32.gmra.mrb[0].mxu0 %v1567
      %v1751 = vpop.f32.mrb[0].mxu0
      %v1752 = vadd.f32 0.0, %v1751
      %v1753 = vpop.f32.mrb[0].mxu0
      %1754 = vmatprep.mubr.f32.mxu0 0.0
      %1755 = vmatmul.mubr.f32.gmra.mrb[0].mxu0 %v1570
      %v1756 = vpop.f32.mrb[0].mxu0
      %v1757 = vadd.f32 0.0, %v1756
      %v1758 = vpop.f32.mrb[0].mxu0
      %1759 = vmatprep.mubr.f32.mxu0 0.0
      %1760 = vmatmul.mubr.f32.gmra.mrb[0].mxu0 %v1573
      %v1761 = vpop.f32.mrb[0].mxu0
      %v1762 = vadd.f32 0.0, %v1761
      %v1763 = vpop.f32.mrb[0].mxu0
      %1764 = vmatprep.mubr.f32.mxu0 0.0
      %1765 = vmatmul.mubr.f32.gmra.mrb[0].mxu0 %v1576
      %v1766 = vpop.f32.mrb[0].mxu0
      %v1767 = vadd.f32 0.0, %v1766
      %v1768 = vpop.f32.mrb[0].mxu0
      %1769 = vmatprep.mubr.f32.mxu0 0.0
      %1770 = vmatmul.mubr.f32.gmra.mrb[0].mxu0 %v1579
      %v1771 = vpop.f32.mrb[0].mxu0
      %v1772 = vadd.f32 0.0, %v1771
      %v1773 = vpop.f32.mrb[0].mxu0
      %1774 = vmatprep.mubr.f32.mxu0 0.0
      %1775 = vmatmul.mubr.f32.gmra.mrb[0].mxu0 %v1582
      %v1776 = vpop.f32.mrb[0].mxu0
      %v1777 = vadd.f32 0.0, %v1776
      %v1778 = vpop.f32.mrb[0].mxu0
      %1779 = vmatprep.mubr.f32.mxu0 0.0
      %1780 = vmatmul.mubr.f32.gmra.mrb[0].mxu0 %v1585
      %v1781 = vpop.f32.mrb[0].mxu0
      %v1782 = vadd.f32 0.0, %v1781
      %v1783 = vpop.f32.mrb[0].mxu0
      %1784 = vmatprep.mubr.f32.mxu0 0.0
      %1785 = vmatmul.mubr.f32.gmra.mrb[0].mxu0 %v1588
      %v1786 = vpop.f32.mrb[0].mxu0
      %v1787 = vadd.f32 0.0, %v1786
      %v1788 = vpop.f32.mrb[0].mxu0
      %1789 = vmatprep.mubr.f32.mxu0 0.0
      %1790 = vmatmul.mubr.f32.gmra.mrb[0].mxu0 %v1591
      %v1791 = vpop.f32.mrb[0].mxu0
      %v1792 = vadd.f32 0.0, %v1791
      %v1793 = vpop.f32.mrb[0].mxu0
      %1794 = vmatprep.mubr.f32.mxu0 0.0
      %1795 = vmatmul.mubr.f32.gmra.mrb[0].mxu0 %v1594
      %v1796 = vpop.f32.mrb[0].mxu0
      %v1797 = vadd.f32 0.0, %v1796
      %v1798 = vpop.f32.mrb[0].mxu0
      %1799 = vmatprep.mubr.f32.mxu0 0.0
      %1800 = vmatmul.mubr.f32.gmra.mrb[0].mxu0 %v1597
      %v1801 = vpop.f32.mrb[0].mxu0
      %v1802 = vadd.f32 0.0, %v1801
      %v1803 = vpop.f32.mrb[0].mxu0
      %1804 = vmatprep.mubr.f32.mxu0 0.0
      %1805 = vmatmul.mubr.f32.gmra.mrb[0].mxu0 %v1600
      %v1806 = vpop.f32.mrb[0].mxu0
      %v1807 = vadd.f32 0.0, %v1806
      %v1808 = vpop.f32.mrb[0].mxu0
      %1809 = vmatprep.mubr.f32.mxu0 0.0
      %1810 = vmatmul.mubr.f32.gmra.mrb[0].mxu0 %v1603
      %v1811 = vpop.f32.mrb[0].mxu0
      %v1812 = vadd.f32 0.0, %v1811
      %v1813 = vpop.f32.mrb[0].mxu0
      %1814 = vmatprep.mubr.f32.mxu0 0.0
      %1815 = vmatmul.mubr.f32.gmra.mrb[0].mxu0 %v1606
      %v1816 = vpop.f32.mrb[0].mxu0
      %v1817 = vadd.f32 0.0, %v1816
      %v1818 = vpop.f32.mrb[0].mxu0
      %1819 = vmatprep.mubr.f32.mxu0 0.0
      %1820 = vmatmul.mubr.f32.gmra.mrb[0].mxu0 %v1609
      %v1821 = vpop.f32.mrb[0].mxu0
      %v1822 = vadd.f32 0.0, %v1821
      %v1823 = vpop.f32.mrb[0].mxu0
      %1824 = vmatprep.mubr.f32.mxu0 0.0
      %1825 = vmatmul.mubr.f32.gmra.mrb[0].mxu0 %v1612
      %v1826 = vpop.f32.mrb[0].mxu0
      %v1827 = vadd.f32 0.0, %v1826
      %v1828 = vpop.f32.mrb[0].mxu0
      %1829 = vmatprep.mubr.f32.mxu0 0.0
      %1830 = vmatmul.mubr.f32.gmra.mrb[0].mxu0 %v1615
      %v1831 = vpop.f32.mrb[0].mxu0
      %v1832 = vadd.f32 0.0, %v1831
      %v1833 = vpop.f32.mrb[0].mxu0
      %1834 = vmatprep.mubr.f32.mxu0 0.0
      %1835 = vmatmul.mubr.f32.gmra.mrb[0].mxu0 %v1618
      %v1836 = vpop.f32.mrb[0].mxu0
      %v1837 = vadd.f32 0.0, %v1836
      %v1838 = vpop.f32.mrb[0].mxu0
      %1839 = vmatprep.mubr.f32.mxu0 0.0
      %1840 = vmatmul.mubr.f32.gmra.mrb[0].mxu0 %v1621
      %v1841 = vpop.f32.mrb[0].mxu0
      %v1842 = vadd.f32 0.0, %v1841
      %v1843 = vpop.f32.mrb[0].mxu0
      %1844 = vmatprep.mubr.f32.mxu0 0.0
      %1845 = vmatmul.mubr.f32.gmra.mrb[0].mxu0 %v1624
      %v1846 = vpop.f32.mrb[0].mxu0
      %v1847 = vadd.f32 0.0, %v1846
      %v1848 = vpop.f32.mrb[0].mxu0
      %1849 = vmatprep.mubr.f32.mxu0 0.0
      %1850 = vmatmul.mubr.f32.gmra.mrb[0].mxu0 %v1627
      %v1851 = vpop.f32.mrb[0].mxu0
      %v1852 = vadd.f32 0.0, %v1851
      %v1853 = vpop.f32.mrb[0].mxu0
      %1854 = vmatprep.mubr.f32.mxu0 0.0
      %1855 = vmatmul.mubr.f32.gmra.mrb[0].mxu0 %v1630
      %v1856 = vpop.f32.mrb[0].mxu0
      %v1857 = vadd.f32 0.0, %v1856
      %v1858 = vpop.f32.mrb[0].mxu0
      %1859 = vdwg.mxu0
      %v1860 = vadd.f32 %v1472, %v1702
      %v1861 = vadd.f32 %v1473, %v1707
      %v1862 = vadd.f32 %v1474, %v1712
      %v1863 = vadd.f32 %v1475, %v1717
      %v1864 = vadd.f32 %v1476, %v1722
      %v1865 = vadd.f32 %v1477, %v1727
      %v1866 = vadd.f32 %v1478, %v1732
      %v1867 = vadd.f32 %v1479, %v1737
      %v1868 = vadd.f32 %v1480, %v1742
      %v1869 = vadd.f32 %v1481, %v1747
      %v1870 = vadd.f32 %v1482, %v1752
      %v1871 = vadd.f32 %v1483, %v1757
      %v1872 = vadd.f32 %v1484, %v1762
      %v1873 = vadd.f32 %v1485, %v1767
      %v1874 = vadd.f32 %v1486, %v1772
      %v1875 = vadd.f32 %v1487, %v1777
      %v1876 = vadd.f32 %v1488, %v1782
      %v1877 = vadd.f32 %v1489, %v1787
      %v1878 = vadd.f32 %v1490, %v1792
      %v1879 = vadd.f32 %v1491, %v1797
      %v1880 = vadd.f32 %v1492, %v1802
      %v1881 = vadd.f32 %v1493, %v1807
      %v1882 = vadd.f32 %v1494, %v1812
      %v1883 = vadd.f32 %v1495, %v1817
      %v1884 = vadd.f32 %v1496, %v1822
      %v1885 = vadd.f32 %v1497, %v1827
      %v1886 = vadd.f32 %v1498, %v1832
      %v1887 = vadd.f32 %v1499, %v1837
      %v1888 = vadd.f32 %v1500, %v1842
      %v1889 = vadd.f32 %v1501, %v1847
      %v1890 = vadd.f32 %v1502, %v1852
      %v1891 = vadd.f32 %v1503, %v1857
      %v1892 = vld [vmem:[%s294 + $0x2] sm:$0xff]
      %v1893 = vld [vmem:[%s294 + $0xa] sm:$0xff]
      %v1894 = vld [vmem:[%s294 + $0x1a] sm:$0xff]
      %v1895 = vld [vmem:[%s294 + $0x22] sm:$0xff]
      %v1896 = vld [vmem:[%s294 + $0x32] sm:$0xff]
      %v1897 = vld [vmem:[%s294 + $0x3a] sm:$0xff]
      %v1898 = vld [vmem:[%s294 + $0x4a] sm:$0xff]
      %v1899 = vld [vmem:[%s294 + $0x52] sm:$0xff]
      %v1900 = vld [vmem:[%s294 + $0x62] sm:$0xff]
      %v1901 = vld [vmem:[%s294 + $0x6a] sm:$0xff]
      %v1902 = vld [vmem:[%s294 + $0x7a] sm:$0xff]
      %v1903 = vld [vmem:[%s294 + $0x82] sm:$0xff]
      %v1904 = vld [vmem:[%s294 + $0x92] sm:$0xff]
      %v1905 = vld [vmem:[%s294 + $0x9a] sm:$0xff]
      %v1906 = vld [vmem:[%s294 + $0xaa] sm:$0xff]
      %v1907 = vld [vmem:[%s294 + $0xb2] sm:$0xff]
      %v1908 = vld [vmem:[%s294 + $0xc2] sm:$0xff]
      %v1909 = vld [vmem:[%s294 + $0xca] sm:$0xff]
      %v1910 = vld [vmem:[%s294 + $0xda] sm:$0xff]
      %v1911 = vld [vmem:[%s294 + $0xe2] sm:$0xff]
      %v1912 = vld [vmem:[%s294 + $0xf2] sm:$0xff]
      %v1913 = vld [vmem:[%s294 + $0xfa] sm:$0xff]
      %v1914 = vld [vmem:[%s294 + $0x10a] sm:$0xff]
      %v1915 = vld [vmem:[%s294 + $0x112] sm:$0xff]
      %v1916 = vld [vmem:[%s294 + $0x122] sm:$0xff]
      %v1917 = vld [vmem:[%s294 + $0x12a] sm:$0xff]
      %v1918 = vld [vmem:[%s294 + $0x13a] sm:$0xff]
      %v1919 = vld [vmem:[%s294 + $0x142] sm:$0xff]
      %v1920 = vld [vmem:[%s294 + $0x152] sm:$0xff]
      %v1921 = vld [vmem:[%s294 + $0x15a] sm:$0xff]
      %v1922 = vld [vmem:[%s294 + $0x16a] sm:$0xff]
      %v1923 = vld [vmem:[%s294 + $0x172] sm:$0xff]
      %v1925 = vsel %vm360, %v1892, 0
      %v1928 = vsel %vm360, %v1893, 0
      %v1931 = vsel %vm360, %v1894, 0
      %v1934 = vsel %vm360, %v1895, 0
      %v1937 = vsel %vm360, %v1896, 0
      %v1940 = vsel %vm360, %v1897, 0
      %v1943 = vsel %vm360, %v1898, 0
      %v1946 = vsel %vm360, %v1899, 0
      %v1949 = vsel %vm360, %v1900, 0
      %v1952 = vsel %vm360, %v1901, 0
      %v1955 = vsel %vm360, %v1902, 0
      %v1958 = vsel %vm360, %v1903, 0
      %v1961 = vsel %vm360, %v1904, 0
      %v1964 = vsel %vm360, %v1905, 0
      %v1967 = vsel %vm360, %v1906, 0
      %v1970 = vsel %vm360, %v1907, 0
      %v1973 = vsel %vm360, %v1908, 0
      %v1976 = vsel %vm360, %v1909, 0
      %v1979 = vsel %vm360, %v1910, 0
      %v1982 = vsel %vm360, %v1911, 0
      %v1985 = vsel %vm360, %v1912, 0
      %v1988 = vsel %vm360, %v1913, 0
      %v1991 = vsel %vm360, %v1914, 0
      %v1994 = vsel %vm360, %v1915, 0
      %v1997 = vsel %vm360, %v1916, 0
      %v2000 = vsel %vm360, %v1917, 0
      %v2003 = vsel %vm360, %v1918, 0
      %v2006 = vsel %vm360, %v1919, 0
      %v2009 = vsel %vm360, %v1920, 0
      %v2012 = vsel %vm360, %v1921, 0
      %v2015 = vsel %vm360, %v1922, 0
      %v2018 = vsel %vm360, %v1923, 0
      %v2021 = vsel %vm563, %v397, 0
      %2023 = vmatprep.subr.mxu0 0.0
      %2024 = vmatpush1.msra.mxu0 %v2021
      %2025 = vmatprep.subr.mxu0 0.0
      %2026 = vmatpush1.msra.mxu0 0.0
      %2027 = vmatprep.subr.mxu0 0.0
      %2028 = vmatpush1.msra.mxu0 0.0
      %2029 = vmatprep.subr.mxu0 0.0
      %2030 = vmatpush1.msra.mxu0 0.0
      %2031 = vmatprep.subr.mxu0 0.0
      %2032 = vmatpush1.msra.mxu0 0.0
      %2033 = vmatprep.subr.mxu0 0.0
      %2034 = vmatpush1.msra.mxu0 0.0
      %2035 = vmatprep.subr.mxu0 0.0
      %2036 = vmatpush1.msra.mxu0 0.0
      %2037 = vmatprep.subr.mxu0 0.0
      %2038 = vmatpush1.msra.mxu0 0.0
      %2039 = vmatprep.subr.mxu0 0.0
      %2040 = vmatpush1.msra.mxu0 0.0
      %2041 = vmatprep.subr.mxu0 0.0
      %2042 = vmatpush1.msra.mxu0 0.0
      %2043 = vmatprep.subr.mxu0 0.0
      %2044 = vmatpush1.msra.mxu0 0.0
      %2045 = vmatprep.subr.mxu0 0.0
      %2046 = vmatpush1.msra.mxu0 0.0
      %2047 = vmatprep.subr.mxu0 0.0
      %2048 = vmatpush1.msra.mxu0 0.0
      %2049 = vmatprep.subr.mxu0 0.0
      %2050 = vmatpush1.msra.mxu0 0.0
      %2051 = vmatprep.subr.mxu0 0.0
      %2052 = vmatpush1.msra.mxu0 0.0
      %2053 = vmatprep.subr.mxu0 0.0
      %2054 = vmatpush1.msra.mxu0 0.0
      %2055 = vmatprep.subr.mxu0 0.0
      %2056 = vmatpush1.msra.mxu0 0.0
      %2057 = vmatprep.subr.mxu0 0.0
      %2058 = vmatpush1.msra.mxu0 0.0
      %2059 = vmatprep.subr.mxu0 0.0
      %2060 = vmatpush1.msra.mxu0 0.0
      %2061 = vmatprep.subr.mxu0 0.0
      %2062 = vmatpush1.msra.mxu0 0.0
      %2063 = vmatprep.subr.mxu0 0.0
      %2064 = vmatpush1.msra.mxu0 0.0
      %2065 = vmatprep.subr.mxu0 0.0
      %2066 = vmatpush1.msra.mxu0 0.0
      %2067 = vmatprep.subr.mxu0 0.0
      %2068 = vmatpush1.msra.mxu0 0.0
      %2069 = vmatprep.subr.mxu0 0.0
      %2070 = vmatpush1.msra.mxu0 0.0
      %2071 = vmatprep.subr.mxu0 0.0
      %2072 = vmatpush1.msra.mxu0 0.0
      %2073 = vmatprep.subr.mxu0 0.0
      %2074 = vmatpush1.msra.mxu0 0.0
      %2075 = vmatprep.subr.mxu0 0.0
      %2076 = vmatpush1.msra.mxu0 0.0
      %2077 = vmatprep.subr.mxu0 0.0
      %2078 = vmatpush1.msra.mxu0 0.0
      %2079 = vmatprep.subr.mxu0 0.0
      %2080 = vmatpush1.msra.mxu0 0.0
      %2081 = vmatprep.subr.mxu0 0.0
      %2082 = vmatpush1.msra.mxu0 0.0
      %2083 = vmatprep.subr.mxu0 0.0
      %2084 = vmatpush1.msra.mxu0 0.0
      %2085 = vmatprep.subr.mxu0 0.0
      %2086 = vmatpush1.msra.mxu0 0.0
      %2087 = vmatprep.mubr.f32.mxu0 0.0
      %2088 = vmatmul.mubr.f32.gmra.mrb[0].mxu0 %v1925
      %v2089 = vpop.f32.mrb[0].mxu0
      %v2090 = vadd.f32 0.0, %v2089
      %v2091 = vpop.f32.mrb[0].mxu0
      %2092 = vmatprep.mubr.f32.mxu0 0.0
      %2093 = vmatmul.mubr.f32.gmra.mrb[0].mxu0 %v1928
      %v2094 = vpop.f32.mrb[0].mxu0
      %v2095 = vadd.f32 0.0, %v2094
      %v2096 = vpop.f32.mrb[0].mxu0
      %2097 = vmatprep.mubr.f32.mxu0 0.0
      %2098 = vmatmul.mubr.f32.gmra.mrb[0].mxu0 %v1931
      %v2099 = vpop.f32.mrb[0].mxu0
      %v2100 = vadd.f32 0.0, %v2099
      %v2101 = vpop.f32.mrb[0].mxu0
      %2102 = vmatprep.mubr.f32.mxu0 0.0
      %2103 = vmatmul.mubr.f32.gmra.mrb[0].mxu0 %v1934
      %v2104 = vpop.f32.mrb[0].mxu0
      %v2105 = vadd.f32 0.0, %v2104
      %v2106 = vpop.f32.mrb[0].mxu0
      %2107 = vmatprep.mubr.f32.mxu0 0.0
      %2108 = vmatmul.mubr.f32.gmra.mrb[0].mxu0 %v1937
      %v2109 = vpop.f32.mrb[0].mxu0
      %v2110 = vadd.f32 0.0, %v2109
      %v2111 = vpop.f32.mrb[0].mxu0
      %2112 = vmatprep.mubr.f32.mxu0 0.0
      %2113 = vmatmul.mubr.f32.gmra.mrb[0].mxu0 %v1940
      %v2114 = vpop.f32.mrb[0].mxu0
      %v2115 = vadd.f32 0.0, %v2114
      %v2116 = vpop.f32.mrb[0].mxu0
      %2117 = vmatprep.mubr.f32.mxu0 0.0
      %2118 = vmatmul.mubr.f32.gmra.mrb[0].mxu0 %v1943
      %v2119 = vpop.f32.mrb[0].mxu0
      %v2120 = vadd.f32 0.0, %v2119
      %v2121 = vpop.f32.mrb[0].mxu0
      %2122 = vmatprep.mubr.f32.mxu0 0.0
      %2123 = vmatmul.mubr.f32.gmra.mrb[0].mxu0 %v1946
      %v2124 = vpop.f32.mrb[0].mxu0
      %v2125 = vadd.f32 0.0, %v2124
      %v2126 = vpop.f32.mrb[0].mxu0
      %2127 = vmatprep.mubr.f32.mxu0 0.0
      %2128 = vmatmul.mubr.f32.gmra.mrb[0].mxu0 %v1949
      %v2129 = vpop.f32.mrb[0].mxu0
      %v2130 = vadd.f32 0.0, %v2129
      %v2131 = vpop.f32.mrb[0].mxu0
      %2132 = vmatprep.mubr.f32.mxu0 0.0
      %2133 = vmatmul.mubr.f32.gmra.mrb[0].mxu0 %v1952
      %v2134 = vpop.f32.mrb[0].mxu0
      %v2135 = vadd.f32 0.0, %v2134
      %v2136 = vpop.f32.mrb[0].mxu0
      %2137 = vmatprep.mubr.f32.mxu0 0.0
      %2138 = vmatmul.mubr.f32.gmra.mrb[0].mxu0 %v1955
      %v2139 = vpop.f32.mrb[0].mxu0
      %v2140 = vadd.f32 0.0, %v2139
      %v2141 = vpop.f32.mrb[0].mxu0
      %2142 = vmatprep.mubr.f32.mxu0 0.0
      %2143 = vmatmul.mubr.f32.gmra.mrb[0].mxu0 %v1958
      %v2144 = vpop.f32.mrb[0].mxu0
      %v2145 = vadd.f32 0.0, %v2144
      %v2146 = vpop.f32.mrb[0].mxu0
      %2147 = vmatprep.mubr.f32.mxu0 0.0
      %2148 = vmatmul.mubr.f32.gmra.mrb[0].mxu0 %v1961
      %v2149 = vpop.f32.mrb[0].mxu0
      %v2150 = vadd.f32 0.0, %v2149
      %v2151 = vpop.f32.mrb[0].mxu0
      %2152 = vmatprep.mubr.f32.mxu0 0.0
      %2153 = vmatmul.mubr.f32.gmra.mrb[0].mxu0 %v1964
      %v2154 = vpop.f32.mrb[0].mxu0
      %v2155 = vadd.f32 0.0, %v2154
      %v2156 = vpop.f32.mrb[0].mxu0
      %2157 = vmatprep.mubr.f32.mxu0 0.0
      %2158 = vmatmul.mubr.f32.gmra.mrb[0].mxu0 %v1967
      %v2159 = vpop.f32.mrb[0].mxu0
      %v2160 = vadd.f32 0.0, %v2159
      %v2161 = vpop.f32.mrb[0].mxu0
      %2162 = vmatprep.mubr.f32.mxu0 0.0
      %2163 = vmatmul.mubr.f32.gmra.mrb[0].mxu0 %v1970
      %v2164 = vpop.f32.mrb[0].mxu0
      %v2165 = vadd.f32 0.0, %v2164
      %v2166 = vpop.f32.mrb[0].mxu0
      %2167 = vmatprep.mubr.f32.mxu0 0.0
      %2168 = vmatmul.mubr.f32.gmra.mrb[0].mxu0 %v1973
      %v2169 = vpop.f32.mrb[0].mxu0
      %v2170 = vadd.f32 0.0, %v2169
      %v2171 = vpop.f32.mrb[0].mxu0
      %2172 = vmatprep.mubr.f32.mxu0 0.0
      %2173 = vmatmul.mubr.f32.gmra.mrb[0].mxu0 %v1976
      %v2174 = vpop.f32.mrb[0].mxu0
      %v2175 = vadd.f32 0.0, %v2174
      %v2176 = vpop.f32.mrb[0].mxu0
      %2177 = vmatprep.mubr.f32.mxu0 0.0
      %2178 = vmatmul.mubr.f32.gmra.mrb[0].mxu0 %v1979
      %v2179 = vpop.f32.mrb[0].mxu0
      %v2180 = vadd.f32 0.0, %v2179
      %v2181 = vpop.f32.mrb[0].mxu0
      %2182 = vmatprep.mubr.f32.mxu0 0.0
      %2183 = vmatmul.mubr.f32.gmra.mrb[0].mxu0 %v1982
      %v2184 = vpop.f32.mrb[0].mxu0
      %v2185 = vadd.f32 0.0, %v2184
      %v2186 = vpop.f32.mrb[0].mxu0
      %2187 = vmatprep.mubr.f32.mxu0 0.0
      %2188 = vmatmul.mubr.f32.gmra.mrb[0].mxu0 %v1985
      %v2189 = vpop.f32.mrb[0].mxu0
      %v2190 = vadd.f32 0.0, %v2189
      %v2191 = vpop.f32.mrb[0].mxu0
      %2192 = vmatprep.mubr.f32.mxu0 0.0
      %2193 = vmatmul.mubr.f32.gmra.mrb[0].mxu0 %v1988
      %v2194 = vpop.f32.mrb[0].mxu0
      %v2195 = vadd.f32 0.0, %v2194
      %v2196 = vpop.f32.mrb[0].mxu0
      %2197 = vmatprep.mubr.f32.mxu0 0.0
      %2198 = vmatmul.mubr.f32.gmra.mrb[0].mxu0 %v1991
      %v2199 = vpop.f32.mrb[0].mxu0
      %v2200 = vadd.f32 0.0, %v2199
      %v2201 = vpop.f32.mrb[0].mxu0
      %2202 = vmatprep.mubr.f32.mxu0 0.0
      %2203 = vmatmul.mubr.f32.gmra.mrb[0].mxu0 %v1994
      %v2204 = vpop.f32.mrb[0].mxu0
      %v2205 = vadd.f32 0.0, %v2204
      %v2206 = vpop.f32.mrb[0].mxu0
      %2207 = vmatprep.mubr.f32.mxu0 0.0
      %2208 = vmatmul.mubr.f32.gmra.mrb[0].mxu0 %v1997
      %v2209 = vpop.f32.mrb[0].mxu0
      %v2210 = vadd.f32 0.0, %v2209
      %v2211 = vpop.f32.mrb[0].mxu0
      %2212 = vmatprep.mubr.f32.mxu0 0.0
      %2213 = vmatmul.mubr.f32.gmra.mrb[0].mxu0 %v2000
      %v2214 = vpop.f32.mrb[0].mxu0
      %v2215 = vadd.f32 0.0, %v2214
      %v2216 = vpop.f32.mrb[0].mxu0
      %2217 = vmatprep.mubr.f32.mxu0 0.0
      %2218 = vmatmul.mubr.f32.gmra.mrb[0].mxu0 %v2003
      %v2219 = vpop.f32.mrb[0].mxu0
      %v2220 = vadd.f32 0.0, %v2219
      %v2221 = vpop.f32.mrb[0].mxu0
      %2222 = vmatprep.mubr.f32.mxu0 0.0
      %2223 = vmatmul.mubr.f32.gmra.mrb[0].mxu0 %v2006
      %v2224 = vpop.f32.mrb[0].mxu0
      %v2225 = vadd.f32 0.0, %v2224
      %v2226 = vpop.f32.mrb[0].mxu0
      %2227 = vmatprep.mubr.f32.mxu0 0.0
      %2228 = vmatmul.mubr.f32.gmra.mrb[0].mxu0 %v2009
      %v2229 = vpop.f32.mrb[0].mxu0
      %v2230 = vadd.f32 0.0, %v2229
      %v2231 = vpop.f32.mrb[0].mxu0
      %2232 = vmatprep.mubr.f32.mxu0 0.0
      %2233 = vmatmul.mubr.f32.gmra.mrb[0].mxu0 %v2012
      %v2234 = vpop.f32.mrb[0].mxu0
      %v2235 = vadd.f32 0.0, %v2234
      %v2236 = vpop.f32.mrb[0].mxu0
      %2237 = vmatprep.mubr.f32.mxu0 0.0
      %2238 = vmatmul.mubr.f32.gmra.mrb[0].mxu0 %v2015
      %v2239 = vpop.f32.mrb[0].mxu0
      %v2240 = vadd.f32 0.0, %v2239
      %v2241 = vpop.f32.mrb[0].mxu0
      %2242 = vmatprep.mubr.f32.mxu0 0.0
      %2243 = vmatmul.mubr.f32.gmra.mrb[0].mxu0 %v2018
      %v2244 = vpop.f32.mrb[0].mxu0
      %v2245 = vadd.f32 0.0, %v2244
      %v2246 = vpop.f32.mrb[0].mxu0
      %2247 = vdwg.mxu0
      %v2248 = vadd.f32 %v1860, %v2090
      %v2249 = vadd.f32 %v1861, %v2095
      %v2250 = vadd.f32 %v1862, %v2100
      %v2251 = vadd.f32 %v1863, %v2105
      %v2252 = vadd.f32 %v1864, %v2110
      %v2253 = vadd.f32 %v1865, %v2115
      %v2254 = vadd.f32 %v1866, %v2120
      %v2255 = vadd.f32 %v1867, %v2125
      %v2256 = vadd.f32 %v1868, %v2130
      %v2257 = vadd.f32 %v1869, %v2135
      %v2258 = vadd.f32 %v1870, %v2140
      %v2259 = vadd.f32 %v1871, %v2145
      %v2260 = vadd.f32 %v1872, %v2150
      %v2261 = vadd.f32 %v1873, %v2155
      %v2262 = vadd.f32 %v1874, %v2160
      %v2263 = vadd.f32 %v1875, %v2165
      %v2264 = vadd.f32 %v1876, %v2170
      %v2265 = vadd.f32 %v1877, %v2175
      %v2266 = vadd.f32 %v1878, %v2180
      %v2267 = vadd.f32 %v1879, %v2185
      %v2268 = vadd.f32 %v1880, %v2190
      %v2269 = vadd.f32 %v1881, %v2195
      %v2270 = vadd.f32 %v1882, %v2200
      %v2271 = vadd.f32 %v1883, %v2205
      %v2272 = vadd.f32 %v1884, %v2210
      %v2273 = vadd.f32 %v1885, %v2215
      %v2274 = vadd.f32 %v1886, %v2220
      %v2275 = vadd.f32 %v1887, %v2225
      %v2276 = vadd.f32 %v1888, %v2230
      %v2277 = vadd.f32 %v1889, %v2235
      %v2278 = vadd.f32 %v1890, %v2240
      %v2279 = vadd.f32 %v1891, %v2245
      %v2280 = vld [vmem:[%s294 + $0x4] sm:$0xff]
      %v2281 = vld [vmem:[%s294 + $0xc] sm:$0xff]
      %v2282 = vld [vmem:[%s294 + $0x1c] sm:$0xff]
      %v2283 = vld [vmem:[%s294 + $0x24] sm:$0xff]
      %v2284 = vld [vmem:[%s294 + $0x34] sm:$0xff]
      %v2285 = vld [vmem:[%s294 + $0x3c] sm:$0xff]
      %v2286 = vld [vmem:[%s294 + $0x4c] sm:$0xff]
      %v2287 = vld [vmem:[%s294 + $0x54] sm:$0xff]
      %v2288 = vld [vmem:[%s294 + $0x64] sm:$0xff]
      %v2289 = vld [vmem:[%s294 + $0x6c] sm:$0xff]
      %v2290 = vld [vmem:[%s294 + $0x7c] sm:$0xff]
      %v2291 = vld [vmem:[%s294 + $0x84] sm:$0xff]
      %v2292 = vld [vmem:[%s294 + $0x94] sm:$0xff]
      %v2293 = vld [vmem:[%s294 + $0x9c] sm:$0xff]
      %v2294 = vld [vmem:[%s294 + $0xac] sm:$0xff]
      %v2295 = vld [vmem:[%s294 + $0xb4] sm:$0xff]
      %v2296 = vld [vmem:[%s294 + $0xc4] sm:$0xff]
      %v2297 = vld [vmem:[%s294 + $0xcc] sm:$0xff]
      %v2298 = vld [vmem:[%s294 + $0xdc] sm:$0xff]
      %v2299 = vld [vmem:[%s294 + $0xe4] sm:$0xff]
      %v2300 = vld [vmem:[%s294 + $0xf4] sm:$0xff]
      %v2301 = vld [vmem:[%s294 + $0xfc] sm:$0xff]
      %v2302 = vld [vmem:[%s294 + $0x10c] sm:$0xff]
      %v2303 = vld [vmem:[%s294 + $0x114] sm:$0xff]
      %v2304 = vld [vmem:[%s294 + $0x124] sm:$0xff]
      %v2305 = vld [vmem:[%s294 + $0x12c] sm:$0xff]
      %v2306 = vld [vmem:[%s294 + $0x13c] sm:$0xff]
      %v2307 = vld [vmem:[%s294 + $0x144] sm:$0xff]
      %v2308 = vld [vmem:[%s294 + $0x154] sm:$0xff]
      %v2309 = vld [vmem:[%s294 + $0x15c] sm:$0xff]
      %v2310 = vld [vmem:[%s294 + $0x16c] sm:$0xff]
      %v2311 = vld [vmem:[%s294 + $0x174] sm:$0xff]
      %v2313 = vsel %vm360, %v2280, 0
      %v2316 = vsel %vm360, %v2281, 0
      %v2319 = vsel %vm360, %v2282, 0
      %v2322 = vsel %vm360, %v2283, 0
      %v2325 = vsel %vm360, %v2284, 0
      %v2328 = vsel %vm360, %v2285, 0
      %v2331 = vsel %vm360, %v2286, 0
      %v2334 = vsel %vm360, %v2287, 0
      %v2337 = vsel %vm360, %v2288, 0
      %v2340 = vsel %vm360, %v2289, 0
      %v2343 = vsel %vm360, %v2290, 0
      %v2346 = vsel %vm360, %v2291, 0
      %v2349 = vsel %vm360, %v2292, 0
      %v2352 = vsel %vm360, %v2293, 0
      %v2355 = vsel %vm360, %v2294, 0
      %v2358 = vsel %vm360, %v2295, 0
      %v2361 = vsel %vm360, %v2296, 0
      %v2364 = vsel %vm360, %v2297, 0
      %v2367 = vsel %vm360, %v2298, 0
      %v2370 = vsel %vm360, %v2299, 0
      %v2373 = vsel %vm360, %v2300, 0
      %v2376 = vsel %vm360, %v2301, 0
      %v2379 = vsel %vm360, %v2302, 0
      %v2382 = vsel %vm360, %v2303, 0
      %v2385 = vsel %vm360, %v2304, 0
      %v2388 = vsel %vm360, %v2305, 0
      %v2391 = vsel %vm360, %v2306, 0
      %v2394 = vsel %vm360, %v2307, 0
      %v2397 = vsel %vm360, %v2308, 0
      %v2400 = vsel %vm360, %v2309, 0
      %v2403 = vsel %vm360, %v2310, 0
      %v2406 = vsel %vm360, %v2311, 0
      %v2409 = vsel %vm563, %v398, 0
      %2411 = vmatprep.subr.mxu0 0.0
      %2412 = vmatpush1.msra.mxu0 %v2409
      %2413 = vmatprep.subr.mxu0 0.0
      %2414 = vmatpush1.msra.mxu0 0.0
      %2415 = vmatprep.subr.mxu0 0.0
      %2416 = vmatpush1.msra.mxu0 0.0
      %2417 = vmatprep.subr.mxu0 0.0
      %2418 = vmatpush1.msra.mxu0 0.0
      %2419 = vmatprep.subr.mxu0 0.0
      %2420 = vmatpush1.msra.mxu0 0.0
      %2421 = vmatprep.subr.mxu0 0.0
      %2422 = vmatpush1.msra.mxu0 0.0
      %2423 = vmatprep.subr.mxu0 0.0
      %2424 = vmatpush1.msra.mxu0 0.0
      %2425 = vmatprep.subr.mxu0 0.0
      %2426 = vmatpush1.msra.mxu0 0.0
      %2427 = vmatprep.subr.mxu0 0.0
      %2428 = vmatpush1.msra.mxu0 0.0
      %2429 = vmatprep.subr.mxu0 0.0
      %2430 = vmatpush1.msra.mxu0 0.0
      %2431 = vmatprep.subr.mxu0 0.0
      %2432 = vmatpush1.msra.mxu0 0.0
      %2433 = vmatprep.subr.mxu0 0.0
      %2434 = vmatpush1.msra.mxu0 0.0
      %2435 = vmatprep.subr.mxu0 0.0
      %2436 = vmatpush1.msra.mxu0 0.0
      %2437 = vmatprep.subr.mxu0 0.0
      %2438 = vmatpush1.msra.mxu0 0.0
      %2439 = vmatprep.subr.mxu0 0.0
      %2440 = vmatpush1.msra.mxu0 0.0
      %2441 = vmatprep.subr.mxu0 0.0
      %2442 = vmatpush1.msra.mxu0 0.0
      %2443 = vmatprep.subr.mxu0 0.0
      %2444 = vmatpush1.msra.mxu0 0.0
      %2445 = vmatprep.subr.mxu0 0.0
      %2446 = vmatpush1.msra.mxu0 0.0
      %2447 = vmatprep.subr.mxu0 0.0
      %2448 = vmatpush1.msra.mxu0 0.0
      %2449 = vmatprep.subr.mxu0 0.0
      %2450 = vmatpush1.msra.mxu0 0.0
      %2451 = vmatprep.subr.mxu0 0.0
      %2452 = vmatpush1.msra.mxu0 0.0
      %2453 = vmatprep.subr.mxu0 0.0
      %2454 = vmatpush1.msra.mxu0 0.0
      %2455 = vmatprep.subr.mxu0 0.0
      %2456 = vmatpush1.msra.mxu0 0.0
      %2457 = vmatprep.subr.mxu0 0.0
      %2458 = vmatpush1.msra.mxu0 0.0
      %2459 = vmatprep.subr.mxu0 0.0
      %2460 = vmatpush1.msra.mxu0 0.0
      %2461 = vmatprep.subr.mxu0 0.0
      %2462 = vmatpush1.msra.mxu0 0.0
      %2463 = vmatprep.subr.mxu0 0.0
      %2464 = vmatpush1.msra.mxu0 0.0
      %2465 = vmatprep.subr.mxu0 0.0
      %2466 = vmatpush1.msra.mxu0 0.0
      %2467 = vmatprep.subr.mxu0 0.0
      %2468 = vmatpush1.msra.mxu0 0.0
      %2469 = vmatprep.subr.mxu0 0.0
      %2470 = vmatpush1.msra.mxu0 0.0
      %2471 = vmatprep.subr.mxu0 0.0
      %2472 = vmatpush1.msra.mxu0 0.0
      %2473 = vmatprep.subr.mxu0 0.0
      %2474 = vmatpush1.msra.mxu0 0.0
      %2475 = vmatprep.mubr.f32.mxu0 0.0
      %2476 = vmatmul.mubr.f32.gmra.mrb[0].mxu0 %v2313
      %v2477 = vpop.f32.mrb[0].mxu0
      %v2478 = vadd.f32 0.0, %v2477
      %v2479 = vpop.f32.mrb[0].mxu0
      %2480 = vmatprep.mubr.f32.mxu0 0.0
      %2481 = vmatmul.mubr.f32.gmra.mrb[0].mxu0 %v2316
      %v2482 = vpop.f32.mrb[0].mxu0
      %v2483 = vadd.f32 0.0, %v2482
      %v2484 = vpop.f32.mrb[0].mxu0
      %2485 = vmatprep.mubr.f32.mxu0 0.0
      %2486 = vmatmul.mubr.f32.gmra.mrb[0].mxu0 %v2319
      %v2487 = vpop.f32.mrb[0].mxu0
      %v2488 = vadd.f32 0.0, %v2487
      %v2489 = vpop.f32.mrb[0].mxu0
      %2490 = vmatprep.mubr.f32.mxu0 0.0
      %2491 = vmatmul.mubr.f32.gmra.mrb[0].mxu0 %v2322
      %v2492 = vpop.f32.mrb[0].mxu0
      %v2493 = vadd.f32 0.0, %v2492
      %v2494 = vpop.f32.mrb[0].mxu0
      %2495 = vmatprep.mubr.f32.mxu0 0.0
      %2496 = vmatmul.mubr.f32.gmra.mrb[0].mxu0 %v2325
      %v2497 = vpop.f32.mrb[0].mxu0
      %v2498 = vadd.f32 0.0, %v2497
      %v2499 = vpop.f32.mrb[0].mxu0
      %2500 = vmatprep.mubr.f32.mxu0 0.0
      %2501 = vmatmul.mubr.f32.gmra.mrb[0].mxu0 %v2328
      %v2502 = vpop.f32.mrb[0].mxu0
      %v2503 = vadd.f32 0.0, %v2502
      %v2504 = vpop.f32.mrb[0].mxu0
      %2505 = vmatprep.mubr.f32.mxu0 0.0
      %2506 = vmatmul.mubr.f32.gmra.mrb[0].mxu0 %v2331
      %v2507 = vpop.f32.mrb[0].mxu0
      %v2508 = vadd.f32 0.0, %v2507
      %v2509 = vpop.f32.mrb[0].mxu0
      %2510 = vmatprep.mubr.f32.mxu0 0.0
      %2511 = vmatmul.mubr.f32.gmra.mrb[0].mxu0 %v2334
      %v2512 = vpop.f32.mrb[0].mxu0
      %v2513 = vadd.f32 0.0, %v2512
      %v2514 = vpop.f32.mrb[0].mxu0
      %2515 = vmatprep.mubr.f32.mxu0 0.0
      %2516 = vmatmul.mubr.f32.gmra.mrb[0].mxu0 %v2337
      %v2517 = vpop.f32.mrb[0].mxu0
      %v2518 = vadd.f32 0.0, %v2517
      %v2519 = vpop.f32.mrb[0].mxu0
      %2520 = vmatprep.mubr.f32.mxu0 0.0
      %2521 = vmatmul.mubr.f32.gmra.mrb[0].mxu0 %v2340
      %v2522 = vpop.f32.mrb[0].mxu0
      %v2523 = vadd.f32 0.0, %v2522
      %v2524 = vpop.f32.mrb[0].mxu0
      %2525 = vmatprep.mubr.f32.mxu0 0.0
      %2526 = vmatmul.mubr.f32.gmra.mrb[0].mxu0 %v2343
      %v2527 = vpop.f32.mrb[0].mxu0
      %v2528 = vadd.f32 0.0, %v2527
      %v2529 = vpop.f32.mrb[0].mxu0
      %2530 = vmatprep.mubr.f32.mxu0 0.0
      %2531 = vmatmul.mubr.f32.gmra.mrb[0].mxu0 %v2346
      %v2532 = vpop.f32.mrb[0].mxu0
      %v2533 = vadd.f32 0.0, %v2532
      %v2534 = vpop.f32.mrb[0].mxu0
      %2535 = vmatprep.mubr.f32.mxu0 0.0
      %2536 = vmatmul.mubr.f32.gmra.mrb[0].mxu0 %v2349
      %v2537 = vpop.f32.mrb[0].mxu0
      %v2538 = vadd.f32 0.0, %v2537
      %v2539 = vpop.f32.mrb[0].mxu0
      %2540 = vmatprep.mubr.f32.mxu0 0.0
      %2541 = vmatmul.mubr.f32.gmra.mrb[0].mxu0 %v2352
      %v2542 = vpop.f32.mrb[0].mxu0
      %v2543 = vadd.f32 0.0, %v2542
      %v2544 = vpop.f32.mrb[0].mxu0
      %2545 = vmatprep.mubr.f32.mxu0 0.0
      %2546 = vmatmul.mubr.f32.gmra.mrb[0].mxu0 %v2355
      %v2547 = vpop.f32.mrb[0].mxu0
      %v2548 = vadd.f32 0.0, %v2547
      %v2549 = vpop.f32.mrb[0].mxu0
      %2550 = vmatprep.mubr.f32.mxu0 0.0
      %2551 = vmatmul.mubr.f32.gmra.mrb[0].mxu0 %v2358
      %v2552 = vpop.f32.mrb[0].mxu0
      %v2553 = vadd.f32 0.0, %v2552
      %v2554 = vpop.f32.mrb[0].mxu0
      %2555 = vmatprep.mubr.f32.mxu0 0.0
      %2556 = vmatmul.mubr.f32.gmra.mrb[0].mxu0 %v2361
      %v2557 = vpop.f32.mrb[0].mxu0
      %v2558 = vadd.f32 0.0, %v2557
      %v2559 = vpop.f32.mrb[0].mxu0
      %2560 = vmatprep.mubr.f32.mxu0 0.0
      %2561 = vmatmul.mubr.f32.gmra.mrb[0].mxu0 %v2364
      %v2562 = vpop.f32.mrb[0].mxu0
      %v2563 = vadd.f32 0.0, %v2562
      %v2564 = vpop.f32.mrb[0].mxu0
      %2565 = vmatprep.mubr.f32.mxu0 0.0
      %2566 = vmatmul.mubr.f32.gmra.mrb[0].mxu0 %v2367
      %v2567 = vpop.f32.mrb[0].mxu0
      %v2568 = vadd.f32 0.0, %v2567
      %v2569 = vpop.f32.mrb[0].mxu0
      %2570 = vmatprep.mubr.f32.mxu0 0.0
      %2571 = vmatmul.mubr.f32.gmra.mrb[0].mxu0 %v2370
      %v2572 = vpop.f32.mrb[0].mxu0
      %v2573 = vadd.f32 0.0, %v2572
      %v2574 = vpop.f32.mrb[0].mxu0
      %2575 = vmatprep.mubr.f32.mxu0 0.0
      %2576 = vmatmul.mubr.f32.gmra.mrb[0].mxu0 %v2373
      %v2577 = vpop.f32.mrb[0].mxu0
      %v2578 = vadd.f32 0.0, %v2577
      %v2579 = vpop.f32.mrb[0].mxu0
      %2580 = vmatprep.mubr.f32.mxu0 0.0
      %2581 = vmatmul.mubr.f32.gmra.mrb[0].mxu0 %v2376
      %v2582 = vpop.f32.mrb[0].mxu0
      %v2583 = vadd.f32 0.0, %v2582
      %v2584 = vpop.f32.mrb[0].mxu0
      %2585 = vmatprep.mubr.f32.mxu0 0.0
      %2586 = vmatmul.mubr.f32.gmra.mrb[0].mxu0 %v2379
      %v2587 = vpop.f32.mrb[0].mxu0
      %v2588 = vadd.f32 0.0, %v2587
      %v2589 = vpop.f32.mrb[0].mxu0
      %2590 = vmatprep.mubr.f32.mxu0 0.0
      %2591 = vmatmul.mubr.f32.gmra.mrb[0].mxu0 %v2382
      %v2592 = vpop.f32.mrb[0].mxu0
      %v2593 = vadd.f32 0.0, %v2592
      %v2594 = vpop.f32.mrb[0].mxu0
      %2595 = vmatprep.mubr.f32.mxu0 0.0
      %2596 = vmatmul.mubr.f32.gmra.mrb[0].mxu0 %v2385
      %v2597 = vpop.f32.mrb[0].mxu0
      %v2598 = vadd.f32 0.0, %v2597
      %v2599 = vpop.f32.mrb[0].mxu0
      %2600 = vmatprep.mubr.f32.mxu0 0.0
      %2601 = vmatmul.mubr.f32.gmra.mrb[0].mxu0 %v2388
      %v2602 = vpop.f32.mrb[0].mxu0
      %v2603 = vadd.f32 0.0, %v2602
      %v2604 = vpop.f32.mrb[0].mxu0
      %2605 = vmatprep.mubr.f32.mxu0 0.0
      %2606 = vmatmul.mubr.f32.gmra.mrb[0].mxu0 %v2391
      %v2607 = vpop.f32.mrb[0].mxu0
      %v2608 = vadd.f32 0.0, %v2607
      %v2609 = vpop.f32.mrb[0].mxu0
      %2610 = vmatprep.mubr.f32.mxu0 0.0
      %2611 = vmatmul.mubr.f32.gmra.mrb[0].mxu0 %v2394
      %v2612 = vpop.f32.mrb[0].mxu0
      %v2613 = vadd.f32 0.0, %v2612
      %v2614 = vpop.f32.mrb[0].mxu0
      %2615 = vmatprep.mubr.f32.mxu0 0.0
      %2616 = vmatmul.mubr.f32.gmra.mrb[0].mxu0 %v2397
      %v2617 = vpop.f32.mrb[0].mxu0
      %v2618 = vadd.f32 0.0, %v2617
      %v2619 = vpop.f32.mrb[0].mxu0
      %2620 = vmatprep.mubr.f32.mxu0 0.0
      %2621 = vmatmul.mubr.f32.gmra.mrb[0].mxu0 %v2400
      %v2622 = vpop.f32.mrb[0].mxu0
      %v2623 = vadd.f32 0.0, %v2622
      %v2624 = vpop.f32.mrb[0].mxu0
      %2625 = vmatprep.mubr.f32.mxu0 0.0
      %2626 = vmatmul.mubr.f32.gmra.mrb[0].mxu0 %v2403
      %v2627 = vpop.f32.mrb[0].mxu0
      %v2628 = vadd.f32 0.0, %v2627
      %v2629 = vpop.f32.mrb[0].mxu0
      %2630 = vmatprep.mubr.f32.mxu0 0.0
      %2631 = vmatmul.mubr.f32.gmra.mrb[0].mxu0 %v2406
      %v2632 = vpop.f32.mrb[0].mxu0
      %v2633 = vadd.f32 0.0, %v2632
      %v2634 = vpop.f32.mrb[0].mxu0
      %2635 = vdwg.mxu0
      %v2636 = vadd.f32 %v2248, %v2478
      %v2637 = vadd.f32 %v2249, %v2483
      %v2638 = vadd.f32 %v2250, %v2488
      %v2639 = vadd.f32 %v2251, %v2493
      %v2640 = vadd.f32 %v2252, %v2498
      %v2641 = vadd.f32 %v2253, %v2503
      %v2642 = vadd.f32 %v2254, %v2508
      %v2643 = vadd.f32 %v2255, %v2513
      %v2644 = vadd.f32 %v2256, %v2518
      %v2645 = vadd.f32 %v2257, %v2523
      %v2646 = vadd.f32 %v2258, %v2528
      %v2647 = vadd.f32 %v2259, %v2533
      %v2648 = vadd.f32 %v2260, %v2538
      %v2649 = vadd.f32 %v2261, %v2543
      %v2650 = vadd.f32 %v2262, %v2548
      %v2651 = vadd.f32 %v2263, %v2553
      %v2652 = vadd.f32 %v2264, %v2558
      %v2653 = vadd.f32 %v2265, %v2563
      %v2654 = vadd.f32 %v2266, %v2568
      %v2655 = vadd.f32 %v2267, %v2573
      %v2656 = vadd.f32 %v2268, %v2578
      %v2657 = vadd.f32 %v2269, %v2583
      %v2658 = vadd.f32 %v2270, %v2588
      %v2659 = vadd.f32 %v2271, %v2593
      %v2660 = vadd.f32 %v2272, %v2598
      %v2661 = vadd.f32 %v2273, %v2603
      %v2662 = vadd.f32 %v2274, %v2608
      %v2663 = vadd.f32 %v2275, %v2613
      %v2664 = vadd.f32 %v2276, %v2618
      %v2665 = vadd.f32 %v2277, %v2623
      %v2666 = vadd.f32 %v2278, %v2628
      %v2667 = vadd.f32 %v2279, %v2633
      %s2668 = scalar_lea.vmem [#allocation2], 96
      %v2669 = vld [vmem:[%s2668] sm:$0xff]
      %v2670 = vld [vmem:[%s2668 + $0x8] sm:$0xff]
      %v2671 = vld [vmem:[%s2668 + $0x18] sm:$0xff]
      %v2672 = vld [vmem:[%s2668 + $0x20] sm:$0xff]
      %v2673 = vld [vmem:[%s2668 + $0x30] sm:$0xff]
      %v2674 = vld [vmem:[%s2668 + $0x38] sm:$0xff]
      %v2675 = vld [vmem:[%s2668 + $0x48] sm:$0xff]
      %v2676 = vld [vmem:[%s2668 + $0x50] sm:$0xff]
      %v2677 = vld [vmem:[%s2668 + $0x60] sm:$0xff]
      %v2678 = vld [vmem:[%s2668 + $0x68] sm:$0xff]
      %v2679 = vld [vmem:[%s2668 + $0x78] sm:$0xff]
      %v2680 = vld [vmem:[%s2668 + $0x80] sm:$0xff]
      %v2681 = vld [vmem:[%s2668 + $0x90] sm:$0xff]
      %v2682 = vld [vmem:[%s2668 + $0x98] sm:$0xff]
      %v2683 = vld [vmem:[%s2668 + $0xa8] sm:$0xff]
      %v2684 = vld [vmem:[%s2668 + $0xb0] sm:$0xff]
      %v2685 = vld [vmem:[%s2668 + $0xc0] sm:$0xff]
      %v2686 = vld [vmem:[%s2668 + $0xc8] sm:$0xff]
      %v2687 = vld [vmem:[%s2668 + $0xd8] sm:$0xff]
      %v2688 = vld [vmem:[%s2668 + $0xe0] sm:$0xff]
      %v2689 = vld [vmem:[%s2668 + $0xf0] sm:$0xff]
      %v2690 = vld [vmem:[%s2668 + $0xf8] sm:$0xff]
      %v2691 = vld [vmem:[%s2668 + $0x108] sm:$0xff]
      %v2692 = vld [vmem:[%s2668 + $0x110] sm:$0xff]
      %v2693 = vld [vmem:[%s2668 + $0x120] sm:$0xff]
      %v2694 = vld [vmem:[%s2668 + $0x128] sm:$0xff]
      %v2695 = vld [vmem:[%s2668 + $0x138] sm:$0xff]
      %v2696 = vld [vmem:[%s2668 + $0x140] sm:$0xff]
      %v2697 = vld [vmem:[%s2668 + $0x150] sm:$0xff]
      %v2698 = vld [vmem:[%s2668 + $0x158] sm:$0xff]
      %v2699 = vld [vmem:[%s2668 + $0x168] sm:$0xff]
      %v2700 = vld [vmem:[%s2668 + $0x170] sm:$0xff]
      %v2702 = vsel %vm360, %v2669, 0
      %v2705 = vsel %vm360, %v2670, 0
      %v2708 = vsel %vm360, %v2671, 0
      %v2711 = vsel %vm360, %v2672, 0
      %v2714 = vsel %vm360, %v2673, 0
      %v2717 = vsel %vm360, %v2674, 0
      %v2720 = vsel %vm360, %v2675, 0
      %v2723 = vsel %vm360, %v2676, 0
      %v2726 = vsel %vm360, %v2677, 0
      %v2729 = vsel %vm360, %v2678, 0
      %v2732 = vsel %vm360, %v2679, 0
      %v2735 = vsel %vm360, %v2680, 0
      %v2738 = vsel %vm360, %v2681, 0
      %v2741 = vsel %vm360, %v2682, 0
      %v2744 = vsel %vm360, %v2683, 0
      %v2747 = vsel %vm360, %v2684, 0
      %v2750 = vsel %vm360, %v2685, 0
      %v2753 = vsel %vm360, %v2686, 0
      %v2756 = vsel %vm360, %v2687, 0
      %v2759 = vsel %vm360, %v2688, 0
      %v2762 = vsel %vm360, %v2689, 0
      %v2765 = vsel %vm360, %v2690, 0
      %v2768 = vsel %vm360, %v2691, 0
      %v2771 = vsel %vm360, %v2692, 0
      %v2774 = vsel %vm360, %v2693, 0
      %v2777 = vsel %vm360, %v2694, 0
      %v2780 = vsel %vm360, %v2695, 0
      %v2783 = vsel %vm360, %v2696, 0
      %v2786 = vsel %vm360, %v2697, 0
      %v2789 = vsel %vm360, %v2698, 0
      %v2792 = vsel %vm360, %v2699, 0
      %v2795 = vsel %vm360, %v2700, 0
      %v2798 = vsel %vm563, %v399, 0
      %2800 = vmatprep.subr.mxu0 0.0
      %2801 = vmatpush1.msra.mxu0 %v2798
      %2802 = vmatprep.subr.mxu0 0.0
      %2803 = vmatpush1.msra.mxu0 0.0
      %2804 = vmatprep.subr.mxu0 0.0
      %2805 = vmatpush1.msra.mxu0 0.0
      %2806 = vmatprep.subr.mxu0 0.0
      %2807 = vmatpush1.msra.mxu0 0.0
      %2808 = vmatprep.subr.mxu0 0.0
      %2809 = vmatpush1.msra.mxu0 0.0
      %2810 = vmatprep.subr.mxu0 0.0
      %2811 = vmatpush1.msra.mxu0 0.0
      %2812 = vmatprep.subr.mxu0 0.0
      %2813 = vmatpush1.msra.mxu0 0.0
      %2814 = vmatprep.subr.mxu0 0.0
      %2815 = vmatpush1.msra.mxu0 0.0
      %2816 = vmatprep.subr.mxu0 0.0
      %2817 = vmatpush1.msra.mxu0 0.0
      %2818 = vmatprep.subr.mxu0 0.0
      %2819 = vmatpush1.msra.mxu0 0.0
      %2820 = vmatprep.subr.mxu0 0.0
      %2821 = vmatpush1.msra.mxu0 0.0
      %2822 = vmatprep.subr.mxu0 0.0
      %2823 = vmatpush1.msra.mxu0 0.0
      %2824 = vmatprep.subr.mxu0 0.0
      %2825 = vmatpush1.msra.mxu0 0.0
      %2826 = vmatprep.subr.mxu0 0.0
      %2827 = vmatpush1.msra.mxu0 0.0
      %2828 = vmatprep.subr.mxu0 0.0
      %2829 = vmatpush1.msra.mxu0 0.0
      %2830 = vmatprep.subr.mxu0 0.0
      %2831 = vmatpush1.msra.mxu0 0.0
      %2832 = vmatprep.subr.mxu0 0.0
      %2833 = vmatpush1.msra.mxu0 0.0
      %2834 = vmatprep.subr.mxu0 0.0
      %2835 = vmatpush1.msra.mxu0 0.0
      %2836 = vmatprep.subr.mxu0 0.0
      %2837 = vmatpush1.msra.mxu0 0.0
      %2838 = vmatprep.subr.mxu0 0.0
      %2839 = vmatpush1.msra.mxu0 0.0
      %2840 = vmatprep.subr.mxu0 0.0
      %2841 = vmatpush1.msra.mxu0 0.0
      %2842 = vmatprep.subr.mxu0 0.0
      %2843 = vmatpush1.msra.mxu0 0.0
      %2844 = vmatprep.subr.mxu0 0.0
      %2845 = vmatpush1.msra.mxu0 0.0
      %2846 = vmatprep.subr.mxu0 0.0
      %2847 = vmatpush1.msra.mxu0 0.0
      %2848 = vmatprep.subr.mxu0 0.0
      %2849 = vmatpush1.msra.mxu0 0.0
      %2850 = vmatprep.subr.mxu0 0.0
      %2851 = vmatpush1.msra.mxu0 0.0
      %2852 = vmatprep.subr.mxu0 0.0
      %2853 = vmatpush1.msra.mxu0 0.0
      %2854 = vmatprep.subr.mxu0 0.0
      %2855 = vmatpush1.msra.mxu0 0.0
      %2856 = vmatprep.subr.mxu0 0.0
      %2857 = vmatpush1.msra.mxu0 0.0
      %2858 = vmatprep.subr.mxu0 0.0
      %2859 = vmatpush1.msra.mxu0 0.0
      %2860 = vmatprep.subr.mxu0 0.0
      %2861 = vmatpush1.msra.mxu0 0.0
      %2862 = vmatprep.subr.mxu0 0.0
      %2863 = vmatpush1.msra.mxu0 0.0
      %2864 = vmatprep.mubr.f32.mxu0 0.0
      %2865 = vmatmul.mubr.f32.gmra.mrb[0].mxu0 %v2702
      %v2866 = vpop.f32.mrb[0].mxu0
      %v2867 = vadd.f32 0.0, %v2866
      %v2868 = vpop.f32.mrb[0].mxu0
      %2869 = vmatprep.mubr.f32.mxu0 0.0
      %2870 = vmatmul.mubr.f32.gmra.mrb[0].mxu0 %v2705
      %v2871 = vpop.f32.mrb[0].mxu0
      %v2872 = vadd.f32 0.0, %v2871
      %v2873 = vpop.f32.mrb[0].mxu0
      %2874 = vmatprep.mubr.f32.mxu0 0.0
      %2875 = vmatmul.mubr.f32.gmra.mrb[0].mxu0 %v2708
      %v2876 = vpop.f32.mrb[0].mxu0
      %v2877 = vadd.f32 0.0, %v2876
      %v2878 = vpop.f32.mrb[0].mxu0
      %2879 = vmatprep.mubr.f32.mxu0 0.0
      %2880 = vmatmul.mubr.f32.gmra.mrb[0].mxu0 %v2711
      %v2881 = vpop.f32.mrb[0].mxu0
      %v2882 = vadd.f32 0.0, %v2881
      %v2883 = vpop.f32.mrb[0].mxu0
      %2884 = vmatprep.mubr.f32.mxu0 0.0
      %2885 = vmatmul.mubr.f32.gmra.mrb[0].mxu0 %v2714
      %v2886 = vpop.f32.mrb[0].mxu0
      %v2887 = vadd.f32 0.0, %v2886
      %v2888 = vpop.f32.mrb[0].mxu0
      %2889 = vmatprep.mubr.f32.mxu0 0.0
      %2890 = vmatmul.mubr.f32.gmra.mrb[0].mxu0 %v2717
      %v2891 = vpop.f32.mrb[0].mxu0
      %v2892 = vadd.f32 0.0, %v2891
      %v2893 = vpop.f32.mrb[0].mxu0
      %2894 = vmatprep.mubr.f32.mxu0 0.0
      %2895 = vmatmul.mubr.f32.gmra.mrb[0].mxu0 %v2720
      %v2896 = vpop.f32.mrb[0].mxu0
      %v2897 = vadd.f32 0.0, %v2896
      %v2898 = vpop.f32.mrb[0].mxu0
      %2899 = vmatprep.mubr.f32.mxu0 0.0
      %2900 = vmatmul.mubr.f32.gmra.mrb[0].mxu0 %v2723
      %v2901 = vpop.f32.mrb[0].mxu0
      %v2902 = vadd.f32 0.0, %v2901
      %v2903 = vpop.f32.mrb[0].mxu0
      %2904 = vmatprep.mubr.f32.mxu0 0.0
      %2905 = vmatmul.mubr.f32.gmra.mrb[0].mxu0 %v2726
      %v2906 = vpop.f32.mrb[0].mxu0
      %v2907 = vadd.f32 0.0, %v2906
      %v2908 = vpop.f32.mrb[0].mxu0
      %2909 = vmatprep.mubr.f32.mxu0 0.0
      %2910 = vmatmul.mubr.f32.gmra.mrb[0].mxu0 %v2729
      %v2911 = vpop.f32.mrb[0].mxu0
      %v2912 = vadd.f32 0.0, %v2911
      %v2913 = vpop.f32.mrb[0].mxu0
      %2914 = vmatprep.mubr.f32.mxu0 0.0
      %2915 = vmatmul.mubr.f32.gmra.mrb[0].mxu0 %v2732
      %v2916 = vpop.f32.mrb[0].mxu0
      %v2917 = vadd.f32 0.0, %v2916
      %v2918 = vpop.f32.mrb[0].mxu0
      %2919 = vmatprep.mubr.f32.mxu0 0.0
      %2920 = vmatmul.mubr.f32.gmra.mrb[0].mxu0 %v2735
      %v2921 = vpop.f32.mrb[0].mxu0
      %v2922 = vadd.f32 0.0, %v2921
      %v2923 = vpop.f32.mrb[0].mxu0
      %2924 = vmatprep.mubr.f32.mxu0 0.0
      %2925 = vmatmul.mubr.f32.gmra.mrb[0].mxu0 %v2738
      %v2926 = vpop.f32.mrb[0].mxu0
      %v2927 = vadd.f32 0.0, %v2926
      %v2928 = vpop.f32.mrb[0].mxu0
      %2929 = vmatprep.mubr.f32.mxu0 0.0
      %2930 = vmatmul.mubr.f32.gmra.mrb[0].mxu0 %v2741
      %v2931 = vpop.f32.mrb[0].mxu0
      %v2932 = vadd.f32 0.0, %v2931
      %v2933 = vpop.f32.mrb[0].mxu0
      %2934 = vmatprep.mubr.f32.mxu0 0.0
      %2935 = vmatmul.mubr.f32.gmra.mrb[0].mxu0 %v2744
      %v2936 = vpop.f32.mrb[0].mxu0
      %v2937 = vadd.f32 0.0, %v2936
      %v2938 = vpop.f32.mrb[0].mxu0
      %2939 = vmatprep.mubr.f32.mxu0 0.0
      %2940 = vmatmul.mubr.f32.gmra.mrb[0].mxu0 %v2747
      %v2941 = vpop.f32.mrb[0].mxu0
      %v2942 = vadd.f32 0.0, %v2941
      %v2943 = vpop.f32.mrb[0].mxu0
      %2944 = vmatprep.mubr.f32.mxu0 0.0
      %2945 = vmatmul.mubr.f32.gmra.mrb[0].mxu0 %v2750
      %v2946 = vpop.f32.mrb[0].mxu0
      %v2947 = vadd.f32 0.0, %v2946
      %v2948 = vpop.f32.mrb[0].mxu0
      %2949 = vmatprep.mubr.f32.mxu0 0.0
      %2950 = vmatmul.mubr.f32.gmra.mrb[0].mxu0 %v2753
      %v2951 = vpop.f32.mrb[0].mxu0
      %v2952 = vadd.f32 0.0, %v2951
      %v2953 = vpop.f32.mrb[0].mxu0
      %2954 = vmatprep.mubr.f32.mxu0 0.0
      %2955 = vmatmul.mubr.f32.gmra.mrb[0].mxu0 %v2756
      %v2956 = vpop.f32.mrb[0].mxu0
      %v2957 = vadd.f32 0.0, %v2956
      %v2958 = vpop.f32.mrb[0].mxu0
      %2959 = vmatprep.mubr.f32.mxu0 0.0
      %2960 = vmatmul.mubr.f32.gmra.mrb[0].mxu0 %v2759
      %v2961 = vpop.f32.mrb[0].mxu0
      %v2962 = vadd.f32 0.0, %v2961
      %v2963 = vpop.f32.mrb[0].mxu0
      %2964 = vmatprep.mubr.f32.mxu0 0.0
      %2965 = vmatmul.mubr.f32.gmra.mrb[0].mxu0 %v2762
      %v2966 = vpop.f32.mrb[0].mxu0
      %v2967 = vadd.f32 0.0, %v2966
      %v2968 = vpop.f32.mrb[0].mxu0
      %2969 = vmatprep.mubr.f32.mxu0 0.0
      %2970 = vmatmul.mubr.f32.gmra.mrb[0].mxu0 %v2765
      %v2971 = vpop.f32.mrb[0].mxu0
      %v2972 = vadd.f32 0.0, %v2971
      %v2973 = vpop.f32.mrb[0].mxu0
      %2974 = vmatprep.mubr.f32.mxu0 0.0
      %2975 = vmatmul.mubr.f32.gmra.mrb[0].mxu0 %v2768
      %v2976 = vpop.f32.mrb[0].mxu0
      %v2977 = vadd.f32 0.0, %v2976
      %v2978 = vpop.f32.mrb[0].mxu0
      %2979 = vmatprep.mubr.f32.mxu0 0.0
      %2980 = vmatmul.mubr.f32.gmra.mrb[0].mxu0 %v2771
      %v2981 = vpop.f32.mrb[0].mxu0
      %v2982 = vadd.f32 0.0, %v2981
      %v2983 = vpop.f32.mrb[0].mxu0
      %2984 = vmatprep.mubr.f32.mxu0 0.0
      %2985 = vmatmul.mubr.f32.gmra.mrb[0].mxu0 %v2774
      %v2986 = vpop.f32.mrb[0].mxu0
      %v2987 = vadd.f32 0.0, %v2986
      %v2988 = vpop.f32.mrb[0].mxu0
      %2989 = vmatprep.mubr.f32.mxu0 0.0
      %2990 = vmatmul.mubr.f32.gmra.mrb[0].mxu0 %v2777
      %v2991 = vpop.f32.mrb[0].mxu0
      %v2992 = vadd.f32 0.0, %v2991
      %v2993 = vpop.f32.mrb[0].mxu0
      %2994 = vmatprep.mubr.f32.mxu0 0.0
      %2995 = vmatmul.mubr.f32.gmra.mrb[0].mxu0 %v2780
      %v2996 = vpop.f32.mrb[0].mxu0
      %v2997 = vadd.f32 0.0, %v2996
      %v2998 = vpop.f32.mrb[0].mxu0
      %2999 = vmatprep.mubr.f32.mxu0 0.0
      %3000 = vmatmul.mubr.f32.gmra.mrb[0].mxu0 %v2783
      %v3001 = vpop.f32.mrb[0].mxu0
      %v3002 = vadd.f32 0.0, %v3001
      %v3003 = vpop.f32.mrb[0].mxu0
      %3004 = vmatprep.mubr.f32.mxu0 0.0
      %3005 = vmatmul.mubr.f32.gmra.mrb[0].mxu0 %v2786
      %v3006 = vpop.f32.mrb[0].mxu0
      %v3007 = vadd.f32 0.0, %v3006
      %v3008 = vpop.f32.mrb[0].mxu0
      %3009 = vmatprep.mubr.f32.mxu0 0.0
      %3010 = vmatmul.mubr.f32.gmra.mrb[0].mxu0 %v2789
      %v3011 = vpop.f32.mrb[0].mxu0
      %v3012 = vadd.f32 0.0, %v3011
      %v3013 = vpop.f32.mrb[0].mxu0
      %3014 = vmatprep.mubr.f32.mxu0 0.0
      %3015 = vmatmul.mubr.f32.gmra.mrb[0].mxu0 %v2792
      %v3016 = vpop.f32.mrb[0].mxu0
      %v3017 = vadd.f32 0.0, %v3016
      %v3018 = vpop.f32.mrb[0].mxu0
      %3019 = vmatprep.mubr.f32.mxu0 0.0
      %3020 = vmatmul.mubr.f32.gmra.mrb[0].mxu0 %v2795
      %v3021 = vpop.f32.mrb[0].mxu0
      %v3022 = vadd.f32 0.0, %v3021
      %v3023 = vpop.f32.mrb[0].mxu0
      %3024 = vdwg.mxu0
      %v3025 = vadd.f32 %v2636, %v2867
      %v3026 = vadd.f32 %v2637, %v2872
      %v3027 = vadd.f32 %v2638, %v2877
      %v3028 = vadd.f32 %v2639, %v2882
      %v3029 = vadd.f32 %v2640, %v2887
      %v3030 = vadd.f32 %v2641, %v2892
      %v3031 = vadd.f32 %v2642, %v2897
      %v3032 = vadd.f32 %v2643, %v2902
      %v3033 = vadd.f32 %v2644, %v2907
      %v3034 = vadd.f32 %v2645, %v2912
      %v3035 = vadd.f32 %v2646, %v2917
      %v3036 = vadd.f32 %v2647, %v2922
      %v3037 = vadd.f32 %v2648, %v2927
      %v3038 = vadd.f32 %v2649, %v2932
      %v3039 = vadd.f32 %v2650, %v2937
      %v3040 = vadd.f32 %v2651, %v2942
      %v3041 = vadd.f32 %v2652, %v2947
      %v3042 = vadd.f32 %v2653, %v2952
      %v3043 = vadd.f32 %v2654, %v2957
      %v3044 = vadd.f32 %v2655, %v2962
      %v3045 = vadd.f32 %v2656, %v2967
      %v3046 = vadd.f32 %v2657, %v2972
      %v3047 = vadd.f32 %v2658, %v2977
      %v3048 = vadd.f32 %v2659, %v2982
      %v3049 = vadd.f32 %v2660, %v2987
      %v3050 = vadd.f32 %v2661, %v2992
      %v3051 = vadd.f32 %v2662, %v2997
      %v3052 = vadd.f32 %v2663, %v3002
      %v3053 = vadd.f32 %v2664, %v3007
      %v3054 = vadd.f32 %v2665, %v3012
      %v3055 = vadd.f32 %v2666, %v3017
      %v3056 = vadd.f32 %v2667, %v3022
      %v3057 = vld [vmem:[%s2668 + $0x2] sm:$0xff]
      %v3058 = vld [vmem:[%s2668 + $0xa] sm:$0xff]
      %v3059 = vld [vmem:[%s2668 + $0x1a] sm:$0xff]
      %v3060 = vld [vmem:[%s2668 + $0x22] sm:$0xff]
      %v3061 = vld [vmem:[%s2668 + $0x32] sm:$0xff]
      %v3062 = vld [vmem:[%s2668 + $0x3a] sm:$0xff]
      %v3063 = vld [vmem:[%s2668 + $0x4a] sm:$0xff]
      %v3064 = vld [vmem:[%s2668 + $0x52] sm:$0xff]
      %v3065 = vld [vmem:[%s2668 + $0x62] sm:$0xff]
      %v3066 = vld [vmem:[%s2668 + $0x6a] sm:$0xff]
      %v3067 = vld [vmem:[%s2668 + $0x7a] sm:$0xff]
      %v3068 = vld [vmem:[%s2668 + $0x82] sm:$0xff]
      %v3069 = vld [vmem:[%s2668 + $0x92] sm:$0xff]
      %v3070 = vld [vmem:[%s2668 + $0x9a] sm:$0xff]
      %v3071 = vld [vmem:[%s2668 + $0xaa] sm:$0xff]
      %v3072 = vld [vmem:[%s2668 + $0xb2] sm:$0xff]
      %v3073 = vld [vmem:[%s2668 + $0xc2] sm:$0xff]
      %v3074 = vld [vmem:[%s2668 + $0xca] sm:$0xff]
      %v3075 = vld [vmem:[%s2668 + $0xda] sm:$0xff]
      %v3076 = vld [vmem:[%s2668 + $0xe2] sm:$0xff]
      %v3077 = vld [vmem:[%s2668 + $0xf2] sm:$0xff]
      %v3078 = vld [vmem:[%s2668 + $0xfa] sm:$0xff]
      %v3079 = vld [vmem:[%s2668 + $0x10a] sm:$0xff]
      %v3080 = vld [vmem:[%s2668 + $0x112] sm:$0xff]
      %v3081 = vld [vmem:[%s2668 + $0x122] sm:$0xff]
      %v3082 = vld [vmem:[%s2668 + $0x12a] sm:$0xff]
      %v3083 = vld [vmem:[%s2668 + $0x13a] sm:$0xff]
      %v3084 = vld [vmem:[%s2668 + $0x142] sm:$0xff]
      %v3085 = vld [vmem:[%s2668 + $0x152] sm:$0xff]
      %v3086 = vld [vmem:[%s2668 + $0x15a] sm:$0xff]
      %v3087 = vld [vmem:[%s2668 + $0x16a] sm:$0xff]
      %v3088 = vld [vmem:[%s2668 + $0x172] sm:$0xff]
      %v3090 = vsel %vm360, %v3057, 0
      %v3093 = vsel %vm360, %v3058, 0
      %v3096 = vsel %vm360, %v3059, 0
      %v3099 = vsel %vm360, %v3060, 0
      %v3102 = vsel %vm360, %v3061, 0
      %v3105 = vsel %vm360, %v3062, 0
      %v3108 = vsel %vm360, %v3063, 0
      %v3111 = vsel %vm360, %v3064, 0
      %v3114 = vsel %vm360, %v3065, 0
      %v3117 = vsel %vm360, %v3066, 0
      %v3120 = vsel %vm360, %v3067, 0
      %v3123 = vsel %vm360, %v3068, 0
      %v3126 = vsel %vm360, %v3069, 0
      %v3129 = vsel %vm360, %v3070, 0
      %v3132 = vsel %vm360, %v3071, 0
      %v3135 = vsel %vm360, %v3072, 0
      %v3138 = vsel %vm360, %v3073, 0
      %v3141 = vsel %vm360, %v3074, 0
      %v3144 = vsel %vm360, %v3075, 0
      %v3147 = vsel %vm360, %v3076, 0
      %v3150 = vsel %vm360, %v3077, 0
      %v3153 = vsel %vm360, %v3078, 0
      %v3156 = vsel %vm360, %v3079, 0
      %v3159 = vsel %vm360, %v3080, 0
      %v3162 = vsel %vm360, %v3081, 0
      %v3165 = vsel %vm360, %v3082, 0
      %v3168 = vsel %vm360, %v3083, 0
      %v3171 = vsel %vm360, %v3084, 0
      %v3174 = vsel %vm360, %v3085, 0
      %v3177 = vsel %vm360, %v3086, 0
      %v3180 = vsel %vm360, %v3087, 0
      %v3183 = vsel %vm360, %v3088, 0
      %v3186 = vsel %vm563, %v400, 0
      %3188 = vmatprep.subr.mxu0 0.0
      %3189 = vmatpush1.msra.mxu0 %v3186
      %3190 = vmatprep.subr.mxu0 0.0
      %3191 = vmatpush1.msra.mxu0 0.0
      %3192 = vmatprep.subr.mxu0 0.0
      %3193 = vmatpush1.msra.mxu0 0.0
      %3194 = vmatprep.subr.mxu0 0.0
      %3195 = vmatpush1.msra.mxu0 0.0
      %3196 = vmatprep.subr.mxu0 0.0
      %3197 = vmatpush1.msra.mxu0 0.0
      %3198 = vmatprep.subr.mxu0 0.0
      %3199 = vmatpush1.msra.mxu0 0.0
      %3200 = vmatprep.subr.mxu0 0.0
      %3201 = vmatpush1.msra.mxu0 0.0
      %3202 = vmatprep.subr.mxu0 0.0
      %3203 = vmatpush1.msra.mxu0 0.0
      %3204 = vmatprep.subr.mxu0 0.0
      %3205 = vmatpush1.msra.mxu0 0.0
      %3206 = vmatprep.subr.mxu0 0.0
      %3207 = vmatpush1.msra.mxu0 0.0
      %3208 = vmatprep.subr.mxu0 0.0
      %3209 = vmatpush1.msra.mxu0 0.0
      %3210 = vmatprep.subr.mxu0 0.0
      %3211 = vmatpush1.msra.mxu0 0.0
      %3212 = vmatprep.subr.mxu0 0.0
      %3213 = vmatpush1.msra.mxu0 0.0
      %3214 = vmatprep.subr.mxu0 0.0
      %3215 = vmatpush1.msra.mxu0 0.0
      %3216 = vmatprep.subr.mxu0 0.0
      %3217 = vmatpush1.msra.mxu0 0.0
      %3218 = vmatprep.subr.mxu0 0.0
      %3219 = vmatpush1.msra.mxu0 0.0
      %3220 = vmatprep.subr.mxu0 0.0
      %3221 = vmatpush1.msra.mxu0 0.0
      %3222 = vmatprep.subr.mxu0 0.0
      %3223 = vmatpush1.msra.mxu0 0.0
      %3224 = vmatprep.subr.mxu0 0.0
      %3225 = vmatpush1.msra.mxu0 0.0
      %3226 = vmatprep.subr.mxu0 0.0
      %3227 = vmatpush1.msra.mxu0 0.0
      %3228 = vmatprep.subr.mxu0 0.0
      %3229 = vmatpush1.msra.mxu0 0.0
      %3230 = vmatprep.subr.mxu0 0.0
      %3231 = vmatpush1.msra.mxu0 0.0
      %3232 = vmatprep.subr.mxu0 0.0
      %3233 = vmatpush1.msra.mxu0 0.0
      %3234 = vmatprep.subr.mxu0 0.0
      %3235 = vmatpush1.msra.mxu0 0.0
      %3236 = vmatprep.subr.mxu0 0.0
      %3237 = vmatpush1.msra.mxu0 0.0
      %3238 = vmatprep.subr.mxu0 0.0
      %3239 = vmatpush1.msra.mxu0 0.0
      %3240 = vmatprep.subr.mxu0 0.0
      %3241 = vmatpush1.msra.mxu0 0.0
      %3242 = vmatprep.subr.mxu0 0.0
      %3243 = vmatpush1.msra.mxu0 0.0
      %3244 = vmatprep.subr.mxu0 0.0
      %3245 = vmatpush1.msra.mxu0 0.0
      %3246 = vmatprep.subr.mxu0 0.0
      %3247 = vmatpush1.msra.mxu0 0.0
      %3248 = vmatprep.subr.mxu0 0.0
      %3249 = vmatpush1.msra.mxu0 0.0
      %3250 = vmatprep.subr.mxu0 0.0
      %3251 = vmatpush1.msra.mxu0 0.0
      %3252 = vmatprep.mubr.f32.mxu0 0.0
      %3253 = vmatmul.mubr.f32.gmra.mrb[0].mxu0 %v3090
      %v3254 = vpop.f32.mrb[0].mxu0
      %v3255 = vadd.f32 0.0, %v3254
      %v3256 = vpop.f32.mrb[0].mxu0
      %3257 = vmatprep.mubr.f32.mxu0 0.0
      %3258 = vmatmul.mubr.f32.gmra.mrb[0].mxu0 %v3093
      %v3259 = vpop.f32.mrb[0].mxu0
      %v3260 = vadd.f32 0.0, %v3259
      %v3261 = vpop.f32.mrb[0].mxu0
      %3262 = vmatprep.mubr.f32.mxu0 0.0
      %3263 = vmatmul.mubr.f32.gmra.mrb[0].mxu0 %v3096
      %v3264 = vpop.f32.mrb[0].mxu0
      %v3265 = vadd.f32 0.0, %v3264
      %v3266 = vpop.f32.mrb[0].mxu0
      %3267 = vmatprep.mubr.f32.mxu0 0.0
      %3268 = vmatmul.mubr.f32.gmra.mrb[0].mxu0 %v3099
      %v3269 = vpop.f32.mrb[0].mxu0
      %v3270 = vadd.f32 0.0, %v3269
      %v3271 = vpop.f32.mrb[0].mxu0
      %3272 = vmatprep.mubr.f32.mxu0 0.0
      %3273 = vmatmul.mubr.f32.gmra.mrb[0].mxu0 %v3102
      %v3274 = vpop.f32.mrb[0].mxu0
      %v3275 = vadd.f32 0.0, %v3274
      %v3276 = vpop.f32.mrb[0].mxu0
      %3277 = vmatprep.mubr.f32.mxu0 0.0
      %3278 = vmatmul.mubr.f32.gmra.mrb[0].mxu0 %v3105
      %v3279 = vpop.f32.mrb[0].mxu0
      %v3280 = vadd.f32 0.0, %v3279
      %v3281 = vpop.f32.mrb[0].mxu0
      %3282 = vmatprep.mubr.f32.mxu0 0.0
      %3283 = vmatmul.mubr.f32.gmra.mrb[0].mxu0 %v3108
      %v3284 = vpop.f32.mrb[0].mxu0
      %v3285 = vadd.f32 0.0, %v3284
      %v3286 = vpop.f32.mrb[0].mxu0
      %3287 = vmatprep.mubr.f32.mxu0 0.0
      %3288 = vmatmul.mubr.f32.gmra.mrb[0].mxu0 %v3111
      %v3289 = vpop.f32.mrb[0].mxu0
      %v3290 = vadd.f32 0.0, %v3289
      %v3291 = vpop.f32.mrb[0].mxu0
      %3292 = vmatprep.mubr.f32.mxu0 0.0
      %3293 = vmatmul.mubr.f32.gmra.mrb[0].mxu0 %v3114
      %v3294 = vpop.f32.mrb[0].mxu0
      %v3295 = vadd.f32 0.0, %v3294
      %v3296 = vpop.f32.mrb[0].mxu0
      %3297 = vmatprep.mubr.f32.mxu0 0.0
      %3298 = vmatmul.mubr.f32.gmra.mrb[0].mxu0 %v3117
      %v3299 = vpop.f32.mrb[0].mxu0
      %v3300 = vadd.f32 0.0, %v3299
      %v3301 = vpop.f32.mrb[0].mxu0
      %3302 = vmatprep.mubr.f32.mxu0 0.0
      %3303 = vmatmul.mubr.f32.gmra.mrb[0].mxu0 %v3120
      %v3304 = vpop.f32.mrb[0].mxu0
      %v3305 = vadd.f32 0.0, %v3304
      %v3306 = vpop.f32.mrb[0].mxu0
      %3307 = vmatprep.mubr.f32.mxu0 0.0
      %3308 = vmatmul.mubr.f32.gmra.mrb[0].mxu0 %v3123
      %v3309 = vpop.f32.mrb[0].mxu0
      %v3310 = vadd.f32 0.0, %v3309
      %v3311 = vpop.f32.mrb[0].mxu0
      %3312 = vmatprep.mubr.f32.mxu0 0.0
      %3313 = vmatmul.mubr.f32.gmra.mrb[0].mxu0 %v3126
      %v3314 = vpop.f32.mrb[0].mxu0
      %v3315 = vadd.f32 0.0, %v3314
      %v3316 = vpop.f32.mrb[0].mxu0
      %3317 = vmatprep.mubr.f32.mxu0 0.0
      %3318 = vmatmul.mubr.f32.gmra.mrb[0].mxu0 %v3129
      %v3319 = vpop.f32.mrb[0].mxu0
      %v3320 = vadd.f32 0.0, %v3319
      %v3321 = vpop.f32.mrb[0].mxu0
      %3322 = vmatprep.mubr.f32.mxu0 0.0
      %3323 = vmatmul.mubr.f32.gmra.mrb[0].mxu0 %v3132
      %v3324 = vpop.f32.mrb[0].mxu0
      %v3325 = vadd.f32 0.0, %v3324
      %v3326 = vpop.f32.mrb[0].mxu0
      %3327 = vmatprep.mubr.f32.mxu0 0.0
      %3328 = vmatmul.mubr.f32.gmra.mrb[0].mxu0 %v3135
      %v3329 = vpop.f32.mrb[0].mxu0
      %v3330 = vadd.f32 0.0, %v3329
      %v3331 = vpop.f32.mrb[0].mxu0
      %3332 = vmatprep.mubr.f32.mxu0 0.0
      %3333 = vmatmul.mubr.f32.gmra.mrb[0].mxu0 %v3138
      %v3334 = vpop.f32.mrb[0].mxu0
      %v3335 = vadd.f32 0.0, %v3334
      %v3336 = vpop.f32.mrb[0].mxu0
      %3337 = vmatprep.mubr.f32.mxu0 0.0
      %3338 = vmatmul.mubr.f32.gmra.mrb[0].mxu0 %v3141
      %v3339 = vpop.f32.mrb[0].mxu0
      %v3340 = vadd.f32 0.0, %v3339
      %v3341 = vpop.f32.mrb[0].mxu0
      %3342 = vmatprep.mubr.f32.mxu0 0.0
      %3343 = vmatmul.mubr.f32.gmra.mrb[0].mxu0 %v3144
      %v3344 = vpop.f32.mrb[0].mxu0
      %v3345 = vadd.f32 0.0, %v3344
      %v3346 = vpop.f32.mrb[0].mxu0
      %3347 = vmatprep.mubr.f32.mxu0 0.0
      %3348 = vmatmul.mubr.f32.gmra.mrb[0].mxu0 %v3147
      %v3349 = vpop.f32.mrb[0].mxu0
      %v3350 = vadd.f32 0.0, %v3349
      %v3351 = vpop.f32.mrb[0].mxu0
      %3352 = vmatprep.mubr.f32.mxu0 0.0
      %3353 = vmatmul.mubr.f32.gmra.mrb[0].mxu0 %v3150
      %v3354 = vpop.f32.mrb[0].mxu0
      %v3355 = vadd.f32 0.0, %v3354
      %v3356 = vpop.f32.mrb[0].mxu0
      %3357 = vmatprep.mubr.f32.mxu0 0.0
      %3358 = vmatmul.mubr.f32.gmra.mrb[0].mxu0 %v3153
      %v3359 = vpop.f32.mrb[0].mxu0
      %v3360 = vadd.f32 0.0, %v3359
      %v3361 = vpop.f32.mrb[0].mxu0
      %3362 = vmatprep.mubr.f32.mxu0 0.0
      %3363 = vmatmul.mubr.f32.gmra.mrb[0].mxu0 %v3156
      %v3364 = vpop.f32.mrb[0].mxu0
      %v3365 = vadd.f32 0.0, %v3364
      %v3366 = vpop.f32.mrb[0].mxu0
      %3367 = vmatprep.mubr.f32.mxu0 0.0
      %3368 = vmatmul.mubr.f32.gmra.mrb[0].mxu0 %v3159
      %v3369 = vpop.f32.mrb[0].mxu0
      %v3370 = vadd.f32 0.0, %v3369
      %v3371 = vpop.f32.mrb[0].mxu0
      %3372 = vmatprep.mubr.f32.mxu0 0.0
      %3373 = vmatmul.mubr.f32.gmra.mrb[0].mxu0 %v3162
      %v3374 = vpop.f32.mrb[0].mxu0
      %v3375 = vadd.f32 0.0, %v3374
      %v3376 = vpop.f32.mrb[0].mxu0
      %3377 = vmatprep.mubr.f32.mxu0 0.0
      %3378 = vmatmul.mubr.f32.gmra.mrb[0].mxu0 %v3165
      %v3379 = vpop.f32.mrb[0].mxu0
      %v3380 = vadd.f32 0.0, %v3379
      %v3381 = vpop.f32.mrb[0].mxu0
      %3382 = vmatprep.mubr.f32.mxu0 0.0
      %3383 = vmatmul.mubr.f32.gmra.mrb[0].mxu0 %v3168
      %v3384 = vpop.f32.mrb[0].mxu0
      %v3385 = vadd.f32 0.0, %v3384
      %v3386 = vpop.f32.mrb[0].mxu0
      %3387 = vmatprep.mubr.f32.mxu0 0.0
      %3388 = vmatmul.mubr.f32.gmra.mrb[0].mxu0 %v3171
      %v3389 = vpop.f32.mrb[0].mxu0
      %v3390 = vadd.f32 0.0, %v3389
      %v3391 = vpop.f32.mrb[0].mxu0
      %3392 = vmatprep.mubr.f32.mxu0 0.0
      %3393 = vmatmul.mubr.f32.gmra.mrb[0].mxu0 %v3174
      %v3394 = vpop.f32.mrb[0].mxu0
      %v3395 = vadd.f32 0.0, %v3394
      %v3396 = vpop.f32.mrb[0].mxu0
      %3397 = vmatprep.mubr.f32.mxu0 0.0
      %3398 = vmatmul.mubr.f32.gmra.mrb[0].mxu0 %v3177
      %v3399 = vpop.f32.mrb[0].mxu0
      %v3400 = vadd.f32 0.0, %v3399
      %v3401 = vpop.f32.mrb[0].mxu0
      %3402 = vmatprep.mubr.f32.mxu0 0.0
      %3403 = vmatmul.mubr.f32.gmra.mrb[0].mxu0 %v3180
      %v3404 = vpop.f32.mrb[0].mxu0
      %v3405 = vadd.f32 0.0, %v3404
      %v3406 = vpop.f32.mrb[0].mxu0
      %3407 = vmatprep.mubr.f32.mxu0 0.0
      %3408 = vmatmul.mubr.f32.gmra.mrb[0].mxu0 %v3183
      %v3409 = vpop.f32.mrb[0].mxu0
      %v3410 = vadd.f32 0.0, %v3409
      %v3411 = vpop.f32.mrb[0].mxu0
      %3412 = vdwg.mxu0
      %v3413 = vadd.f32 %v3025, %v3255
      %v3414 = vadd.f32 %v3026, %v3260
      %v3415 = vadd.f32 %v3027, %v3265
      %v3416 = vadd.f32 %v3028, %v3270
      %v3417 = vadd.f32 %v3029, %v3275
      %v3418 = vadd.f32 %v3030, %v3280
      %v3419 = vadd.f32 %v3031, %v3285
      %v3420 = vadd.f32 %v3032, %v3290
      %v3421 = vadd.f32 %v3033, %v3295
      %v3422 = vadd.f32 %v3034, %v3300
      %v3423 = vadd.f32 %v3035, %v3305
      %v3424 = vadd.f32 %v3036, %v3310
      %v3425 = vadd.f32 %v3037, %v3315
      %v3426 = vadd.f32 %v3038, %v3320
      %v3427 = vadd.f32 %v3039, %v3325
      %v3428 = vadd.f32 %v3040, %v3330
      %v3429 = vadd.f32 %v3041, %v3335
      %v3430 = vadd.f32 %v3042, %v3340
      %v3431 = vadd.f32 %v3043, %v3345
      %v3432 = vadd.f32 %v3044, %v3350
      %v3433 = vadd.f32 %v3045, %v3355
      %v3434 = vadd.f32 %v3046, %v3360
      %v3435 = vadd.f32 %v3047, %v3365
      %v3436 = vadd.f32 %v3048, %v3370
      %v3437 = vadd.f32 %v3049, %v3375
      %v3438 = vadd.f32 %v3050, %v3380
      %v3439 = vadd.f32 %v3051, %v3385
      %v3440 = vadd.f32 %v3052, %v3390
      %v3441 = vadd.f32 %v3053, %v3395
      %v3442 = vadd.f32 %v3054, %v3400
      %v3443 = vadd.f32 %v3055, %v3405
      %v3444 = vadd.f32 %v3056, %v3410
      %v3445 = vld [vmem:[%s2668 + $0x4] sm:$0xff]
      %v3446 = vld [vmem:[%s2668 + $0xc] sm:$0xff]
      %v3447 = vld [vmem:[%s2668 + $0x1c] sm:$0xff]
      %v3448 = vld [vmem:[%s2668 + $0x24] sm:$0xff]
      %v3449 = vld [vmem:[%s2668 + $0x34] sm:$0xff]
      %v3450 = vld [vmem:[%s2668 + $0x3c] sm:$0xff]
      %v3451 = vld [vmem:[%s2668 + $0x4c] sm:$0xff]
      %v3452 = vld [vmem:[%s2668 + $0x54] sm:$0xff]
      %v3453 = vld [vmem:[%s2668 + $0x64] sm:$0xff]
      %v3454 = vld [vmem:[%s2668 + $0x6c] sm:$0xff]
      %v3455 = vld [vmem:[%s2668 + $0x7c] sm:$0xff]
      %v3456 = vld [vmem:[%s2668 + $0x84] sm:$0xff]
      %v3457 = vld [vmem:[%s2668 + $0x94] sm:$0xff]
      %v3458 = vld [vmem:[%s2668 + $0x9c] sm:$0xff]
      %v3459 = vld [vmem:[%s2668 + $0xac] sm:$0xff]
      %v3460 = vld [vmem:[%s2668 + $0xb4] sm:$0xff]
      %v3461 = vld [vmem:[%s2668 + $0xc4] sm:$0xff]
      %v3462 = vld [vmem:[%s2668 + $0xcc] sm:$0xff]
      %v3463 = vld [vmem:[%s2668 + $0xdc] sm:$0xff]
      %v3464 = vld [vmem:[%s2668 + $0xe4] sm:$0xff]
      %v3465 = vld [vmem:[%s2668 + $0xf4] sm:$0xff]
      %v3466 = vld [vmem:[%s2668 + $0xfc] sm:$0xff]
      %v3467 = vld [vmem:[%s2668 + $0x10c] sm:$0xff]
      %v3468 = vld [vmem:[%s2668 + $0x114] sm:$0xff]
      %v3469 = vld [vmem:[%s2668 + $0x124] sm:$0xff]
      %v3470 = vld [vmem:[%s2668 + $0x12c] sm:$0xff]
      %v3471 = vld [vmem:[%s2668 + $0x13c] sm:$0xff]
      %v3472 = vld [vmem:[%s2668 + $0x144] sm:$0xff]
      %v3473 = vld [vmem:[%s2668 + $0x154] sm:$0xff]
      %v3474 = vld [vmem:[%s2668 + $0x15c] sm:$0xff]
      %v3475 = vld [vmem:[%s2668 + $0x16c] sm:$0xff]
      %v3476 = vld [vmem:[%s2668 + $0x174] sm:$0xff]
      %v3478 = vsel %vm360, %v3445, 0
      %v3481 = vsel %vm360, %v3446, 0
      %v3484 = vsel %vm360, %v3447, 0
      %v3487 = vsel %vm360, %v3448, 0
      %v3490 = vsel %vm360, %v3449, 0
      %v3493 = vsel %vm360, %v3450, 0
      %v3496 = vsel %vm360, %v3451, 0
      %v3499 = vsel %vm360, %v3452, 0
      %v3502 = vsel %vm360, %v3453, 0
      %v3505 = vsel %vm360, %v3454, 0
      %v3508 = vsel %vm360, %v3455, 0
      %v3511 = vsel %vm360, %v3456, 0
      %v3514 = vsel %vm360, %v3457, 0
      %v3517 = vsel %vm360, %v3458, 0
      %v3520 = vsel %vm360, %v3459, 0
      %v3523 = vsel %vm360, %v3460, 0
      %v3526 = vsel %vm360, %v3461, 0
      %v3529 = vsel %vm360, %v3462, 0
      %v3532 = vsel %vm360, %v3463, 0
      %v3535 = vsel %vm360, %v3464, 0
      %v3538 = vsel %vm360, %v3465, 0
      %v3541 = vsel %vm360, %v3466, 0
      %v3544 = vsel %vm360, %v3467, 0
      %v3547 = vsel %vm360, %v3468, 0
      %v3550 = vsel %vm360, %v3469, 0
      %v3553 = vsel %vm360, %v3470, 0
      %v3556 = vsel %vm360, %v3471, 0
      %v3559 = vsel %vm360, %v3472, 0
      %v3562 = vsel %vm360, %v3473, 0
      %v3565 = vsel %vm360, %v3474, 0
      %v3568 = vsel %vm360, %v3475, 0
      %v3571 = vsel %vm360, %v3476, 0
      %v3574 = vsel %vm563, %v401, 0
      %3576 = vmatprep.subr.mxu0 0.0
      %3577 = vmatpush1.msra.mxu0 %v3574
      %3578 = vmatprep.subr.mxu0 0.0
      %3579 = vmatpush1.msra.mxu0 0.0
      %3580 = vmatprep.subr.mxu0 0.0
      %3581 = vmatpush1.msra.mxu0 0.0
      %3582 = vmatprep.subr.mxu0 0.0
      %3583 = vmatpush1.msra.mxu0 0.0
      %3584 = vmatprep.subr.mxu0 0.0
      %3585 = vmatpush1.msra.mxu0 0.0
      %3586 = vmatprep.subr.mxu0 0.0
      %3587 = vmatpush1.msra.mxu0 0.0
      %3588 = vmatprep.subr.mxu0 0.0
      %3589 = vmatpush1.msra.mxu0 0.0
      %3590 = vmatprep.subr.mxu0 0.0
      %3591 = vmatpush1.msra.mxu0 0.0
      %3592 = vmatprep.subr.mxu0 0.0
      %3593 = vmatpush1.msra.mxu0 0.0
      %3594 = vmatprep.subr.mxu0 0.0
      %3595 = vmatpush1.msra.mxu0 0.0
      %3596 = vmatprep.subr.mxu0 0.0
      %3597 = vmatpush1.msra.mxu0 0.0
      %3598 = vmatprep.subr.mxu0 0.0
      %3599 = vmatpush1.msra.mxu0 0.0
      %3600 = vmatprep.subr.mxu0 0.0
      %3601 = vmatpush1.msra.mxu0 0.0
      %3602 = vmatprep.subr.mxu0 0.0
      %3603 = vmatpush1.msra.mxu0 0.0
      %3604 = vmatprep.subr.mxu0 0.0
      %3605 = vmatpush1.msra.mxu0 0.0
      %3606 = vmatprep.subr.mxu0 0.0
      %3607 = vmatpush1.msra.mxu0 0.0
      %3608 = vmatprep.subr.mxu0 0.0
      %3609 = vmatpush1.msra.mxu0 0.0
      %3610 = vmatprep.subr.mxu0 0.0
      %3611 = vmatpush1.msra.mxu0 0.0
      %3612 = vmatprep.subr.mxu0 0.0
      %3613 = vmatpush1.msra.mxu0 0.0
      %3614 = vmatprep.subr.mxu0 0.0
      %3615 = vmatpush1.msra.mxu0 0.0
      %3616 = vmatprep.subr.mxu0 0.0
      %3617 = vmatpush1.msra.mxu0 0.0
      %3618 = vmatprep.subr.mxu0 0.0
      %3619 = vmatpush1.msra.mxu0 0.0
      %3620 = vmatprep.subr.mxu0 0.0
      %3621 = vmatpush1.msra.mxu0 0.0
      %3622 = vmatprep.subr.mxu0 0.0
      %3623 = vmatpush1.msra.mxu0 0.0
      %3624 = vmatprep.subr.mxu0 0.0
      %3625 = vmatpush1.msra.mxu0 0.0
      %3626 = vmatprep.subr.mxu0 0.0
      %3627 = vmatpush1.msra.mxu0 0.0
      %3628 = vmatprep.subr.mxu0 0.0
      %3629 = vmatpush1.msra.mxu0 0.0
      %3630 = vmatprep.subr.mxu0 0.0
      %3631 = vmatpush1.msra.mxu0 0.0
      %3632 = vmatprep.subr.mxu0 0.0
      %3633 = vmatpush1.msra.mxu0 0.0
      %3634 = vmatprep.subr.mxu0 0.0
      %3635 = vmatpush1.msra.mxu0 0.0
      %3636 = vmatprep.subr.mxu0 0.0
      %3637 = vmatpush1.msra.mxu0 0.0
      %3638 = vmatprep.subr.mxu0 0.0
      %3639 = vmatpush1.msra.mxu0 0.0
      %3640 = vmatprep.mubr.f32.mxu0 0.0
      %3641 = vmatmul.mubr.f32.gmra.mrb[0].mxu0 %v3478
      %v3642 = vpop.f32.mrb[0].mxu0
      %v3643 = vadd.f32 0.0, %v3642
      %v3644 = vpop.f32.mrb[0].mxu0
      %3645 = vmatprep.mubr.f32.mxu0 0.0
      %3646 = vmatmul.mubr.f32.gmra.mrb[0].mxu0 %v3481
      %v3647 = vpop.f32.mrb[0].mxu0
      %v3648 = vadd.f32 0.0, %v3647
      %v3649 = vpop.f32.mrb[0].mxu0
      %3650 = vmatprep.mubr.f32.mxu0 0.0
      %3651 = vmatmul.mubr.f32.gmra.mrb[0].mxu0 %v3484
      %v3652 = vpop.f32.mrb[0].mxu0
      %v3653 = vadd.f32 0.0, %v3652
      %v3654 = vpop.f32.mrb[0].mxu0
      %3655 = vmatprep.mubr.f32.mxu0 0.0
      %3656 = vmatmul.mubr.f32.gmra.mrb[0].mxu0 %v3487
      %v3657 = vpop.f32.mrb[0].mxu0
      %v3658 = vadd.f32 0.0, %v3657
      %v3659 = vpop.f32.mrb[0].mxu0
      %3660 = vmatprep.mubr.f32.mxu0 0.0
      %3661 = vmatmul.mubr.f32.gmra.mrb[0].mxu0 %v3490
      %v3662 = vpop.f32.mrb[0].mxu0
      %v3663 = vadd.f32 0.0, %v3662
      %v3664 = vpop.f32.mrb[0].mxu0
      %3665 = vmatprep.mubr.f32.mxu0 0.0
      %3666 = vmatmul.mubr.f32.gmra.mrb[0].mxu0 %v3493
      %v3667 = vpop.f32.mrb[0].mxu0
      %v3668 = vadd.f32 0.0, %v3667
      %v3669 = vpop.f32.mrb[0].mxu0
      %3670 = vmatprep.mubr.f32.mxu0 0.0
      %3671 = vmatmul.mubr.f32.gmra.mrb[0].mxu0 %v3496
      %v3672 = vpop.f32.mrb[0].mxu0
      %v3673 = vadd.f32 0.0, %v3672
      %v3674 = vpop.f32.mrb[0].mxu0
      %3675 = vmatprep.mubr.f32.mxu0 0.0
      %3676 = vmatmul.mubr.f32.gmra.mrb[0].mxu0 %v3499
      %v3677 = vpop.f32.mrb[0].mxu0
      %v3678 = vadd.f32 0.0, %v3677
      %v3679 = vpop.f32.mrb[0].mxu0
      %3680 = vmatprep.mubr.f32.mxu0 0.0
      %3681 = vmatmul.mubr.f32.gmra.mrb[0].mxu0 %v3502
      %v3682 = vpop.f32.mrb[0].mxu0
      %v3683 = vadd.f32 0.0, %v3682
      %v3684 = vpop.f32.mrb[0].mxu0
      %3685 = vmatprep.mubr.f32.mxu0 0.0
      %3686 = vmatmul.mubr.f32.gmra.mrb[0].mxu0 %v3505
      %v3687 = vpop.f32.mrb[0].mxu0
      %v3688 = vadd.f32 0.0, %v3687
      %v3689 = vpop.f32.mrb[0].mxu0
      %3690 = vmatprep.mubr.f32.mxu0 0.0
      %3691 = vmatmul.mubr.f32.gmra.mrb[0].mxu0 %v3508
      %v3692 = vpop.f32.mrb[0].mxu0
      %v3693 = vadd.f32 0.0, %v3692
      %v3694 = vpop.f32.mrb[0].mxu0
      %3695 = vmatprep.mubr.f32.mxu0 0.0
      %3696 = vmatmul.mubr.f32.gmra.mrb[0].mxu0 %v3511
      %v3697 = vpop.f32.mrb[0].mxu0
      %v3698 = vadd.f32 0.0, %v3697
      %v3699 = vpop.f32.mrb[0].mxu0
      %3700 = vmatprep.mubr.f32.mxu0 0.0
      %3701 = vmatmul.mubr.f32.gmra.mrb[0].mxu0 %v3514
      %v3702 = vpop.f32.mrb[0].mxu0
      %v3703 = vadd.f32 0.0, %v3702
      %v3704 = vpop.f32.mrb[0].mxu0
      %3705 = vmatprep.mubr.f32.mxu0 0.0
      %3706 = vmatmul.mubr.f32.gmra.mrb[0].mxu0 %v3517
      %v3707 = vpop.f32.mrb[0].mxu0
      %v3708 = vadd.f32 0.0, %v3707
      %v3709 = vpop.f32.mrb[0].mxu0
      %3710 = vmatprep.mubr.f32.mxu0 0.0
      %3711 = vmatmul.mubr.f32.gmra.mrb[0].mxu0 %v3520
      %v3712 = vpop.f32.mrb[0].mxu0
      %v3713 = vadd.f32 0.0, %v3712
      %v3714 = vpop.f32.mrb[0].mxu0
      %3715 = vmatprep.mubr.f32.mxu0 0.0
      %3716 = vmatmul.mubr.f32.gmra.mrb[0].mxu0 %v3523
      %v3717 = vpop.f32.mrb[0].mxu0
      %v3718 = vadd.f32 0.0, %v3717
      %v3719 = vpop.f32.mrb[0].mxu0
      %3720 = vmatprep.mubr.f32.mxu0 0.0
      %3721 = vmatmul.mubr.f32.gmra.mrb[0].mxu0 %v3526
      %v3722 = vpop.f32.mrb[0].mxu0
      %v3723 = vadd.f32 0.0, %v3722
      %v3724 = vpop.f32.mrb[0].mxu0
      %3725 = vmatprep.mubr.f32.mxu0 0.0
      %3726 = vmatmul.mubr.f32.gmra.mrb[0].mxu0 %v3529
      %v3727 = vpop.f32.mrb[0].mxu0
      %v3728 = vadd.f32 0.0, %v3727
      %v3729 = vpop.f32.mrb[0].mxu0
      %3730 = vmatprep.mubr.f32.mxu0 0.0
      %3731 = vmatmul.mubr.f32.gmra.mrb[0].mxu0 %v3532
      %v3732 = vpop.f32.mrb[0].mxu0
      %v3733 = vadd.f32 0.0, %v3732
      %v3734 = vpop.f32.mrb[0].mxu0
      %3735 = vmatprep.mubr.f32.mxu0 0.0
      %3736 = vmatmul.mubr.f32.gmra.mrb[0].mxu0 %v3535
      %v3737 = vpop.f32.mrb[0].mxu0
      %v3738 = vadd.f32 0.0, %v3737
      %v3739 = vpop.f32.mrb[0].mxu0
      %3740 = vmatprep.mubr.f32.mxu0 0.0
      %3741 = vmatmul.mubr.f32.gmra.mrb[0].mxu0 %v3538
      %v3742 = vpop.f32.mrb[0].mxu0
      %v3743 = vadd.f32 0.0, %v3742
      %v3744 = vpop.f32.mrb[0].mxu0
      %3745 = vmatprep.mubr.f32.mxu0 0.0
      %3746 = vmatmul.mubr.f32.gmra.mrb[0].mxu0 %v3541
      %v3747 = vpop.f32.mrb[0].mxu0
      %v3748 = vadd.f32 0.0, %v3747
      %v3749 = vpop.f32.mrb[0].mxu0
      %3750 = vmatprep.mubr.f32.mxu0 0.0
      %3751 = vmatmul.mubr.f32.gmra.mrb[0].mxu0 %v3544
      %v3752 = vpop.f32.mrb[0].mxu0
      %v3753 = vadd.f32 0.0, %v3752
      %v3754 = vpop.f32.mrb[0].mxu0
      %3755 = vmatprep.mubr.f32.mxu0 0.0
      %3756 = vmatmul.mubr.f32.gmra.mrb[0].mxu0 %v3547
      %v3757 = vpop.f32.mrb[0].mxu0
      %v3758 = vadd.f32 0.0, %v3757
      %v3759 = vpop.f32.mrb[0].mxu0
      %3760 = vmatprep.mubr.f32.mxu0 0.0
      %3761 = vmatmul.mubr.f32.gmra.mrb[0].mxu0 %v3550
      %v3762 = vpop.f32.mrb[0].mxu0
      %v3763 = vadd.f32 0.0, %v3762
      %v3764 = vpop.f32.mrb[0].mxu0
      %3765 = vmatprep.mubr.f32.mxu0 0.0
      %3766 = vmatmul.mubr.f32.gmra.mrb[0].mxu0 %v3553
      %v3767 = vpop.f32.mrb[0].mxu0
      %v3768 = vadd.f32 0.0, %v3767
      %v3769 = vpop.f32.mrb[0].mxu0
      %3770 = vmatprep.mubr.f32.mxu0 0.0
      %3771 = vmatmul.mubr.f32.gmra.mrb[0].mxu0 %v3556
      %v3772 = vpop.f32.mrb[0].mxu0
      %v3773 = vadd.f32 0.0, %v3772
      %v3774 = vpop.f32.mrb[0].mxu0
      %3775 = vmatprep.mubr.f32.mxu0 0.0
      %3776 = vmatmul.mubr.f32.gmra.mrb[0].mxu0 %v3559
      %v3777 = vpop.f32.mrb[0].mxu0
      %v3778 = vadd.f32 0.0, %v3777
      %v3779 = vpop.f32.mrb[0].mxu0
      %3780 = vmatprep.mubr.f32.mxu0 0.0
      %3781 = vmatmul.mubr.f32.gmra.mrb[0].mxu0 %v3562
      %v3782 = vpop.f32.mrb[0].mxu0
      %v3783 = vadd.f32 0.0, %v3782
      %v3784 = vpop.f32.mrb[0].mxu0
      %3785 = vmatprep.mubr.f32.mxu0 0.0
      %3786 = vmatmul.mubr.f32.gmra.mrb[0].mxu0 %v3565
      %v3787 = vpop.f32.mrb[0].mxu0
      %v3788 = vadd.f32 0.0, %v3787
      %v3789 = vpop.f32.mrb[0].mxu0
      %3790 = vmatprep.mubr.f32.mxu0 0.0
      %3791 = vmatmul.mubr.f32.gmra.mrb[0].mxu0 %v3568
      %v3792 = vpop.f32.mrb[0].mxu0
      %v3793 = vadd.f32 0.0, %v3792
      %v3794 = vpop.f32.mrb[0].mxu0
      %3795 = vmatprep.mubr.f32.mxu0 0.0
      %3796 = vmatmul.mubr.f32.gmra.mrb[0].mxu0 %v3571
      %v3797 = vpop.f32.mrb[0].mxu0
      %v3798 = vadd.f32 0.0, %v3797
      %v3799 = vpop.f32.mrb[0].mxu0
      %3800 = vdwg.mxu0
      %v3801 = vadd.f32 %v3413, %v3643
      %v3802 = vadd.f32 %v3414, %v3648
      %v3803 = vadd.f32 %v3415, %v3653
      %v3804 = vadd.f32 %v3416, %v3658
      %v3805 = vadd.f32 %v3417, %v3663
      %v3806 = vadd.f32 %v3418, %v3668
      %v3807 = vadd.f32 %v3419, %v3673
      %v3808 = vadd.f32 %v3420, %v3678
      %v3809 = vadd.f32 %v3421, %v3683
      %v3810 = vadd.f32 %v3422, %v3688
      %v3811 = vadd.f32 %v3423, %v3693
      %v3812 = vadd.f32 %v3424, %v3698
      %v3813 = vadd.f32 %v3425, %v3703
      %v3814 = vadd.f32 %v3426, %v3708
      %v3815 = vadd.f32 %v3427, %v3713
      %v3816 = vadd.f32 %v3428, %v3718
      %v3817 = vadd.f32 %v3429, %v3723
      %v3818 = vadd.f32 %v3430, %v3728
      %v3819 = vadd.f32 %v3431, %v3733
      %v3820 = vadd.f32 %v3432, %v3738
      %v3821 = vadd.f32 %v3433, %v3743
      %v3822 = vadd.f32 %v3434, %v3748
      %v3823 = vadd.f32 %v3435, %v3753
      %v3824 = vadd.f32 %v3436, %v3758
      %v3825 = vadd.f32 %v3437, %v3763
      %v3826 = vadd.f32 %v3438, %v3768
      %v3827 = vadd.f32 %v3439, %v3773
      %v3828 = vadd.f32 %v3440, %v3778
      %v3829 = vadd.f32 %v3441, %v3783
      %v3830 = vadd.f32 %v3442, %v3788
      %v3831 = vadd.f32 %v3443, %v3793
      %v3832 = vadd.f32 %v3444, %v3798
      %v3834 = vlaneseq
      %v3835 = vshrl.u32 %v3834, 7
      %v3836 = vsub.s32 0, %v3835
      %v3837 = vrot.slane %v402, %v3836
      %v3839 = vadd.f32 %v3801, %v3837
      %v3840 = vadd.f32 %v3802, %v3837
      %v3841 = vadd.f32 %v3803, %v3837
      %v3842 = vadd.f32 %v3804, %v3837
      %v3843 = vadd.f32 %v3805, %v3837
      %v3844 = vadd.f32 %v3806, %v3837
      %v3845 = vadd.f32 %v3807, %v3837
      %v3846 = vadd.f32 %v3808, %v3837
      %v3847 = vadd.f32 %v3809, %v3837
      %v3848 = vadd.f32 %v3810, %v3837
      %v3849 = vadd.f32 %v3811, %v3837
      %v3850 = vadd.f32 %v3812, %v3837
      %v3851 = vadd.f32 %v3813, %v3837
      %v3852 = vadd.f32 %v3814, %v3837
      %v3853 = vadd.f32 %v3815, %v3837
      %v3854 = vadd.f32 %v3816, %v3837
      %v3855 = vadd.f32 %v3817, %v3837
      %v3856 = vadd.f32 %v3818, %v3837
      %v3857 = vadd.f32 %v3819, %v3837
      %v3858 = vadd.f32 %v3820, %v3837
      %v3859 = vadd.f32 %v3821, %v3837
      %v3860 = vadd.f32 %v3822, %v3837
      %v3861 = vadd.f32 %v3823, %v3837
      %v3862 = vadd.f32 %v3824, %v3837
      %v3863 = vadd.f32 %v3825, %v3837
      %v3864 = vadd.f32 %v3826, %v3837
      %v3865 = vadd.f32 %v3827, %v3837
      %v3866 = vadd.f32 %v3828, %v3837
      %v3867 = vadd.f32 %v3829, %v3837
      %v3868 = vadd.f32 %v3830, %v3837
      %v3869 = vadd.f32 %v3831, %v3837
      %v3870 = vadd.f32 %v3832, %v3837
      %3903 = vrot.lane.b32.xlu0 %v3839, 4
      %v3904 = vpop.permute.xlu0 %3903
      %3905 = vrot.lane.b32.xlu0 %v3840, 4
      %v3906 = vpop.permute.xlu0 %3905
      %3907 = vrot.lane.b32.xlu0 %v3841, 4
      %v3908 = vpop.permute.xlu0 %3907
      %3909 = vrot.lane.b32.xlu0 %v3842, 4
      %v3910 = vpop.permute.xlu0 %3909
      %3911 = vrot.lane.b32.xlu0 %v3843, 4
      %v3912 = vpop.permute.xlu0 %3911
      %3913 = vrot.lane.b32.xlu0 %v3844, 4
      %v3914 = vpop.permute.xlu0 %3913
      %3915 = vrot.lane.b32.xlu0 %v3845, 4
      %v3916 = vpop.permute.xlu0 %3915
      %3917 = vrot.lane.b32.xlu0 %v3846, 4
      %v3918 = vpop.permute.xlu0 %3917
      %3919 = vrot.lane.b32.xlu0 %v3847, 4
      %v3920 = vpop.permute.xlu0 %3919
      %3921 = vrot.lane.b32.xlu0 %v3848, 4
      %v3922 = vpop.permute.xlu0 %3921
      %3923 = vrot.lane.b32.xlu0 %v3849, 4
      %v3924 = vpop.permute.xlu0 %3923
      %3925 = vrot.lane.b32.xlu0 %v3850, 4
      %v3926 = vpop.permute.xlu0 %3925
      %3927 = vrot.lane.b32.xlu0 %v3851, 4
      %v3928 = vpop.permute.xlu0 %3927
      %3929 = vrot.lane.b32.xlu0 %v3852, 4
      %v3930 = vpop.permute.xlu0 %3929
      %3931 = vrot.lane.b32.xlu0 %v3853, 4
      %v3932 = vpop.permute.xlu0 %3931
      %3933 = vrot.lane.b32.xlu0 %v3854, 4
      %v3934 = vpop.permute.xlu0 %3933
      %3935 = vrot.lane.b32.xlu0 %v3855, 4
      %v3936 = vpop.permute.xlu0 %3935
      %3937 = vrot.lane.b32.xlu0 %v3856, 4
      %v3938 = vpop.permute.xlu0 %3937
      %3939 = vrot.lane.b32.xlu0 %v3857, 4
      %v3940 = vpop.permute.xlu0 %3939
      %3941 = vrot.lane.b32.xlu0 %v3858, 4
      %v3942 = vpop.permute.xlu0 %3941
      %3943 = vrot.lane.b32.xlu0 %v3859, 4
      %v3944 = vpop.permute.xlu0 %3943
      %3945 = vrot.lane.b32.xlu0 %v3860, 4
      %v3946 = vpop.permute.xlu0 %3945
      %3947 = vrot.lane.b32.xlu0 %v3861, 4
      %v3948 = vpop.permute.xlu0 %3947
      %3949 = vrot.lane.b32.xlu0 %v3862, 4
      %v3950 = vpop.permute.xlu0 %3949
      %3951 = vrot.lane.b32.xlu0 %v3863, 4
      %v3952 = vpop.permute.xlu0 %3951
      %3953 = vrot.lane.b32.xlu0 %v3864, 4
      %v3954 = vpop.permute.xlu0 %3953
      %3955 = vrot.lane.b32.xlu0 %v3865, 4
      %v3956 = vpop.permute.xlu0 %3955
      %3957 = vrot.lane.b32.xlu0 %v3866, 4
      %v3958 = vpop.permute.xlu0 %3957
      %3959 = vrot.lane.b32.xlu0 %v3867, 4
      %v3960 = vpop.permute.xlu0 %3959
      %3961 = vrot.lane.b32.xlu0 %v3868, 4
      %v3962 = vpop.permute.xlu0 %3961
      %3963 = vrot.lane.b32.xlu0 %v3869, 4
      %v3964 = vpop.permute.xlu0 %3963
      %3965 = vrot.lane.b32.xlu0 %v3870, 4
      %v3966 = vpop.permute.xlu0 %3965
      %vm3999 = vcmask 64544
      %4000 = vst.msk [vmem:[%s294 + $0x2] sm:$0xff] %vm3999, %v3904
      %4001 = vst.msk [vmem:[%s294 + $0xa] sm:$0xff] %vm3999, %v3906
      %4002 = vst.msk [vmem:[%s294 + $0x1a] sm:$0xff] %vm3999, %v3908
      %4003 = vst.msk [vmem:[%s294 + $0x22] sm:$0xff] %vm3999, %v3910
      %4004 = vst.msk [vmem:[%s294 + $0x32] sm:$0xff] %vm3999, %v3912
      %4005 = vst.msk [vmem:[%s294 + $0x3a] sm:$0xff] %vm3999, %v3914
      %4006 = vst.msk [vmem:[%s294 + $0x4a] sm:$0xff] %vm3999, %v3916
      %4007 = vst.msk [vmem:[%s294 + $0x52] sm:$0xff] %vm3999, %v3918
      %4008 = vst.msk [vmem:[%s294 + $0x62] sm:$0xff] %vm3999, %v3920
      %4009 = vst.msk [vmem:[%s294 + $0x6a] sm:$0xff] %vm3999, %v3922
      %4010 = vst.msk [vmem:[%s294 + $0x7a] sm:$0xff] %vm3999, %v3924
      %4011 = vst.msk [vmem:[%s294 + $0x82] sm:$0xff] %vm3999, %v3926
      %4012 = vst.msk [vmem:[%s294 + $0x92] sm:$0xff] %vm3999, %v3928
      %4013 = vst.msk [vmem:[%s294 + $0x9a] sm:$0xff] %vm3999, %v3930
      %4014 = vst.msk [vmem:[%s294 + $0xaa] sm:$0xff] %vm3999, %v3932
      %4015 = vst.msk [vmem:[%s294 + $0xb2] sm:$0xff] %vm3999, %v3934
      %4016 = vst.msk [vmem:[%s294 + $0xc2] sm:$0xff] %vm3999, %v3936
      %4017 = vst.msk [vmem:[%s294 + $0xca] sm:$0xff] %vm3999, %v3938
      %4018 = vst.msk [vmem:[%s294 + $0xda] sm:$0xff] %vm3999, %v3940
      %4019 = vst.msk [vmem:[%s294 + $0xe2] sm:$0xff] %vm3999, %v3942
      %4020 = vst.msk [vmem:[%s294 + $0xf2] sm:$0xff] %vm3999, %v3944
      %4021 = vst.msk [vmem:[%s294 + $0xfa] sm:$0xff] %vm3999, %v3946
      %4022 = vst.msk [vmem:[%s294 + $0x10a] sm:$0xff] %vm3999, %v3948
      %4023 = vst.msk [vmem:[%s294 + $0x112] sm:$0xff] %vm3999, %v3950
      %4024 = vst.msk [vmem:[%s294 + $0x122] sm:$0xff] %vm3999, %v3952
      %4025 = vst.msk [vmem:[%s294 + $0x12a] sm:$0xff] %vm3999, %v3954
      %4026 = vst.msk [vmem:[%s294 + $0x13a] sm:$0xff] %vm3999, %v3956
      %4027 = vst.msk [vmem:[%s294 + $0x142] sm:$0xff] %vm3999, %v3958
      %4028 = vst.msk [vmem:[%s294 + $0x152] sm:$0xff] %vm3999, %v3960
      %4029 = vst.msk [vmem:[%s294 + $0x15a] sm:$0xff] %vm3999, %v3962
      %4030 = vst.msk [vmem:[%s294 + $0x16a] sm:$0xff] %vm3999, %v3964
      %4031 = vst.msk [vmem:[%s294 + $0x172] sm:$0xff] %vm3999, %v3966
      %v4032 = vld [vmem:[%s3] sm:$0xff]
      %v4033 = vld [vmem:[%s3 + $0x8] sm:$0xff]
      %v4034 = vld [vmem:[%s3 + $0x10] sm:$0xff]
      %v4035 = vld [vmem:[%s3 + $0x18] sm:$0xff]
      %v4036 = vld [vmem:[%s3 + $0x20] sm:$0xff]
      %v4037 = vld [vmem:[%s3 + $0x28] sm:$0xff]
      %v4038 = vld [vmem:[%s3 + $0x30] sm:$0xff]
      %v4039 = vld [vmem:[%s3 + $0x38] sm:$0xff]
      %v4040 = vld [vmem:[%s3 + $0x40] sm:$0xff]
      %v4041 = vld [vmem:[%s4] sm:$0x1]
      %v4042 = vld [vmem:[#allocation2] sm:$0xff]
      %v4043 = vld [vmem:[#allocation2 + $0x8] sm:$0xff]
      %v4044 = vld [vmem:[#allocation2 + $0x18] sm:$0xff]
      %v4045 = vld [vmem:[#allocation2 + $0x20] sm:$0xff]
      %v4046 = vld [vmem:[#allocation2 + $0x30] sm:$0xff]
      %v4047 = vld [vmem:[#allocation2 + $0x38] sm:$0xff]
      %v4048 = vld [vmem:[#allocation2 + $0x48] sm:$0xff]
      %v4049 = vld [vmem:[#allocation2 + $0x50] sm:$0xff]
      %v4050 = vld [vmem:[#allocation2 + $0x60] sm:$0xff]
      %v4051 = vld [vmem:[#allocation2 + $0x68] sm:$0xff]
      %v4052 = vld [vmem:[#allocation2 + $0x78] sm:$0xff]
      %v4053 = vld [vmem:[#allocation2 + $0x80] sm:$0xff]
      %v4054 = vld [vmem:[#allocation2 + $0x90] sm:$0xff]
      %v4055 = vld [vmem:[#allocation2 + $0x98] sm:$0xff]
      %v4056 = vld [vmem:[#allocation2 + $0xa8] sm:$0xff]
      %v4057 = vld [vmem:[#allocation2 + $0xb0] sm:$0xff]
      %v4058 = vld [vmem:[#allocation2 + $0xc0] sm:$0xff]
      %v4059 = vld [vmem:[#allocation2 + $0xc8] sm:$0xff]
      %v4060 = vld [vmem:[#allocation2 + $0xd8] sm:$0xff]
      %v4061 = vld [vmem:[#allocation2 + $0xe0] sm:$0xff]
      %v4062 = vld [vmem:[#allocation2 + $0xf0] sm:$0xff]
      %v4063 = vld [vmem:[#allocation2 + $0xf8] sm:$0xff]
      %v4064 = vld [vmem:[#allocation2 + $0x108] sm:$0xff]
      %v4065 = vld [vmem:[#allocation2 + $0x110] sm:$0xff]
      %v4066 = vld [vmem:[#allocation2 + $0x120] sm:$0xff]
      %v4067 = vld [vmem:[#allocation2 + $0x128] sm:$0xff]
      %v4068 = vld [vmem:[#allocation2 + $0x138] sm:$0xff]
      %v4069 = vld [vmem:[#allocation2 + $0x140] sm:$0xff]
      %v4070 = vld [vmem:[#allocation2 + $0x150] sm:$0xff]
      %v4071 = vld [vmem:[#allocation2 + $0x158] sm:$0xff]
      %v4072 = vld [vmem:[#allocation2 + $0x168] sm:$0xff]
      %v4073 = vld [vmem:[#allocation2 + $0x170] sm:$0xff]
      %v4074 = vld [vmem:[#allocation2 + $0x2] sm:$0xff]
      %v4075 = vld [vmem:[#allocation2 + $0xa] sm:$0xff]
      %v4076 = vld [vmem:[#allocation2 + $0x1a] sm:$0xff]
      %v4077 = vld [vmem:[#allocation2 + $0x22] sm:$0xff]
      %v4078 = vld [vmem:[#allocation2 + $0x32] sm:$0xff]
      %v4079 = vld [vmem:[#allocation2 + $0x3a] sm:$0xff]
      %v4080 = vld [vmem:[#allocation2 + $0x4a] sm:$0xff]
      %v4081 = vld [vmem:[#allocation2 + $0x52] sm:$0xff]
      %v4082 = vld [vmem:[#allocation2 + $0x62] sm:$0xff]
      %v4083 = vld [vmem:[#allocation2 + $0x6a] sm:$0xff]
      %v4084 = vld [vmem:[#allocation2 + $0x7a] sm:$0xff]
      %v4085 = vld [vmem:[#allocation2 + $0x82] sm:$0xff]
      %v4086 = vld [vmem:[#allocation2 + $0x92] sm:$0xff]
      %v4087 = vld [vmem:[#allocation2 + $0x9a] sm:$0xff]
      %v4088 = vld [vmem:[#allocation2 + $0xaa] sm:$0xff]
      %v4089 = vld [vmem:[#allocation2 + $0xb2] sm:$0xff]
      %v4090 = vld [vmem:[#allocation2 + $0xc2] sm:$0xff]
      %v4091 = vld [vmem:[#allocation2 + $0xca] sm:$0xff]
      %v4092 = vld [vmem:[#allocation2 + $0xda] sm:$0xff]
      %v4093 = vld [vmem:[#allocation2 + $0xe2] sm:$0xff]
      %v4094 = vld [vmem:[#allocation2 + $0xf2] sm:$0xff]
      %v4095 = vld [vmem:[#allocation2 + $0xfa] sm:$0xff]
      %v4096 = vld [vmem:[#allocation2 + $0x10a] sm:$0xff]
      %v4097 = vld [vmem:[#allocation2 + $0x112] sm:$0xff]
      %v4098 = vld [vmem:[#allocation2 + $0x122] sm:$0xff]
      %v4099 = vld [vmem:[#allocation2 + $0x12a] sm:$0xff]
      %v4100 = vld [vmem:[#allocation2 + $0x13a] sm:$0xff]
      %v4101 = vld [vmem:[#allocation2 + $0x142] sm:$0xff]
      %v4102 = vld [vmem:[#allocation2 + $0x152] sm:$0xff]
      %v4103 = vld [vmem:[#allocation2 + $0x15a] sm:$0xff]
      %v4104 = vld [vmem:[#allocation2 + $0x16a] sm:$0xff]
      %v4105 = vld [vmem:[#allocation2 + $0x172] sm:$0xff]
      %vm4106 = vcmask 64512
      %v4108 = vsel %vm4106, %v4074, 0
      %v4111 = vsel %vm4106, %v4075, 0
      %v4114 = vsel %vm4106, %v4076, 0
      %v4117 = vsel %vm4106, %v4077, 0
      %v4120 = vsel %vm4106, %v4078, 0
      %v4123 = vsel %vm4106, %v4079, 0
      %v4126 = vsel %vm4106, %v4080, 0
      %v4129 = vsel %vm4106, %v4081, 0
      %v4132 = vsel %vm4106, %v4082, 0
      %v4135 = vsel %vm4106, %v4083, 0
      %v4138 = vsel %vm4106, %v4084, 0
      %v4141 = vsel %vm4106, %v4085, 0
      %v4144 = vsel %vm4106, %v4086, 0
      %v4147 = vsel %vm4106, %v4087, 0
      %v4150 = vsel %vm4106, %v4088, 0
      %v4153 = vsel %vm4106, %v4089, 0
      %v4156 = vsel %vm4106, %v4090, 0
      %v4159 = vsel %vm4106, %v4091, 0
      %v4162 = vsel %vm4106, %v4092, 0
      %v4165 = vsel %vm4106, %v4093, 0
      %v4168 = vsel %vm4106, %v4094, 0
      %v4171 = vsel %vm4106, %v4095, 0
      %v4174 = vsel %vm4106, %v4096, 0
      %v4177 = vsel %vm4106, %v4097, 0
      %v4180 = vsel %vm4106, %v4098, 0
      %v4183 = vsel %vm4106, %v4099, 0
      %v4186 = vsel %vm4106, %v4100, 0
      %v4189 = vsel %vm4106, %v4101, 0
      %v4192 = vsel %vm4106, %v4102, 0
      %v4195 = vsel %vm4106, %v4103, 0
      %v4198 = vsel %vm4106, %v4104, 0
      %v4201 = vsel %vm4106, %v4105, 0
      %4203 = vmatprep.subr.mxu0 0.0
      %4204 = vmatpush1.msra.mxu0 %v4033
      %4205 = vmatprep.subr.mxu0 0.0
      %4206 = vmatpush1.msra.mxu0 0.0
      %4207 = vmatprep.subr.mxu0 0.0
      %4208 = vmatpush1.msra.mxu0 0.0
      %4209 = vmatprep.subr.mxu0 0.0
      %4210 = vmatpush1.msra.mxu0 0.0
      %4211 = vmatprep.subr.mxu0 0.0
      %4212 = vmatpush1.msra.mxu0 0.0
      %4213 = vmatprep.subr.mxu0 0.0
      %4214 = vmatpush1.msra.mxu0 0.0
      %4215 = vmatprep.subr.mxu0 0.0
      %4216 = vmatpush1.msra.mxu0 0.0
      %4217 = vmatprep.subr.mxu0 0.0
      %4218 = vmatpush1.msra.mxu0 0.0
      %4219 = vmatprep.subr.mxu0 0.0
      %4220 = vmatpush1.msra.mxu0 0.0
      %4221 = vmatprep.subr.mxu0 0.0
      %4222 = vmatpush1.msra.mxu0 0.0
      %4223 = vmatprep.subr.mxu0 0.0
      %4224 = vmatpush1.msra.mxu0 0.0
      %4225 = vmatprep.subr.mxu0 0.0
      %4226 = vmatpush1.msra.mxu0 0.0
      %4227 = vmatprep.subr.mxu0 0.0
      %4228 = vmatpush1.msra.mxu0 0.0
      %4229 = vmatprep.subr.mxu0 0.0
      %4230 = vmatpush1.msra.mxu0 0.0
      %4231 = vmatprep.subr.mxu0 0.0
      %4232 = vmatpush1.msra.mxu0 0.0
      %4233 = vmatprep.subr.mxu0 0.0
      %4234 = vmatpush1.msra.mxu0 0.0
      %4235 = vmatprep.subr.mxu0 0.0
      %4236 = vmatpush1.msra.mxu0 0.0
      %4237 = vmatprep.subr.mxu0 0.0
      %4238 = vmatpush1.msra.mxu0 0.0
      %4239 = vmatprep.subr.mxu0 0.0
      %4240 = vmatpush1.msra.mxu0 0.0
      %4241 = vmatprep.subr.mxu0 0.0
      %4242 = vmatpush1.msra.mxu0 0.0
      %4243 = vmatprep.subr.mxu0 0.0
      %4244 = vmatpush1.msra.mxu0 0.0
      %4245 = vmatprep.subr.mxu0 0.0
      %4246 = vmatpush1.msra.mxu0 0.0
      %4247 = vmatprep.subr.mxu0 0.0
      %4248 = vmatpush1.msra.mxu0 0.0
      %4249 = vmatprep.subr.mxu0 0.0
      %4250 = vmatpush1.msra.mxu0 0.0
      %4251 = vmatprep.subr.mxu0 0.0
      %4252 = vmatpush1.msra.mxu0 0.0
      %4253 = vmatprep.subr.mxu0 0.0
      %4254 = vmatpush1.msra.mxu0 0.0
      %4255 = vmatprep.subr.mxu0 0.0
      %4256 = vmatpush1.msra.mxu0 0.0
      %4257 = vmatprep.subr.mxu0 0.0
      %4258 = vmatpush1.msra.mxu0 0.0
      %4259 = vmatprep.subr.mxu0 0.0
      %4260 = vmatpush1.msra.mxu0 0.0
      %4261 = vmatprep.subr.mxu0 0.0
      %4262 = vmatpush1.msra.mxu0 0.0
      %4263 = vmatprep.subr.mxu0 0.0
      %4264 = vmatpush1.msra.mxu0 0.0
      %4265 = vmatprep.subr.mxu0 0.0
      %4266 = vmatpush1.msra.mxu0 0.0
      %4267 = vmatprep.mubr.f32.mxu0 0.0
      %4268 = vmatmul.mubr.f32.gmra.mrb[0].mxu0 %v4108
      %v4269 = vpop.f32.mrb[0].mxu0
      %v4270 = vadd.f32 0.0, %v4269
      %v4271 = vpop.f32.mrb[0].mxu0
      %4272 = vmatprep.mubr.f32.mxu0 0.0
      %4273 = vmatmul.mubr.f32.gmra.mrb[0].mxu0 %v4111
      %v4274 = vpop.f32.mrb[0].mxu0
      %v4275 = vadd.f32 0.0, %v4274
      %v4276 = vpop.f32.mrb[0].mxu0
      %4277 = vmatprep.mubr.f32.mxu0 0.0
      %4278 = vmatmul.mubr.f32.gmra.mrb[0].mxu0 %v4114
      %v4279 = vpop.f32.mrb[0].mxu0
      %v4280 = vadd.f32 0.0, %v4279
      %v4281 = vpop.f32.mrb[0].mxu0
      %4282 = vmatprep.mubr.f32.mxu0 0.0
      %4283 = vmatmul.mubr.f32.gmra.mrb[0].mxu0 %v4117
      %v4284 = vpop.f32.mrb[0].mxu0
      %v4285 = vadd.f32 0.0, %v4284
      %v4286 = vpop.f32.mrb[0].mxu0
      %4287 = vmatprep.mubr.f32.mxu0 0.0
      %4288 = vmatmul.mubr.f32.gmra.mrb[0].mxu0 %v4120
      %v4289 = vpop.f32.mrb[0].mxu0
      %v4290 = vadd.f32 0.0, %v4289
      %v4291 = vpop.f32.mrb[0].mxu0
      %4292 = vmatprep.mubr.f32.mxu0 0.0
      %4293 = vmatmul.mubr.f32.gmra.mrb[0].mxu0 %v4123
      %v4294 = vpop.f32.mrb[0].mxu0
      %v4295 = vadd.f32 0.0, %v4294
      %v4296 = vpop.f32.mrb[0].mxu0
      %4297 = vmatprep.mubr.f32.mxu0 0.0
      %4298 = vmatmul.mubr.f32.gmra.mrb[0].mxu0 %v4126
      %v4299 = vpop.f32.mrb[0].mxu0
      %v4300 = vadd.f32 0.0, %v4299
      %v4301 = vpop.f32.mrb[0].mxu0
      %4302 = vmatprep.mubr.f32.mxu0 0.0
      %4303 = vmatmul.mubr.f32.gmra.mrb[0].mxu0 %v4129
      %v4304 = vpop.f32.mrb[0].mxu0
      %v4305 = vadd.f32 0.0, %v4304
      %v4306 = vpop.f32.mrb[0].mxu0
      %4307 = vmatprep.mubr.f32.mxu0 0.0
      %4308 = vmatmul.mubr.f32.gmra.mrb[0].mxu0 %v4132
      %v4309 = vpop.f32.mrb[0].mxu0
      %v4310 = vadd.f32 0.0, %v4309
      %v4311 = vpop.f32.mrb[0].mxu0
      %4312 = vmatprep.mubr.f32.mxu0 0.0
      %4313 = vmatmul.mubr.f32.gmra.mrb[0].mxu0 %v4135
      %v4314 = vpop.f32.mrb[0].mxu0
      %v4315 = vadd.f32 0.0, %v4314
      %v4316 = vpop.f32.mrb[0].mxu0
      %4317 = vmatprep.mubr.f32.mxu0 0.0
      %4318 = vmatmul.mubr.f32.gmra.mrb[0].mxu0 %v4138
      %v4319 = vpop.f32.mrb[0].mxu0
      %v4320 = vadd.f32 0.0, %v4319
      %v4321 = vpop.f32.mrb[0].mxu0
      %4322 = vmatprep.mubr.f32.mxu0 0.0
      %4323 = vmatmul.mubr.f32.gmra.mrb[0].mxu0 %v4141
      %v4324 = vpop.f32.mrb[0].mxu0
      %v4325 = vadd.f32 0.0, %v4324
      %v4326 = vpop.f32.mrb[0].mxu0
      %4327 = vmatprep.mubr.f32.mxu0 0.0
      %4328 = vmatmul.mubr.f32.gmra.mrb[0].mxu0 %v4144
      %v4329 = vpop.f32.mrb[0].mxu0
      %v4330 = vadd.f32 0.0, %v4329
      %v4331 = vpop.f32.mrb[0].mxu0
      %4332 = vmatprep.mubr.f32.mxu0 0.0
      %4333 = vmatmul.mubr.f32.gmra.mrb[0].mxu0 %v4147
      %v4334 = vpop.f32.mrb[0].mxu0
      %v4335 = vadd.f32 0.0, %v4334
      %v4336 = vpop.f32.mrb[0].mxu0
      %4337 = vmatprep.mubr.f32.mxu0 0.0
      %4338 = vmatmul.mubr.f32.gmra.mrb[0].mxu0 %v4150
      %v4339 = vpop.f32.mrb[0].mxu0
      %v4340 = vadd.f32 0.0, %v4339
      %v4341 = vpop.f32.mrb[0].mxu0
      %4342 = vmatprep.mubr.f32.mxu0 0.0
      %4343 = vmatmul.mubr.f32.gmra.mrb[0].mxu0 %v4153
      %v4344 = vpop.f32.mrb[0].mxu0
      %v4345 = vadd.f32 0.0, %v4344
      %v4346 = vpop.f32.mrb[0].mxu0
      %4347 = vmatprep.mubr.f32.mxu0 0.0
      %4348 = vmatmul.mubr.f32.gmra.mrb[0].mxu0 %v4156
      %v4349 = vpop.f32.mrb[0].mxu0
      %v4350 = vadd.f32 0.0, %v4349
      %v4351 = vpop.f32.mrb[0].mxu0
      %4352 = vmatprep.mubr.f32.mxu0 0.0
      %4353 = vmatmul.mubr.f32.gmra.mrb[0].mxu0 %v4159
      %v4354 = vpop.f32.mrb[0].mxu0
      %v4355 = vadd.f32 0.0, %v4354
      %v4356 = vpop.f32.mrb[0].mxu0
      %4357 = vmatprep.mubr.f32.mxu0 0.0
      %4358 = vmatmul.mubr.f32.gmra.mrb[0].mxu0 %v4162
      %v4359 = vpop.f32.mrb[0].mxu0
      %v4360 = vadd.f32 0.0, %v4359
      %v4361 = vpop.f32.mrb[0].mxu0
      %4362 = vmatprep.mubr.f32.mxu0 0.0
      %4363 = vmatmul.mubr.f32.gmra.mrb[0].mxu0 %v4165
      %v4364 = vpop.f32.mrb[0].mxu0
      %v4365 = vadd.f32 0.0, %v4364
      %v4366 = vpop.f32.mrb[0].mxu0
      %4367 = vmatprep.mubr.f32.mxu0 0.0
      %4368 = vmatmul.mubr.f32.gmra.mrb[0].mxu0 %v4168
      %v4369 = vpop.f32.mrb[0].mxu0
      %v4370 = vadd.f32 0.0, %v4369
      %v4371 = vpop.f32.mrb[0].mxu0
      %4372 = vmatprep.mubr.f32.mxu0 0.0
      %4373 = vmatmul.mubr.f32.gmra.mrb[0].mxu0 %v4171
      %v4374 = vpop.f32.mrb[0].mxu0
      %v4375 = vadd.f32 0.0, %v4374
      %v4376 = vpop.f32.mrb[0].mxu0
      %4377 = vmatprep.mubr.f32.mxu0 0.0
      %4378 = vmatmul.mubr.f32.gmra.mrb[0].mxu0 %v4174
      %v4379 = vpop.f32.mrb[0].mxu0
      %v4380 = vadd.f32 0.0, %v4379
      %v4381 = vpop.f32.mrb[0].mxu0
      %4382 = vmatprep.mubr.f32.mxu0 0.0
      %4383 = vmatmul.mubr.f32.gmra.mrb[0].mxu0 %v4177
      %v4384 = vpop.f32.mrb[0].mxu0
      %v4385 = vadd.f32 0.0, %v4384
      %v4386 = vpop.f32.mrb[0].mxu0
      %4387 = vmatprep.mubr.f32.mxu0 0.0
      %4388 = vmatmul.mubr.f32.gmra.mrb[0].mxu0 %v4180
      %v4389 = vpop.f32.mrb[0].mxu0
      %v4390 = vadd.f32 0.0, %v4389
      %v4391 = vpop.f32.mrb[0].mxu0
      %4392 = vmatprep.mubr.f32.mxu0 0.0
      %4393 = vmatmul.mubr.f32.gmra.mrb[0].mxu0 %v4183
      %v4394 = vpop.f32.mrb[0].mxu0
      %v4395 = vadd.f32 0.0, %v4394
      %v4396 = vpop.f32.mrb[0].mxu0
      %4397 = vmatprep.mubr.f32.mxu0 0.0
      %4398 = vmatmul.mubr.f32.gmra.mrb[0].mxu0 %v4186
      %v4399 = vpop.f32.mrb[0].mxu0
      %v4400 = vadd.f32 0.0, %v4399
      %v4401 = vpop.f32.mrb[0].mxu0
      %4402 = vmatprep.mubr.f32.mxu0 0.0
      %4403 = vmatmul.mubr.f32.gmra.mrb[0].mxu0 %v4189
      %v4404 = vpop.f32.mrb[0].mxu0
      %v4405 = vadd.f32 0.0, %v4404
      %v4406 = vpop.f32.mrb[0].mxu0
      %4407 = vmatprep.mubr.f32.mxu0 0.0
      %4408 = vmatmul.mubr.f32.gmra.mrb[0].mxu0 %v4192
      %v4409 = vpop.f32.mrb[0].mxu0
      %v4410 = vadd.f32 0.0, %v4409
      %v4411 = vpop.f32.mrb[0].mxu0
      %4412 = vmatprep.mubr.f32.mxu0 0.0
      %4413 = vmatmul.mubr.f32.gmra.mrb[0].mxu0 %v4195
      %v4414 = vpop.f32.mrb[0].mxu0
      %v4415 = vadd.f32 0.0, %v4414
      %v4416 = vpop.f32.mrb[0].mxu0
      %4417 = vmatprep.mubr.f32.mxu0 0.0
      %4418 = vmatmul.mubr.f32.gmra.mrb[0].mxu0 %v4198
      %v4419 = vpop.f32.mrb[0].mxu0
      %v4420 = vadd.f32 0.0, %v4419
      %v4421 = vpop.f32.mrb[0].mxu0
      %4422 = vmatprep.mubr.f32.mxu0 0.0
      %4423 = vmatmul.mubr.f32.gmra.mrb[0].mxu0 %v4201
      %v4424 = vpop.f32.mrb[0].mxu0
      %v4425 = vadd.f32 0.0, %v4424
      %v4426 = vpop.f32.mrb[0].mxu0
      %4427 = vdwg.mxu0
      %v4429 = vsel %vm4106, %v4042, 0
      %v4432 = vsel %vm4106, %v4043, 0
      %v4435 = vsel %vm4106, %v4044, 0
      %v4438 = vsel %vm4106, %v4045, 0
      %v4441 = vsel %vm4106, %v4046, 0
      %v4444 = vsel %vm4106, %v4047, 0
      %v4447 = vsel %vm4106, %v4048, 0
      %v4450 = vsel %vm4106, %v4049, 0
      %v4453 = vsel %vm4106, %v4050, 0
      %v4456 = vsel %vm4106, %v4051, 0
      %v4459 = vsel %vm4106, %v4052, 0
      %v4462 = vsel %vm4106, %v4053, 0
      %v4465 = vsel %vm4106, %v4054, 0
      %v4468 = vsel %vm4106, %v4055, 0
      %v4471 = vsel %vm4106, %v4056, 0
      %v4474 = vsel %vm4106, %v4057, 0
      %v4477 = vsel %vm4106, %v4058, 0
      %v4480 = vsel %vm4106, %v4059, 0
      %v4483 = vsel %vm4106, %v4060, 0
      %v4486 = vsel %vm4106, %v4061, 0
      %v4489 = vsel %vm4106, %v4062, 0
      %v4492 = vsel %vm4106, %v4063, 0
      %v4495 = vsel %vm4106, %v4064, 0
      %v4498 = vsel %vm4106, %v4065, 0
      %v4501 = vsel %vm4106, %v4066, 0
      %v4504 = vsel %vm4106, %v4067, 0
      %v4507 = vsel %vm4106, %v4068, 0
      %v4510 = vsel %vm4106, %v4069, 0
      %v4513 = vsel %vm4106, %v4070, 0
      %v4516 = vsel %vm4106, %v4071, 0
      %v4519 = vsel %vm4106, %v4072, 0
      %v4522 = vsel %vm4106, %v4073, 0
      %4524 = vmatprep.subr.mxu0 0.0
      %4525 = vmatpush1.msra.mxu0 %v4032
      %4526 = vmatprep.subr.mxu0 0.0
      %4527 = vmatpush1.msra.mxu0 0.0
      %4528 = vmatprep.subr.mxu0 0.0
      %4529 = vmatpush1.msra.mxu0 0.0
      %4530 = vmatprep.subr.mxu0 0.0
      %4531 = vmatpush1.msra.mxu0 0.0
      %4532 = vmatprep.subr.mxu0 0.0
      %4533 = vmatpush1.msra.mxu0 0.0
      %4534 = vmatprep.subr.mxu0 0.0
      %4535 = vmatpush1.msra.mxu0 0.0
      %4536 = vmatprep.subr.mxu0 0.0
      %4537 = vmatpush1.msra.mxu0 0.0
      %4538 = vmatprep.subr.mxu0 0.0
      %4539 = vmatpush1.msra.mxu0 0.0
      %4540 = vmatprep.subr.mxu0 0.0
      %4541 = vmatpush1.msra.mxu0 0.0
      %4542 = vmatprep.subr.mxu0 0.0
      %4543 = vmatpush1.msra.mxu0 0.0
      %4544 = vmatprep.subr.mxu0 0.0
      %4545 = vmatpush1.msra.mxu0 0.0
      %4546 = vmatprep.subr.mxu0 0.0
      %4547 = vmatpush1.msra.mxu0 0.0
      %4548 = vmatprep.subr.mxu0 0.0
      %4549 = vmatpush1.msra.mxu0 0.0
      %4550 = vmatprep.subr.mxu0 0.0
      %4551 = vmatpush1.msra.mxu0 0.0
      %4552 = vmatprep.subr.mxu0 0.0
      %4553 = vmatpush1.msra.mxu0 0.0
      %4554 = vmatprep.subr.mxu0 0.0
      %4555 = vmatpush1.msra.mxu0 0.0
      %4556 = vmatprep.subr.mxu0 0.0
      %4557 = vmatpush1.msra.mxu0 0.0
      %4558 = vmatprep.subr.mxu0 0.0
      %4559 = vmatpush1.msra.mxu0 0.0
      %4560 = vmatprep.subr.mxu0 0.0
      %4561 = vmatpush1.msra.mxu0 0.0
      %4562 = vmatprep.subr.mxu0 0.0
      %4563 = vmatpush1.msra.mxu0 0.0
      %4564 = vmatprep.subr.mxu0 0.0
      %4565 = vmatpush1.msra.mxu0 0.0
      %4566 = vmatprep.subr.mxu0 0.0
      %4567 = vmatpush1.msra.mxu0 0.0
      %4568 = vmatprep.subr.mxu0 0.0
      %4569 = vmatpush1.msra.mxu0 0.0
      %4570 = vmatprep.subr.mxu0 0.0
      %4571 = vmatpush1.msra.mxu0 0.0
      %4572 = vmatprep.subr.mxu0 0.0
      %4573 = vmatpush1.msra.mxu0 0.0
      %4574 = vmatprep.subr.mxu0 0.0
      %4575 = vmatpush1.msra.mxu0 0.0
      %4576 = vmatprep.subr.mxu0 0.0
      %4577 = vmatpush1.msra.mxu0 0.0
      %4578 = vmatprep.subr.mxu0 0.0
      %4579 = vmatpush1.msra.mxu0 0.0
      %4580 = vmatprep.subr.mxu0 0.0
      %4581 = vmatpush1.msra.mxu0 0.0
      %4582 = vmatprep.subr.mxu0 0.0
      %4583 = vmatpush1.msra.mxu0 0.0
      %4584 = vmatprep.subr.mxu0 0.0
      %4585 = vmatpush1.msra.mxu0 0.0
      %4586 = vmatprep.subr.mxu0 0.0
      %4587 = vmatpush1.msra.mxu0 0.0
      %4588 = vmatprep.mubr.f32.mxu0 0.0
      %4589 = vmatmul.mubr.f32.gmra.mrb[0].mxu0 %v4429
      %v4590 = vpop.f32.mrb[0].mxu0
      %v4591 = vadd.f32 %v4270, %v4590
      %v4592 = vpop.f32.mrb[0].mxu0
      %4593 = vmatprep.mubr.f32.mxu0 0.0
      %4594 = vmatmul.mubr.f32.gmra.mrb[0].mxu0 %v4432
      %v4595 = vpop.f32.mrb[0].mxu0
      %v4596 = vadd.f32 %v4275, %v4595
      %v4597 = vpop.f32.mrb[0].mxu0
      %4598 = vmatprep.mubr.f32.mxu0 0.0
      %4599 = vmatmul.mubr.f32.gmra.mrb[0].mxu0 %v4435
      %v4600 = vpop.f32.mrb[0].mxu0
      %v4601 = vadd.f32 %v4280, %v4600
      %v4602 = vpop.f32.mrb[0].mxu0
      %4603 = vmatprep.mubr.f32.mxu0 0.0
      %4604 = vmatmul.mubr.f32.gmra.mrb[0].mxu0 %v4438
      %v4605 = vpop.f32.mrb[0].mxu0
      %v4606 = vadd.f32 %v4285, %v4605
      %v4607 = vpop.f32.mrb[0].mxu0
      %4608 = vmatprep.mubr.f32.mxu0 0.0
      %4609 = vmatmul.mubr.f32.gmra.mrb[0].mxu0 %v4441
      %v4610 = vpop.f32.mrb[0].mxu0
      %v4611 = vadd.f32 %v4290, %v4610
      %v4612 = vpop.f32.mrb[0].mxu0
      %4613 = vmatprep.mubr.f32.mxu0 0.0
      %4614 = vmatmul.mubr.f32.gmra.mrb[0].mxu0 %v4444
      %v4615 = vpop.f32.mrb[0].mxu0
      %v4616 = vadd.f32 %v4295, %v4615
      %v4617 = vpop.f32.mrb[0].mxu0
      %4618 = vmatprep.mubr.f32.mxu0 0.0
      %4619 = vmatmul.mubr.f32.gmra.mrb[0].mxu0 %v4447
      %v4620 = vpop.f32.mrb[0].mxu0
      %v4621 = vadd.f32 %v4300, %v4620
      %v4622 = vpop.f32.mrb[0].mxu0
      %4623 = vmatprep.mubr.f32.mxu0 0.0
      %4624 = vmatmul.mubr.f32.gmra.mrb[0].mxu0 %v4450
      %v4625 = vpop.f32.mrb[0].mxu0
      %v4626 = vadd.f32 %v4305, %v4625
      %v4627 = vpop.f32.mrb[0].mxu0
      %4628 = vmatprep.mubr.f32.mxu0 0.0
      %4629 = vmatmul.mubr.f32.gmra.mrb[0].mxu0 %v4453
      %v4630 = vpop.f32.mrb[0].mxu0
      %v4631 = vadd.f32 %v4310, %v4630
      %v4632 = vpop.f32.mrb[0].mxu0
      %4633 = vmatprep.mubr.f32.mxu0 0.0
      %4634 = vmatmul.mubr.f32.gmra.mrb[0].mxu0 %v4456
      %v4635 = vpop.f32.mrb[0].mxu0
      %v4636 = vadd.f32 %v4315, %v4635
      %v4637 = vpop.f32.mrb[0].mxu0
      %4638 = vmatprep.mubr.f32.mxu0 0.0
      %4639 = vmatmul.mubr.f32.gmra.mrb[0].mxu0 %v4459
      %v4640 = vpop.f32.mrb[0].mxu0
      %v4641 = vadd.f32 %v4320, %v4640
      %v4642 = vpop.f32.mrb[0].mxu0
      %4643 = vmatprep.mubr.f32.mxu0 0.0
      %4644 = vmatmul.mubr.f32.gmra.mrb[0].mxu0 %v4462
      %v4645 = vpop.f32.mrb[0].mxu0
      %v4646 = vadd.f32 %v4325, %v4645
      %v4647 = vpop.f32.mrb[0].mxu0
      %4648 = vmatprep.mubr.f32.mxu0 0.0
      %4649 = vmatmul.mubr.f32.gmra.mrb[0].mxu0 %v4465
      %v4650 = vpop.f32.mrb[0].mxu0
      %v4651 = vadd.f32 %v4330, %v4650
      %v4652 = vpop.f32.mrb[0].mxu0
      %4653 = vmatprep.mubr.f32.mxu0 0.0
      %4654 = vmatmul.mubr.f32.gmra.mrb[0].mxu0 %v4468
      %v4655 = vpop.f32.mrb[0].mxu0
      %v4656 = vadd.f32 %v4335, %v4655
      %v4657 = vpop.f32.mrb[0].mxu0
      %4658 = vmatprep.mubr.f32.mxu0 0.0
      %4659 = vmatmul.mubr.f32.gmra.mrb[0].mxu0 %v4471
      %v4660 = vpop.f32.mrb[0].mxu0
      %v4661 = vadd.f32 %v4340, %v4660
      %v4662 = vpop.f32.mrb[0].mxu0
      %4663 = vmatprep.mubr.f32.mxu0 0.0
      %4664 = vmatmul.mubr.f32.gmra.mrb[0].mxu0 %v4474
      %v4665 = vpop.f32.mrb[0].mxu0
      %v4666 = vadd.f32 %v4345, %v4665
      %v4667 = vpop.f32.mrb[0].mxu0
      %4668 = vmatprep.mubr.f32.mxu0 0.0
      %4669 = vmatmul.mubr.f32.gmra.mrb[0].mxu0 %v4477
      %v4670 = vpop.f32.mrb[0].mxu0
      %v4671 = vadd.f32 %v4350, %v4670
      %v4672 = vpop.f32.mrb[0].mxu0
      %4673 = vmatprep.mubr.f32.mxu0 0.0
      %4674 = vmatmul.mubr.f32.gmra.mrb[0].mxu0 %v4480
      %v4675 = vpop.f32.mrb[0].mxu0
      %v4676 = vadd.f32 %v4355, %v4675
      %v4677 = vpop.f32.mrb[0].mxu0
      %4678 = vmatprep.mubr.f32.mxu0 0.0
      %4679 = vmatmul.mubr.f32.gmra.mrb[0].mxu0 %v4483
      %v4680 = vpop.f32.mrb[0].mxu0
      %v4681 = vadd.f32 %v4360, %v4680
      %v4682 = vpop.f32.mrb[0].mxu0
      %4683 = vmatprep.mubr.f32.mxu0 0.0
      %4684 = vmatmul.mubr.f32.gmra.mrb[0].mxu0 %v4486
      %v4685 = vpop.f32.mrb[0].mxu0
      %v4686 = vadd.f32 %v4365, %v4685
      %v4687 = vpop.f32.mrb[0].mxu0
      %4688 = vmatprep.mubr.f32.mxu0 0.0
      %4689 = vmatmul.mubr.f32.gmra.mrb[0].mxu0 %v4489
      %v4690 = vpop.f32.mrb[0].mxu0
      %v4691 = vadd.f32 %v4370, %v4690
      %v4692 = vpop.f32.mrb[0].mxu0
      %4693 = vmatprep.mubr.f32.mxu0 0.0
      %4694 = vmatmul.mubr.f32.gmra.mrb[0].mxu0 %v4492
      %v4695 = vpop.f32.mrb[0].mxu0
      %v4696 = vadd.f32 %v4375, %v4695
      %v4697 = vpop.f32.mrb[0].mxu0
      %4698 = vmatprep.mubr.f32.mxu0 0.0
      %4699 = vmatmul.mubr.f32.gmra.mrb[0].mxu0 %v4495
      %v4700 = vpop.f32.mrb[0].mxu0
      %v4701 = vadd.f32 %v4380, %v4700
      %v4702 = vpop.f32.mrb[0].mxu0
      %4703 = vmatprep.mubr.f32.mxu0 0.0
      %4704 = vmatmul.mubr.f32.gmra.mrb[0].mxu0 %v4498
      %v4705 = vpop.f32.mrb[0].mxu0
      %v4706 = vadd.f32 %v4385, %v4705
      %v4707 = vpop.f32.mrb[0].mxu0
      %4708 = vmatprep.mubr.f32.mxu0 0.0
      %4709 = vmatmul.mubr.f32.gmra.mrb[0].mxu0 %v4501
      %v4710 = vpop.f32.mrb[0].mxu0
      %v4711 = vadd.f32 %v4390, %v4710
      %v4712 = vpop.f32.mrb[0].mxu0
      %4713 = vmatprep.mubr.f32.mxu0 0.0
      %4714 = vmatmul.mubr.f32.gmra.mrb[0].mxu0 %v4504
      %v4715 = vpop.f32.mrb[0].mxu0
      %v4716 = vadd.f32 %v4395, %v4715
      %v4717 = vpop.f32.mrb[0].mxu0
      %4718 = vmatprep.mubr.f32.mxu0 0.0
      %4719 = vmatmul.mubr.f32.gmra.mrb[0].mxu0 %v4507
      %v4720 = vpop.f32.mrb[0].mxu0
      %v4721 = vadd.f32 %v4400, %v4720
      %v4722 = vpop.f32.mrb[0].mxu0
      %4723 = vmatprep.mubr.f32.mxu0 0.0
      %4724 = vmatmul.mubr.f32.gmra.mrb[0].mxu0 %v4510
      %v4725 = vpop.f32.mrb[0].mxu0
      %v4726 = vadd.f32 %v4405, %v4725
      %v4727 = vpop.f32.mrb[0].mxu0
      %4728 = vmatprep.mubr.f32.mxu0 0.0
      %4729 = vmatmul.mubr.f32.gmra.mrb[0].mxu0 %v4513
      %v4730 = vpop.f32.mrb[0].mxu0
      %v4731 = vadd.f32 %v4410, %v4730
      %v4732 = vpop.f32.mrb[0].mxu0
      %4733 = vmatprep.mubr.f32.mxu0 0.0
      %4734 = vmatmul.mubr.f32.gmra.mrb[0].mxu0 %v4516
      %v4735 = vpop.f32.mrb[0].mxu0
      %v4736 = vadd.f32 %v4415, %v4735
      %v4737 = vpop.f32.mrb[0].mxu0
      %4738 = vmatprep.mubr.f32.mxu0 0.0
      %4739 = vmatmul.mubr.f32.gmra.mrb[0].mxu0 %v4519
      %v4740 = vpop.f32.mrb[0].mxu0
      %v4741 = vadd.f32 %v4420, %v4740
      %v4742 = vpop.f32.mrb[0].mxu0
      %4743 = vmatprep.mubr.f32.mxu0 0.0
      %4744 = vmatmul.mubr.f32.gmra.mrb[0].mxu0 %v4522
      %v4745 = vpop.f32.mrb[0].mxu0
      %v4746 = vadd.f32 %v4425, %v4745
      %v4747 = vpop.f32.mrb[0].mxu0
      %4748 = vdwg.mxu0
      %v4749 = vld [vmem:[#allocation2 + $0x4] sm:$0xff]
      %v4750 = vld [vmem:[#allocation2 + $0xc] sm:$0xff]
      %v4751 = vld [vmem:[#allocation2 + $0x1c] sm:$0xff]
      %v4752 = vld [vmem:[#allocation2 + $0x24] sm:$0xff]
      %v4753 = vld [vmem:[#allocation2 + $0x34] sm:$0xff]
      %v4754 = vld [vmem:[#allocation2 + $0x3c] sm:$0xff]
      %v4755 = vld [vmem:[#allocation2 + $0x4c] sm:$0xff]
      %v4756 = vld [vmem:[#allocation2 + $0x54] sm:$0xff]
      %v4757 = vld [vmem:[#allocation2 + $0x64] sm:$0xff]
      %v4758 = vld [vmem:[#allocation2 + $0x6c] sm:$0xff]
      %v4759 = vld [vmem:[#allocation2 + $0x7c] sm:$0xff]
      %v4760 = vld [vmem:[#allocation2 + $0x84] sm:$0xff]
      %v4761 = vld [vmem:[#allocation2 + $0x94] sm:$0xff]
      %v4762 = vld [vmem:[#allocation2 + $0x9c] sm:$0xff]
      %v4763 = vld [vmem:[#allocation2 + $0xac] sm:$0xff]
      %v4764 = vld [vmem:[#allocation2 + $0xb4] sm:$0xff]
      %v4765 = vld [vmem:[#allocation2 + $0xc4] sm:$0xff]
      %v4766 = vld [vmem:[#allocation2 + $0xcc] sm:$0xff]
      %v4767 = vld [vmem:[#allocation2 + $0xdc] sm:$0xff]
      %v4768 = vld [vmem:[#allocation2 + $0xe4] sm:$0xff]
      %v4769 = vld [vmem:[#allocation2 + $0xf4] sm:$0xff]
      %v4770 = vld [vmem:[#allocation2 + $0xfc] sm:$0xff]
      %v4771 = vld [vmem:[#allocation2 + $0x10c] sm:$0xff]
      %v4772 = vld [vmem:[#allocation2 + $0x114] sm:$0xff]
      %v4773 = vld [vmem:[#allocation2 + $0x124] sm:$0xff]
      %v4774 = vld [vmem:[#allocation2 + $0x12c] sm:$0xff]
      %v4775 = vld [vmem:[#allocation2 + $0x13c] sm:$0xff]
      %v4776 = vld [vmem:[#allocation2 + $0x144] sm:$0xff]
      %v4777 = vld [vmem:[#allocation2 + $0x154] sm:$0xff]
      %v4778 = vld [vmem:[#allocation2 + $0x15c] sm:$0xff]
      %v4779 = vld [vmem:[#allocation2 + $0x16c] sm:$0xff]
      %v4780 = vld [vmem:[#allocation2 + $0x174] sm:$0xff]
      %v4782 = vsel %vm4106, %v4749, 0
      %v4785 = vsel %vm4106, %v4750, 0
      %v4788 = vsel %vm4106, %v4751, 0
      %v4791 = vsel %vm4106, %v4752, 0
      %v4794 = vsel %vm4106, %v4753, 0
      %v4797 = vsel %vm4106, %v4754, 0
      %v4800 = vsel %vm4106, %v4755, 0
      %v4803 = vsel %vm4106, %v4756, 0
      %v4806 = vsel %vm4106, %v4757, 0
      %v4809 = vsel %vm4106, %v4758, 0
      %v4812 = vsel %vm4106, %v4759, 0
      %v4815 = vsel %vm4106, %v4760, 0
      %v4818 = vsel %vm4106, %v4761, 0
      %v4821 = vsel %vm4106, %v4762, 0
      %v4824 = vsel %vm4106, %v4763, 0
      %v4827 = vsel %vm4106, %v4764, 0
      %v4830 = vsel %vm4106, %v4765, 0
      %v4833 = vsel %vm4106, %v4766, 0
      %v4836 = vsel %vm4106, %v4767, 0
      %v4839 = vsel %vm4106, %v4768, 0
      %v4842 = vsel %vm4106, %v4769, 0
      %v4845 = vsel %vm4106, %v4770, 0
      %v4848 = vsel %vm4106, %v4771, 0
      %v4851 = vsel %vm4106, %v4772, 0
      %v4854 = vsel %vm4106, %v4773, 0
      %v4857 = vsel %vm4106, %v4774, 0
      %v4860 = vsel %vm4106, %v4775, 0
      %v4863 = vsel %vm4106, %v4776, 0
      %v4866 = vsel %vm4106, %v4777, 0
      %v4869 = vsel %vm4106, %v4778, 0
      %v4872 = vsel %vm4106, %v4779, 0
      %v4875 = vsel %vm4106, %v4780, 0
      %4877 = vmatprep.subr.mxu0 0.0
      %4878 = vmatpush1.msra.mxu0 %v4034
      %4879 = vmatprep.subr.mxu0 0.0
      %4880 = vmatpush1.msra.mxu0 0.0
      %4881 = vmatprep.subr.mxu0 0.0
      %4882 = vmatpush1.msra.mxu0 0.0
      %4883 = vmatprep.subr.mxu0 0.0
      %4884 = vmatpush1.msra.mxu0 0.0
      %4885 = vmatprep.subr.mxu0 0.0
      %4886 = vmatpush1.msra.mxu0 0.0
      %4887 = vmatprep.subr.mxu0 0.0
      %4888 = vmatpush1.msra.mxu0 0.0
      %4889 = vmatprep.subr.mxu0 0.0
      %4890 = vmatpush1.msra.mxu0 0.0
      %4891 = vmatprep.subr.mxu0 0.0
      %4892 = vmatpush1.msra.mxu0 0.0
      %4893 = vmatprep.subr.mxu0 0.0
      %4894 = vmatpush1.msra.mxu0 0.0
      %4895 = vmatprep.subr.mxu0 0.0
      %4896 = vmatpush1.msra.mxu0 0.0
      %4897 = vmatprep.subr.mxu0 0.0
      %4898 = vmatpush1.msra.mxu0 0.0
      %4899 = vmatprep.subr.mxu0 0.0
      %4900 = vmatpush1.msra.mxu0 0.0
      %4901 = vmatprep.subr.mxu0 0.0
      %4902 = vmatpush1.msra.mxu0 0.0
      %4903 = vmatprep.subr.mxu0 0.0
      %4904 = vmatpush1.msra.mxu0 0.0
      %4905 = vmatprep.subr.mxu0 0.0
      %4906 = vmatpush1.msra.mxu0 0.0
      %4907 = vmatprep.subr.mxu0 0.0
      %4908 = vmatpush1.msra.mxu0 0.0
      %4909 = vmatprep.subr.mxu0 0.0
      %4910 = vmatpush1.msra.mxu0 0.0
      %4911 = vmatprep.subr.mxu0 0.0
      %4912 = vmatpush1.msra.mxu0 0.0
      %4913 = vmatprep.subr.mxu0 0.0
      %4914 = vmatpush1.msra.mxu0 0.0
      %4915 = vmatprep.subr.mxu0 0.0
      %4916 = vmatpush1.msra.mxu0 0.0
      %4917 = vmatprep.subr.mxu0 0.0
      %4918 = vmatpush1.msra.mxu0 0.0
      %4919 = vmatprep.subr.mxu0 0.0
      %4920 = vmatpush1.msra.mxu0 0.0
      %4921 = vmatprep.subr.mxu0 0.0
      %4922 = vmatpush1.msra.mxu0 0.0
      %4923 = vmatprep.subr.mxu0 0.0
      %4924 = vmatpush1.msra.mxu0 0.0
      %4925 = vmatprep.subr.mxu0 0.0
      %4926 = vmatpush1.msra.mxu0 0.0
      %4927 = vmatprep.subr.mxu0 0.0
      %4928 = vmatpush1.msra.mxu0 0.0
      %4929 = vmatprep.subr.mxu0 0.0
      %4930 = vmatpush1.msra.mxu0 0.0
      %4931 = vmatprep.subr.mxu0 0.0
      %4932 = vmatpush1.msra.mxu0 0.0
      %4933 = vmatprep.subr.mxu0 0.0
      %4934 = vmatpush1.msra.mxu0 0.0
      %4935 = vmatprep.subr.mxu0 0.0
      %4936 = vmatpush1.msra.mxu0 0.0
      %4937 = vmatprep.subr.mxu0 0.0
      %4938 = vmatpush1.msra.mxu0 0.0
      %4939 = vmatprep.subr.mxu0 0.0
      %4940 = vmatpush1.msra.mxu0 0.0
      %4941 = vmatprep.mubr.f32.mxu0 0.0
      %4942 = vmatmul.mubr.f32.gmra.mrb[0].mxu0 %v4782
      %v4943 = vpop.f32.mrb[0].mxu0
      %v4944 = vadd.f32 0.0, %v4943
      %v4945 = vpop.f32.mrb[0].mxu0
      %4946 = vmatprep.mubr.f32.mxu0 0.0
      %4947 = vmatmul.mubr.f32.gmra.mrb[0].mxu0 %v4785
      %v4948 = vpop.f32.mrb[0].mxu0
      %v4949 = vadd.f32 0.0, %v4948
      %v4950 = vpop.f32.mrb[0].mxu0
      %4951 = vmatprep.mubr.f32.mxu0 0.0
      %4952 = vmatmul.mubr.f32.gmra.mrb[0].mxu0 %v4788
      %v4953 = vpop.f32.mrb[0].mxu0
      %v4954 = vadd.f32 0.0, %v4953
      %v4955 = vpop.f32.mrb[0].mxu0
      %4956 = vmatprep.mubr.f32.mxu0 0.0
      %4957 = vmatmul.mubr.f32.gmra.mrb[0].mxu0 %v4791
      %v4958 = vpop.f32.mrb[0].mxu0
      %v4959 = vadd.f32 0.0, %v4958
      %v4960 = vpop.f32.mrb[0].mxu0
      %4961 = vmatprep.mubr.f32.mxu0 0.0
      %4962 = vmatmul.mubr.f32.gmra.mrb[0].mxu0 %v4794
      %v4963 = vpop.f32.mrb[0].mxu0
      %v4964 = vadd.f32 0.0, %v4963
      %v4965 = vpop.f32.mrb[0].mxu0
      %4966 = vmatprep.mubr.f32.mxu0 0.0
      %4967 = vmatmul.mubr.f32.gmra.mrb[0].mxu0 %v4797
      %v4968 = vpop.f32.mrb[0].mxu0
      %v4969 = vadd.f32 0.0, %v4968
      %v4970 = vpop.f32.mrb[0].mxu0
      %4971 = vmatprep.mubr.f32.mxu0 0.0
      %4972 = vmatmul.mubr.f32.gmra.mrb[0].mxu0 %v4800
      %v4973 = vpop.f32.mrb[0].mxu0
      %v4974 = vadd.f32 0.0, %v4973
      %v4975 = vpop.f32.mrb[0].mxu0
      %4976 = vmatprep.mubr.f32.mxu0 0.0
      %4977 = vmatmul.mubr.f32.gmra.mrb[0].mxu0 %v4803
      %v4978 = vpop.f32.mrb[0].mxu0
      %v4979 = vadd.f32 0.0, %v4978
      %v4980 = vpop.f32.mrb[0].mxu0
      %4981 = vmatprep.mubr.f32.mxu0 0.0
      %4982 = vmatmul.mubr.f32.gmra.mrb[0].mxu0 %v4806
      %v4983 = vpop.f32.mrb[0].mxu0
      %v4984 = vadd.f32 0.0, %v4983
      %v4985 = vpop.f32.mrb[0].mxu0
      %4986 = vmatprep.mubr.f32.mxu0 0.0
      %4987 = vmatmul.mubr.f32.gmra.mrb[0].mxu0 %v4809
      %v4988 = vpop.f32.mrb[0].mxu0
      %v4989 = vadd.f32 0.0, %v4988
      %v4990 = vpop.f32.mrb[0].mxu0
      %4991 = vmatprep.mubr.f32.mxu0 0.0
      %4992 = vmatmul.mubr.f32.gmra.mrb[0].mxu0 %v4812
      %v4993 = vpop.f32.mrb[0].mxu0
      %v4994 = vadd.f32 0.0, %v4993
      %v4995 = vpop.f32.mrb[0].mxu0
      %4996 = vmatprep.mubr.f32.mxu0 0.0
      %4997 = vmatmul.mubr.f32.gmra.mrb[0].mxu0 %v4815
      %v4998 = vpop.f32.mrb[0].mxu0
      %v4999 = vadd.f32 0.0, %v4998
      %v5000 = vpop.f32.mrb[0].mxu0
      %5001 = vmatprep.mubr.f32.mxu0 0.0
      %5002 = vmatmul.mubr.f32.gmra.mrb[0].mxu0 %v4818
      %v5003 = vpop.f32.mrb[0].mxu0
      %v5004 = vadd.f32 0.0, %v5003
      %v5005 = vpop.f32.mrb[0].mxu0
      %5006 = vmatprep.mubr.f32.mxu0 0.0
      %5007 = vmatmul.mubr.f32.gmra.mrb[0].mxu0 %v4821
      %v5008 = vpop.f32.mrb[0].mxu0
      %v5009 = vadd.f32 0.0, %v5008
      %v5010 = vpop.f32.mrb[0].mxu0
      %5011 = vmatprep.mubr.f32.mxu0 0.0
      %5012 = vmatmul.mubr.f32.gmra.mrb[0].mxu0 %v4824
      %v5013 = vpop.f32.mrb[0].mxu0
      %v5014 = vadd.f32 0.0, %v5013
      %v5015 = vpop.f32.mrb[0].mxu0
      %5016 = vmatprep.mubr.f32.mxu0 0.0
      %5017 = vmatmul.mubr.f32.gmra.mrb[0].mxu0 %v4827
      %v5018 = vpop.f32.mrb[0].mxu0
      %v5019 = vadd.f32 0.0, %v5018
      %v5020 = vpop.f32.mrb[0].mxu0
      %5021 = vmatprep.mubr.f32.mxu0 0.0
      %5022 = vmatmul.mubr.f32.gmra.mrb[0].mxu0 %v4830
      %v5023 = vpop.f32.mrb[0].mxu0
      %v5024 = vadd.f32 0.0, %v5023
      %v5025 = vpop.f32.mrb[0].mxu0
      %5026 = vmatprep.mubr.f32.mxu0 0.0
      %5027 = vmatmul.mubr.f32.gmra.mrb[0].mxu0 %v4833
      %v5028 = vpop.f32.mrb[0].mxu0
      %v5029 = vadd.f32 0.0, %v5028
      %v5030 = vpop.f32.mrb[0].mxu0
      %5031 = vmatprep.mubr.f32.mxu0 0.0
      %5032 = vmatmul.mubr.f32.gmra.mrb[0].mxu0 %v4836
      %v5033 = vpop.f32.mrb[0].mxu0
      %v5034 = vadd.f32 0.0, %v5033
      %v5035 = vpop.f32.mrb[0].mxu0
      %5036 = vmatprep.mubr.f32.mxu0 0.0
      %5037 = vmatmul.mubr.f32.gmra.mrb[0].mxu0 %v4839
      %v5038 = vpop.f32.mrb[0].mxu0
      %v5039 = vadd.f32 0.0, %v5038
      %v5040 = vpop.f32.mrb[0].mxu0
      %5041 = vmatprep.mubr.f32.mxu0 0.0
      %5042 = vmatmul.mubr.f32.gmra.mrb[0].mxu0 %v4842
      %v5043 = vpop.f32.mrb[0].mxu0
      %v5044 = vadd.f32 0.0, %v5043
      %v5045 = vpop.f32.mrb[0].mxu0
      %5046 = vmatprep.mubr.f32.mxu0 0.0
      %5047 = vmatmul.mubr.f32.gmra.mrb[0].mxu0 %v4845
      %v5048 = vpop.f32.mrb[0].mxu0
      %v5049 = vadd.f32 0.0, %v5048
      %v5050 = vpop.f32.mrb[0].mxu0
      %5051 = vmatprep.mubr.f32.mxu0 0.0
      %5052 = vmatmul.mubr.f32.gmra.mrb[0].mxu0 %v4848
      %v5053 = vpop.f32.mrb[0].mxu0
      %v5054 = vadd.f32 0.0, %v5053
      %v5055 = vpop.f32.mrb[0].mxu0
      %5056 = vmatprep.mubr.f32.mxu0 0.0
      %5057 = vmatmul.mubr.f32.gmra.mrb[0].mxu0 %v4851
      %v5058 = vpop.f32.mrb[0].mxu0
      %v5059 = vadd.f32 0.0, %v5058
      %v5060 = vpop.f32.mrb[0].mxu0
      %5061 = vmatprep.mubr.f32.mxu0 0.0
      %5062 = vmatmul.mubr.f32.gmra.mrb[0].mxu0 %v4854
      %v5063 = vpop.f32.mrb[0].mxu0
      %v5064 = vadd.f32 0.0, %v5063
      %v5065 = vpop.f32.mrb[0].mxu0
      %5066 = vmatprep.mubr.f32.mxu0 0.0
      %5067 = vmatmul.mubr.f32.gmra.mrb[0].mxu0 %v4857
      %v5068 = vpop.f32.mrb[0].mxu0
      %v5069 = vadd.f32 0.0, %v5068
      %v5070 = vpop.f32.mrb[0].mxu0
      %5071 = vmatprep.mubr.f32.mxu0 0.0
      %5072 = vmatmul.mubr.f32.gmra.mrb[0].mxu0 %v4860
      %v5073 = vpop.f32.mrb[0].mxu0
      %v5074 = vadd.f32 0.0, %v5073
      %v5075 = vpop.f32.mrb[0].mxu0
      %5076 = vmatprep.mubr.f32.mxu0 0.0
      %5077 = vmatmul.mubr.f32.gmra.mrb[0].mxu0 %v4863
      %v5078 = vpop.f32.mrb[0].mxu0
      %v5079 = vadd.f32 0.0, %v5078
      %v5080 = vpop.f32.mrb[0].mxu0
      %5081 = vmatprep.mubr.f32.mxu0 0.0
      %5082 = vmatmul.mubr.f32.gmra.mrb[0].mxu0 %v4866
      %v5083 = vpop.f32.mrb[0].mxu0
      %v5084 = vadd.f32 0.0, %v5083
      %v5085 = vpop.f32.mrb[0].mxu0
      %5086 = vmatprep.mubr.f32.mxu0 0.0
      %5087 = vmatmul.mubr.f32.gmra.mrb[0].mxu0 %v4869
      %v5088 = vpop.f32.mrb[0].mxu0
      %v5089 = vadd.f32 0.0, %v5088
      %v5090 = vpop.f32.mrb[0].mxu0
      %5091 = vmatprep.mubr.f32.mxu0 0.0
      %5092 = vmatmul.mubr.f32.gmra.mrb[0].mxu0 %v4872
      %v5093 = vpop.f32.mrb[0].mxu0
      %v5094 = vadd.f32 0.0, %v5093
      %v5095 = vpop.f32.mrb[0].mxu0
      %5096 = vmatprep.mubr.f32.mxu0 0.0
      %5097 = vmatmul.mubr.f32.gmra.mrb[0].mxu0 %v4875
      %v5098 = vpop.f32.mrb[0].mxu0
      %v5099 = vadd.f32 0.0, %v5098
      %v5100 = vpop.f32.mrb[0].mxu0
      %5101 = vdwg.mxu0
      %v5102 = vadd.f32 %v4591, %v4944
      %v5103 = vadd.f32 %v4596, %v4949
      %v5104 = vadd.f32 %v4601, %v4954
      %v5105 = vadd.f32 %v4606, %v4959
      %v5106 = vadd.f32 %v4611, %v4964
      %v5107 = vadd.f32 %v4616, %v4969
      %v5108 = vadd.f32 %v4621, %v4974
      %v5109 = vadd.f32 %v4626, %v4979
      %v5110 = vadd.f32 %v4631, %v4984
      %v5111 = vadd.f32 %v4636, %v4989
      %v5112 = vadd.f32 %v4641, %v4994
      %v5113 = vadd.f32 %v4646, %v4999
      %v5114 = vadd.f32 %v4651, %v5004
      %v5115 = vadd.f32 %v4656, %v5009
      %v5116 = vadd.f32 %v4661, %v5014
      %v5117 = vadd.f32 %v4666, %v5019
      %v5118 = vadd.f32 %v4671, %v5024
      %v5119 = vadd.f32 %v4676, %v5029
      %v5120 = vadd.f32 %v4681, %v5034
      %v5121 = vadd.f32 %v4686, %v5039
      %v5122 = vadd.f32 %v4691, %v5044
      %v5123 = vadd.f32 %v4696, %v5049
      %v5124 = vadd.f32 %v4701, %v5054
      %v5125 = vadd.f32 %v4706, %v5059
      %v5126 = vadd.f32 %v4711, %v5064
      %v5127 = vadd.f32 %v4716, %v5069
      %v5128 = vadd.f32 %v4721, %v5074
      %v5129 = vadd.f32 %v4726, %v5079
      %v5130 = vadd.f32 %v4731, %v5084
      %v5131 = vadd.f32 %v4736, %v5089
      %v5132 = vadd.f32 %v4741, %v5094
      %v5133 = vadd.f32 %v4746, %v5099
      %v5134 = vld [vmem:[%s294] sm:$0xff]
      %v5135 = vld [vmem:[%s294 + $0x8] sm:$0xff]
      %v5136 = vld [vmem:[%s294 + $0x18] sm:$0xff]
      %v5137 = vld [vmem:[%s294 + $0x20] sm:$0xff]
      %v5138 = vld [vmem:[%s294 + $0x30] sm:$0xff]
      %v5139 = vld [vmem:[%s294 + $0x38] sm:$0xff]
      %v5140 = vld [vmem:[%s294 + $0x48] sm:$0xff]
      %v5141 = vld [vmem:[%s294 + $0x50] sm:$0xff]
      %v5142 = vld [vmem:[%s294 + $0x60] sm:$0xff]
      %v5143 = vld [vmem:[%s294 + $0x68] sm:$0xff]
      %v5144 = vld [vmem:[%s294 + $0x78] sm:$0xff]
      %v5145 = vld [vmem:[%s294 + $0x80] sm:$0xff]
      %v5146 = vld [vmem:[%s294 + $0x90] sm:$0xff]
      %v5147 = vld [vmem:[%s294 + $0x98] sm:$0xff]
      %v5148 = vld [vmem:[%s294 + $0xa8] sm:$0xff]
      %v5149 = vld [vmem:[%s294 + $0xb0] sm:$0xff]
      %v5150 = vld [vmem:[%s294 + $0xc0] sm:$0xff]
      %v5151 = vld [vmem:[%s294 + $0xc8] sm:$0xff]
      %v5152 = vld [vmem:[%s294 + $0xd8] sm:$0xff]
      %v5153 = vld [vmem:[%s294 + $0xe0] sm:$0xff]
      %v5154 = vld [vmem:[%s294 + $0xf0] sm:$0xff]
      %v5155 = vld [vmem:[%s294 + $0xf8] sm:$0xff]
      %v5156 = vld [vmem:[%s294 + $0x108] sm:$0xff]
      %v5157 = vld [vmem:[%s294 + $0x110] sm:$0xff]
      %v5158 = vld [vmem:[%s294 + $0x120] sm:$0xff]
      %v5159 = vld [vmem:[%s294 + $0x128] sm:$0xff]
      %v5160 = vld [vmem:[%s294 + $0x138] sm:$0xff]
      %v5161 = vld [vmem:[%s294 + $0x140] sm:$0xff]
      %v5162 = vld [vmem:[%s294 + $0x150] sm:$0xff]
      %v5163 = vld [vmem:[%s294 + $0x158] sm:$0xff]
      %v5164 = vld [vmem:[%s294 + $0x168] sm:$0xff]
      %v5165 = vld [vmem:[%s294 + $0x170] sm:$0xff]
      %v5167 = vsel %vm4106, %v5134, 0
      %v5170 = vsel %vm4106, %v5135, 0
      %v5173 = vsel %vm4106, %v5136, 0
      %v5176 = vsel %vm4106, %v5137, 0
      %v5179 = vsel %vm4106, %v5138, 0
      %v5182 = vsel %vm4106, %v5139, 0
      %v5185 = vsel %vm4106, %v5140, 0
      %v5188 = vsel %vm4106, %v5141, 0
      %v5191 = vsel %vm4106, %v5142, 0
      %v5194 = vsel %vm4106, %v5143, 0
      %v5197 = vsel %vm4106, %v5144, 0
      %v5200 = vsel %vm4106, %v5145, 0
      %v5203 = vsel %vm4106, %v5146, 0
      %v5206 = vsel %vm4106, %v5147, 0
      %v5209 = vsel %vm4106, %v5148, 0
      %v5212 = vsel %vm4106, %v5149, 0
      %v5215 = vsel %vm4106, %v5150, 0
      %v5218 = vsel %vm4106, %v5151, 0
      %v5221 = vsel %vm4106, %v5152, 0
      %v5224 = vsel %vm4106, %v5153, 0
      %v5227 = vsel %vm4106, %v5154, 0
      %v5230 = vsel %vm4106, %v5155, 0
      %v5233 = vsel %vm4106, %v5156, 0
      %v5236 = vsel %vm4106, %v5157, 0
      %v5239 = vsel %vm4106, %v5158, 0
      %v5242 = vsel %vm4106, %v5159, 0
      %v5245 = vsel %vm4106, %v5160, 0
      %v5248 = vsel %vm4106, %v5161, 0
      %v5251 = vsel %vm4106, %v5162, 0
      %v5254 = vsel %vm4106, %v5163, 0
      %v5257 = vsel %vm4106, %v5164, 0
      %v5260 = vsel %vm4106, %v5165, 0
      %5262 = vmatprep.subr.mxu0 0.0
      %5263 = vmatpush1.msra.mxu0 %v4035
      %5264 = vmatprep.subr.mxu0 0.0
      %5265 = vmatpush1.msra.mxu0 0.0
      %5266 = vmatprep.subr.mxu0 0.0
      %5267 = vmatpush1.msra.mxu0 0.0
      %5268 = vmatprep.subr.mxu0 0.0
      %5269 = vmatpush1.msra.mxu0 0.0
      %5270 = vmatprep.subr.mxu0 0.0
      %5271 = vmatpush1.msra.mxu0 0.0
      %5272 = vmatprep.subr.mxu0 0.0
      %5273 = vmatpush1.msra.mxu0 0.0
      %5274 = vmatprep.subr.mxu0 0.0
      %5275 = vmatpush1.msra.mxu0 0.0
      %5276 = vmatprep.subr.mxu0 0.0
      %5277 = vmatpush1.msra.mxu0 0.0
      %5278 = vmatprep.subr.mxu0 0.0
      %5279 = vmatpush1.msra.mxu0 0.0
      %5280 = vmatprep.subr.mxu0 0.0
      %5281 = vmatpush1.msra.mxu0 0.0
      %5282 = vmatprep.subr.mxu0 0.0
      %5283 = vmatpush1.msra.mxu0 0.0
      %5284 = vmatprep.subr.mxu0 0.0
      %5285 = vmatpush1.msra.mxu0 0.0
      %5286 = vmatprep.subr.mxu0 0.0
      %5287 = vmatpush1.msra.mxu0 0.0
      %5288 = vmatprep.subr.mxu0 0.0
      %5289 = vmatpush1.msra.mxu0 0.0
      %5290 = vmatprep.subr.mxu0 0.0
      %5291 = vmatpush1.msra.mxu0 0.0
      %5292 = vmatprep.subr.mxu0 0.0
      %5293 = vmatpush1.msra.mxu0 0.0
      %5294 = vmatprep.subr.mxu0 0.0
      %5295 = vmatpush1.msra.mxu0 0.0
      %5296 = vmatprep.subr.mxu0 0.0
      %5297 = vmatpush1.msra.mxu0 0.0
      %5298 = vmatprep.subr.mxu0 0.0
      %5299 = vmatpush1.msra.mxu0 0.0
      %5300 = vmatprep.subr.mxu0 0.0
      %5301 = vmatpush1.msra.mxu0 0.0
      %5302 = vmatprep.subr.mxu0 0.0
      %5303 = vmatpush1.msra.mxu0 0.0
      %5304 = vmatprep.subr.mxu0 0.0
      %5305 = vmatpush1.msra.mxu0 0.0
      %5306 = vmatprep.subr.mxu0 0.0
      %5307 = vmatpush1.msra.mxu0 0.0
      %5308 = vmatprep.subr.mxu0 0.0
      %5309 = vmatpush1.msra.mxu0 0.0
      %5310 = vmatprep.subr.mxu0 0.0
      %5311 = vmatpush1.msra.mxu0 0.0
      %5312 = vmatprep.subr.mxu0 0.0
      %5313 = vmatpush1.msra.mxu0 0.0
      %5314 = vmatprep.subr.mxu0 0.0
      %5315 = vmatpush1.msra.mxu0 0.0
      %5316 = vmatprep.subr.mxu0 0.0
      %5317 = vmatpush1.msra.mxu0 0.0
      %5318 = vmatprep.subr.mxu0 0.0
      %5319 = vmatpush1.msra.mxu0 0.0
      %5320 = vmatprep.subr.mxu0 0.0
      %5321 = vmatpush1.msra.mxu0 0.0
      %5322 = vmatprep.subr.mxu0 0.0
      %5323 = vmatpush1.msra.mxu0 0.0
      %5324 = vmatprep.subr.mxu0 0.0
      %5325 = vmatpush1.msra.mxu0 0.0
      %5326 = vmatprep.mubr.f32.mxu0 0.0
      %5327 = vmatmul.mubr.f32.gmra.mrb[0].mxu0 %v5167
      %v5328 = vpop.f32.mrb[0].mxu0
      %v5329 = vadd.f32 0.0, %v5328
      %v5330 = vpop.f32.mrb[0].mxu0
      %5331 = vmatprep.mubr.f32.mxu0 0.0
      %5332 = vmatmul.mubr.f32.gmra.mrb[0].mxu0 %v5170
      %v5333 = vpop.f32.mrb[0].mxu0
      %v5334 = vadd.f32 0.0, %v5333
      %v5335 = vpop.f32.mrb[0].mxu0
      %5336 = vmatprep.mubr.f32.mxu0 0.0
      %5337 = vmatmul.mubr.f32.gmra.mrb[0].mxu0 %v5173
      %v5338 = vpop.f32.mrb[0].mxu0
      %v5339 = vadd.f32 0.0, %v5338
      %v5340 = vpop.f32.mrb[0].mxu0
      %5341 = vmatprep.mubr.f32.mxu0 0.0
      %5342 = vmatmul.mubr.f32.gmra.mrb[0].mxu0 %v5176
      %v5343 = vpop.f32.mrb[0].mxu0
      %v5344 = vadd.f32 0.0, %v5343
      %v5345 = vpop.f32.mrb[0].mxu0
      %5346 = vmatprep.mubr.f32.mxu0 0.0
      %5347 = vmatmul.mubr.f32.gmra.mrb[0].mxu0 %v5179
      %v5348 = vpop.f32.mrb[0].mxu0
      %v5349 = vadd.f32 0.0, %v5348
      %v5350 = vpop.f32.mrb[0].mxu0
      %5351 = vmatprep.mubr.f32.mxu0 0.0
      %5352 = vmatmul.mubr.f32.gmra.mrb[0].mxu0 %v5182
      %v5353 = vpop.f32.mrb[0].mxu0
      %v5354 = vadd.f32 0.0, %v5353
      %v5355 = vpop.f32.mrb[0].mxu0
      %5356 = vmatprep.mubr.f32.mxu0 0.0
      %5357 = vmatmul.mubr.f32.gmra.mrb[0].mxu0 %v5185
      %v5358 = vpop.f32.mrb[0].mxu0
      %v5359 = vadd.f32 0.0, %v5358
      %v5360 = vpop.f32.mrb[0].mxu0
      %5361 = vmatprep.mubr.f32.mxu0 0.0
      %5362 = vmatmul.mubr.f32.gmra.mrb[0].mxu0 %v5188
      %v5363 = vpop.f32.mrb[0].mxu0
      %v5364 = vadd.f32 0.0, %v5363
      %v5365 = vpop.f32.mrb[0].mxu0
      %5366 = vmatprep.mubr.f32.mxu0 0.0
      %5367 = vmatmul.mubr.f32.gmra.mrb[0].mxu0 %v5191
      %v5368 = vpop.f32.mrb[0].mxu0
      %v5369 = vadd.f32 0.0, %v5368
      %v5370 = vpop.f32.mrb[0].mxu0
      %5371 = vmatprep.mubr.f32.mxu0 0.0
      %5372 = vmatmul.mubr.f32.gmra.mrb[0].mxu0 %v5194
      %v5373 = vpop.f32.mrb[0].mxu0
      %v5374 = vadd.f32 0.0, %v5373
      %v5375 = vpop.f32.mrb[0].mxu0
      %5376 = vmatprep.mubr.f32.mxu0 0.0
      %5377 = vmatmul.mubr.f32.gmra.mrb[0].mxu0 %v5197
      %v5378 = vpop.f32.mrb[0].mxu0
      %v5379 = vadd.f32 0.0, %v5378
      %v5380 = vpop.f32.mrb[0].mxu0
      %5381 = vmatprep.mubr.f32.mxu0 0.0
      %5382 = vmatmul.mubr.f32.gmra.mrb[0].mxu0 %v5200
      %v5383 = vpop.f32.mrb[0].mxu0
      %v5384 = vadd.f32 0.0, %v5383
      %v5385 = vpop.f32.mrb[0].mxu0
      %5386 = vmatprep.mubr.f32.mxu0 0.0
      %5387 = vmatmul.mubr.f32.gmra.mrb[0].mxu0 %v5203
      %v5388 = vpop.f32.mrb[0].mxu0
      %v5389 = vadd.f32 0.0, %v5388
      %v5390 = vpop.f32.mrb[0].mxu0
      %5391 = vmatprep.mubr.f32.mxu0 0.0
      %5392 = vmatmul.mubr.f32.gmra.mrb[0].mxu0 %v5206
      %v5393 = vpop.f32.mrb[0].mxu0
      %v5394 = vadd.f32 0.0, %v5393
      %v5395 = vpop.f32.mrb[0].mxu0
      %5396 = vmatprep.mubr.f32.mxu0 0.0
      %5397 = vmatmul.mubr.f32.gmra.mrb[0].mxu0 %v5209
      %v5398 = vpop.f32.mrb[0].mxu0
      %v5399 = vadd.f32 0.0, %v5398
      %v5400 = vpop.f32.mrb[0].mxu0
      %5401 = vmatprep.mubr.f32.mxu0 0.0
      %5402 = vmatmul.mubr.f32.gmra.mrb[0].mxu0 %v5212
      %v5403 = vpop.f32.mrb[0].mxu0
      %v5404 = vadd.f32 0.0, %v5403
      %v5405 = vpop.f32.mrb[0].mxu0
      %5406 = vmatprep.mubr.f32.mxu0 0.0
      %5407 = vmatmul.mubr.f32.gmra.mrb[0].mxu0 %v5215
      %v5408 = vpop.f32.mrb[0].mxu0
      %v5409 = vadd.f32 0.0, %v5408
      %v5410 = vpop.f32.mrb[0].mxu0
      %5411 = vmatprep.mubr.f32.mxu0 0.0
      %5412 = vmatmul.mubr.f32.gmra.mrb[0].mxu0 %v5218
      %v5413 = vpop.f32.mrb[0].mxu0
      %v5414 = vadd.f32 0.0, %v5413
      %v5415 = vpop.f32.mrb[0].mxu0
      %5416 = vmatprep.mubr.f32.mxu0 0.0
      %5417 = vmatmul.mubr.f32.gmra.mrb[0].mxu0 %v5221
      %v5418 = vpop.f32.mrb[0].mxu0
      %v5419 = vadd.f32 0.0, %v5418
      %v5420 = vpop.f32.mrb[0].mxu0
      %5421 = vmatprep.mubr.f32.mxu0 0.0
      %5422 = vmatmul.mubr.f32.gmra.mrb[0].mxu0 %v5224
      %v5423 = vpop.f32.mrb[0].mxu0
      %v5424 = vadd.f32 0.0, %v5423
      %v5425 = vpop.f32.mrb[0].mxu0
      %5426 = vmatprep.mubr.f32.mxu0 0.0
      %5427 = vmatmul.mubr.f32.gmra.mrb[0].mxu0 %v5227
      %v5428 = vpop.f32.mrb[0].mxu0
      %v5429 = vadd.f32 0.0, %v5428
      %v5430 = vpop.f32.mrb[0].mxu0
      %5431 = vmatprep.mubr.f32.mxu0 0.0
      %5432 = vmatmul.mubr.f32.gmra.mrb[0].mxu0 %v5230
      %v5433 = vpop.f32.mrb[0].mxu0
      %v5434 = vadd.f32 0.0, %v5433
      %v5435 = vpop.f32.mrb[0].mxu0
      %5436 = vmatprep.mubr.f32.mxu0 0.0
      %5437 = vmatmul.mubr.f32.gmra.mrb[0].mxu0 %v5233
      %v5438 = vpop.f32.mrb[0].mxu0
      %v5439 = vadd.f32 0.0, %v5438
      %v5440 = vpop.f32.mrb[0].mxu0
      %5441 = vmatprep.mubr.f32.mxu0 0.0
      %5442 = vmatmul.mubr.f32.gmra.mrb[0].mxu0 %v5236
      %v5443 = vpop.f32.mrb[0].mxu0
      %v5444 = vadd.f32 0.0, %v5443
      %v5445 = vpop.f32.mrb[0].mxu0
      %5446 = vmatprep.mubr.f32.mxu0 0.0
      %5447 = vmatmul.mubr.f32.gmra.mrb[0].mxu0 %v5239
      %v5448 = vpop.f32.mrb[0].mxu0
      %v5449 = vadd.f32 0.0, %v5448
      %v5450 = vpop.f32.mrb[0].mxu0
      %5451 = vmatprep.mubr.f32.mxu0 0.0
      %5452 = vmatmul.mubr.f32.gmra.mrb[0].mxu0 %v5242
      %v5453 = vpop.f32.mrb[0].mxu0
      %v5454 = vadd.f32 0.0, %v5453
      %v5455 = vpop.f32.mrb[0].mxu0
      %5456 = vmatprep.mubr.f32.mxu0 0.0
      %5457 = vmatmul.mubr.f32.gmra.mrb[0].mxu0 %v5245
      %v5458 = vpop.f32.mrb[0].mxu0
      %v5459 = vadd.f32 0.0, %v5458
      %v5460 = vpop.f32.mrb[0].mxu0
      %5461 = vmatprep.mubr.f32.mxu0 0.0
      %5462 = vmatmul.mubr.f32.gmra.mrb[0].mxu0 %v5248
      %v5463 = vpop.f32.mrb[0].mxu0
      %v5464 = vadd.f32 0.0, %v5463
      %v5465 = vpop.f32.mrb[0].mxu0
      %5466 = vmatprep.mubr.f32.mxu0 0.0
      %5467 = vmatmul.mubr.f32.gmra.mrb[0].mxu0 %v5251
      %v5468 = vpop.f32.mrb[0].mxu0
      %v5469 = vadd.f32 0.0, %v5468
      %v5470 = vpop.f32.mrb[0].mxu0
      %5471 = vmatprep.mubr.f32.mxu0 0.0
      %5472 = vmatmul.mubr.f32.gmra.mrb[0].mxu0 %v5254
      %v5473 = vpop.f32.mrb[0].mxu0
      %v5474 = vadd.f32 0.0, %v5473
      %v5475 = vpop.f32.mrb[0].mxu0
      %5476 = vmatprep.mubr.f32.mxu0 0.0
      %5477 = vmatmul.mubr.f32.gmra.mrb[0].mxu0 %v5257
      %v5478 = vpop.f32.mrb[0].mxu0
      %v5479 = vadd.f32 0.0, %v5478
      %v5480 = vpop.f32.mrb[0].mxu0
      %5481 = vmatprep.mubr.f32.mxu0 0.0
      %5482 = vmatmul.mubr.f32.gmra.mrb[0].mxu0 %v5260
      %v5483 = vpop.f32.mrb[0].mxu0
      %v5484 = vadd.f32 0.0, %v5483
      %v5485 = vpop.f32.mrb[0].mxu0
      %5486 = vdwg.mxu0
      %v5487 = vadd.f32 %v5102, %v5329
      %v5488 = vadd.f32 %v5103, %v5334
      %v5489 = vadd.f32 %v5104, %v5339
      %v5490 = vadd.f32 %v5105, %v5344
      %v5491 = vadd.f32 %v5106, %v5349
      %v5492 = vadd.f32 %v5107, %v5354
      %v5493 = vadd.f32 %v5108, %v5359
      %v5494 = vadd.f32 %v5109, %v5364
      %v5495 = vadd.f32 %v5110, %v5369
      %v5496 = vadd.f32 %v5111, %v5374
      %v5497 = vadd.f32 %v5112, %v5379
      %v5498 = vadd.f32 %v5113, %v5384
      %v5499 = vadd.f32 %v5114, %v5389
      %v5500 = vadd.f32 %v5115, %v5394
      %v5501 = vadd.f32 %v5116, %v5399
      %v5502 = vadd.f32 %v5117, %v5404
      %v5503 = vadd.f32 %v5118, %v5409
      %v5504 = vadd.f32 %v5119, %v5414
      %v5505 = vadd.f32 %v5120, %v5419
      %v5506 = vadd.f32 %v5121, %v5424
      %v5507 = vadd.f32 %v5122, %v5429
      %v5508 = vadd.f32 %v5123, %v5434
      %v5509 = vadd.f32 %v5124, %v5439
      %v5510 = vadd.f32 %v5125, %v5444
      %v5511 = vadd.f32 %v5126, %v5449
      %v5512 = vadd.f32 %v5127, %v5454
      %v5513 = vadd.f32 %v5128, %v5459
      %v5514 = vadd.f32 %v5129, %v5464
      %v5515 = vadd.f32 %v5130, %v5469
      %v5516 = vadd.f32 %v5131, %v5474
      %v5517 = vadd.f32 %v5132, %v5479
      %v5518 = vadd.f32 %v5133, %v5484
      %v5519 = vld [vmem:[%s294 + $0x2] sm:$0xff]
      %v5520 = vld [vmem:[%s294 + $0xa] sm:$0xff]
      %v5521 = vld [vmem:[%s294 + $0x1a] sm:$0xff]
      %v5522 = vld [vmem:[%s294 + $0x22] sm:$0xff]
      %v5523 = vld [vmem:[%s294 + $0x32] sm:$0xff]
      %v5524 = vld [vmem:[%s294 + $0x3a] sm:$0xff]
      %v5525 = vld [vmem:[%s294 + $0x4a] sm:$0xff]
      %v5526 = vld [vmem:[%s294 + $0x52] sm:$0xff]
      %v5527 = vld [vmem:[%s294 + $0x62] sm:$0xff]
      %v5528 = vld [vmem:[%s294 + $0x6a] sm:$0xff]
      %v5529 = vld [vmem:[%s294 + $0x7a] sm:$0xff]
      %v5530 = vld [vmem:[%s294 + $0x82] sm:$0xff]
      %v5531 = vld [vmem:[%s294 + $0x92] sm:$0xff]
      %v5532 = vld [vmem:[%s294 + $0x9a] sm:$0xff]
      %v5533 = vld [vmem:[%s294 + $0xaa] sm:$0xff]
      %v5534 = vld [vmem:[%s294 + $0xb2] sm:$0xff]
      %v5535 = vld [vmem:[%s294 + $0xc2] sm:$0xff]
      %v5536 = vld [vmem:[%s294 + $0xca] sm:$0xff]
      %v5537 = vld [vmem:[%s294 + $0xda] sm:$0xff]
      %v5538 = vld [vmem:[%s294 + $0xe2] sm:$0xff]
      %v5539 = vld [vmem:[%s294 + $0xf2] sm:$0xff]
      %v5540 = vld [vmem:[%s294 + $0xfa] sm:$0xff]
      %v5541 = vld [vmem:[%s294 + $0x10a] sm:$0xff]
      %v5542 = vld [vmem:[%s294 + $0x112] sm:$0xff]
      %v5543 = vld [vmem:[%s294 + $0x122] sm:$0xff]
      %v5544 = vld [vmem:[%s294 + $0x12a] sm:$0xff]
      %v5545 = vld [vmem:[%s294 + $0x13a] sm:$0xff]
      %v5546 = vld [vmem:[%s294 + $0x142] sm:$0xff]
      %v5547 = vld [vmem:[%s294 + $0x152] sm:$0xff]
      %v5548 = vld [vmem:[%s294 + $0x15a] sm:$0xff]
      %v5549 = vld [vmem:[%s294 + $0x16a] sm:$0xff]
      %v5550 = vld [vmem:[%s294 + $0x172] sm:$0xff]
      %v5552 = vsel %vm4106, %v5519, 0
      %v5555 = vsel %vm4106, %v5520, 0
      %v5558 = vsel %vm4106, %v5521, 0
      %v5561 = vsel %vm4106, %v5522, 0
      %v5564 = vsel %vm4106, %v5523, 0
      %v5567 = vsel %vm4106, %v5524, 0
      %v5570 = vsel %vm4106, %v5525, 0
      %v5573 = vsel %vm4106, %v5526, 0
      %v5576 = vsel %vm4106, %v5527, 0
      %v5579 = vsel %vm4106, %v5528, 0
      %v5582 = vsel %vm4106, %v5529, 0
      %v5585 = vsel %vm4106, %v5530, 0
      %v5588 = vsel %vm4106, %v5531, 0
      %v5591 = vsel %vm4106, %v5532, 0
      %v5594 = vsel %vm4106, %v5533, 0
      %v5597 = vsel %vm4106, %v5534, 0
      %v5600 = vsel %vm4106, %v5535, 0
      %v5603 = vsel %vm4106, %v5536, 0
      %v5606 = vsel %vm4106, %v5537, 0
      %v5609 = vsel %vm4106, %v5538, 0
      %v5612 = vsel %vm4106, %v5539, 0
      %v5615 = vsel %vm4106, %v5540, 0
      %v5618 = vsel %vm4106, %v5541, 0
      %v5621 = vsel %vm4106, %v5542, 0
      %v5624 = vsel %vm4106, %v5543, 0
      %v5627 = vsel %vm4106, %v5544, 0
      %v5630 = vsel %vm4106, %v5545, 0
      %v5633 = vsel %vm4106, %v5546, 0
      %v5636 = vsel %vm4106, %v5547, 0
      %v5639 = vsel %vm4106, %v5548, 0
      %v5642 = vsel %vm4106, %v5549, 0
      %v5645 = vsel %vm4106, %v5550, 0
      %5647 = vmatprep.subr.mxu0 0.0
      %5648 = vmatpush1.msra.mxu0 %v4036
      %5649 = vmatprep.subr.mxu0 0.0
      %5650 = vmatpush1.msra.mxu0 0.0
      %5651 = vmatprep.subr.mxu0 0.0
      %5652 = vmatpush1.msra.mxu0 0.0
      %5653 = vmatprep.subr.mxu0 0.0
      %5654 = vmatpush1.msra.mxu0 0.0
      %5655 = vmatprep.subr.mxu0 0.0
      %5656 = vmatpush1.msra.mxu0 0.0
      %5657 = vmatprep.subr.mxu0 0.0
      %5658 = vmatpush1.msra.mxu0 0.0
      %5659 = vmatprep.subr.mxu0 0.0
      %5660 = vmatpush1.msra.mxu0 0.0
      %5661 = vmatprep.subr.mxu0 0.0
      %5662 = vmatpush1.msra.mxu0 0.0
      %5663 = vmatprep.subr.mxu0 0.0
      %5664 = vmatpush1.msra.mxu0 0.0
      %5665 = vmatprep.subr.mxu0 0.0
      %5666 = vmatpush1.msra.mxu0 0.0
      %5667 = vmatprep.subr.mxu0 0.0
      %5668 = vmatpush1.msra.mxu0 0.0
      %5669 = vmatprep.subr.mxu0 0.0
      %5670 = vmatpush1.msra.mxu0 0.0
      %5671 = vmatprep.subr.mxu0 0.0
      %5672 = vmatpush1.msra.mxu0 0.0
      %5673 = vmatprep.subr.mxu0 0.0
      %5674 = vmatpush1.msra.mxu0 0.0
      %5675 = vmatprep.subr.mxu0 0.0
      %5676 = vmatpush1.msra.mxu0 0.0
      %5677 = vmatprep.subr.mxu0 0.0
      %5678 = vmatpush1.msra.mxu0 0.0
      %5679 = vmatprep.subr.mxu0 0.0
      %5680 = vmatpush1.msra.mxu0 0.0
      %5681 = vmatprep.subr.mxu0 0.0
      %5682 = vmatpush1.msra.mxu0 0.0
      %5683 = vmatprep.subr.mxu0 0.0
      %5684 = vmatpush1.msra.mxu0 0.0
      %5685 = vmatprep.subr.mxu0 0.0
      %5686 = vmatpush1.msra.mxu0 0.0
      %5687 = vmatprep.subr.mxu0 0.0
      %5688 = vmatpush1.msra.mxu0 0.0
      %5689 = vmatprep.subr.mxu0 0.0
      %5690 = vmatpush1.msra.mxu0 0.0
      %5691 = vmatprep.subr.mxu0 0.0
      %5692 = vmatpush1.msra.mxu0 0.0
      %5693 = vmatprep.subr.mxu0 0.0
      %5694 = vmatpush1.msra.mxu0 0.0
      %5695 = vmatprep.subr.mxu0 0.0
      %5696 = vmatpush1.msra.mxu0 0.0
      %5697 = vmatprep.subr.mxu0 0.0
      %5698 = vmatpush1.msra.mxu0 0.0
      %5699 = vmatprep.subr.mxu0 0.0
      %5700 = vmatpush1.msra.mxu0 0.0
      %5701 = vmatprep.subr.mxu0 0.0
      %5702 = vmatpush1.msra.mxu0 0.0
      %5703 = vmatprep.subr.mxu0 0.0
      %5704 = vmatpush1.msra.mxu0 0.0
      %5705 = vmatprep.subr.mxu0 0.0
      %5706 = vmatpush1.msra.mxu0 0.0
      %5707 = vmatprep.subr.mxu0 0.0
      %5708 = vmatpush1.msra.mxu0 0.0
      %5709 = vmatprep.subr.mxu0 0.0
      %5710 = vmatpush1.msra.mxu0 0.0
      %5711 = vmatprep.mubr.f32.mxu0 0.0
      %5712 = vmatmul.mubr.f32.gmra.mrb[0].mxu0 %v5552
      %v5713 = vpop.f32.mrb[0].mxu0
      %v5714 = vadd.f32 0.0, %v5713
      %v5715 = vpop.f32.mrb[0].mxu0
      %5716 = vmatprep.mubr.f32.mxu0 0.0
      %5717 = vmatmul.mubr.f32.gmra.mrb[0].mxu0 %v5555
      %v5718 = vpop.f32.mrb[0].mxu0
      %v5719 = vadd.f32 0.0, %v5718
      %v5720 = vpop.f32.mrb[0].mxu0
      %5721 = vmatprep.mubr.f32.mxu0 0.0
      %5722 = vmatmul.mubr.f32.gmra.mrb[0].mxu0 %v5558
      %v5723 = vpop.f32.mrb[0].mxu0
      %v5724 = vadd.f32 0.0, %v5723
      %v5725 = vpop.f32.mrb[0].mxu0
      %5726 = vmatprep.mubr.f32.mxu0 0.0
      %5727 = vmatmul.mubr.f32.gmra.mrb[0].mxu0 %v5561
      %v5728 = vpop.f32.mrb[0].mxu0
      %v5729 = vadd.f32 0.0, %v5728
      %v5730 = vpop.f32.mrb[0].mxu0
      %5731 = vmatprep.mubr.f32.mxu0 0.0
      %5732 = vmatmul.mubr.f32.gmra.mrb[0].mxu0 %v5564
      %v5733 = vpop.f32.mrb[0].mxu0
      %v5734 = vadd.f32 0.0, %v5733
      %v5735 = vpop.f32.mrb[0].mxu0
      %5736 = vmatprep.mubr.f32.mxu0 0.0
      %5737 = vmatmul.mubr.f32.gmra.mrb[0].mxu0 %v5567
      %v5738 = vpop.f32.mrb[0].mxu0
      %v5739 = vadd.f32 0.0, %v5738
      %v5740 = vpop.f32.mrb[0].mxu0
      %5741 = vmatprep.mubr.f32.mxu0 0.0
      %5742 = vmatmul.mubr.f32.gmra.mrb[0].mxu0 %v5570
      %v5743 = vpop.f32.mrb[0].mxu0
      %v5744 = vadd.f32 0.0, %v5743
      %v5745 = vpop.f32.mrb[0].mxu0
      %5746 = vmatprep.mubr.f32.mxu0 0.0
      %5747 = vmatmul.mubr.f32.gmra.mrb[0].mxu0 %v5573
      %v5748 = vpop.f32.mrb[0].mxu0
      %v5749 = vadd.f32 0.0, %v5748
      %v5750 = vpop.f32.mrb[0].mxu0
      %5751 = vmatprep.mubr.f32.mxu0 0.0
      %5752 = vmatmul.mubr.f32.gmra.mrb[0].mxu0 %v5576
      %v5753 = vpop.f32.mrb[0].mxu0
      %v5754 = vadd.f32 0.0, %v5753
      %v5755 = vpop.f32.mrb[0].mxu0
      %5756 = vmatprep.mubr.f32.mxu0 0.0
      %5757 = vmatmul.mubr.f32.gmra.mrb[0].mxu0 %v5579
      %v5758 = vpop.f32.mrb[0].mxu0
      %v5759 = vadd.f32 0.0, %v5758
      %v5760 = vpop.f32.mrb[0].mxu0
      %5761 = vmatprep.mubr.f32.mxu0 0.0
      %5762 = vmatmul.mubr.f32.gmra.mrb[0].mxu0 %v5582
      %v5763 = vpop.f32.mrb[0].mxu0
      %v5764 = vadd.f32 0.0, %v5763
      %v5765 = vpop.f32.mrb[0].mxu0
      %5766 = vmatprep.mubr.f32.mxu0 0.0
      %5767 = vmatmul.mubr.f32.gmra.mrb[0].mxu0 %v5585
      %v5768 = vpop.f32.mrb[0].mxu0
      %v5769 = vadd.f32 0.0, %v5768
      %v5770 = vpop.f32.mrb[0].mxu0
      %5771 = vmatprep.mubr.f32.mxu0 0.0
      %5772 = vmatmul.mubr.f32.gmra.mrb[0].mxu0 %v5588
      %v5773 = vpop.f32.mrb[0].mxu0
      %v5774 = vadd.f32 0.0, %v5773
      %v5775 = vpop.f32.mrb[0].mxu0
      %5776 = vmatprep.mubr.f32.mxu0 0.0
      %5777 = vmatmul.mubr.f32.gmra.mrb[0].mxu0 %v5591
      %v5778 = vpop.f32.mrb[0].mxu0
      %v5779 = vadd.f32 0.0, %v5778
      %v5780 = vpop.f32.mrb[0].mxu0
      %5781 = vmatprep.mubr.f32.mxu0 0.0
      %5782 = vmatmul.mubr.f32.gmra.mrb[0].mxu0 %v5594
      %v5783 = vpop.f32.mrb[0].mxu0
      %v5784 = vadd.f32 0.0, %v5783
      %v5785 = vpop.f32.mrb[0].mxu0
      %5786 = vmatprep.mubr.f32.mxu0 0.0
      %5787 = vmatmul.mubr.f32.gmra.mrb[0].mxu0 %v5597
      %v5788 = vpop.f32.mrb[0].mxu0
      %v5789 = vadd.f32 0.0, %v5788
      %v5790 = vpop.f32.mrb[0].mxu0
      %5791 = vmatprep.mubr.f32.mxu0 0.0
      %5792 = vmatmul.mubr.f32.gmra.mrb[0].mxu0 %v5600
      %v5793 = vpop.f32.mrb[0].mxu0
      %v5794 = vadd.f32 0.0, %v5793
      %v5795 = vpop.f32.mrb[0].mxu0
      %5796 = vmatprep.mubr.f32.mxu0 0.0
      %5797 = vmatmul.mubr.f32.gmra.mrb[0].mxu0 %v5603
      %v5798 = vpop.f32.mrb[0].mxu0
      %v5799 = vadd.f32 0.0, %v5798
      %v5800 = vpop.f32.mrb[0].mxu0
      %5801 = vmatprep.mubr.f32.mxu0 0.0
      %5802 = vmatmul.mubr.f32.gmra.mrb[0].mxu0 %v5606
      %v5803 = vpop.f32.mrb[0].mxu0
      %v5804 = vadd.f32 0.0, %v5803
      %v5805 = vpop.f32.mrb[0].mxu0
      %5806 = vmatprep.mubr.f32.mxu0 0.0
      %5807 = vmatmul.mubr.f32.gmra.mrb[0].mxu0 %v5609
      %v5808 = vpop.f32.mrb[0].mxu0
      %v5809 = vadd.f32 0.0, %v5808
      %v5810 = vpop.f32.mrb[0].mxu0
      %5811 = vmatprep.mubr.f32.mxu0 0.0
      %5812 = vmatmul.mubr.f32.gmra.mrb[0].mxu0 %v5612
      %v5813 = vpop.f32.mrb[0].mxu0
      %v5814 = vadd.f32 0.0, %v5813
      %v5815 = vpop.f32.mrb[0].mxu0
      %5816 = vmatprep.mubr.f32.mxu0 0.0
      %5817 = vmatmul.mubr.f32.gmra.mrb[0].mxu0 %v5615
      %v5818 = vpop.f32.mrb[0].mxu0
      %v5819 = vadd.f32 0.0, %v5818
      %v5820 = vpop.f32.mrb[0].mxu0
      %5821 = vmatprep.mubr.f32.mxu0 0.0
      %5822 = vmatmul.mubr.f32.gmra.mrb[0].mxu0 %v5618
      %v5823 = vpop.f32.mrb[0].mxu0
      %v5824 = vadd.f32 0.0, %v5823
      %v5825 = vpop.f32.mrb[0].mxu0
      %5826 = vmatprep.mubr.f32.mxu0 0.0
      %5827 = vmatmul.mubr.f32.gmra.mrb[0].mxu0 %v5621
      %v5828 = vpop.f32.mrb[0].mxu0
      %v5829 = vadd.f32 0.0, %v5828
      %v5830 = vpop.f32.mrb[0].mxu0
      %5831 = vmatprep.mubr.f32.mxu0 0.0
      %5832 = vmatmul.mubr.f32.gmra.mrb[0].mxu0 %v5624
      %v5833 = vpop.f32.mrb[0].mxu0
      %v5834 = vadd.f32 0.0, %v5833
      %v5835 = vpop.f32.mrb[0].mxu0
      %5836 = vmatprep.mubr.f32.mxu0 0.0
      %5837 = vmatmul.mubr.f32.gmra.mrb[0].mxu0 %v5627
      %v5838 = vpop.f32.mrb[0].mxu0
      %v5839 = vadd.f32 0.0, %v5838
      %v5840 = vpop.f32.mrb[0].mxu0
      %5841 = vmatprep.mubr.f32.mxu0 0.0
      %5842 = vmatmul.mubr.f32.gmra.mrb[0].mxu0 %v5630
      %v5843 = vpop.f32.mrb[0].mxu0
      %v5844 = vadd.f32 0.0, %v5843
      %v5845 = vpop.f32.mrb[0].mxu0
      %5846 = vmatprep.mubr.f32.mxu0 0.0
      %5847 = vmatmul.mubr.f32.gmra.mrb[0].mxu0 %v5633
      %v5848 = vpop.f32.mrb[0].mxu0
      %v5849 = vadd.f32 0.0, %v5848
      %v5850 = vpop.f32.mrb[0].mxu0
      %5851 = vmatprep.mubr.f32.mxu0 0.0
      %5852 = vmatmul.mubr.f32.gmra.mrb[0].mxu0 %v5636
      %v5853 = vpop.f32.mrb[0].mxu0
      %v5854 = vadd.f32 0.0, %v5853
      %v5855 = vpop.f32.mrb[0].mxu0
      %5856 = vmatprep.mubr.f32.mxu0 0.0
      %5857 = vmatmul.mubr.f32.gmra.mrb[0].mxu0 %v5639
      %v5858 = vpop.f32.mrb[0].mxu0
      %v5859 = vadd.f32 0.0, %v5858
      %v5860 = vpop.f32.mrb[0].mxu0
      %5861 = vmatprep.mubr.f32.mxu0 0.0
      %5862 = vmatmul.mubr.f32.gmra.mrb[0].mxu0 %v5642
      %v5863 = vpop.f32.mrb[0].mxu0
      %v5864 = vadd.f32 0.0, %v5863
      %v5865 = vpop.f32.mrb[0].mxu0
      %5866 = vmatprep.mubr.f32.mxu0 0.0
      %5867 = vmatmul.mubr.f32.gmra.mrb[0].mxu0 %v5645
      %v5868 = vpop.f32.mrb[0].mxu0
      %v5869 = vadd.f32 0.0, %v5868
      %v5870 = vpop.f32.mrb[0].mxu0
      %5871 = vdwg.mxu0
      %v5872 = vadd.f32 %v5487, %v5714
      %v5873 = vadd.f32 %v5488, %v5719
      %v5874 = vadd.f32 %v5489, %v5724
      %v5875 = vadd.f32 %v5490, %v5729
      %v5876 = vadd.f32 %v5491, %v5734
      %v5877 = vadd.f32 %v5492, %v5739
      %v5878 = vadd.f32 %v5493, %v5744
      %v5879 = vadd.f32 %v5494, %v5749
      %v5880 = vadd.f32 %v5495, %v5754
      %v5881 = vadd.f32 %v5496, %v5759
      %v5882 = vadd.f32 %v5497, %v5764
      %v5883 = vadd.f32 %v5498, %v5769
      %v5884 = vadd.f32 %v5499, %v5774
      %v5885 = vadd.f32 %v5500, %v5779
      %v5886 = vadd.f32 %v5501, %v5784
      %v5887 = vadd.f32 %v5502, %v5789
      %v5888 = vadd.f32 %v5503, %v5794
      %v5889 = vadd.f32 %v5504, %v5799
      %v5890 = vadd.f32 %v5505, %v5804
      %v5891 = vadd.f32 %v5506, %v5809
      %v5892 = vadd.f32 %v5507, %v5814
      %v5893 = vadd.f32 %v5508, %v5819
      %v5894 = vadd.f32 %v5509, %v5824
      %v5895 = vadd.f32 %v5510, %v5829
      %v5896 = vadd.f32 %v5511, %v5834
      %v5897 = vadd.f32 %v5512, %v5839
      %v5898 = vadd.f32 %v5513, %v5844
      %v5899 = vadd.f32 %v5514, %v5849
      %v5900 = vadd.f32 %v5515, %v5854
      %v5901 = vadd.f32 %v5516, %v5859
      %v5902 = vadd.f32 %v5517, %v5864
      %v5903 = vadd.f32 %v5518, %v5869
      %v5904 = vld [vmem:[%s294 + $0x4] sm:$0xff]
      %v5905 = vld [vmem:[%s294 + $0xc] sm:$0xff]
      %v5906 = vld [vmem:[%s294 + $0x1c] sm:$0xff]
      %v5907 = vld [vmem:[%s294 + $0x24] sm:$0xff]
      %v5908 = vld [vmem:[%s294 + $0x34] sm:$0xff]
      %v5909 = vld [vmem:[%s294 + $0x3c] sm:$0xff]
      %v5910 = vld [vmem:[%s294 + $0x4c] sm:$0xff]
      %v5911 = vld [vmem:[%s294 + $0x54] sm:$0xff]
      %v5912 = vld [vmem:[%s294 + $0x64] sm:$0xff]
      %v5913 = vld [vmem:[%s294 + $0x6c] sm:$0xff]
      %v5914 = vld [vmem:[%s294 + $0x7c] sm:$0xff]
      %v5915 = vld [vmem:[%s294 + $0x84] sm:$0xff]
      %v5916 = vld [vmem:[%s294 + $0x94] sm:$0xff]
      %v5917 = vld [vmem:[%s294 + $0x9c] sm:$0xff]
      %v5918 = vld [vmem:[%s294 + $0xac] sm:$0xff]
      %v5919 = vld [vmem:[%s294 + $0xb4] sm:$0xff]
      %v5920 = vld [vmem:[%s294 + $0xc4] sm:$0xff]
      %v5921 = vld [vmem:[%s294 + $0xcc] sm:$0xff]
      %v5922 = vld [vmem:[%s294 + $0xdc] sm:$0xff]
      %v5923 = vld [vmem:[%s294 + $0xe4] sm:$0xff]
      %v5924 = vld [vmem:[%s294 + $0xf4] sm:$0xff]
      %v5925 = vld [vmem:[%s294 + $0xfc] sm:$0xff]
      %v5926 = vld [vmem:[%s294 + $0x10c] sm:$0xff]
      %v5927 = vld [vmem:[%s294 + $0x114] sm:$0xff]
      %v5928 = vld [vmem:[%s294 + $0x124] sm:$0xff]
      %v5929 = vld [vmem:[%s294 + $0x12c] sm:$0xff]
      %v5930 = vld [vmem:[%s294 + $0x13c] sm:$0xff]
      %v5931 = vld [vmem:[%s294 + $0x144] sm:$0xff]
      %v5932 = vld [vmem:[%s294 + $0x154] sm:$0xff]
      %v5933 = vld [vmem:[%s294 + $0x15c] sm:$0xff]
      %v5934 = vld [vmem:[%s294 + $0x16c] sm:$0xff]
      %v5935 = vld [vmem:[%s294 + $0x174] sm:$0xff]
      %v5937 = vsel %vm4106, %v5904, 0
      %v5940 = vsel %vm4106, %v5905, 0
      %v5943 = vsel %vm4106, %v5906, 0
      %v5946 = vsel %vm4106, %v5907, 0
      %v5949 = vsel %vm4106, %v5908, 0
      %v5952 = vsel %vm4106, %v5909, 0
      %v5955 = vsel %vm4106, %v5910, 0
      %v5958 = vsel %vm4106, %v5911, 0
      %v5961 = vsel %vm4106, %v5912, 0
      %v5964 = vsel %vm4106, %v5913, 0
      %v5967 = vsel %vm4106, %v5914, 0
      %v5970 = vsel %vm4106, %v5915, 0
      %v5973 = vsel %vm4106, %v5916, 0
      %v5976 = vsel %vm4106, %v5917, 0
      %v5979 = vsel %vm4106, %v5918, 0
      %v5982 = vsel %vm4106, %v5919, 0
      %v5985 = vsel %vm4106, %v5920, 0
      %v5988 = vsel %vm4106, %v5921, 0
      %v5991 = vsel %vm4106, %v5922, 0
      %v5994 = vsel %vm4106, %v5923, 0
      %v5997 = vsel %vm4106, %v5924, 0
      %v6000 = vsel %vm4106, %v5925, 0
      %v6003 = vsel %vm4106, %v5926, 0
      %v6006 = vsel %vm4106, %v5927, 0
      %v6009 = vsel %vm4106, %v5928, 0
      %v6012 = vsel %vm4106, %v5929, 0
      %v6015 = vsel %vm4106, %v5930, 0
      %v6018 = vsel %vm4106, %v5931, 0
      %v6021 = vsel %vm4106, %v5932, 0
      %v6024 = vsel %vm4106, %v5933, 0
      %v6027 = vsel %vm4106, %v5934, 0
      %v6030 = vsel %vm4106, %v5935, 0
      %6032 = vmatprep.subr.mxu0 0.0
      %6033 = vmatpush1.msra.mxu0 %v4037
      %6034 = vmatprep.subr.mxu0 0.0
      %6035 = vmatpush1.msra.mxu0 0.0
      %6036 = vmatprep.subr.mxu0 0.0
      %6037 = vmatpush1.msra.mxu0 0.0
      %6038 = vmatprep.subr.mxu0 0.0
      %6039 = vmatpush1.msra.mxu0 0.0
      %6040 = vmatprep.subr.mxu0 0.0
      %6041 = vmatpush1.msra.mxu0 0.0
      %6042 = vmatprep.subr.mxu0 0.0
      %6043 = vmatpush1.msra.mxu0 0.0
      %6044 = vmatprep.subr.mxu0 0.0
      %6045 = vmatpush1.msra.mxu0 0.0
      %6046 = vmatprep.subr.mxu0 0.0
      %6047 = vmatpush1.msra.mxu0 0.0
      %6048 = vmatprep.subr.mxu0 0.0
      %6049 = vmatpush1.msra.mxu0 0.0
      %6050 = vmatprep.subr.mxu0 0.0
      %6051 = vmatpush1.msra.mxu0 0.0
      %6052 = vmatprep.subr.mxu0 0.0
      %6053 = vmatpush1.msra.mxu0 0.0
      %6054 = vmatprep.subr.mxu0 0.0
      %6055 = vmatpush1.msra.mxu0 0.0
      %6056 = vmatprep.subr.mxu0 0.0
      %6057 = vmatpush1.msra.mxu0 0.0
      %6058 = vmatprep.subr.mxu0 0.0
      %6059 = vmatpush1.msra.mxu0 0.0
      %6060 = vmatprep.subr.mxu0 0.0
      %6061 = vmatpush1.msra.mxu0 0.0
      %6062 = vmatprep.subr.mxu0 0.0
      %6063 = vmatpush1.msra.mxu0 0.0
      %6064 = vmatprep.subr.mxu0 0.0
      %6065 = vmatpush1.msra.mxu0 0.0
      %6066 = vmatprep.subr.mxu0 0.0
      %6067 = vmatpush1.msra.mxu0 0.0
      %6068 = vmatprep.subr.mxu0 0.0
      %6069 = vmatpush1.msra.mxu0 0.0
      %6070 = vmatprep.subr.mxu0 0.0
      %6071 = vmatpush1.msra.mxu0 0.0
      %6072 = vmatprep.subr.mxu0 0.0
      %6073 = vmatpush1.msra.mxu0 0.0
      %6074 = vmatprep.subr.mxu0 0.0
      %6075 = vmatpush1.msra.mxu0 0.0
      %6076 = vmatprep.subr.mxu0 0.0
      %6077 = vmatpush1.msra.mxu0 0.0
      %6078 = vmatprep.subr.mxu0 0.0
      %6079 = vmatpush1.msra.mxu0 0.0
      %6080 = vmatprep.subr.mxu0 0.0
      %6081 = vmatpush1.msra.mxu0 0.0
      %6082 = vmatprep.subr.mxu0 0.0
      %6083 = vmatpush1.msra.mxu0 0.0
      %6084 = vmatprep.subr.mxu0 0.0
      %6085 = vmatpush1.msra.mxu0 0.0
      %6086 = vmatprep.subr.mxu0 0.0
      %6087 = vmatpush1.msra.mxu0 0.0
      %6088 = vmatprep.subr.mxu0 0.0
      %6089 = vmatpush1.msra.mxu0 0.0
      %6090 = vmatprep.subr.mxu0 0.0
      %6091 = vmatpush1.msra.mxu0 0.0
      %6092 = vmatprep.subr.mxu0 0.0
      %6093 = vmatpush1.msra.mxu0 0.0
      %6094 = vmatprep.subr.mxu0 0.0
      %6095 = vmatpush1.msra.mxu0 0.0
      %6096 = vmatprep.mubr.f32.mxu0 0.0
      %6097 = vmatmul.mubr.f32.gmra.mrb[0].mxu0 %v5937
      %v6098 = vpop.f32.mrb[0].mxu0
      %v6099 = vadd.f32 0.0, %v6098
      %v6100 = vpop.f32.mrb[0].mxu0
      %6101 = vmatprep.mubr.f32.mxu0 0.0
      %6102 = vmatmul.mubr.f32.gmra.mrb[0].mxu0 %v5940
      %v6103 = vpop.f32.mrb[0].mxu0
      %v6104 = vadd.f32 0.0, %v6103
      %v6105 = vpop.f32.mrb[0].mxu0
      %6106 = vmatprep.mubr.f32.mxu0 0.0
      %6107 = vmatmul.mubr.f32.gmra.mrb[0].mxu0 %v5943
      %v6108 = vpop.f32.mrb[0].mxu0
      %v6109 = vadd.f32 0.0, %v6108
      %v6110 = vpop.f32.mrb[0].mxu0
      %6111 = vmatprep.mubr.f32.mxu0 0.0
      %6112 = vmatmul.mubr.f32.gmra.mrb[0].mxu0 %v5946
      %v6113 = vpop.f32.mrb[0].mxu0
      %v6114 = vadd.f32 0.0, %v6113
      %v6115 = vpop.f32.mrb[0].mxu0
      %6116 = vmatprep.mubr.f32.mxu0 0.0
      %6117 = vmatmul.mubr.f32.gmra.mrb[0].mxu0 %v5949
      %v6118 = vpop.f32.mrb[0].mxu0
      %v6119 = vadd.f32 0.0, %v6118
      %v6120 = vpop.f32.mrb[0].mxu0
      %6121 = vmatprep.mubr.f32.mxu0 0.0
      %6122 = vmatmul.mubr.f32.gmra.mrb[0].mxu0 %v5952
      %v6123 = vpop.f32.mrb[0].mxu0
      %v6124 = vadd.f32 0.0, %v6123
      %v6125 = vpop.f32.mrb[0].mxu0
      %6126 = vmatprep.mubr.f32.mxu0 0.0
      %6127 = vmatmul.mubr.f32.gmra.mrb[0].mxu0 %v5955
      %v6128 = vpop.f32.mrb[0].mxu0
      %v6129 = vadd.f32 0.0, %v6128
      %v6130 = vpop.f32.mrb[0].mxu0
      %6131 = vmatprep.mubr.f32.mxu0 0.0
      %6132 = vmatmul.mubr.f32.gmra.mrb[0].mxu0 %v5958
      %v6133 = vpop.f32.mrb[0].mxu0
      %v6134 = vadd.f32 0.0, %v6133
      %v6135 = vpop.f32.mrb[0].mxu0
      %6136 = vmatprep.mubr.f32.mxu0 0.0
      %6137 = vmatmul.mubr.f32.gmra.mrb[0].mxu0 %v5961
      %v6138 = vpop.f32.mrb[0].mxu0
      %v6139 = vadd.f32 0.0, %v6138
      %v6140 = vpop.f32.mrb[0].mxu0
      %6141 = vmatprep.mubr.f32.mxu0 0.0
      %6142 = vmatmul.mubr.f32.gmra.mrb[0].mxu0 %v5964
      %v6143 = vpop.f32.mrb[0].mxu0
      %v6144 = vadd.f32 0.0, %v6143
      %v6145 = vpop.f32.mrb[0].mxu0
      %6146 = vmatprep.mubr.f32.mxu0 0.0
      %6147 = vmatmul.mubr.f32.gmra.mrb[0].mxu0 %v5967
      %v6148 = vpop.f32.mrb[0].mxu0
      %v6149 = vadd.f32 0.0, %v6148
      %v6150 = vpop.f32.mrb[0].mxu0
      %6151 = vmatprep.mubr.f32.mxu0 0.0
      %6152 = vmatmul.mubr.f32.gmra.mrb[0].mxu0 %v5970
      %v6153 = vpop.f32.mrb[0].mxu0
      %v6154 = vadd.f32 0.0, %v6153
      %v6155 = vpop.f32.mrb[0].mxu0
      %6156 = vmatprep.mubr.f32.mxu0 0.0
      %6157 = vmatmul.mubr.f32.gmra.mrb[0].mxu0 %v5973
      %v6158 = vpop.f32.mrb[0].mxu0
      %v6159 = vadd.f32 0.0, %v6158
      %v6160 = vpop.f32.mrb[0].mxu0
      %6161 = vmatprep.mubr.f32.mxu0 0.0
      %6162 = vmatmul.mubr.f32.gmra.mrb[0].mxu0 %v5976
      %v6163 = vpop.f32.mrb[0].mxu0
      %v6164 = vadd.f32 0.0, %v6163
      %v6165 = vpop.f32.mrb[0].mxu0
      %6166 = vmatprep.mubr.f32.mxu0 0.0
      %6167 = vmatmul.mubr.f32.gmra.mrb[0].mxu0 %v5979
      %v6168 = vpop.f32.mrb[0].mxu0
      %v6169 = vadd.f32 0.0, %v6168
      %v6170 = vpop.f32.mrb[0].mxu0
      %6171 = vmatprep.mubr.f32.mxu0 0.0
      %6172 = vmatmul.mubr.f32.gmra.mrb[0].mxu0 %v5982
      %v6173 = vpop.f32.mrb[0].mxu0
      %v6174 = vadd.f32 0.0, %v6173
      %v6175 = vpop.f32.mrb[0].mxu0
      %6176 = vmatprep.mubr.f32.mxu0 0.0
      %6177 = vmatmul.mubr.f32.gmra.mrb[0].mxu0 %v5985
      %v6178 = vpop.f32.mrb[0].mxu0
      %v6179 = vadd.f32 0.0, %v6178
      %v6180 = vpop.f32.mrb[0].mxu0
      %6181 = vmatprep.mubr.f32.mxu0 0.0
      %6182 = vmatmul.mubr.f32.gmra.mrb[0].mxu0 %v5988
      %v6183 = vpop.f32.mrb[0].mxu0
      %v6184 = vadd.f32 0.0, %v6183
      %v6185 = vpop.f32.mrb[0].mxu0
      %6186 = vmatprep.mubr.f32.mxu0 0.0
      %6187 = vmatmul.mubr.f32.gmra.mrb[0].mxu0 %v5991
      %v6188 = vpop.f32.mrb[0].mxu0
      %v6189 = vadd.f32 0.0, %v6188
      %v6190 = vpop.f32.mrb[0].mxu0
      %6191 = vmatprep.mubr.f32.mxu0 0.0
      %6192 = vmatmul.mubr.f32.gmra.mrb[0].mxu0 %v5994
      %v6193 = vpop.f32.mrb[0].mxu0
      %v6194 = vadd.f32 0.0, %v6193
      %v6195 = vpop.f32.mrb[0].mxu0
      %6196 = vmatprep.mubr.f32.mxu0 0.0
      %6197 = vmatmul.mubr.f32.gmra.mrb[0].mxu0 %v5997
      %v6198 = vpop.f32.mrb[0].mxu0
      %v6199 = vadd.f32 0.0, %v6198
      %v6200 = vpop.f32.mrb[0].mxu0
      %6201 = vmatprep.mubr.f32.mxu0 0.0
      %6202 = vmatmul.mubr.f32.gmra.mrb[0].mxu0 %v6000
      %v6203 = vpop.f32.mrb[0].mxu0
      %v6204 = vadd.f32 0.0, %v6203
      %v6205 = vpop.f32.mrb[0].mxu0
      %6206 = vmatprep.mubr.f32.mxu0 0.0
      %6207 = vmatmul.mubr.f32.gmra.mrb[0].mxu0 %v6003
      %v6208 = vpop.f32.mrb[0].mxu0
      %v6209 = vadd.f32 0.0, %v6208
      %v6210 = vpop.f32.mrb[0].mxu0
      %6211 = vmatprep.mubr.f32.mxu0 0.0
      %6212 = vmatmul.mubr.f32.gmra.mrb[0].mxu0 %v6006
      %v6213 = vpop.f32.mrb[0].mxu0
      %v6214 = vadd.f32 0.0, %v6213
      %v6215 = vpop.f32.mrb[0].mxu0
      %6216 = vmatprep.mubr.f32.mxu0 0.0
      %6217 = vmatmul.mubr.f32.gmra.mrb[0].mxu0 %v6009
      %v6218 = vpop.f32.mrb[0].mxu0
      %v6219 = vadd.f32 0.0, %v6218
      %v6220 = vpop.f32.mrb[0].mxu0
      %6221 = vmatprep.mubr.f32.mxu0 0.0
      %6222 = vmatmul.mubr.f32.gmra.mrb[0].mxu0 %v6012
      %v6223 = vpop.f32.mrb[0].mxu0
      %v6224 = vadd.f32 0.0, %v6223
      %v6225 = vpop.f32.mrb[0].mxu0
      %6226 = vmatprep.mubr.f32.mxu0 0.0
      %6227 = vmatmul.mubr.f32.gmra.mrb[0].mxu0 %v6015
      %v6228 = vpop.f32.mrb[0].mxu0
      %v6229 = vadd.f32 0.0, %v6228
      %v6230 = vpop.f32.mrb[0].mxu0
      %6231 = vmatprep.mubr.f32.mxu0 0.0
      %6232 = vmatmul.mubr.f32.gmra.mrb[0].mxu0 %v6018
      %v6233 = vpop.f32.mrb[0].mxu0
      %v6234 = vadd.f32 0.0, %v6233
      %v6235 = vpop.f32.mrb[0].mxu0
      %6236 = vmatprep.mubr.f32.mxu0 0.0
      %6237 = vmatmul.mubr.f32.gmra.mrb[0].mxu0 %v6021
      %v6238 = vpop.f32.mrb[0].mxu0
      %v6239 = vadd.f32 0.0, %v6238
      %v6240 = vpop.f32.mrb[0].mxu0
      %6241 = vmatprep.mubr.f32.mxu0 0.0
      %6242 = vmatmul.mubr.f32.gmra.mrb[0].mxu0 %v6024
      %v6243 = vpop.f32.mrb[0].mxu0
      %v6244 = vadd.f32 0.0, %v6243
      %v6245 = vpop.f32.mrb[0].mxu0
      %6246 = vmatprep.mubr.f32.mxu0 0.0
      %6247 = vmatmul.mubr.f32.gmra.mrb[0].mxu0 %v6027
      %v6248 = vpop.f32.mrb[0].mxu0
      %v6249 = vadd.f32 0.0, %v6248
      %v6250 = vpop.f32.mrb[0].mxu0
      %6251 = vmatprep.mubr.f32.mxu0 0.0
      %6252 = vmatmul.mubr.f32.gmra.mrb[0].mxu0 %v6030
      %v6253 = vpop.f32.mrb[0].mxu0
      %v6254 = vadd.f32 0.0, %v6253
      %v6255 = vpop.f32.mrb[0].mxu0
      %6256 = vdwg.mxu0
      %v6257 = vadd.f32 %v5872, %v6099
      %v6258 = vadd.f32 %v5873, %v6104
      %v6259 = vadd.f32 %v5874, %v6109
      %v6260 = vadd.f32 %v5875, %v6114
      %v6261 = vadd.f32 %v5876, %v6119
      %v6262 = vadd.f32 %v5877, %v6124
      %v6263 = vadd.f32 %v5878, %v6129
      %v6264 = vadd.f32 %v5879, %v6134
      %v6265 = vadd.f32 %v5880, %v6139
      %v6266 = vadd.f32 %v5881, %v6144
      %v6267 = vadd.f32 %v5882, %v6149
      %v6268 = vadd.f32 %v5883, %v6154
      %v6269 = vadd.f32 %v5884, %v6159
      %v6270 = vadd.f32 %v5885, %v6164
      %v6271 = vadd.f32 %v5886, %v6169
      %v6272 = vadd.f32 %v5887, %v6174
      %v6273 = vadd.f32 %v5888, %v6179
      %v6274 = vadd.f32 %v5889, %v6184
      %v6275 = vadd.f32 %v5890, %v6189
      %v6276 = vadd.f32 %v5891, %v6194
      %v6277 = vadd.f32 %v5892, %v6199
      %v6278 = vadd.f32 %v5893, %v6204
      %v6279 = vadd.f32 %v5894, %v6209
      %v6280 = vadd.f32 %v5895, %v6214
      %v6281 = vadd.f32 %v5896, %v6219
      %v6282 = vadd.f32 %v5897, %v6224
      %v6283 = vadd.f32 %v5898, %v6229
      %v6284 = vadd.f32 %v5899, %v6234
      %v6285 = vadd.f32 %v5900, %v6239
      %v6286 = vadd.f32 %v5901, %v6244
      %v6287 = vadd.f32 %v5902, %v6249
      %v6288 = vadd.f32 %v5903, %v6254
      %v6289 = vld [vmem:[%s2668] sm:$0xff]
      %v6290 = vld [vmem:[%s2668 + $0x8] sm:$0xff]
      %v6291 = vld [vmem:[%s2668 + $0x18] sm:$0xff]
      %v6292 = vld [vmem:[%s2668 + $0x20] sm:$0xff]
      %v6293 = vld [vmem:[%s2668 + $0x30] sm:$0xff]
      %v6294 = vld [vmem:[%s2668 + $0x38] sm:$0xff]
      %v6295 = vld [vmem:[%s2668 + $0x48] sm:$0xff]
      %v6296 = vld [vmem:[%s2668 + $0x50] sm:$0xff]
      %v6297 = vld [vmem:[%s2668 + $0x60] sm:$0xff]
      %v6298 = vld [vmem:[%s2668 + $0x68] sm:$0xff]
      %v6299 = vld [vmem:[%s2668 + $0x78] sm:$0xff]
      %v6300 = vld [vmem:[%s2668 + $0x80] sm:$0xff]
      %v6301 = vld [vmem:[%s2668 + $0x90] sm:$0xff]
      %v6302 = vld [vmem:[%s2668 + $0x98] sm:$0xff]
      %v6303 = vld [vmem:[%s2668 + $0xa8] sm:$0xff]
      %v6304 = vld [vmem:[%s2668 + $0xb0] sm:$0xff]
      %v6305 = vld [vmem:[%s2668 + $0xc0] sm:$0xff]
      %v6306 = vld [vmem:[%s2668 + $0xc8] sm:$0xff]
      %v6307 = vld [vmem:[%s2668 + $0xd8] sm:$0xff]
      %v6308 = vld [vmem:[%s2668 + $0xe0] sm:$0xff]
      %v6309 = vld [vmem:[%s2668 + $0xf0] sm:$0xff]
      %v6310 = vld [vmem:[%s2668 + $0xf8] sm:$0xff]
      %v6311 = vld [vmem:[%s2668 + $0x108] sm:$0xff]
      %v6312 = vld [vmem:[%s2668 + $0x110] sm:$0xff]
      %v6313 = vld [vmem:[%s2668 + $0x120] sm:$0xff]
      %v6314 = vld [vmem:[%s2668 + $0x128] sm:$0xff]
      %v6315 = vld [vmem:[%s2668 + $0x138] sm:$0xff]
      %v6316 = vld [vmem:[%s2668 + $0x140] sm:$0xff]
      %v6317 = vld [vmem:[%s2668 + $0x150] sm:$0xff]
      %v6318 = vld [vmem:[%s2668 + $0x158] sm:$0xff]
      %v6319 = vld [vmem:[%s2668 + $0x168] sm:$0xff]
      %v6320 = vld [vmem:[%s2668 + $0x170] sm:$0xff]
      %v6322 = vsel %vm4106, %v6289, 0
      %v6325 = vsel %vm4106, %v6290, 0
      %v6328 = vsel %vm4106, %v6291, 0
      %v6331 = vsel %vm4106, %v6292, 0
      %v6334 = vsel %vm4106, %v6293, 0
      %v6337 = vsel %vm4106, %v6294, 0
      %v6340 = vsel %vm4106, %v6295, 0
      %v6343 = vsel %vm4106, %v6296, 0
      %v6346 = vsel %vm4106, %v6297, 0
      %v6349 = vsel %vm4106, %v6298, 0
      %v6352 = vsel %vm4106, %v6299, 0
      %v6355 = vsel %vm4106, %v6300, 0
      %v6358 = vsel %vm4106, %v6301, 0
      %v6361 = vsel %vm4106, %v6302, 0
      %v6364 = vsel %vm4106, %v6303, 0
      %v6367 = vsel %vm4106, %v6304, 0
      %v6370 = vsel %vm4106, %v6305, 0
      %v6373 = vsel %vm4106, %v6306, 0
      %v6376 = vsel %vm4106, %v6307, 0
      %v6379 = vsel %vm4106, %v6308, 0
      %v6382 = vsel %vm4106, %v6309, 0
      %v6385 = vsel %vm4106, %v6310, 0
      %v6388 = vsel %vm4106, %v6311, 0
      %v6391 = vsel %vm4106, %v6312, 0
      %v6394 = vsel %vm4106, %v6313, 0
      %v6397 = vsel %vm4106, %v6314, 0
      %v6400 = vsel %vm4106, %v6315, 0
      %v6403 = vsel %vm4106, %v6316, 0
      %v6406 = vsel %vm4106, %v6317, 0
      %v6409 = vsel %vm4106, %v6318, 0
      %v6412 = vsel %vm4106, %v6319, 0
      %v6415 = vsel %vm4106, %v6320, 0
      %6417 = vmatprep.subr.mxu0 0.0
      %6418 = vmatpush1.msra.mxu0 %v4038
      %6419 = vmatprep.subr.mxu0 0.0
      %6420 = vmatpush1.msra.mxu0 0.0
      %6421 = vmatprep.subr.mxu0 0.0
      %6422 = vmatpush1.msra.mxu0 0.0
      %6423 = vmatprep.subr.mxu0 0.0
      %6424 = vmatpush1.msra.mxu0 0.0
      %6425 = vmatprep.subr.mxu0 0.0
      %6426 = vmatpush1.msra.mxu0 0.0
      %6427 = vmatprep.subr.mxu0 0.0
      %6428 = vmatpush1.msra.mxu0 0.0
      %6429 = vmatprep.subr.mxu0 0.0
      %6430 = vmatpush1.msra.mxu0 0.0
      %6431 = vmatprep.subr.mxu0 0.0
      %6432 = vmatpush1.msra.mxu0 0.0
      %6433 = vmatprep.subr.mxu0 0.0
      %6434 = vmatpush1.msra.mxu0 0.0
      %6435 = vmatprep.subr.mxu0 0.0
      %6436 = vmatpush1.msra.mxu0 0.0
      %6437 = vmatprep.subr.mxu0 0.0
      %6438 = vmatpush1.msra.mxu0 0.0
      %6439 = vmatprep.subr.mxu0 0.0
      %6440 = vmatpush1.msra.mxu0 0.0
      %6441 = vmatprep.subr.mxu0 0.0
      %6442 = vmatpush1.msra.mxu0 0.0
      %6443 = vmatprep.subr.mxu0 0.0
      %6444 = vmatpush1.msra.mxu0 0.0
      %6445 = vmatprep.subr.mxu0 0.0
      %6446 = vmatpush1.msra.mxu0 0.0
      %6447 = vmatprep.subr.mxu0 0.0
      %6448 = vmatpush1.msra.mxu0 0.0
      %6449 = vmatprep.subr.mxu0 0.0
      %6450 = vmatpush1.msra.mxu0 0.0
      %6451 = vmatprep.subr.mxu0 0.0
      %6452 = vmatpush1.msra.mxu0 0.0
      %6453 = vmatprep.subr.mxu0 0.0
      %6454 = vmatpush1.msra.mxu0 0.0
      %6455 = vmatprep.subr.mxu0 0.0
      %6456 = vmatpush1.msra.mxu0 0.0
      %6457 = vmatprep.subr.mxu0 0.0
      %6458 = vmatpush1.msra.mxu0 0.0
      %6459 = vmatprep.subr.mxu0 0.0
      %6460 = vmatpush1.msra.mxu0 0.0
      %6461 = vmatprep.subr.mxu0 0.0
      %6462 = vmatpush1.msra.mxu0 0.0
      %6463 = vmatprep.subr.mxu0 0.0
      %6464 = vmatpush1.msra.mxu0 0.0
      %6465 = vmatprep.subr.mxu0 0.0
      %6466 = vmatpush1.msra.mxu0 0.0
      %6467 = vmatprep.subr.mxu0 0.0
      %6468 = vmatpush1.msra.mxu0 0.0
      %6469 = vmatprep.subr.mxu0 0.0
      %6470 = vmatpush1.msra.mxu0 0.0
      %6471 = vmatprep.subr.mxu0 0.0
      %6472 = vmatpush1.msra.mxu0 0.0
      %6473 = vmatprep.subr.mxu0 0.0
      %6474 = vmatpush1.msra.mxu0 0.0
      %6475 = vmatprep.subr.mxu0 0.0
      %6476 = vmatpush1.msra.mxu0 0.0
      %6477 = vmatprep.subr.mxu0 0.0
      %6478 = vmatpush1.msra.mxu0 0.0
      %6479 = vmatprep.subr.mxu0 0.0
      %6480 = vmatpush1.msra.mxu0 0.0
      %6481 = vmatprep.mubr.f32.mxu0 0.0
      %6482 = vmatmul.mubr.f32.gmra.mrb[0].mxu0 %v6322
      %v6483 = vpop.f32.mrb[0].mxu0
      %v6484 = vadd.f32 0.0, %v6483
      %v6485 = vpop.f32.mrb[0].mxu0
      %6486 = vmatprep.mubr.f32.mxu0 0.0
      %6487 = vmatmul.mubr.f32.gmra.mrb[0].mxu0 %v6325
      %v6488 = vpop.f32.mrb[0].mxu0
      %v6489 = vadd.f32 0.0, %v6488
      %v6490 = vpop.f32.mrb[0].mxu0
      %6491 = vmatprep.mubr.f32.mxu0 0.0
      %6492 = vmatmul.mubr.f32.gmra.mrb[0].mxu0 %v6328
      %v6493 = vpop.f32.mrb[0].mxu0
      %v6494 = vadd.f32 0.0, %v6493
      %v6495 = vpop.f32.mrb[0].mxu0
      %6496 = vmatprep.mubr.f32.mxu0 0.0
      %6497 = vmatmul.mubr.f32.gmra.mrb[0].mxu0 %v6331
      %v6498 = vpop.f32.mrb[0].mxu0
      %v6499 = vadd.f32 0.0, %v6498
      %v6500 = vpop.f32.mrb[0].mxu0
      %6501 = vmatprep.mubr.f32.mxu0 0.0
      %6502 = vmatmul.mubr.f32.gmra.mrb[0].mxu0 %v6334
      %v6503 = vpop.f32.mrb[0].mxu0
      %v6504 = vadd.f32 0.0, %v6503
      %v6505 = vpop.f32.mrb[0].mxu0
      %6506 = vmatprep.mubr.f32.mxu0 0.0
      %6507 = vmatmul.mubr.f32.gmra.mrb[0].mxu0 %v6337
      %v6508 = vpop.f32.mrb[0].mxu0
      %v6509 = vadd.f32 0.0, %v6508
      %v6510 = vpop.f32.mrb[0].mxu0
      %6511 = vmatprep.mubr.f32.mxu0 0.0
      %6512 = vmatmul.mubr.f32.gmra.mrb[0].mxu0 %v6340
      %v6513 = vpop.f32.mrb[0].mxu0
      %v6514 = vadd.f32 0.0, %v6513
      %v6515 = vpop.f32.mrb[0].mxu0
      %6516 = vmatprep.mubr.f32.mxu0 0.0
      %6517 = vmatmul.mubr.f32.gmra.mrb[0].mxu0 %v6343
      %v6518 = vpop.f32.mrb[0].mxu0
      %v6519 = vadd.f32 0.0, %v6518
      %v6520 = vpop.f32.mrb[0].mxu0
      %6521 = vmatprep.mubr.f32.mxu0 0.0
      %6522 = vmatmul.mubr.f32.gmra.mrb[0].mxu0 %v6346
      %v6523 = vpop.f32.mrb[0].mxu0
      %v6524 = vadd.f32 0.0, %v6523
      %v6525 = vpop.f32.mrb[0].mxu0
      %6526 = vmatprep.mubr.f32.mxu0 0.0
      %6527 = vmatmul.mubr.f32.gmra.mrb[0].mxu0 %v6349
      %v6528 = vpop.f32.mrb[0].mxu0
      %v6529 = vadd.f32 0.0, %v6528
      %v6530 = vpop.f32.mrb[0].mxu0
      %6531 = vmatprep.mubr.f32.mxu0 0.0
      %6532 = vmatmul.mubr.f32.gmra.mrb[0].mxu0 %v6352
      %v6533 = vpop.f32.mrb[0].mxu0
      %v6534 = vadd.f32 0.0, %v6533
      %v6535 = vpop.f32.mrb[0].mxu0
      %6536 = vmatprep.mubr.f32.mxu0 0.0
      %6537 = vmatmul.mubr.f32.gmra.mrb[0].mxu0 %v6355
      %v6538 = vpop.f32.mrb[0].mxu0
      %v6539 = vadd.f32 0.0, %v6538
      %v6540 = vpop.f32.mrb[0].mxu0
      %6541 = vmatprep.mubr.f32.mxu0 0.0
      %6542 = vmatmul.mubr.f32.gmra.mrb[0].mxu0 %v6358
      %v6543 = vpop.f32.mrb[0].mxu0
      %v6544 = vadd.f32 0.0, %v6543
      %v6545 = vpop.f32.mrb[0].mxu0
      %6546 = vmatprep.mubr.f32.mxu0 0.0
      %6547 = vmatmul.mubr.f32.gmra.mrb[0].mxu0 %v6361
      %v6548 = vpop.f32.mrb[0].mxu0
      %v6549 = vadd.f32 0.0, %v6548
      %v6550 = vpop.f32.mrb[0].mxu0
      %6551 = vmatprep.mubr.f32.mxu0 0.0
      %6552 = vmatmul.mubr.f32.gmra.mrb[0].mxu0 %v6364
      %v6553 = vpop.f32.mrb[0].mxu0
      %v6554 = vadd.f32 0.0, %v6553
      %v6555 = vpop.f32.mrb[0].mxu0
      %6556 = vmatprep.mubr.f32.mxu0 0.0
      %6557 = vmatmul.mubr.f32.gmra.mrb[0].mxu0 %v6367
      %v6558 = vpop.f32.mrb[0].mxu0
      %v6559 = vadd.f32 0.0, %v6558
      %v6560 = vpop.f32.mrb[0].mxu0
      %6561 = vmatprep.mubr.f32.mxu0 0.0
      %6562 = vmatmul.mubr.f32.gmra.mrb[0].mxu0 %v6370
      %v6563 = vpop.f32.mrb[0].mxu0
      %v6564 = vadd.f32 0.0, %v6563
      %v6565 = vpop.f32.mrb[0].mxu0
      %6566 = vmatprep.mubr.f32.mxu0 0.0
      %6567 = vmatmul.mubr.f32.gmra.mrb[0].mxu0 %v6373
      %v6568 = vpop.f32.mrb[0].mxu0
      %v6569 = vadd.f32 0.0, %v6568
      %v6570 = vpop.f32.mrb[0].mxu0
      %6571 = vmatprep.mubr.f32.mxu0 0.0
      %6572 = vmatmul.mubr.f32.gmra.mrb[0].mxu0 %v6376
      %v6573 = vpop.f32.mrb[0].mxu0
      %v6574 = vadd.f32 0.0, %v6573
      %v6575 = vpop.f32.mrb[0].mxu0
      %6576 = vmatprep.mubr.f32.mxu0 0.0
      %6577 = vmatmul.mubr.f32.gmra.mrb[0].mxu0 %v6379
      %v6578 = vpop.f32.mrb[0].mxu0
      %v6579 = vadd.f32 0.0, %v6578
      %v6580 = vpop.f32.mrb[0].mxu0
      %6581 = vmatprep.mubr.f32.mxu0 0.0
      %6582 = vmatmul.mubr.f32.gmra.mrb[0].mxu0 %v6382
      %v6583 = vpop.f32.mrb[0].mxu0
      %v6584 = vadd.f32 0.0, %v6583
      %v6585 = vpop.f32.mrb[0].mxu0
      %6586 = vmatprep.mubr.f32.mxu0 0.0
      %6587 = vmatmul.mubr.f32.gmra.mrb[0].mxu0 %v6385
      %v6588 = vpop.f32.mrb[0].mxu0
      %v6589 = vadd.f32 0.0, %v6588
      %v6590 = vpop.f32.mrb[0].mxu0
      %6591 = vmatprep.mubr.f32.mxu0 0.0
      %6592 = vmatmul.mubr.f32.gmra.mrb[0].mxu0 %v6388
      %v6593 = vpop.f32.mrb[0].mxu0
      %v6594 = vadd.f32 0.0, %v6593
      %v6595 = vpop.f32.mrb[0].mxu0
      %6596 = vmatprep.mubr.f32.mxu0 0.0
      %6597 = vmatmul.mubr.f32.gmra.mrb[0].mxu0 %v6391
      %v6598 = vpop.f32.mrb[0].mxu0
      %v6599 = vadd.f32 0.0, %v6598
      %v6600 = vpop.f32.mrb[0].mxu0
      %6601 = vmatprep.mubr.f32.mxu0 0.0
      %6602 = vmatmul.mubr.f32.gmra.mrb[0].mxu0 %v6394
      %v6603 = vpop.f32.mrb[0].mxu0
      %v6604 = vadd.f32 0.0, %v6603
      %v6605 = vpop.f32.mrb[0].mxu0
      %6606 = vmatprep.mubr.f32.mxu0 0.0
      %6607 = vmatmul.mubr.f32.gmra.mrb[0].mxu0 %v6397
      %v6608 = vpop.f32.mrb[0].mxu0
      %v6609 = vadd.f32 0.0, %v6608
      %v6610 = vpop.f32.mrb[0].mxu0
      %6611 = vmatprep.mubr.f32.mxu0 0.0
      %6612 = vmatmul.mubr.f32.gmra.mrb[0].mxu0 %v6400
      %v6613 = vpop.f32.mrb[0].mxu0
      %v6614 = vadd.f32 0.0, %v6613
      %v6615 = vpop.f32.mrb[0].mxu0
      %6616 = vmatprep.mubr.f32.mxu0 0.0
      %6617 = vmatmul.mubr.f32.gmra.mrb[0].mxu0 %v6403
      %v6618 = vpop.f32.mrb[0].mxu0
      %v6619 = vadd.f32 0.0, %v6618
      %v6620 = vpop.f32.mrb[0].mxu0
      %6621 = vmatprep.mubr.f32.mxu0 0.0
      %6622 = vmatmul.mubr.f32.gmra.mrb[0].mxu0 %v6406
      %v6623 = vpop.f32.mrb[0].mxu0
      %v6624 = vadd.f32 0.0, %v6623
      %v6625 = vpop.f32.mrb[0].mxu0
      %6626 = vmatprep.mubr.f32.mxu0 0.0
      %6627 = vmatmul.mubr.f32.gmra.mrb[0].mxu0 %v6409
      %v6628 = vpop.f32.mrb[0].mxu0
      %v6629 = vadd.f32 0.0, %v6628
      %v6630 = vpop.f32.mrb[0].mxu0
      %6631 = vmatprep.mubr.f32.mxu0 0.0
      %6632 = vmatmul.mubr.f32.gmra.mrb[0].mxu0 %v6412
      %v6633 = vpop.f32.mrb[0].mxu0
      %v6634 = vadd.f32 0.0, %v6633
      %v6635 = vpop.f32.mrb[0].mxu0
      %6636 = vmatprep.mubr.f32.mxu0 0.0
      %6637 = vmatmul.mubr.f32.gmra.mrb[0].mxu0 %v6415
      %v6638 = vpop.f32.mrb[0].mxu0
      %v6639 = vadd.f32 0.0, %v6638
      %v6640 = vpop.f32.mrb[0].mxu0
      %6641 = vdwg.mxu0
      %v6642 = vadd.f32 %v6257, %v6484
      %v6643 = vadd.f32 %v6258, %v6489
      %v6644 = vadd.f32 %v6259, %v6494
      %v6645 = vadd.f32 %v6260, %v6499
      %v6646 = vadd.f32 %v6261, %v6504
      %v6647 = vadd.f32 %v6262, %v6509
      %v6648 = vadd.f32 %v6263, %v6514
      %v6649 = vadd.f32 %v6264, %v6519
      %v6650 = vadd.f32 %v6265, %v6524
      %v6651 = vadd.f32 %v6266, %v6529
      %v6652 = vadd.f32 %v6267, %v6534
      %v6653 = vadd.f32 %v6268, %v6539
      %v6654 = vadd.f32 %v6269, %v6544
      %v6655 = vadd.f32 %v6270, %v6549
      %v6656 = vadd.f32 %v6271, %v6554
      %v6657 = vadd.f32 %v6272, %v6559
      %v6658 = vadd.f32 %v6273, %v6564
      %v6659 = vadd.f32 %v6274, %v6569
      %v6660 = vadd.f32 %v6275, %v6574
      %v6661 = vadd.f32 %v6276, %v6579
      %v6662 = vadd.f32 %v6277, %v6584
      %v6663 = vadd.f32 %v6278, %v6589
      %v6664 = vadd.f32 %v6279, %v6594
      %v6665 = vadd.f32 %v6280, %v6599
      %v6666 = vadd.f32 %v6281, %v6604
      %v6667 = vadd.f32 %v6282, %v6609
      %v6668 = vadd.f32 %v6283, %v6614
      %v6669 = vadd.f32 %v6284, %v6619
      %v6670 = vadd.f32 %v6285, %v6624
      %v6671 = vadd.f32 %v6286, %v6629
      %v6672 = vadd.f32 %v6287, %v6634
      %v6673 = vadd.f32 %v6288, %v6639
      %v6674 = vld [vmem:[%s2668 + $0x2] sm:$0xff]
      %v6675 = vld [vmem:[%s2668 + $0xa] sm:$0xff]
      %v6676 = vld [vmem:[%s2668 + $0x1a] sm:$0xff]
      %v6677 = vld [vmem:[%s2668 + $0x22] sm:$0xff]
      %v6678 = vld [vmem:[%s2668 + $0x32] sm:$0xff]
      %v6679 = vld [vmem:[%s2668 + $0x3a] sm:$0xff]
      %v6680 = vld [vmem:[%s2668 + $0x4a] sm:$0xff]
      %v6681 = vld [vmem:[%s2668 + $0x52] sm:$0xff]
      %v6682 = vld [vmem:[%s2668 + $0x62] sm:$0xff]
      %v6683 = vld [vmem:[%s2668 + $0x6a] sm:$0xff]
      %v6684 = vld [vmem:[%s2668 + $0x7a] sm:$0xff]
      %v6685 = vld [vmem:[%s2668 + $0x82] sm:$0xff]
      %v6686 = vld [vmem:[%s2668 + $0x92] sm:$0xff]
      %v6687 = vld [vmem:[%s2668 + $0x9a] sm:$0xff]
      %v6688 = vld [vmem:[%s2668 + $0xaa] sm:$0xff]
      %v6689 = vld [vmem:[%s2668 + $0xb2] sm:$0xff]
      %v6690 = vld [vmem:[%s2668 + $0xc2] sm:$0xff]
      %v6691 = vld [vmem:[%s2668 + $0xca] sm:$0xff]
      %v6692 = vld [vmem:[%s2668 + $0xda] sm:$0xff]
      %v6693 = vld [vmem:[%s2668 + $0xe2] sm:$0xff]
      %v6694 = vld [vmem:[%s2668 + $0xf2] sm:$0xff]
      %v6695 = vld [vmem:[%s2668 + $0xfa] sm:$0xff]
      %v6696 = vld [vmem:[%s2668 + $0x10a] sm:$0xff]
      %v6697 = vld [vmem:[%s2668 + $0x112] sm:$0xff]
      %v6698 = vld [vmem:[%s2668 + $0x122] sm:$0xff]
      %v6699 = vld [vmem:[%s2668 + $0x12a] sm:$0xff]
      %v6700 = vld [vmem:[%s2668 + $0x13a] sm:$0xff]
      %v6701 = vld [vmem:[%s2668 + $0x142] sm:$0xff]
      %v6702 = vld [vmem:[%s2668 + $0x152] sm:$0xff]
      %v6703 = vld [vmem:[%s2668 + $0x15a] sm:$0xff]
      %v6704 = vld [vmem:[%s2668 + $0x16a] sm:$0xff]
      %v6705 = vld [vmem:[%s2668 + $0x172] sm:$0xff]
      %v6707 = vsel %vm4106, %v6674, 0
      %v6710 = vsel %vm4106, %v6675, 0
      %v6713 = vsel %vm4106, %v6676, 0
      %v6716 = vsel %vm4106, %v6677, 0
      %v6719 = vsel %vm4106, %v6678, 0
      %v6722 = vsel %vm4106, %v6679, 0
      %v6725 = vsel %vm4106, %v6680, 0
      %v6728 = vsel %vm4106, %v6681, 0
      %v6731 = vsel %vm4106, %v6682, 0
      %v6734 = vsel %vm4106, %v6683, 0
      %v6737 = vsel %vm4106, %v6684, 0
      %v6740 = vsel %vm4106, %v6685, 0
      %v6743 = vsel %vm4106, %v6686, 0
      %v6746 = vsel %vm4106, %v6687, 0
      %v6749 = vsel %vm4106, %v6688, 0
      %v6752 = vsel %vm4106, %v6689, 0
      %v6755 = vsel %vm4106, %v6690, 0
      %v6758 = vsel %vm4106, %v6691, 0
      %v6761 = vsel %vm4106, %v6692, 0
      %v6764 = vsel %vm4106, %v6693, 0
      %v6767 = vsel %vm4106, %v6694, 0
      %v6770 = vsel %vm4106, %v6695, 0
      %v6773 = vsel %vm4106, %v6696, 0
      %v6776 = vsel %vm4106, %v6697, 0
      %v6779 = vsel %vm4106, %v6698, 0
      %v6782 = vsel %vm4106, %v6699, 0
      %v6785 = vsel %vm4106, %v6700, 0
      %v6788 = vsel %vm4106, %v6701, 0
      %v6791 = vsel %vm4106, %v6702, 0
      %v6794 = vsel %vm4106, %v6703, 0
      %v6797 = vsel %vm4106, %v6704, 0
      %v6800 = vsel %vm4106, %v6705, 0
      %6802 = vmatprep.subr.mxu0 0.0
      %6803 = vmatpush1.msra.mxu0 %v4039
      %6804 = vmatprep.subr.mxu0 0.0
      %6805 = vmatpush1.msra.mxu0 0.0
      %6806 = vmatprep.subr.mxu0 0.0
      %6807 = vmatpush1.msra.mxu0 0.0
      %6808 = vmatprep.subr.mxu0 0.0
      %6809 = vmatpush1.msra.mxu0 0.0
      %6810 = vmatprep.subr.mxu0 0.0
      %6811 = vmatpush1.msra.mxu0 0.0
      %6812 = vmatprep.subr.mxu0 0.0
      %6813 = vmatpush1.msra.mxu0 0.0
      %6814 = vmatprep.subr.mxu0 0.0
      %6815 = vmatpush1.msra.mxu0 0.0
      %6816 = vmatprep.subr.mxu0 0.0
      %6817 = vmatpush1.msra.mxu0 0.0
      %6818 = vmatprep.subr.mxu0 0.0
      %6819 = vmatpush1.msra.mxu0 0.0
      %6820 = vmatprep.subr.mxu0 0.0
      %6821 = vmatpush1.msra.mxu0 0.0
      %6822 = vmatprep.subr.mxu0 0.0
      %6823 = vmatpush1.msra.mxu0 0.0
      %6824 = vmatprep.subr.mxu0 0.0
      %6825 = vmatpush1.msra.mxu0 0.0
      %6826 = vmatprep.subr.mxu0 0.0
      %6827 = vmatpush1.msra.mxu0 0.0
      %6828 = vmatprep.subr.mxu0 0.0
      %6829 = vmatpush1.msra.mxu0 0.0
      %6830 = vmatprep.subr.mxu0 0.0
      %6831 = vmatpush1.msra.mxu0 0.0
      %6832 = vmatprep.subr.mxu0 0.0
      %6833 = vmatpush1.msra.mxu0 0.0
      %6834 = vmatprep.subr.mxu0 0.0
      %6835 = vmatpush1.msra.mxu0 0.0
      %6836 = vmatprep.subr.mxu0 0.0
      %6837 = vmatpush1.msra.mxu0 0.0
      %6838 = vmatprep.subr.mxu0 0.0
      %6839 = vmatpush1.msra.mxu0 0.0
      %6840 = vmatprep.subr.mxu0 0.0
      %6841 = vmatpush1.msra.mxu0 0.0
      %6842 = vmatprep.subr.mxu0 0.0
      %6843 = vmatpush1.msra.mxu0 0.0
      %6844 = vmatprep.subr.mxu0 0.0
      %6845 = vmatpush1.msra.mxu0 0.0
      %6846 = vmatprep.subr.mxu0 0.0
      %6847 = vmatpush1.msra.mxu0 0.0
      %6848 = vmatprep.subr.mxu0 0.0
      %6849 = vmatpush1.msra.mxu0 0.0
      %6850 = vmatprep.subr.mxu0 0.0
      %6851 = vmatpush1.msra.mxu0 0.0
      %6852 = vmatprep.subr.mxu0 0.0
      %6853 = vmatpush1.msra.mxu0 0.0
      %6854 = vmatprep.subr.mxu0 0.0
      %6855 = vmatpush1.msra.mxu0 0.0
      %6856 = vmatprep.subr.mxu0 0.0
      %6857 = vmatpush1.msra.mxu0 0.0
      %6858 = vmatprep.subr.mxu0 0.0
      %6859 = vmatpush1.msra.mxu0 0.0
      %6860 = vmatprep.subr.mxu0 0.0
      %6861 = vmatpush1.msra.mxu0 0.0
      %6862 = vmatprep.subr.mxu0 0.0
      %6863 = vmatpush1.msra.mxu0 0.0
      %6864 = vmatprep.subr.mxu0 0.0
      %6865 = vmatpush1.msra.mxu0 0.0
      %6866 = vmatprep.mubr.f32.mxu0 0.0
      %6867 = vmatmul.mubr.f32.gmra.mrb[0].mxu0 %v6707
      %v6868 = vpop.f32.mrb[0].mxu0
      %v6869 = vadd.f32 0.0, %v6868
      %v6870 = vpop.f32.mrb[0].mxu0
      %6871 = vmatprep.mubr.f32.mxu0 0.0
      %6872 = vmatmul.mubr.f32.gmra.mrb[0].mxu0 %v6710
      %v6873 = vpop.f32.mrb[0].mxu0
      %v6874 = vadd.f32 0.0, %v6873
      %v6875 = vpop.f32.mrb[0].mxu0
      %6876 = vmatprep.mubr.f32.mxu0 0.0
      %6877 = vmatmul.mubr.f32.gmra.mrb[0].mxu0 %v6713
      %v6878 = vpop.f32.mrb[0].mxu0
      %v6879 = vadd.f32 0.0, %v6878
      %v6880 = vpop.f32.mrb[0].mxu0
      %6881 = vmatprep.mubr.f32.mxu0 0.0
      %6882 = vmatmul.mubr.f32.gmra.mrb[0].mxu0 %v6716
      %v6883 = vpop.f32.mrb[0].mxu0
      %v6884 = vadd.f32 0.0, %v6883
      %v6885 = vpop.f32.mrb[0].mxu0
      %6886 = vmatprep.mubr.f32.mxu0 0.0
      %6887 = vmatmul.mubr.f32.gmra.mrb[0].mxu0 %v6719
      %v6888 = vpop.f32.mrb[0].mxu0
      %v6889 = vadd.f32 0.0, %v6888
      %v6890 = vpop.f32.mrb[0].mxu0
      %6891 = vmatprep.mubr.f32.mxu0 0.0
      %6892 = vmatmul.mubr.f32.gmra.mrb[0].mxu0 %v6722
      %v6893 = vpop.f32.mrb[0].mxu0
      %v6894 = vadd.f32 0.0, %v6893
      %v6895 = vpop.f32.mrb[0].mxu0
      %6896 = vmatprep.mubr.f32.mxu0 0.0
      %6897 = vmatmul.mubr.f32.gmra.mrb[0].mxu0 %v6725
      %v6898 = vpop.f32.mrb[0].mxu0
      %v6899 = vadd.f32 0.0, %v6898
      %v6900 = vpop.f32.mrb[0].mxu0
      %6901 = vmatprep.mubr.f32.mxu0 0.0
      %6902 = vmatmul.mubr.f32.gmra.mrb[0].mxu0 %v6728
      %v6903 = vpop.f32.mrb[0].mxu0
      %v6904 = vadd.f32 0.0, %v6903
      %v6905 = vpop.f32.mrb[0].mxu0
      %6906 = vmatprep.mubr.f32.mxu0 0.0
      %6907 = vmatmul.mubr.f32.gmra.mrb[0].mxu0 %v6731
      %v6908 = vpop.f32.mrb[0].mxu0
      %v6909 = vadd.f32 0.0, %v6908
      %v6910 = vpop.f32.mrb[0].mxu0
      %6911 = vmatprep.mubr.f32.mxu0 0.0
      %6912 = vmatmul.mubr.f32.gmra.mrb[0].mxu0 %v6734
      %v6913 = vpop.f32.mrb[0].mxu0
      %v6914 = vadd.f32 0.0, %v6913
      %v6915 = vpop.f32.mrb[0].mxu0
      %6916 = vmatprep.mubr.f32.mxu0 0.0
      %6917 = vmatmul.mubr.f32.gmra.mrb[0].mxu0 %v6737
      %v6918 = vpop.f32.mrb[0].mxu0
      %v6919 = vadd.f32 0.0, %v6918
      %v6920 = vpop.f32.mrb[0].mxu0
      %6921 = vmatprep.mubr.f32.mxu0 0.0
      %6922 = vmatmul.mubr.f32.gmra.mrb[0].mxu0 %v6740
      %v6923 = vpop.f32.mrb[0].mxu0
      %v6924 = vadd.f32 0.0, %v6923
      %v6925 = vpop.f32.mrb[0].mxu0
      %6926 = vmatprep.mubr.f32.mxu0 0.0
      %6927 = vmatmul.mubr.f32.gmra.mrb[0].mxu0 %v6743
      %v6928 = vpop.f32.mrb[0].mxu0
      %v6929 = vadd.f32 0.0, %v6928
      %v6930 = vpop.f32.mrb[0].mxu0
      %6931 = vmatprep.mubr.f32.mxu0 0.0
      %6932 = vmatmul.mubr.f32.gmra.mrb[0].mxu0 %v6746
      %v6933 = vpop.f32.mrb[0].mxu0
      %v6934 = vadd.f32 0.0, %v6933
      %v6935 = vpop.f32.mrb[0].mxu0
      %6936 = vmatprep.mubr.f32.mxu0 0.0
      %6937 = vmatmul.mubr.f32.gmra.mrb[0].mxu0 %v6749
      %v6938 = vpop.f32.mrb[0].mxu0
      %v6939 = vadd.f32 0.0, %v6938
      %v6940 = vpop.f32.mrb[0].mxu0
      %6941 = vmatprep.mubr.f32.mxu0 0.0
      %6942 = vmatmul.mubr.f32.gmra.mrb[0].mxu0 %v6752
      %v6943 = vpop.f32.mrb[0].mxu0
      %v6944 = vadd.f32 0.0, %v6943
      %v6945 = vpop.f32.mrb[0].mxu0
      %6946 = vmatprep.mubr.f32.mxu0 0.0
      %6947 = vmatmul.mubr.f32.gmra.mrb[0].mxu0 %v6755
      %v6948 = vpop.f32.mrb[0].mxu0
      %v6949 = vadd.f32 0.0, %v6948
      %v6950 = vpop.f32.mrb[0].mxu0
      %6951 = vmatprep.mubr.f32.mxu0 0.0
      %6952 = vmatmul.mubr.f32.gmra.mrb[0].mxu0 %v6758
      %v6953 = vpop.f32.mrb[0].mxu0
      %v6954 = vadd.f32 0.0, %v6953
      %v6955 = vpop.f32.mrb[0].mxu0
      %6956 = vmatprep.mubr.f32.mxu0 0.0
      %6957 = vmatmul.mubr.f32.gmra.mrb[0].mxu0 %v6761
      %v6958 = vpop.f32.mrb[0].mxu0
      %v6959 = vadd.f32 0.0, %v6958
      %v6960 = vpop.f32.mrb[0].mxu0
      %6961 = vmatprep.mubr.f32.mxu0 0.0
      %6962 = vmatmul.mubr.f32.gmra.mrb[0].mxu0 %v6764
      %v6963 = vpop.f32.mrb[0].mxu0
      %v6964 = vadd.f32 0.0, %v6963
      %v6965 = vpop.f32.mrb[0].mxu0
      %6966 = vmatprep.mubr.f32.mxu0 0.0
      %6967 = vmatmul.mubr.f32.gmra.mrb[0].mxu0 %v6767
      %v6968 = vpop.f32.mrb[0].mxu0
      %v6969 = vadd.f32 0.0, %v6968
      %v6970 = vpop.f32.mrb[0].mxu0
      %6971 = vmatprep.mubr.f32.mxu0 0.0
      %6972 = vmatmul.mubr.f32.gmra.mrb[0].mxu0 %v6770
      %v6973 = vpop.f32.mrb[0].mxu0
      %v6974 = vadd.f32 0.0, %v6973
      %v6975 = vpop.f32.mrb[0].mxu0
      %6976 = vmatprep.mubr.f32.mxu0 0.0
      %6977 = vmatmul.mubr.f32.gmra.mrb[0].mxu0 %v6773
      %v6978 = vpop.f32.mrb[0].mxu0
      %v6979 = vadd.f32 0.0, %v6978
      %v6980 = vpop.f32.mrb[0].mxu0
      %6981 = vmatprep.mubr.f32.mxu0 0.0
      %6982 = vmatmul.mubr.f32.gmra.mrb[0].mxu0 %v6776
      %v6983 = vpop.f32.mrb[0].mxu0
      %v6984 = vadd.f32 0.0, %v6983
      %v6985 = vpop.f32.mrb[0].mxu0
      %6986 = vmatprep.mubr.f32.mxu0 0.0
      %6987 = vmatmul.mubr.f32.gmra.mrb[0].mxu0 %v6779
      %v6988 = vpop.f32.mrb[0].mxu0
      %v6989 = vadd.f32 0.0, %v6988
      %v6990 = vpop.f32.mrb[0].mxu0
      %6991 = vmatprep.mubr.f32.mxu0 0.0
      %6992 = vmatmul.mubr.f32.gmra.mrb[0].mxu0 %v6782
      %v6993 = vpop.f32.mrb[0].mxu0
      %v6994 = vadd.f32 0.0, %v6993
      %v6995 = vpop.f32.mrb[0].mxu0
      %6996 = vmatprep.mubr.f32.mxu0 0.0
      %6997 = vmatmul.mubr.f32.gmra.mrb[0].mxu0 %v6785
      %v6998 = vpop.f32.mrb[0].mxu0
      %v6999 = vadd.f32 0.0, %v6998
      %v7000 = vpop.f32.mrb[0].mxu0
      %7001 = vmatprep.mubr.f32.mxu0 0.0
      %7002 = vmatmul.mubr.f32.gmra.mrb[0].mxu0 %v6788
      %v7003 = vpop.f32.mrb[0].mxu0
      %v7004 = vadd.f32 0.0, %v7003
      %v7005 = vpop.f32.mrb[0].mxu0
      %7006 = vmatprep.mubr.f32.mxu0 0.0
      %7007 = vmatmul.mubr.f32.gmra.mrb[0].mxu0 %v6791
      %v7008 = vpop.f32.mrb[0].mxu0
      %v7009 = vadd.f32 0.0, %v7008
      %v7010 = vpop.f32.mrb[0].mxu0
      %7011 = vmatprep.mubr.f32.mxu0 0.0
      %7012 = vmatmul.mubr.f32.gmra.mrb[0].mxu0 %v6794
      %v7013 = vpop.f32.mrb[0].mxu0
      %v7014 = vadd.f32 0.0, %v7013
      %v7015 = vpop.f32.mrb[0].mxu0
      %7016 = vmatprep.mubr.f32.mxu0 0.0
      %7017 = vmatmul.mubr.f32.gmra.mrb[0].mxu0 %v6797
      %v7018 = vpop.f32.mrb[0].mxu0
      %v7019 = vadd.f32 0.0, %v7018
      %v7020 = vpop.f32.mrb[0].mxu0
      %7021 = vmatprep.mubr.f32.mxu0 0.0
      %7022 = vmatmul.mubr.f32.gmra.mrb[0].mxu0 %v6800
      %v7023 = vpop.f32.mrb[0].mxu0
      %v7024 = vadd.f32 0.0, %v7023
      %v7025 = vpop.f32.mrb[0].mxu0
      %7026 = vdwg.mxu0
      %v7027 = vadd.f32 %v6642, %v6869
      %v7028 = vadd.f32 %v6643, %v6874
      %v7029 = vadd.f32 %v6644, %v6879
      %v7030 = vadd.f32 %v6645, %v6884
      %v7031 = vadd.f32 %v6646, %v6889
      %v7032 = vadd.f32 %v6647, %v6894
      %v7033 = vadd.f32 %v6648, %v6899
      %v7034 = vadd.f32 %v6649, %v6904
      %v7035 = vadd.f32 %v6650, %v6909
      %v7036 = vadd.f32 %v6651, %v6914
      %v7037 = vadd.f32 %v6652, %v6919
      %v7038 = vadd.f32 %v6653, %v6924
      %v7039 = vadd.f32 %v6654, %v6929
      %v7040 = vadd.f32 %v6655, %v6934
      %v7041 = vadd.f32 %v6656, %v6939
      %v7042 = vadd.f32 %v6657, %v6944
      %v7043 = vadd.f32 %v6658, %v6949
      %v7044 = vadd.f32 %v6659, %v6954
      %v7045 = vadd.f32 %v6660, %v6959
      %v7046 = vadd.f32 %v6661, %v6964
      %v7047 = vadd.f32 %v6662, %v6969
      %v7048 = vadd.f32 %v6663, %v6974
      %v7049 = vadd.f32 %v6664, %v6979
      %v7050 = vadd.f32 %v6665, %v6984
      %v7051 = vadd.f32 %v6666, %v6989
      %v7052 = vadd.f32 %v6667, %v6994
      %v7053 = vadd.f32 %v6668, %v6999
      %v7054 = vadd.f32 %v6669, %v7004
      %v7055 = vadd.f32 %v6670, %v7009
      %v7056 = vadd.f32 %v6671, %v7014
      %v7057 = vadd.f32 %v6672, %v7019
      %v7058 = vadd.f32 %v6673, %v7024
      %v7059 = vld [vmem:[%s2668 + $0x4] sm:$0xff]
      %v7060 = vld [vmem:[%s2668 + $0xc] sm:$0xff]
      %v7061 = vld [vmem:[%s2668 + $0x1c] sm:$0xff]
      %v7062 = vld [vmem:[%s2668 + $0x24] sm:$0xff]
      %v7063 = vld [vmem:[%s2668 + $0x34] sm:$0xff]
      %v7064 = vld [vmem:[%s2668 + $0x3c] sm:$0xff]
      %v7065 = vld [vmem:[%s2668 + $0x4c] sm:$0xff]
      %v7066 = vld [vmem:[%s2668 + $0x54] sm:$0xff]
      %v7067 = vld [vmem:[%s2668 + $0x64] sm:$0xff]
      %v7068 = vld [vmem:[%s2668 + $0x6c] sm:$0xff]
      %v7069 = vld [vmem:[%s2668 + $0x7c] sm:$0xff]
      %v7070 = vld [vmem:[%s2668 + $0x84] sm:$0xff]
      %v7071 = vld [vmem:[%s2668 + $0x94] sm:$0xff]
      %v7072 = vld [vmem:[%s2668 + $0x9c] sm:$0xff]
      %v7073 = vld [vmem:[%s2668 + $0xac] sm:$0xff]
      %v7074 = vld [vmem:[%s2668 + $0xb4] sm:$0xff]
      %v7075 = vld [vmem:[%s2668 + $0xc4] sm:$0xff]
      %v7076 = vld [vmem:[%s2668 + $0xcc] sm:$0xff]
      %v7077 = vld [vmem:[%s2668 + $0xdc] sm:$0xff]
      %v7078 = vld [vmem:[%s2668 + $0xe4] sm:$0xff]
      %v7079 = vld [vmem:[%s2668 + $0xf4] sm:$0xff]
      %v7080 = vld [vmem:[%s2668 + $0xfc] sm:$0xff]
      %v7081 = vld [vmem:[%s2668 + $0x10c] sm:$0xff]
      %v7082 = vld [vmem:[%s2668 + $0x114] sm:$0xff]
      %v7083 = vld [vmem:[%s2668 + $0x124] sm:$0xff]
      %v7084 = vld [vmem:[%s2668 + $0x12c] sm:$0xff]
      %v7085 = vld [vmem:[%s2668 + $0x13c] sm:$0xff]
      %v7086 = vld [vmem:[%s2668 + $0x144] sm:$0xff]
      %v7087 = vld [vmem:[%s2668 + $0x154] sm:$0xff]
      %v7088 = vld [vmem:[%s2668 + $0x15c] sm:$0xff]
      %v7089 = vld [vmem:[%s2668 + $0x16c] sm:$0xff]
      %v7090 = vld [vmem:[%s2668 + $0x174] sm:$0xff]
      %v7092 = vsel %vm4106, %v7059, 0
      %v7095 = vsel %vm4106, %v7060, 0
      %v7098 = vsel %vm4106, %v7061, 0
      %v7101 = vsel %vm4106, %v7062, 0
      %v7104 = vsel %vm4106, %v7063, 0
      %v7107 = vsel %vm4106, %v7064, 0
      %v7110 = vsel %vm4106, %v7065, 0
      %v7113 = vsel %vm4106, %v7066, 0
      %v7116 = vsel %vm4106, %v7067, 0
      %v7119 = vsel %vm4106, %v7068, 0
      %v7122 = vsel %vm4106, %v7069, 0
      %v7125 = vsel %vm4106, %v7070, 0
      %v7128 = vsel %vm4106, %v7071, 0
      %v7131 = vsel %vm4106, %v7072, 0
      %v7134 = vsel %vm4106, %v7073, 0
      %v7137 = vsel %vm4106, %v7074, 0
      %v7140 = vsel %vm4106, %v7075, 0
      %v7143 = vsel %vm4106, %v7076, 0
      %v7146 = vsel %vm4106, %v7077, 0
      %v7149 = vsel %vm4106, %v7078, 0
      %v7152 = vsel %vm4106, %v7079, 0
      %v7155 = vsel %vm4106, %v7080, 0
      %v7158 = vsel %vm4106, %v7081, 0
      %v7161 = vsel %vm4106, %v7082, 0
      %v7164 = vsel %vm4106, %v7083, 0
      %v7167 = vsel %vm4106, %v7084, 0
      %v7170 = vsel %vm4106, %v7085, 0
      %v7173 = vsel %vm4106, %v7086, 0
      %v7176 = vsel %vm4106, %v7087, 0
      %v7179 = vsel %vm4106, %v7088, 0
      %v7182 = vsel %vm4106, %v7089, 0
      %v7185 = vsel %vm4106, %v7090, 0
      %7187 = vmatprep.subr.mxu0 0.0
      %7188 = vmatpush1.msra.mxu0 %v4040
      %7189 = vmatprep.subr.mxu0 0.0
      %7190 = vmatpush1.msra.mxu0 0.0
      %7191 = vmatprep.subr.mxu0 0.0
      %7192 = vmatpush1.msra.mxu0 0.0
      %7193 = vmatprep.subr.mxu0 0.0
      %7194 = vmatpush1.msra.mxu0 0.0
      %7195 = vmatprep.subr.mxu0 0.0
      %7196 = vmatpush1.msra.mxu0 0.0
      %7197 = vmatprep.subr.mxu0 0.0
      %7198 = vmatpush1.msra.mxu0 0.0
      %7199 = vmatprep.subr.mxu0 0.0
      %7200 = vmatpush1.msra.mxu0 0.0
      %7201 = vmatprep.subr.mxu0 0.0
      %7202 = vmatpush1.msra.mxu0 0.0
      %7203 = vmatprep.subr.mxu0 0.0
      %7204 = vmatpush1.msra.mxu0 0.0
      %7205 = vmatprep.subr.mxu0 0.0
      %7206 = vmatpush1.msra.mxu0 0.0
      %7207 = vmatprep.subr.mxu0 0.0
      %7208 = vmatpush1.msra.mxu0 0.0
      %7209 = vmatprep.subr.mxu0 0.0
      %7210 = vmatpush1.msra.mxu0 0.0
      %7211 = vmatprep.subr.mxu0 0.0
      %7212 = vmatpush1.msra.mxu0 0.0
      %7213 = vmatprep.subr.mxu0 0.0
      %7214 = vmatpush1.msra.mxu0 0.0
      %7215 = vmatprep.subr.mxu0 0.0
      %7216 = vmatpush1.msra.mxu0 0.0
      %7217 = vmatprep.subr.mxu0 0.0
      %7218 = vmatpush1.msra.mxu0 0.0
      %7219 = vmatprep.subr.mxu0 0.0
      %7220 = vmatpush1.msra.mxu0 0.0
      %7221 = vmatprep.subr.mxu0 0.0
      %7222 = vmatpush1.msra.mxu0 0.0
      %7223 = vmatprep.subr.mxu0 0.0
      %7224 = vmatpush1.msra.mxu0 0.0
      %7225 = vmatprep.subr.mxu0 0.0
      %7226 = vmatpush1.msra.mxu0 0.0
      %7227 = vmatprep.subr.mxu0 0.0
      %7228 = vmatpush1.msra.mxu0 0.0
      %7229 = vmatprep.subr.mxu0 0.0
      %7230 = vmatpush1.msra.mxu0 0.0
      %7231 = vmatprep.subr.mxu0 0.0
      %7232 = vmatpush1.msra.mxu0 0.0
      %7233 = vmatprep.subr.mxu0 0.0
      %7234 = vmatpush1.msra.mxu0 0.0
      %7235 = vmatprep.subr.mxu0 0.0
      %7236 = vmatpush1.msra.mxu0 0.0
      %7237 = vmatprep.subr.mxu0 0.0
      %7238 = vmatpush1.msra.mxu0 0.0
      %7239 = vmatprep.subr.mxu0 0.0
      %7240 = vmatpush1.msra.mxu0 0.0
      %7241 = vmatprep.subr.mxu0 0.0
      %7242 = vmatpush1.msra.mxu0 0.0
      %7243 = vmatprep.subr.mxu0 0.0
      %7244 = vmatpush1.msra.mxu0 0.0
      %7245 = vmatprep.subr.mxu0 0.0
      %7246 = vmatpush1.msra.mxu0 0.0
      %7247 = vmatprep.subr.mxu0 0.0
      %7248 = vmatpush1.msra.mxu0 0.0
      %7249 = vmatprep.subr.mxu0 0.0
      %7250 = vmatpush1.msra.mxu0 0.0
      %7251 = vmatprep.mubr.f32.mxu0 0.0
      %7252 = vmatmul.mubr.f32.gmra.mrb[0].mxu0 %v7092
      %v7253 = vpop.f32.mrb[0].mxu0
      %v7254 = vadd.f32 0.0, %v7253
      %v7255 = vpop.f32.mrb[0].mxu0
      %7256 = vmatprep.mubr.f32.mxu0 0.0
      %7257 = vmatmul.mubr.f32.gmra.mrb[0].mxu0 %v7095
      %v7258 = vpop.f32.mrb[0].mxu0
      %v7259 = vadd.f32 0.0, %v7258
      %v7260 = vpop.f32.mrb[0].mxu0
      %7261 = vmatprep.mubr.f32.mxu0 0.0
      %7262 = vmatmul.mubr.f32.gmra.mrb[0].mxu0 %v7098
      %v7263 = vpop.f32.mrb[0].mxu0
      %v7264 = vadd.f32 0.0, %v7263
      %v7265 = vpop.f32.mrb[0].mxu0
      %7266 = vmatprep.mubr.f32.mxu0 0.0
      %7267 = vmatmul.mubr.f32.gmra.mrb[0].mxu0 %v7101
      %v7268 = vpop.f32.mrb[0].mxu0
      %v7269 = vadd.f32 0.0, %v7268
      %v7270 = vpop.f32.mrb[0].mxu0
      %7271 = vmatprep.mubr.f32.mxu0 0.0
      %7272 = vmatmul.mubr.f32.gmra.mrb[0].mxu0 %v7104
      %v7273 = vpop.f32.mrb[0].mxu0
      %v7274 = vadd.f32 0.0, %v7273
      %v7275 = vpop.f32.mrb[0].mxu0
      %7276 = vmatprep.mubr.f32.mxu0 0.0
      %7277 = vmatmul.mubr.f32.gmra.mrb[0].mxu0 %v7107
      %v7278 = vpop.f32.mrb[0].mxu0
      %v7279 = vadd.f32 0.0, %v7278
      %v7280 = vpop.f32.mrb[0].mxu0
      %7281 = vmatprep.mubr.f32.mxu0 0.0
      %7282 = vmatmul.mubr.f32.gmra.mrb[0].mxu0 %v7110
      %v7283 = vpop.f32.mrb[0].mxu0
      %v7284 = vadd.f32 0.0, %v7283
      %v7285 = vpop.f32.mrb[0].mxu0
      %7286 = vmatprep.mubr.f32.mxu0 0.0
      %7287 = vmatmul.mubr.f32.gmra.mrb[0].mxu0 %v7113
      %v7288 = vpop.f32.mrb[0].mxu0
      %v7289 = vadd.f32 0.0, %v7288
      %v7290 = vpop.f32.mrb[0].mxu0
      %7291 = vmatprep.mubr.f32.mxu0 0.0
      %7292 = vmatmul.mubr.f32.gmra.mrb[0].mxu0 %v7116
      %v7293 = vpop.f32.mrb[0].mxu0
      %v7294 = vadd.f32 0.0, %v7293
      %v7295 = vpop.f32.mrb[0].mxu0
      %7296 = vmatprep.mubr.f32.mxu0 0.0
      %7297 = vmatmul.mubr.f32.gmra.mrb[0].mxu0 %v7119
      %v7298 = vpop.f32.mrb[0].mxu0
      %v7299 = vadd.f32 0.0, %v7298
      %v7300 = vpop.f32.mrb[0].mxu0
      %7301 = vmatprep.mubr.f32.mxu0 0.0
      %7302 = vmatmul.mubr.f32.gmra.mrb[0].mxu0 %v7122
      %v7303 = vpop.f32.mrb[0].mxu0
      %v7304 = vadd.f32 0.0, %v7303
      %v7305 = vpop.f32.mrb[0].mxu0
      %7306 = vmatprep.mubr.f32.mxu0 0.0
      %7307 = vmatmul.mubr.f32.gmra.mrb[0].mxu0 %v7125
      %v7308 = vpop.f32.mrb[0].mxu0
      %v7309 = vadd.f32 0.0, %v7308
      %v7310 = vpop.f32.mrb[0].mxu0
      %7311 = vmatprep.mubr.f32.mxu0 0.0
      %7312 = vmatmul.mubr.f32.gmra.mrb[0].mxu0 %v7128
      %v7313 = vpop.f32.mrb[0].mxu0
      %v7314 = vadd.f32 0.0, %v7313
      %v7315 = vpop.f32.mrb[0].mxu0
      %7316 = vmatprep.mubr.f32.mxu0 0.0
      %7317 = vmatmul.mubr.f32.gmra.mrb[0].mxu0 %v7131
      %v7318 = vpop.f32.mrb[0].mxu0
      %v7319 = vadd.f32 0.0, %v7318
      %v7320 = vpop.f32.mrb[0].mxu0
      %7321 = vmatprep.mubr.f32.mxu0 0.0
      %7322 = vmatmul.mubr.f32.gmra.mrb[0].mxu0 %v7134
      %v7323 = vpop.f32.mrb[0].mxu0
      %v7324 = vadd.f32 0.0, %v7323
      %v7325 = vpop.f32.mrb[0].mxu0
      %7326 = vmatprep.mubr.f32.mxu0 0.0
      %7327 = vmatmul.mubr.f32.gmra.mrb[0].mxu0 %v7137
      %v7328 = vpop.f32.mrb[0].mxu0
      %v7329 = vadd.f32 0.0, %v7328
      %v7330 = vpop.f32.mrb[0].mxu0
      %7331 = vmatprep.mubr.f32.mxu0 0.0
      %7332 = vmatmul.mubr.f32.gmra.mrb[0].mxu0 %v7140
      %v7333 = vpop.f32.mrb[0].mxu0
      %v7334 = vadd.f32 0.0, %v7333
      %v7335 = vpop.f32.mrb[0].mxu0
      %7336 = vmatprep.mubr.f32.mxu0 0.0
      %7337 = vmatmul.mubr.f32.gmra.mrb[0].mxu0 %v7143
      %v7338 = vpop.f32.mrb[0].mxu0
      %v7339 = vadd.f32 0.0, %v7338
      %v7340 = vpop.f32.mrb[0].mxu0
      %7341 = vmatprep.mubr.f32.mxu0 0.0
      %7342 = vmatmul.mubr.f32.gmra.mrb[0].mxu0 %v7146
      %v7343 = vpop.f32.mrb[0].mxu0
      %v7344 = vadd.f32 0.0, %v7343
      %v7345 = vpop.f32.mrb[0].mxu0
      %7346 = vmatprep.mubr.f32.mxu0 0.0
      %7347 = vmatmul.mubr.f32.gmra.mrb[0].mxu0 %v7149
      %v7348 = vpop.f32.mrb[0].mxu0
      %v7349 = vadd.f32 0.0, %v7348
      %v7350 = vpop.f32.mrb[0].mxu0
      %7351 = vmatprep.mubr.f32.mxu0 0.0
      %7352 = vmatmul.mubr.f32.gmra.mrb[0].mxu0 %v7152
      %v7353 = vpop.f32.mrb[0].mxu0
      %v7354 = vadd.f32 0.0, %v7353
      %v7355 = vpop.f32.mrb[0].mxu0
      %7356 = vmatprep.mubr.f32.mxu0 0.0
      %7357 = vmatmul.mubr.f32.gmra.mrb[0].mxu0 %v7155
      %v7358 = vpop.f32.mrb[0].mxu0
      %v7359 = vadd.f32 0.0, %v7358
      %v7360 = vpop.f32.mrb[0].mxu0
      %7361 = vmatprep.mubr.f32.mxu0 0.0
      %7362 = vmatmul.mubr.f32.gmra.mrb[0].mxu0 %v7158
      %v7363 = vpop.f32.mrb[0].mxu0
      %v7364 = vadd.f32 0.0, %v7363
      %v7365 = vpop.f32.mrb[0].mxu0
      %7366 = vmatprep.mubr.f32.mxu0 0.0
      %7367 = vmatmul.mubr.f32.gmra.mrb[0].mxu0 %v7161
      %v7368 = vpop.f32.mrb[0].mxu0
      %v7369 = vadd.f32 0.0, %v7368
      %v7370 = vpop.f32.mrb[0].mxu0
      %7371 = vmatprep.mubr.f32.mxu0 0.0
      %7372 = vmatmul.mubr.f32.gmra.mrb[0].mxu0 %v7164
      %v7373 = vpop.f32.mrb[0].mxu0
      %v7374 = vadd.f32 0.0, %v7373
      %v7375 = vpop.f32.mrb[0].mxu0
      %7376 = vmatprep.mubr.f32.mxu0 0.0
      %7377 = vmatmul.mubr.f32.gmra.mrb[0].mxu0 %v7167
      %v7378 = vpop.f32.mrb[0].mxu0
      %v7379 = vadd.f32 0.0, %v7378
      %v7380 = vpop.f32.mrb[0].mxu0
      %7381 = vmatprep.mubr.f32.mxu0 0.0
      %7382 = vmatmul.mubr.f32.gmra.mrb[0].mxu0 %v7170
      %v7383 = vpop.f32.mrb[0].mxu0
      %v7384 = vadd.f32 0.0, %v7383
      %v7385 = vpop.f32.mrb[0].mxu0
      %7386 = vmatprep.mubr.f32.mxu0 0.0
      %7387 = vmatmul.mubr.f32.gmra.mrb[0].mxu0 %v7173
      %v7388 = vpop.f32.mrb[0].mxu0
      %v7389 = vadd.f32 0.0, %v7388
      %v7390 = vpop.f32.mrb[0].mxu0
      %7391 = vmatprep.mubr.f32.mxu0 0.0
      %7392 = vmatmul.mubr.f32.gmra.mrb[0].mxu0 %v7176
      %v7393 = vpop.f32.mrb[0].mxu0
      %v7394 = vadd.f32 0.0, %v7393
      %v7395 = vpop.f32.mrb[0].mxu0
      %7396 = vmatprep.mubr.f32.mxu0 0.0
      %7397 = vmatmul.mubr.f32.gmra.mrb[0].mxu0 %v7179
      %v7398 = vpop.f32.mrb[0].mxu0
      %v7399 = vadd.f32 0.0, %v7398
      %v7400 = vpop.f32.mrb[0].mxu0
      %7401 = vmatprep.mubr.f32.mxu0 0.0
      %7402 = vmatmul.mubr.f32.gmra.mrb[0].mxu0 %v7182
      %v7403 = vpop.f32.mrb[0].mxu0
      %v7404 = vadd.f32 0.0, %v7403
      %v7405 = vpop.f32.mrb[0].mxu0
      %7406 = vmatprep.mubr.f32.mxu0 0.0
      %7407 = vmatmul.mubr.f32.gmra.mrb[0].mxu0 %v7185
      %v7408 = vpop.f32.mrb[0].mxu0
      %v7409 = vadd.f32 0.0, %v7408
      %v7410 = vpop.f32.mrb[0].mxu0
      %7411 = vdwg.mxu0
      %v7412 = vadd.f32 %v7027, %v7254
      %v7413 = vadd.f32 %v7028, %v7259
      %v7414 = vadd.f32 %v7029, %v7264
      %v7415 = vadd.f32 %v7030, %v7269
      %v7416 = vadd.f32 %v7031, %v7274
      %v7417 = vadd.f32 %v7032, %v7279
      %v7418 = vadd.f32 %v7033, %v7284
      %v7419 = vadd.f32 %v7034, %v7289
      %v7420 = vadd.f32 %v7035, %v7294
      %v7421 = vadd.f32 %v7036, %v7299
      %v7422 = vadd.f32 %v7037, %v7304
      %v7423 = vadd.f32 %v7038, %v7309
      %v7424 = vadd.f32 %v7039, %v7314
      %v7425 = vadd.f32 %v7040, %v7319
      %v7426 = vadd.f32 %v7041, %v7324
      %v7427 = vadd.f32 %v7042, %v7329
      %v7428 = vadd.f32 %v7043, %v7334
      %v7429 = vadd.f32 %v7044, %v7339
      %v7430 = vadd.f32 %v7045, %v7344
      %v7431 = vadd.f32 %v7046, %v7349
      %v7432 = vadd.f32 %v7047, %v7354
      %v7433 = vadd.f32 %v7048, %v7359
      %v7434 = vadd.f32 %v7049, %v7364
      %v7435 = vadd.f32 %v7050, %v7369
      %v7436 = vadd.f32 %v7051, %v7374
      %v7437 = vadd.f32 %v7052, %v7379
      %v7438 = vadd.f32 %v7053, %v7384
      %v7439 = vadd.f32 %v7054, %v7389
      %v7440 = vadd.f32 %v7055, %v7394
      %v7441 = vadd.f32 %v7056, %v7399
      %v7442 = vadd.f32 %v7057, %v7404
      %v7443 = vadd.f32 %v7058, %v7409
      %v7445 = vlaneseq
      %v7446 = vshrl.u32 %v7445, 7
      %v7447 = vsub.s32 0, %v7446
      %v7448 = vrot.slane %v4041, %v7447
      %v7450 = vadd.f32 %v7412, %v7448
      %v7451 = vadd.f32 %v7413, %v7448
      %v7452 = vadd.f32 %v7414, %v7448
      %v7453 = vadd.f32 %v7415, %v7448
      %v7454 = vadd.f32 %v7416, %v7448
      %v7455 = vadd.f32 %v7417, %v7448
      %v7456 = vadd.f32 %v7418, %v7448
      %v7457 = vadd.f32 %v7419, %v7448
      %v7458 = vadd.f32 %v7420, %v7448
      %v7459 = vadd.f32 %v7421, %v7448
      %v7460 = vadd.f32 %v7422, %v7448
      %v7461 = vadd.f32 %v7423, %v7448
      %v7462 = vadd.f32 %v7424, %v7448
      %v7463 = vadd.f32 %v7425, %v7448
      %v7464 = vadd.f32 %v7426, %v7448
      %v7465 = vadd.f32 %v7427, %v7448
      %v7466 = vadd.f32 %v7428, %v7448
      %v7467 = vadd.f32 %v7429, %v7448
      %v7468 = vadd.f32 %v7430, %v7448
      %v7469 = vadd.f32 %v7431, %v7448
      %v7470 = vadd.f32 %v7432, %v7448
      %v7471 = vadd.f32 %v7433, %v7448
      %v7472 = vadd.f32 %v7434, %v7448
      %v7473 = vadd.f32 %v7435, %v7448
      %v7474 = vadd.f32 %v7436, %v7448
      %v7475 = vadd.f32 %v7437, %v7448
      %v7476 = vadd.f32 %v7438, %v7448
      %v7477 = vadd.f32 %v7439, %v7448
      %v7478 = vadd.f32 %v7440, %v7448
      %v7479 = vadd.f32 %v7441, %v7448
      %v7480 = vadd.f32 %v7442, %v7448
      %v7481 = vadd.f32 %v7443, %v7448
      %7514 = vrot.lane.b32.xlu0 %v7450, 8
      %v7515 = vpop.permute.xlu0 %7514
      %7516 = vrot.lane.b32.xlu0 %v7451, 8
      %v7517 = vpop.permute.xlu0 %7516
      %7518 = vrot.lane.b32.xlu0 %v7452, 8
      %v7519 = vpop.permute.xlu0 %7518
      %7520 = vrot.lane.b32.xlu0 %v7453, 8
      %v7521 = vpop.permute.xlu0 %7520
      %7522 = vrot.lane.b32.xlu0 %v7454, 8
      %v7523 = vpop.permute.xlu0 %7522
      %7524 = vrot.lane.b32.xlu0 %v7455, 8
      %v7525 = vpop.permute.xlu0 %7524
      %7526 = vrot.lane.b32.xlu0 %v7456, 8
      %v7527 = vpop.permute.xlu0 %7526
      %7528 = vrot.lane.b32.xlu0 %v7457, 8
      %v7529 = vpop.permute.xlu0 %7528
      %7530 = vrot.lane.b32.xlu0 %v7458, 8
      %v7531 = vpop.permute.xlu0 %7530
      %7532 = vrot.lane.b32.xlu0 %v7459, 8
      %v7533 = vpop.permute.xlu0 %7532
      %7534 = vrot.lane.b32.xlu0 %v7460, 8
      %v7535 = vpop.permute.xlu0 %7534
      %7536 = vrot.lane.b32.xlu0 %v7461, 8
      %v7537 = vpop.permute.xlu0 %7536
      %7538 = vrot.lane.b32.xlu0 %v7462, 8
      %v7539 = vpop.permute.xlu0 %7538
      %7540 = vrot.lane.b32.xlu0 %v7463, 8
      %v7541 = vpop.permute.xlu0 %7540
      %7542 = vrot.lane.b32.xlu0 %v7464, 8
      %v7543 = vpop.permute.xlu0 %7542
      %7544 = vrot.lane.b32.xlu0 %v7465, 8
      %v7545 = vpop.permute.xlu0 %7544
      %7546 = vrot.lane.b32.xlu0 %v7466, 8
      %v7547 = vpop.permute.xlu0 %7546
      %7548 = vrot.lane.b32.xlu0 %v7467, 8
      %v7549 = vpop.permute.xlu0 %7548
      %7550 = vrot.lane.b32.xlu0 %v7468, 8
      %v7551 = vpop.permute.xlu0 %7550
      %7552 = vrot.lane.b32.xlu0 %v7469, 8
      %v7553 = vpop.permute.xlu0 %7552
      %7554 = vrot.lane.b32.xlu0 %v7470, 8
      %v7555 = vpop.permute.xlu0 %7554
      %7556 = vrot.lane.b32.xlu0 %v7471, 8
      %v7557 = vpop.permute.xlu0 %7556
      %7558 = vrot.lane.b32.xlu0 %v7472, 8
      %v7559 = vpop.permute.xlu0 %7558
      %7560 = vrot.lane.b32.xlu0 %v7473, 8
      %v7561 = vpop.permute.xlu0 %7560
      %7562 = vrot.lane.b32.xlu0 %v7474, 8
      %v7563 = vpop.permute.xlu0 %7562
      %7564 = vrot.lane.b32.xlu0 %v7475, 8
      %v7565 = vpop.permute.xlu0 %7564
      %7566 = vrot.lane.b32.xlu0 %v7476, 8
      %v7567 = vpop.permute.xlu0 %7566
      %7568 = vrot.lane.b32.xlu0 %v7477, 8
      %v7569 = vpop.permute.xlu0 %7568
      %7570 = vrot.lane.b32.xlu0 %v7478, 8
      %v7571 = vpop.permute.xlu0 %7570
      %7572 = vrot.lane.b32.xlu0 %v7479, 8
      %v7573 = vpop.permute.xlu0 %7572
      %7574 = vrot.lane.b32.xlu0 %v7480, 8
      %v7575 = vpop.permute.xlu0 %7574
      %7576 = vrot.lane.b32.xlu0 %v7481, 8
      %v7577 = vpop.permute.xlu0 %7576
      %vm7610 = vcmask 97344
      %7611 = vst.msk [vmem:[%s294 + $0x2] sm:$0xff] %vm7610, %v7515
      %7612 = vst.msk [vmem:[%s294 + $0xa] sm:$0xff] %vm7610, %v7517
      %7613 = vst.msk [vmem:[%s294 + $0x1a] sm:$0xff] %vm7610, %v7519
      %7614 = vst.msk [vmem:[%s294 + $0x22] sm:$0xff] %vm7610, %v7521
      %7615 = vst.msk [vmem:[%s294 + $0x32] sm:$0xff] %vm7610, %v7523
      %7616 = vst.msk [vmem:[%s294 + $0x3a] sm:$0xff] %vm7610, %v7525
      %7617 = vst.msk [vmem:[%s294 + $0x4a] sm:$0xff] %vm7610, %v7527
      %7618 = vst.msk [vmem:[%s294 + $0x52] sm:$0xff] %vm7610, %v7529
      %7619 = vst.msk [vmem:[%s294 + $0x62] sm:$0xff] %vm7610, %v7531
      %7620 = vst.msk [vmem:[%s294 + $0x6a] sm:$0xff] %vm7610, %v7533
      %7621 = vst.msk [vmem:[%s294 + $0x7a] sm:$0xff] %vm7610, %v7535
      %7622 = vst.msk [vmem:[%s294 + $0x82] sm:$0xff] %vm7610, %v7537
      %7623 = vst.msk [vmem:[%s294 + $0x92] sm:$0xff] %vm7610, %v7539
      %7624 = vst.msk [vmem:[%s294 + $0x9a] sm:$0xff] %vm7610, %v7541
      %7625 = vst.msk [vmem:[%s294 + $0xaa] sm:$0xff] %vm7610, %v7543
      %7626 = vst.msk [vmem:[%s294 + $0xb2] sm:$0xff] %vm7610, %v7545
      %7627 = vst.msk [vmem:[%s294 + $0xc2] sm:$0xff] %vm7610, %v7547
      %7628 = vst.msk [vmem:[%s294 + $0xca] sm:$0xff] %vm7610, %v7549
      %7629 = vst.msk [vmem:[%s294 + $0xda] sm:$0xff] %vm7610, %v7551
      %7630 = vst.msk [vmem:[%s294 + $0xe2] sm:$0xff] %vm7610, %v7553
      %7631 = vst.msk [vmem:[%s294 + $0xf2] sm:$0xff] %vm7610, %v7555
      %7632 = vst.msk [vmem:[%s294 + $0xfa] sm:$0xff] %vm7610, %v7557
      %7633 = vst.msk [vmem:[%s294 + $0x10a] sm:$0xff] %vm7610, %v7559
      %7634 = vst.msk [vmem:[%s294 + $0x112] sm:$0xff] %vm7610, %v7561
      %7635 = vst.msk [vmem:[%s294 + $0x122] sm:$0xff] %vm7610, %v7563
      %7636 = vst.msk [vmem:[%s294 + $0x12a] sm:$0xff] %vm7610, %v7565
      %7637 = vst.msk [vmem:[%s294 + $0x13a] sm:$0xff] %vm7610, %v7567
      %7638 = vst.msk [vmem:[%s294 + $0x142] sm:$0xff] %vm7610, %v7569
      %7639 = vst.msk [vmem:[%s294 + $0x152] sm:$0xff] %vm7610, %v7571
      %7640 = vst.msk [vmem:[%s294 + $0x15a] sm:$0xff] %vm7610, %v7573
      %7641 = vst.msk [vmem:[%s294 + $0x16a] sm:$0xff] %vm7610, %v7575
      %7642 = vst.msk [vmem:[%s294 + $0x172] sm:$0xff] %vm7610, %v7577
      %v7643 = vld [vmem:[%s294 + $0x2] sm:$0xff]
      %v7644 = vld [vmem:[%s294 + $0xa] sm:$0xff]
      %v7645 = vld [vmem:[%s294 + $0x1a] sm:$0xff]
      %v7646 = vld [vmem:[%s294 + $0x22] sm:$0xff]
      %v7647 = vld [vmem:[%s294 + $0x32] sm:$0xff]
      %v7648 = vld [vmem:[%s294 + $0x3a] sm:$0xff]
      %v7649 = vld [vmem:[%s294 + $0x4a] sm:$0xff]
      %v7650 = vld [vmem:[%s294 + $0x52] sm:$0xff]
      %v7651 = vld [vmem:[%s294 + $0x62] sm:$0xff]
      %v7652 = vld [vmem:[%s294 + $0x6a] sm:$0xff]
      %v7653 = vld [vmem:[%s294 + $0x7a] sm:$0xff]
      %v7654 = vld [vmem:[%s294 + $0x82] sm:$0xff]
      %v7655 = vld [vmem:[%s294 + $0x92] sm:$0xff]
      %v7656 = vld [vmem:[%s294 + $0x9a] sm:$0xff]
      %v7657 = vld [vmem:[%s294 + $0xaa] sm:$0xff]
      %v7658 = vld [vmem:[%s294 + $0xb2] sm:$0xff]
      %v7659 = vld [vmem:[%s294 + $0xc2] sm:$0xff]
      %v7660 = vld [vmem:[%s294 + $0xca] sm:$0xff]
      %v7661 = vld [vmem:[%s294 + $0xda] sm:$0xff]
      %v7662 = vld [vmem:[%s294 + $0xe2] sm:$0xff]
      %v7663 = vld [vmem:[%s294 + $0xf2] sm:$0xff]
      %v7664 = vld [vmem:[%s294 + $0xfa] sm:$0xff]
      %v7665 = vld [vmem:[%s294 + $0x10a] sm:$0xff]
      %v7666 = vld [vmem:[%s294 + $0x112] sm:$0xff]
      %v7667 = vld [vmem:[%s294 + $0x122] sm:$0xff]
      %v7668 = vld [vmem:[%s294 + $0x12a] sm:$0xff]
      %v7669 = vld [vmem:[%s294 + $0x13a] sm:$0xff]
      %v7670 = vld [vmem:[%s294 + $0x142] sm:$0xff]
      %v7671 = vld [vmem:[%s294 + $0x152] sm:$0xff]
      %v7672 = vld [vmem:[%s294 + $0x15a] sm:$0xff]
      %v7673 = vld [vmem:[%s294 + $0x16a] sm:$0xff]
      %v7674 = vld [vmem:[%s294 + $0x172] sm:$0xff]
      %v7675 = vld [vmem:[%s5] sm:$0xff]
      %v7676 = vld [vmem:[%s5 + $0x8] sm:$0xf]
      %v7677 = vld [vmem:[%s6] sm:$0x1]
      %v7679 = vlaneseq
      %v7680 = vshrl.u32 %v7679, 7
      %v7681 = vsub.s32 0, %v7680
      %v7682 = vrot.slane %v7677, %v7681
      %v7685 = vsel %vm279, %v7643, 0
      %v7688 = vsel %vm279, %v7644, 0
      %v7691 = vsel %vm279, %v7645, 0
      %v7694 = vsel %vm279, %v7646, 0
      %v7697 = vsel %vm279, %v7647, 0
      %v7700 = vsel %vm279, %v7648, 0
      %v7703 = vsel %vm279, %v7649, 0
      %v7706 = vsel %vm279, %v7650, 0
      %v7709 = vsel %vm279, %v7651, 0
      %v7712 = vsel %vm279, %v7652, 0
      %v7715 = vsel %vm279, %v7653, 0
      %v7718 = vsel %vm279, %v7654, 0
      %v7721 = vsel %vm279, %v7655, 0
      %v7724 = vsel %vm279, %v7656, 0
      %v7727 = vsel %vm279, %v7657, 0
      %v7730 = vsel %vm279, %v7658, 0
      %v7733 = vsel %vm279, %v7659, 0
      %v7736 = vsel %vm279, %v7660, 0
      %v7739 = vsel %vm279, %v7661, 0
      %v7742 = vsel %vm279, %v7662, 0
      %v7745 = vsel %vm279, %v7663, 0
      %v7748 = vsel %vm279, %v7664, 0
      %v7751 = vsel %vm279, %v7665, 0
      %v7754 = vsel %vm279, %v7666, 0
      %v7757 = vsel %vm279, %v7667, 0
      %v7760 = vsel %vm279, %v7668, 0
      %v7763 = vsel %vm279, %v7669, 0
      %v7766 = vsel %vm279, %v7670, 0
      %v7769 = vsel %vm279, %v7671, 0
      %v7772 = vsel %vm279, %v7672, 0
      %v7775 = vsel %vm279, %v7673, 0
      %v7778 = vsel %vm279, %v7674, 0
      %v7781 = vsel %vm563, %v7676, 0
      %7783 = vmatprep.subr.mxu0 0.0
      %7784 = vmatpush1.msra.mxu0 %v7675
      %7785 = vmatprep.subr.mxu0 0.0
      %7786 = vmatpush1.msra.mxu0 %v7781
      %7787 = vmatprep.subr.mxu0 0.0
      %7788 = vmatpush1.msra.mxu0 0.0
      %7789 = vmatprep.subr.mxu0 0.0
      %7790 = vmatpush1.msra.mxu0 0.0
      %7791 = vmatprep.subr.mxu0 0.0
      %7792 = vmatpush1.msra.mxu0 0.0
      %7793 = vmatprep.subr.mxu0 0.0
      %7794 = vmatpush1.msra.mxu0 0.0
      %7795 = vmatprep.subr.mxu0 0.0
      %7796 = vmatpush1.msra.mxu0 0.0
      %7797 = vmatprep.subr.mxu0 0.0
      %7798 = vmatpush1.msra.mxu0 0.0
      %7799 = vmatprep.subr.mxu0 0.0
      %7800 = vmatpush1.msra.mxu0 0.0
      %7801 = vmatprep.subr.mxu0 0.0
      %7802 = vmatpush1.msra.mxu0 0.0
      %7803 = vmatprep.subr.mxu0 0.0
      %7804 = vmatpush1.msra.mxu0 0.0
      %7805 = vmatprep.subr.mxu0 0.0
      %7806 = vmatpush1.msra.mxu0 0.0
      %7807 = vmatprep.subr.mxu0 0.0
      %7808 = vmatpush1.msra.mxu0 0.0
      %7809 = vmatprep.subr.mxu0 0.0
      %7810 = vmatpush1.msra.mxu0 0.0
      %7811 = vmatprep.subr.mxu0 0.0
      %7812 = vmatpush1.msra.mxu0 0.0
      %7813 = vmatprep.subr.mxu0 0.0
      %7814 = vmatpush1.msra.mxu0 0.0
      %7815 = vmatprep.subr.mxu0 0.0
      %7816 = vmatpush1.msra.mxu0 0.0
      %7817 = vmatprep.subr.mxu0 0.0
      %7818 = vmatpush1.msra.mxu0 0.0
      %7819 = vmatprep.subr.mxu0 0.0
      %7820 = vmatpush1.msra.mxu0 0.0
      %7821 = vmatprep.subr.mxu0 0.0
      %7822 = vmatpush1.msra.mxu0 0.0
      %7823 = vmatprep.subr.mxu0 0.0
      %7824 = vmatpush1.msra.mxu0 0.0
      %7825 = vmatprep.subr.mxu0 0.0
      %7826 = vmatpush1.msra.mxu0 0.0
      %7827 = vmatprep.subr.mxu0 0.0
      %7828 = vmatpush1.msra.mxu0 0.0
      %7829 = vmatprep.subr.mxu0 0.0
      %7830 = vmatpush1.msra.mxu0 0.0
      %7831 = vmatprep.subr.mxu0 0.0
      %7832 = vmatpush1.msra.mxu0 0.0
      %7833 = vmatprep.subr.mxu0 0.0
      %7834 = vmatpush1.msra.mxu0 0.0
      %7835 = vmatprep.subr.mxu0 0.0
      %7836 = vmatpush1.msra.mxu0 0.0
      %7837 = vmatprep.subr.mxu0 0.0
      %7838 = vmatpush1.msra.mxu0 0.0
      %7839 = vmatprep.subr.mxu0 0.0
      %7840 = vmatpush1.msra.mxu0 0.0
      %7841 = vmatprep.subr.mxu0 0.0
      %7842 = vmatpush1.msra.mxu0 0.0
      %7843 = vmatprep.subr.mxu0 0.0
      %7844 = vmatpush1.msra.mxu0 0.0
      %7845 = vmatprep.subr.mxu0 0.0
      %7846 = vmatpush1.msra.mxu0 0.0
      %7847 = vmatprep.mubr.f32.mxu0 0.0
      %7848 = vmatmul.mubr.f32.gmra.mrb[0].mxu0 %v7685
      %v7849 = vpop.f32.mrb[0].mxu0
      %v7850 = vadd.f32 %v7682, %v7849
      %v7851 = vpop.f32.mrb[0].mxu0
      %7852 = vmatprep.mubr.f32.mxu0 0.0
      %7853 = vmatmul.mubr.f32.gmra.mrb[0].mxu0 %v7688
      %v7854 = vpop.f32.mrb[0].mxu0
      %v7855 = vadd.f32 %v7682, %v7854
      %v7856 = vpop.f32.mrb[0].mxu0
      %7857 = vmatprep.mubr.f32.mxu0 0.0
      %7858 = vmatmul.mubr.f32.gmra.mrb[0].mxu0 %v7691
      %v7859 = vpop.f32.mrb[0].mxu0
      %v7860 = vadd.f32 %v7682, %v7859
      %v7861 = vpop.f32.mrb[0].mxu0
      %7862 = vmatprep.mubr.f32.mxu0 0.0
      %7863 = vmatmul.mubr.f32.gmra.mrb[0].mxu0 %v7694
      %v7864 = vpop.f32.mrb[0].mxu0
      %v7865 = vadd.f32 %v7682, %v7864
      %v7866 = vpop.f32.mrb[0].mxu0
      %7867 = vmatprep.mubr.f32.mxu0 0.0
      %7868 = vmatmul.mubr.f32.gmra.mrb[0].mxu0 %v7697
      %v7869 = vpop.f32.mrb[0].mxu0
      %v7870 = vadd.f32 %v7682, %v7869
      %v7871 = vpop.f32.mrb[0].mxu0
      %7872 = vmatprep.mubr.f32.mxu0 0.0
      %7873 = vmatmul.mubr.f32.gmra.mrb[0].mxu0 %v7700
      %v7874 = vpop.f32.mrb[0].mxu0
      %v7875 = vadd.f32 %v7682, %v7874
      %v7876 = vpop.f32.mrb[0].mxu0
      %7877 = vmatprep.mubr.f32.mxu0 0.0
      %7878 = vmatmul.mubr.f32.gmra.mrb[0].mxu0 %v7703
      %v7879 = vpop.f32.mrb[0].mxu0
      %v7880 = vadd.f32 %v7682, %v7879
      %v7881 = vpop.f32.mrb[0].mxu0
      %7882 = vmatprep.mubr.f32.mxu0 0.0
      %7883 = vmatmul.mubr.f32.gmra.mrb[0].mxu0 %v7706
      %v7884 = vpop.f32.mrb[0].mxu0
      %v7885 = vadd.f32 %v7682, %v7884
      %v7886 = vpop.f32.mrb[0].mxu0
      %7887 = vmatprep.mubr.f32.mxu0 0.0
      %7888 = vmatmul.mubr.f32.gmra.mrb[0].mxu0 %v7709
      %v7889 = vpop.f32.mrb[0].mxu0
      %v7890 = vadd.f32 %v7682, %v7889
      %v7891 = vpop.f32.mrb[0].mxu0
      %7892 = vmatprep.mubr.f32.mxu0 0.0
      %7893 = vmatmul.mubr.f32.gmra.mrb[0].mxu0 %v7712
      %v7894 = vpop.f32.mrb[0].mxu0
      %v7895 = vadd.f32 %v7682, %v7894
      %v7896 = vpop.f32.mrb[0].mxu0
      %7897 = vmatprep.mubr.f32.mxu0 0.0
      %7898 = vmatmul.mubr.f32.gmra.mrb[0].mxu0 %v7715
      %v7899 = vpop.f32.mrb[0].mxu0
      %v7900 = vadd.f32 %v7682, %v7899
      %v7901 = vpop.f32.mrb[0].mxu0
      %7902 = vmatprep.mubr.f32.mxu0 0.0
      %7903 = vmatmul.mubr.f32.gmra.mrb[0].mxu0 %v7718
      %v7904 = vpop.f32.mrb[0].mxu0
      %v7905 = vadd.f32 %v7682, %v7904
      %v7906 = vpop.f32.mrb[0].mxu0
      %7907 = vmatprep.mubr.f32.mxu0 0.0
      %7908 = vmatmul.mubr.f32.gmra.mrb[0].mxu0 %v7721
      %v7909 = vpop.f32.mrb[0].mxu0
      %v7910 = vadd.f32 %v7682, %v7909
      %v7911 = vpop.f32.mrb[0].mxu0
      %7912 = vmatprep.mubr.f32.mxu0 0.0
      %7913 = vmatmul.mubr.f32.gmra.mrb[0].mxu0 %v7724
      %v7914 = vpop.f32.mrb[0].mxu0
      %v7915 = vadd.f32 %v7682, %v7914
      %v7916 = vpop.f32.mrb[0].mxu0
      %7917 = vmatprep.mubr.f32.mxu0 0.0
      %7918 = vmatmul.mubr.f32.gmra.mrb[0].mxu0 %v7727
      %v7919 = vpop.f32.mrb[0].mxu0
      %v7920 = vadd.f32 %v7682, %v7919
      %v7921 = vpop.f32.mrb[0].mxu0
      %7922 = vmatprep.mubr.f32.mxu0 0.0
      %7923 = vmatmul.mubr.f32.gmra.mrb[0].mxu0 %v7730
      %v7924 = vpop.f32.mrb[0].mxu0
      %v7925 = vadd.f32 %v7682, %v7924
      %v7926 = vpop.f32.mrb[0].mxu0
      %7927 = vmatprep.mubr.f32.mxu0 0.0
      %7928 = vmatmul.mubr.f32.gmra.mrb[0].mxu0 %v7733
      %v7929 = vpop.f32.mrb[0].mxu0
      %v7930 = vadd.f32 %v7682, %v7929
      %v7931 = vpop.f32.mrb[0].mxu0
      %7932 = vmatprep.mubr.f32.mxu0 0.0
      %7933 = vmatmul.mubr.f32.gmra.mrb[0].mxu0 %v7736
      %v7934 = vpop.f32.mrb[0].mxu0
      %v7935 = vadd.f32 %v7682, %v7934
      %v7936 = vpop.f32.mrb[0].mxu0
      %7937 = vmatprep.mubr.f32.mxu0 0.0
      %7938 = vmatmul.mubr.f32.gmra.mrb[0].mxu0 %v7739
      %v7939 = vpop.f32.mrb[0].mxu0
      %v7940 = vadd.f32 %v7682, %v7939
      %v7941 = vpop.f32.mrb[0].mxu0
      %7942 = vmatprep.mubr.f32.mxu0 0.0
      %7943 = vmatmul.mubr.f32.gmra.mrb[0].mxu0 %v7742
      %v7944 = vpop.f32.mrb[0].mxu0
      %v7945 = vadd.f32 %v7682, %v7944
      %v7946 = vpop.f32.mrb[0].mxu0
      %7947 = vmatprep.mubr.f32.mxu0 0.0
      %7948 = vmatmul.mubr.f32.gmra.mrb[0].mxu0 %v7745
      %v7949 = vpop.f32.mrb[0].mxu0
      %v7950 = vadd.f32 %v7682, %v7949
      %v7951 = vpop.f32.mrb[0].mxu0
      %7952 = vmatprep.mubr.f32.mxu0 0.0
      %7953 = vmatmul.mubr.f32.gmra.mrb[0].mxu0 %v7748
      %v7954 = vpop.f32.mrb[0].mxu0
      %v7955 = vadd.f32 %v7682, %v7954
      %v7956 = vpop.f32.mrb[0].mxu0
      %7957 = vmatprep.mubr.f32.mxu0 0.0
      %7958 = vmatmul.mubr.f32.gmra.mrb[0].mxu0 %v7751
      %v7959 = vpop.f32.mrb[0].mxu0
      %v7960 = vadd.f32 %v7682, %v7959
      %v7961 = vpop.f32.mrb[0].mxu0
      %7962 = vmatprep.mubr.f32.mxu0 0.0
      %7963 = vmatmul.mubr.f32.gmra.mrb[0].mxu0 %v7754
      %v7964 = vpop.f32.mrb[0].mxu0
      %v7965 = vadd.f32 %v7682, %v7964
      %v7966 = vpop.f32.mrb[0].mxu0
      %7967 = vmatprep.mubr.f32.mxu0 0.0
      %7968 = vmatmul.mubr.f32.gmra.mrb[0].mxu0 %v7757
      %v7969 = vpop.f32.mrb[0].mxu0
      %v7970 = vadd.f32 %v7682, %v7969
      %v7971 = vpop.f32.mrb[0].mxu0
      %7972 = vmatprep.mubr.f32.mxu0 0.0
      %7973 = vmatmul.mubr.f32.gmra.mrb[0].mxu0 %v7760
      %v7974 = vpop.f32.mrb[0].mxu0
      %v7975 = vadd.f32 %v7682, %v7974
      %v7976 = vpop.f32.mrb[0].mxu0
      %7977 = vmatprep.mubr.f32.mxu0 0.0
      %7978 = vmatmul.mubr.f32.gmra.mrb[0].mxu0 %v7763
      %v7979 = vpop.f32.mrb[0].mxu0
      %v7980 = vadd.f32 %v7682, %v7979
      %v7981 = vpop.f32.mrb[0].mxu0
      %7982 = vmatprep.mubr.f32.mxu0 0.0
      %7983 = vmatmul.mubr.f32.gmra.mrb[0].mxu0 %v7766
      %v7984 = vpop.f32.mrb[0].mxu0
      %v7985 = vadd.f32 %v7682, %v7984
      %v7986 = vpop.f32.mrb[0].mxu0
      %7987 = vmatprep.mubr.f32.mxu0 0.0
      %7988 = vmatmul.mubr.f32.gmra.mrb[0].mxu0 %v7769
      %v7989 = vpop.f32.mrb[0].mxu0
      %v7990 = vadd.f32 %v7682, %v7989
      %v7991 = vpop.f32.mrb[0].mxu0
      %7992 = vmatprep.mubr.f32.mxu0 0.0
      %7993 = vmatmul.mubr.f32.gmra.mrb[0].mxu0 %v7772
      %v7994 = vpop.f32.mrb[0].mxu0
      %v7995 = vadd.f32 %v7682, %v7994
      %v7996 = vpop.f32.mrb[0].mxu0
      %7997 = vmatprep.mubr.f32.mxu0 0.0
      %7998 = vmatmul.mubr.f32.gmra.mrb[0].mxu0 %v7775
      %v7999 = vpop.f32.mrb[0].mxu0
      %v8000 = vadd.f32 %v7682, %v7999
      %v8001 = vpop.f32.mrb[0].mxu0
      %8002 = vmatprep.mubr.f32.mxu0 0.0
      %8003 = vmatmul.mubr.f32.gmra.mrb[0].mxu0 %v7778
      %v8004 = vpop.f32.mrb[0].mxu0
      %v8005 = vadd.f32 %v7682, %v8004
      %v8006 = vpop.f32.mrb[0].mxu0
      %8007 = vdwg.mxu0
      %v8008 = vadd.f32 %v7850, %v328
      %v8009 = vadd.f32 %v7855, %v329
      %v8010 = vadd.f32 %v7860, %v330
      %v8011 = vadd.f32 %v7865, %v331
      %v8012 = vadd.f32 %v7870, %v332
      %v8013 = vadd.f32 %v7875, %v333
      %v8014 = vadd.f32 %v7880, %v334
      %v8015 = vadd.f32 %v7885, %v335
      %v8016 = vadd.f32 %v7890, %v336
      %v8017 = vadd.f32 %v7895, %v337
      %v8018 = vadd.f32 %v7900, %v338
      %v8019 = vadd.f32 %v7905, %v339
      %v8020 = vadd.f32 %v7910, %v340
      %v8021 = vadd.f32 %v7915, %v341
      %v8022 = vadd.f32 %v7920, %v342
      %v8023 = vadd.f32 %v7925, %v343
      %v8024 = vadd.f32 %v7930, %v344
      %v8025 = vadd.f32 %v7935, %v345
      %v8026 = vadd.f32 %v7940, %v346
      %v8027 = vadd.f32 %v7945, %v347
      %v8028 = vadd.f32 %v7950, %v348
      %v8029 = vadd.f32 %v7955, %v349
      %v8030 = vadd.f32 %v7960, %v350
      %v8031 = vadd.f32 %v7965, %v351
      %v8032 = vadd.f32 %v7970, %v352
      %v8033 = vadd.f32 %v7975, %v353
      %v8034 = vadd.f32 %v7980, %v354
      %v8035 = vadd.f32 %v7985, %v355
      %v8036 = vadd.f32 %v7990, %v356
      %v8037 = vadd.f32 %v7995, %v357
      %v8038 = vadd.f32 %v8000, %v358
      %v8039 = vadd.f32 %v8005, %v359
      %8040 = vst.msk [vmem:[%s278] sm:$0xff] %vm360, %v8008
      %8041 = vst.msk [vmem:[%s278 + $0x8] sm:$0xff] %vm360, %v8009
      %8042 = vst.msk [vmem:[%s278 + $0x10] sm:$0xff] %vm360, %v8010
      %8043 = vst.msk [vmem:[%s278 + $0x18] sm:$0xff] %vm360, %v8011
      %8044 = vst.msk [vmem:[%s278 + $0x20] sm:$0xff] %vm360, %v8012
      %8045 = vst.msk [vmem:[%s278 + $0x28] sm:$0xff] %vm360, %v8013
      %8046 = vst.msk [vmem:[%s278 + $0x30] sm:$0xff] %vm360, %v8014
      %8047 = vst.msk [vmem:[%s278 + $0x38] sm:$0xff] %vm360, %v8015
      %8048 = vst.msk [vmem:[%s278 + $0x40] sm:$0xff] %vm360, %v8016
      %8049 = vst.msk [vmem:[%s278 + $0x48] sm:$0xff] %vm360, %v8017
      %8050 = vst.msk [vmem:[%s278 + $0x50] sm:$0xff] %vm360, %v8018
      %8051 = vst.msk [vmem:[%s278 + $0x58] sm:$0xff] %vm360, %v8019
      %8052 = vst.msk [vmem:[%s278 + $0x60] sm:$0xff] %vm360, %v8020
      %8053 = vst.msk [vmem:[%s278 + $0x68] sm:$0xff] %vm360, %v8021
      %8054 = vst.msk [vmem:[%s278 + $0x70] sm:$0xff] %vm360, %v8022
      %8055 = vst.msk [vmem:[%s278 + $0x78] sm:$0xff] %vm360, %v8023
      %8056 = vst.msk [vmem:[%s278 + $0x80] sm:$0xff] %vm360, %v8024
      %8057 = vst.msk [vmem:[%s278 + $0x88] sm:$0xff] %vm360, %v8025
      %8058 = vst.msk [vmem:[%s278 + $0x90] sm:$0xff] %vm360, %v8026
      %8059 = vst.msk [vmem:[%s278 + $0x98] sm:$0xff] %vm360, %v8027
      %8060 = vst.msk [vmem:[%s278 + $0xa0] sm:$0xff] %vm360, %v8028
      %8061 = vst.msk [vmem:[%s278 + $0xa8] sm:$0xff] %vm360, %v8029
      %8062 = vst.msk [vmem:[%s278 + $0xb0] sm:$0xff] %vm360, %v8030
      %8063 = vst.msk [vmem:[%s278 + $0xb8] sm:$0xff] %vm360, %v8031
      %8064 = vst.msk [vmem:[%s278 + $0xc0] sm:$0xff] %vm360, %v8032
      %8065 = vst.msk [vmem:[%s278 + $0xc8] sm:$0xff] %vm360, %v8033
      %8066 = vst.msk [vmem:[%s278 + $0xd0] sm:$0xff] %vm360, %v8034
      %8067 = vst.msk [vmem:[%s278 + $0xd8] sm:$0xff] %vm360, %v8035
      %8068 = vst.msk [vmem:[%s278 + $0xe0] sm:$0xff] %vm360, %v8036
      %8069 = vst.msk [vmem:[%s278 + $0xe8] sm:$0xff] %vm360, %v8037
      %8070 = vst.msk [vmem:[%s278 + $0xf0] sm:$0xff] %vm360, %v8038
      %8071 = vst.msk [vmem:[%s278 + $0xf8] sm:$0xff] %vm360, %v8039
      %p8072 = scmp.lt.s32.totalorder %s18, 1
      %s8073 = scalar_select %p8072, %s18, 1
      %s8074 = smul.addr %s8073, 32
      %s8075 = smul.addr %s8074, 8
      %s8076 = scalar_lea.vmem %s7, %s8075
      // Predicated region
      $region49: #{tpu_custom_call.1} parent=47 // pred_check
        %p8077 = pneg %p188
      $region50: #{tpu_custom_call.1} parent=47 // pred_check_branch
        %8079 = sbr.rel (%p8077) target = $region52
      $region51: #{tpu_custom_call.1} parent=47 // pred_region
        _
      $region52: #{tpu_custom_call.1} parent=47 // pred_fallthru
        _
    $region48: #{tpu_custom_call.1} parent=5 // pred_fallthru
      _
    %p8080 = scmp.le.s32.totalorder 2, %s13
    // Predicated region
    $region53: #{tpu_custom_call.1} parent=5 // pred_check
      %p8081 = pneg %p8080
    $region54: #{tpu_custom_call.1} parent=5 // pred_check_branch
      %8083 = sbr.rel (%p8081) target = $region56
    $region55: #{tpu_custom_call.1} parent=5 // pred_region
      %s8084 = ssub.s32 %s13, 2
      // Predicated region
      $region57: #{tpu_custom_call.1} parent=55 // pred_check
        %p8085 = pneg %p194
      $region58: #{tpu_custom_call.1} parent=55 // pred_check_branch
        %8087 = sbr.rel (%p8085) target = $region60
      $region59: #{tpu_custom_call.1} parent=55 // pred_region
        %p8088 = scmp.lt.s32.totalorder %s19, 1
        %s8089 = scalar_select %p8088, %s19, 1
        %s8090 = smul.addr %s8089, 32
        %s8091 = smul.addr %s8090, 8
        %s8092 = scalar_lea.vmem %s7, %s8091
      $region60: #{tpu_custom_call.1} parent=55 // pred_fallthru
        _
    $region56: #{tpu_custom_call.1} parent=5 // pred_fallthru
      _
  $region6: #{tpu_custom_call.1} parent=0 // loop_footer
    %s17 = sadd.s32 1, %s13
  $region7: #{tpu_custom_call.1} parent=0 // loop_footer_branch
    %12 = sbr.rel target = $region3
  $region8: #{tpu_custom_call.1} parent=0 // loop_exit
    _

</llo_original>
